<compile_context>
chip_gen: v7x
topology: tpu7x:2x2x1
jax: 0.10.0
libtpu: 0.0.40
codegen_flags: <defaults>
</compile_context>

<pallas_src>
import functools

import jax
import jax.numpy as jnp
from jax import lax
from jax.experimental import pallas as pl
from jax.experimental.pallas import tpu as pltpu

EPS = 1e-5


def _log2(v):
    assert v > 0 and (v & (v - 1)) == 0, f"{v} must be a power of two"
    return v.bit_length() - 1


# ----------------------------------------------------------------------------
# In-kernel building blocks
# ----------------------------------------------------------------------------

def _phase_convs(xpad_ref, wp_ref, *, h, w, m, pad):
    """4 phase outputs of ConvTranspose2d(k=4, s=2, p=1) as deep-K matmuls.

    xpad_ref : (Cin, m + 2*pad) bf16, flat activation, batch-major over
               (n, iy, ix), with `pad` zero columns on each side.
    wp_ref   : (2, 2, Cout, 4*Cin) bf16, per-phase weights with K ordered
               ((dy, dx), cin) to match the tap concatenation below.
    Returns the 4 f32 accumulators [(Cout, m)], phases (a, b) row-major.
    Phase (a, b) element m corresponds to output pixel (2*iy + a, 2*ix + b)
    of the same flat (n, iy, ix) index m.
    """
    lw = _log2(w)
    idx = lax.broadcasted_iota(jnp.int32, (1, m), 1)
    col = jnp.bitwise_and(idx, w - 1)                        # ix within row
    row = jnp.bitwise_and(jnp.right_shift(idx, lw), h - 1)   # iy within image

    accs = []
    for a in (0, 1):
        for b in (0, 1):
            taps = []
            for dy in (0, 1):
                for dx in (0, 1):
                    # source pixel: (iy, ix) = (q + a + dy - 1, r + b + dx - 1)
                    delta = (a + dy - 1) * w + (b + dx - 1)
                    t = xpad_ref[:, pad + delta:pad + delta + m]
                    v = a + dy
                    u = b + dx
                    if v == 0:                       # iy = q - 1, invalid at q == 0
                        t = jnp.where(row != 0, t, jnp.zeros_like(t))
                    elif v == 2:                     # iy = q + 1, invalid at q == h-1
                        t = jnp.where(row != h - 1, t, jnp.zeros_like(t))
                    if u == 0:
                        t = jnp.where(col != 0, t, jnp.zeros_like(t))
                    elif u == 2:
                        t = jnp.where(col != w - 1, t, jnp.zeros_like(t))
                    taps.append(t)
            cols = jnp.concatenate(taps, axis=0)     # (4*Cin, m), K = ((dy,dx), ci)
            accs.append(jnp.dot(wp_ref[a, b], cols,
                                preferred_element_type=jnp.float32))
    return accs


def _batchnorm_relu(accs, g_ref, b_ref, *, count, eps):
    """BatchNorm2d (batch stats over all 4 phases = N*OH*OW) + ReLU, in f32."""
    s = sum(jnp.sum(a, axis=1, keepdims=True) for a in accs)
    ss = sum(jnp.sum(a * a, axis=1, keepdims=True) for a in accs)
    inv = 1.0 / count
    mean = s * inv
    var = jnp.maximum(ss * inv - mean * mean, 0.0)   # clamp: f32 cancellation guard
    scale = g_ref[...] * lax.rsqrt(var + eps)
    shift = b_ref[...] - mean * scale
    return [jnp.maximum(a * scale + shift, 0.0) for a in accs]


# ----------------------------------------------------------------------------
# Kernel bodies
# ----------------------------------------------------------------------------

def _stem_kernel(zrep_ref, w1_ref, g1_ref, b1_ref, wp_ref, g2_ref, b2_ref,
                 o_ref, xpad_ref, *, h, w, m, pad, eps):
    """Fused layers 1+2: (1x1->4x4 ConvT proj + BN + ReLU) + (ConvT(4,2,1) + BN + ReLU)."""
    # ---- layer 1: dense projection onto the 4x4 grid (M = 16*N lanes) -------
    x1 = jnp.dot(w1_ref[...], zrep_ref[...], preferred_element_type=jnp.float32)
    inv = 1.0 / m
    mean = jnp.sum(x1, axis=1, keepdims=True) * inv
    var = jnp.maximum(jnp.sum(x1 * x1, axis=1, keepdims=True) * inv - mean * mean, 0.0)
    scale = g1_ref[...] * lax.rsqrt(var + eps)
    shift = b1_ref[...] - mean * scale
    x1 = jnp.maximum(x1 * scale + shift, 0.0)

    # Stash into a zero-padded VMEM scratch so layer 2 can take shifted views.
    xpad_ref[...] = jnp.zeros_like(xpad_ref)
    xpad_ref[:, pad:pad + m] = x1.astype(xpad_ref.dtype)

    # ---- layer 2: ConvT(4,2,1) via phase decomposition + BN + ReLU ----------
    accs = _phase_convs(xpad_ref, wp_ref, h=h, w=w, m=m, pad=pad)
    ys = _batchnorm_relu(accs, g2_ref, b2_ref, count=4 * m, eps=eps)
    for p, y in enumerate(ys):
        o_ref[p // 2, p % 2] = y.astype(o_ref.dtype)


def _convt_bn_relu_kernel(xpad_ref, wp_ref, g_ref, b_ref, o_ref,
                          *, h, w, m, pad, eps):
    accs = _phase_convs(xpad_ref, wp_ref, h=h, w=w, m=m, pad=pad)
    ys = _batchnorm_relu(accs, g_ref, b_ref, count=4 * m, eps=eps)
    for p, y in enumerate(ys):
        o_ref[p // 2, p % 2] = y.astype(o_ref.dtype)


def _convt_tanh_kernel(xpad_ref, wp_ref, o_ref, *, h, w, m, pad):
    accs = _phase_convs(xpad_ref, wp_ref, h=h, w=w, m=m, pad=pad)
    for p, acc in enumerate(accs):
        o_ref[p // 2, p % 2] = jnp.tanh(acc).astype(o_ref.dtype)


# ----------------------------------------------------------------------------
# pallas_call wrappers (whole layer fits VMEM at these toy shapes)
# ----------------------------------------------------------------------------

def _full_spec(shape):
    nd = len(shape)
    return pl.BlockSpec(shape, lambda i: (0,) * nd)


def _compiler_params():
    return pltpu.CompilerParams(dimension_semantics=("arbitrary",),
                                vmem_limit_bytes=32 * 1024 * 1024)


def pallas_stem(zrep, w1, g1, b1, wp2, g2, b2):
    c1 = w1.shape[0]
    c2 = wp2.shape[2]
    m = zrep.shape[1]                 # = N * 4 * 4
    h = w = 4
    pad = w + 1
    kernel = functools.partial(_stem_kernel, h=h, w=w, m=m, pad=pad, eps=EPS)
    flops = 2 * c1 * w1.shape[1] * m + 2 * 4 * c2 * wp2.shape[3] * m
    bytes_accessed = sum(int(a.size) * a.dtype.itemsize
                         for a in (zrep, w1, g1, b1, wp2, g2, b2)) + 4 * c2 * m * 2
    return pl.pallas_call(
        kernel,
        out_shape=jax.ShapeDtypeStruct((2, 2, c2, m), jnp.bfloat16),
        grid=(1,),
        in_specs=[_full_spec(zrep.shape), _full_spec(w1.shape),
                  _full_spec(g1.shape), _full_spec(b1.shape),
                  _full_spec(wp2.shape), _full_spec(g2.shape),
                  _full_spec(b2.shape)],
        out_specs=_full_spec((2, 2, c2, m)),
        scratch_shapes=[pltpu.VMEM((c1, m + 2 * pad), jnp.bfloat16)],
        compiler_params=_compiler_params(),
        cost_estimate=pl.CostEstimate(flops=int(flops), transcendentals=0,
                                      bytes_accessed=int(bytes_accessed)),
    )(zrep, w1, g1, b1, wp2, g2, b2)


def pallas_convt_bn_relu(x_flat, wp, g, b, *, h, w):
    m = x_flat.shape[1]
    cout = wp.shape[2]
    pad = w + 1
    xpad = jnp.pad(x_flat, ((0, 0), (pad, pad)))
    kernel = functools.partial(_convt_bn_relu_kernel, h=h, w=w, m=m, pad=pad, eps=EPS)
    flops = 2 * 4 * cout * wp.shape[3] * m
    bytes_accessed = int(xpad.size) * 2 + int(wp.size) * 2 + 4 * cout * m * 2 + cout * 8
    return pl.pallas_call(
        kernel,
        out_shape=jax.ShapeDtypeStruct((2, 2, cout, m), jnp.bfloat16),
        grid=(1,),
        in_specs=[_full_spec(xpad.shape), _full_spec(wp.shape),
                  _full_spec(g.shape), _full_spec(b.shape)],
        out_specs=_full_spec((2, 2, cout, m)),
        compiler_params=_compiler_params(),
        cost_estimate=pl.CostEstimate(flops=int(flops), transcendentals=0,
                                      bytes_accessed=int(bytes_accessed)),
    )(xpad, wp, g, b)


def pallas_convt_tanh(x_flat, wp, *, h, w):
    m = x_flat.shape[1]
    cout = wp.shape[2]
    pad = w + 1
    xpad = jnp.pad(x_flat, ((0, 0), (pad, pad)))
    kernel = functools.partial(_convt_tanh_kernel, h=h, w=w, m=m, pad=pad)
    flops = 2 * 4 * cout * wp.shape[3] * m
    bytes_accessed = int(xpad.size) * 2 + int(wp.size) * 2 + 4 * cout * m * 4
    return pl.pallas_call(
        kernel,
        out_shape=jax.ShapeDtypeStruct((2, 2, cout, m), jnp.float32),
        grid=(1,),
        in_specs=[_full_spec(xpad.shape), _full_spec(wp.shape)],
        out_specs=_full_spec((2, 2, cout, m)),
        compiler_params=_compiler_params(),
        cost_estimate=pl.CostEstimate(flops=int(flops),
                                      transcendentals=int(4 * cout * m),
                                      bytes_accessed=int(bytes_accessed)),
    )(xpad, wp)


# ----------------------------------------------------------------------------
# Weight preparation (exact ConvTranspose2d semantics)
# ----------------------------------------------------------------------------

def convt_weight_to_phase(wt):
    """(Cin, Cout, 4, 4) ConvTranspose2d weight -> (2, 2, Cout, 4*Cin).

    Phase (a, b), tap (dy, dx) (source pixel offset a+dy-1, b+dx-1) uses
    W[ci, co, 3 - a - 2*dy, 3 - b - 2*dx]; K ordering ((dy, dx), ci) matches
    the in-kernel tap concatenation.
    """
    ci, co = wt.shape[0], wt.shape[1]
    rows = []
    for a in range(2):
        cols_ = []
        for b in range(2):
            taps = []
            for dy in range(2):
                for dx in range(2):
                    taps.append(wt[:, :, 3 - a - 2 * dy, 3 - b - 2 * dx])  # (ci, co)
            wk = jnp.stack(taps, axis=0)                      # (4, ci, co)
            wk = jnp.transpose(wk, (2, 0, 1)).reshape(co, 4 * ci)
            cols_.append(wk)
        rows.append(jnp.stack(cols_, axis=0))
    return jnp.stack(rows, axis=0)                            # (2, 2, co, 4*ci)


def stem_weight_to_matmul(wt):
    """(Cz, C1, 4, 4) -> (C1, 16*Cz), K ordered ((oy*4+ox), cz)."""
    cz, c1 = wt.shape[0], wt.shape[1]
    return jnp.transpose(wt, (1, 2, 3, 0)).reshape(c1, 16 * cz)


def init_params(key, noise_channels, img_channels, num_features):
    nf = num_features
    conv_shapes = [
        (noise_channels, nf * 8, 4, 4),
        (nf * 8, nf * 4, 4, 4),
        (nf * 4, nf * 2, 4, 4),
        (nf * 2, nf, 4, 4),
        (nf, img_channels, 4, 4),
    ]
    bn_channels = [nf * 8, nf * 4, nf * 2, nf]
    keys = jax.random.split(key, 13)
    raw_w = [(0.02 * jax.random.normal(k, s, jnp.float32)).astype(jnp.bfloat16)
             for k, s in zip(keys[:5], conv_shapes)]
    gammas = [1.0 + 0.1 * jax.random.normal(k, (c,), jnp.float32)
              for k, c in zip(keys[5:9], bn_channels)]
    betas = [0.1 * jax.random.normal(k, (c,), jnp.float32)
             for k, c in zip(keys[9:13], bn_channels)]

    params = {
        "w1": stem_weight_to_matmul(raw_w[0]),
        "wp2": convt_weight_to_phase(raw_w[1]),
        "wp3": convt_weight_to_phase(raw_w[2]),
        "wp4": convt_weight_to_phase(raw_w[3]),
        "wp5": convt_weight_to_phase(raw_w[4]),
    }
    for i, (g, b) in enumerate(zip(gammas, betas), start=1):
        params[f"g{i}"] = g.reshape(-1, 1)
        params[f"b{i}"] = b.reshape(-1, 1)
    ref_params = {"w": raw_w, "gamma": gammas, "beta": betas}
    return params, ref_params


# ----------------------------------------------------------------------------
# Forward pass (matches the nn.Sequential Generator; BatchNorm uses batch
# statistics, i.e. the training-mode forward)
# ----------------------------------------------------------------------------

def _interleave_phases(y, n, h, w):
    """(2, 2, C, n*h*w) phase blocks -> flat (C, n*(2h)*(2w)), batch-major."""
    c = y.shape[2]
    y = y.reshape(2, 2, c, n, h, w)
    y = jnp.transpose(y, (2, 3, 4, 0, 5, 1))                  # (C, n, h, 2, w, 2)
    return y.reshape(c, n * 2 * h * 2 * w)


@jax.jit
def generator_forward(z, params):
    n, cz = z.shape[0], z.shape[1]

    # Block-diagonal replication of the noise so the fused stem kernel can do
    # layer 1 as a single lane-dense matmul (16x K inflation on a tiny operand).
    z2 = z.reshape(n, cz).astype(jnp.float32)
    eye = jnp.eye(16, dtype=jnp.float32)
    zrep = (eye[:, None, None, :] * z2.T[None, :, :, None]).reshape(16 * cz, 16 * n)
    zrep = zrep.astype(jnp.bfloat16)

    # layers 1+2 fused
    y = pallas_stem(zrep, params["w1"], params["g1"], params["b1"],
                    params["wp2"], params["g2"], params["b2"])
    x = _interleave_phases(y, n, 4, 4)                         # (nf*4, n*8*8)

    # layer 3
    y = pallas_convt_bn_relu(x, params["wp3"], params["g3"], params["b3"], h=8, w=8)
    x = _interleave_phases(y, n, 8, 8)                         # (nf*2, n*16*16)

    # layer 4
    y = pallas_convt_bn_relu(x, params["wp4"], params["g4"], params["b4"], h=16, w=16)
    x = _interleave_phases(y, n, 16, 16)                       # (nf, n*32*32)

    # layer 5 + tanh
    y = pallas_convt_tanh(x, params["wp5"], h=32, w=32)        # (2, 2, Cimg, n*32*32)
    c_img = y.shape[2]
    img = y.reshape(2, 2, c_img, n, 32, 32)
    img = jnp.transpose(img, (3, 2, 4, 0, 5, 1)).reshape(n, c_img, 64, 64)
    return img


# ----------------------------------------------------------------------------
# Pure-JAX reference (f32 activations, same bf16-valued weights)
# ----------------------------------------------------------------------------

def _convt_ref(x, wt, stride, pad):
    wf = jnp.transpose(jnp.flip(wt, (2, 3)), (1, 0, 2, 3))     # (Cout, Cin, 4, 4)
    return lax.conv_general_dilated(
        x, wf, window_strides=(1, 1),
        padding=[(3 - pad, 3 - pad), (3 - pad, 3 - pad)],
        lhs_dilation=(stride, stride),
        dimension_numbers=("NCHW", "OIHW", "NCHW"))


def reference_forward(z, ref_params):
    ws, gs, bs = ref_params["w"], ref_params["gamma"], ref_params["beta"]
    strides = [1, 2, 2, 2, 2]
    pads = [0, 1, 1, 1, 1]
    x = z.astype(jnp.float32)
    for i in range(4):
        x = _convt_ref(x, ws[i].astype(jnp.float32), strides[i], pads[i])
        mean = jnp.mean(x, axis=(0, 2, 3), keepdims=True)
        var = jnp.mean(jnp.square(x - mean), axis=(0, 2, 3), keepdims=True)
        x = (x - mean) * lax.rsqrt(var + EPS)
        x = x * gs[i].reshape(1, -1, 1, 1) + bs[i].reshape(1, -1, 1, 1)
        x = jnp.maximum(x, 0.0)
    x = _convt_ref(x, ws[4].astype(jnp.float32), 2, 1)
    return jnp.tanh(x)


# ----------------------------------------------------------------------------

if __name__ == "__main__":
    # Small DCGAN-consistent shapes: 1x1 noise -> 4 -> 8 -> 16 -> 32 -> 64.
    batch, noise_channels, img_channels, num_features = 2, 16, 3, 8

    key = jax.random.PRNGKey(0)
    k_z, k_p = jax.random.split(key)
    z = jax.random.normal(k_z, (batch, noise_channels, 1, 1), dtype=jnp.float32)
    params, ref_params = init_params(k_p, noise_channels, img_channels, num_features)

    out = jax.block_until_ready(generator_forward(z, params))

    assert out.shape == (batch, img_channels, 64, 64), out.shape
    assert bool(jnp.isfinite(out).all())
    assert bool(jnp.all(jnp.abs(out) <= 1.0))                  # tanh range

    ref = reference_forward(z, ref_params)
    err = float(jnp.max(jnp.abs(out - ref.astype(out.dtype))))
    assert err < 5e-2, f"max |kernel - reference| = {err}"     # bf16 activations vs f32 ref
    print("KERNEL_OK")
</pallas_src>

<mosaic_0001>
module attributes {stable_mosaic.version = 11 : i64} {
  func.func @_stem_kernel(%arg0: i32, %arg1: memref<256x32xbf16, #tpu.memory_space<vmem>>, %arg2: memref<64x256xbf16, #tpu.memory_space<vmem>>, %arg3: memref<64x1xf32, #tpu.memory_space<vmem>>, %arg4: memref<64x1xf32, #tpu.memory_space<vmem>>, %arg5: memref<2x2x32x256xbf16, #tpu.memory_space<vmem>>, %arg6: memref<32x1xf32, #tpu.memory_space<vmem>>, %arg7: memref<32x1xf32, #tpu.memory_space<vmem>>, %arg8: memref<2x2x32x32xbf16, #tpu.memory_space<vmem>>, %arg9: memref<64x42xbf16, #tpu.memory_space<vmem>>) attributes {dimension_semantics = [#tpu.dimension_semantics<arbitrary>], iteration_bounds = array<i64: 1>, scalar_prefetch = 0 : i64, scratch_operands = 1 : i64, tpu.core_type = #tpu.core_type<tc>, window_params = [{pipeline_mode = #tpu.pipeline_mode<synchronous>, transform_indices = @transform_0, window_bounds = array<i64: 256, 32>}, {pipeline_mode = #tpu.pipeline_mode<synchronous>, transform_indices = @transform_1, window_bounds = array<i64: 64, 256>}, {pipeline_mode = #tpu.pipeline_mode<synchronous>, transform_indices = @transform_2, window_bounds = array<i64: 64, 1>}, {pipeline_mode = #tpu.pipeline_mode<synchronous>, transform_indices = @transform_3, window_bounds = array<i64: 64, 1>}, {pipeline_mode = #tpu.pipeline_mode<synchronous>, transform_indices = @transform_4, window_bounds = array<i64: 2, 2, 32, 256>}, {pipeline_mode = #tpu.pipeline_mode<synchronous>, transform_indices = @transform_5, window_bounds = array<i64: 32, 1>}, {pipeline_mode = #tpu.pipeline_mode<synchronous>, transform_indices = @transform_6, window_bounds = array<i64: 32, 1>}, {pipeline_mode = #tpu.pipeline_mode<synchronous>, transform_indices = @transform_7, window_bounds = array<i64: 2, 2, 32, 32>}]} {
    %c0 = arith.constant 0 : index
    %c0_0 = arith.constant 0 : index
    %0 = vector.load %arg2[%c0, %c0_0] : memref<64x256xbf16, #tpu.memory_space<vmem>>, vector<64x256xbf16>
    %c0_1 = arith.constant 0 : index
    %c0_2 = arith.constant 0 : index
    %1 = vector.load %arg1[%c0_1, %c0_2] : memref<256x32xbf16, #tpu.memory_space<vmem>>, vector<256x32xbf16>
    %cst = arith.constant dense<0.000000e+00> : vector<64x32xf32>
    %2 = tpu.matmul %0, %1, %cst {dimension_numbers = #tpu.dot_dimension_numbers<[1], [0], [0], [1], [0, 0, 1, 1], [], []>} : vector<64x256xbf16>, vector<256x32xbf16>, vector<64x32xf32> -> vector<64x32xf32>
    %cst_3 = arith.constant dense<0.000000e+00> : vector<64xf32>
    %3 = vector.multi_reduction <add>, %2, %cst_3 [1] : vector<64x32xf32> to vector<64xf32>
    %4 = vector.shape_cast %3 : vector<64xf32> to vector<64x1xf32>
    %cst_4 = arith.constant 3.125000e-02 : f32
    %5 = vector.broadcast %cst_4 : f32 to vector<64x1xf32>
    %6 = arith.mulf %4, %5 : vector<64x1xf32>
    %7 = arith.mulf %2, %2 : vector<64x32xf32>
    %cst_5 = arith.constant dense<0.000000e+00> : vector<64xf32>
    %8 = vector.multi_reduction <add>, %7, %cst_5 [1] : vector<64x32xf32> to vector<64xf32>
    %9 = vector.shape_cast %8 : vector<64xf32> to vector<64x1xf32>
    %cst_6 = arith.constant 3.125000e-02 : f32
    %10 = vector.broadcast %cst_6 : f32 to vector<64x1xf32>
    %11 = arith.mulf %9, %10 : vector<64x1xf32>
    %12 = arith.mulf %6, %6 : vector<64x1xf32>
    %13 = arith.subf %11, %12 : vector<64x1xf32>
    %cst_7 = arith.constant 0.000000e+00 : f32
    %14 = vector.broadcast %cst_7 : f32 to vector<64x1xf32>
    %15 = arith.maximumf %13, %14 : vector<64x1xf32>
    %c0_8 = arith.constant 0 : index
    %c0_9 = arith.constant 0 : index
    %16 = vector.load %arg3[%c0_8, %c0_9] : memref<64x1xf32, #tpu.memory_space<vmem>>, vector<64x1xf32>
    %cst_10 = arith.constant 9.99999974E-6 : f32
    %17 = vector.broadcast %cst_10 : f32 to vector<64x1xf32>
    %18 = arith.addf %15, %17 : vector<64x1xf32>
    %19 = math.rsqrt %18 : vector<64x1xf32>
    %20 = arith.mulf %16, %19 : vector<64x1xf32>
    %c0_11 = arith.constant 0 : index
    %c0_12 = arith.constant 0 : index
    %21 = vector.load %arg4[%c0_11, %c0_12] : memref<64x1xf32, #tpu.memory_space<vmem>>, vector<64x1xf32>
    %22 = arith.mulf %6, %20 : vector<64x1xf32>
    %23 = arith.subf %21, %22 : vector<64x1xf32>
    %24 = vector.broadcast %20 : vector<64x1xf32> to vector<64x32xf32>
    %25 = arith.mulf %2, %24 : vector<64x32xf32>
    %26 = vector.broadcast %23 : vector<64x1xf32> to vector<64x32xf32>
    %27 = arith.addf %25, %26 : vector<64x32xf32>
    %cst_13 = arith.constant 0.000000e+00 : f32
    %28 = vector.broadcast %cst_13 : f32 to vector<64x32xf32>
    %29 = arith.maximumf %27, %28 : vector<64x32xf32>
    %cst_14 = arith.constant 0.000000e+00 : bf16
    %30 = vector.broadcast %cst_14 : bf16 to vector<64x42xbf16>
    %c0_15 = arith.constant 0 : index
    %c0_16 = arith.constant 0 : index
    %31 = vector.load %arg9[%c0_15, %c0_16] : memref<64x42xbf16, #tpu.memory_space<vmem>>, vector<64x42xbf16>
    tpu.vector_store %arg9[%c0_15, %c0_16], %30 {strides = array<i32>} : memref<64x42xbf16, #tpu.memory_space<vmem>>, vector<64x42xbf16>,
    %32 = arith.truncf %29 : vector<64x32xf32> to vector<64x32xbf16>
    %c0_17 = arith.constant 0 : index
    %c5 = arith.constant 5 : index
    %33 = vector.load %arg9[%c0_17, %c5] : memref<64x42xbf16, #tpu.memory_space<vmem>>, vector<64x32xbf16>
    tpu.vector_store %arg9[%c0_17, %c5], %32 {strides = array<i32>} : memref<64x42xbf16, #tpu.memory_space<vmem>>, vector<64x32xbf16>,
    %34 = tpu.iota {dimensions = array<i32: 1>} : vector<1x32xi32>
    %c3_i32 = arith.constant 3 : i32
    %35 = vector.broadcast %c3_i32 : i32 to vector<1x32xi32>
    %36 = arith.andi %34, %35 : vector<1x32xi32>
    %c2_i32 = arith.constant 2 : i32
    %37 = vector.broadcast %c2_i32 : i32 to vector<1x32xi32>
    %38 = arith.shrsi %34, %37 : vector<1x32xi32>
    %c3_i32_18 = arith.constant 3 : i32
    %39 = vector.broadcast %c3_i32_18 : i32 to vector<1x32xi32>
    %40 = arith.andi %38, %39 : vector<1x32xi32>
    %c0_19 = arith.constant 0 : index
    %c0_20 = arith.constant 0 : index
    %41 = vector.load %arg9[%c0_19, %c0_20] : memref<64x42xbf16, #tpu.memory_space<vmem>>, vector<64x32xbf16>
    %c0_i32 = arith.constant 0 : i32
    %42 = vector.broadcast %c0_i32 : i32 to vector<1x32xi32>
    %43 = arith.cmpi ne, %40, %42 : vector<1x32xi32>
    %cst_21 = arith.constant 0.000000e+00 : bf16
    %44 = vector.broadcast %cst_21 : bf16 to vector<64x32xbf16>
    %45 = vector.shape_cast %43 : vector<1x32xi1> to vector<1x32xi1>
    %46 = vector.broadcast %45 : vector<1x32xi1> to vector<64x32xi1>
    %47 = arith.select %46, %41, %44 : vector<64x32xi1>, vector<64x32xbf16>
    %c0_i32_22 = arith.constant 0 : i32
    %48 = vector.broadcast %c0_i32_22 : i32 to vector<1x32xi32>
    %49 = arith.cmpi ne, %36, %48 : vector<1x32xi32>
    %cst_23 = arith.constant 0.000000e+00 : bf16
    %50 = vector.broadcast %cst_23 : bf16 to vector<64x32xbf16>
    %51 = vector.shape_cast %49 : vector<1x32xi1> to vector<1x32xi1>
    %52 = vector.broadcast %51 : vector<1x32xi1> to vector<64x32xi1>
    %53 = arith.select %52, %47, %50 : vector<64x32xi1>, vector<64x32xbf16>
    %c0_24 = arith.constant 0 : index
    %c1 = arith.constant 1 : index
    %54 = vector.load %arg9[%c0_24, %c1] : memref<64x42xbf16, #tpu.memory_space<vmem>>, vector<64x32xbf16>
    %c0_i32_25 = arith.constant 0 : i32
    %55 = vector.broadcast %c0_i32_25 : i32 to vector<1x32xi32>
    %56 = arith.cmpi ne, %40, %55 : vector<1x32xi32>
    %cst_26 = arith.constant 0.000000e+00 : bf16
    %57 = vector.broadcast %cst_26 : bf16 to vector<64x32xbf16>
    %58 = vector.shape_cast %56 : vector<1x32xi1> to vector<1x32xi1>
    %59 = vector.broadcast %58 : vector<1x32xi1> to vector<64x32xi1>
    %60 = arith.select %59, %54, %57 : vector<64x32xi1>, vector<64x32xbf16>
    %c0_27 = arith.constant 0 : index
    %c4 = arith.constant 4 : index
    %61 = vector.load %arg9[%c0_27, %c4] : memref<64x42xbf16, #tpu.memory_space<vmem>>, vector<64x32xbf16>
    %c0_i32_28 = arith.constant 0 : i32
    %62 = vector.broadcast %c0_i32_28 : i32 to vector<1x32xi32>
    %63 = arith.cmpi ne, %36, %62 : vector<1x32xi32>
    %cst_29 = arith.constant 0.000000e+00 : bf16
    %64 = vector.broadcast %cst_29 : bf16 to vector<64x32xbf16>
    %65 = vector.shape_cast %63 : vector<1x32xi1> to vector<1x32xi1>
    %66 = vector.broadcast %65 : vector<1x32xi1> to vector<64x32xi1>
    %67 = arith.select %66, %61, %64 : vector<64x32xi1>, vector<64x32xbf16>
    %c0_30 = arith.constant 0 : index
    %c5_31 = arith.constant 5 : index
    %68 = vector.load %arg9[%c0_30, %c5_31] : memref<64x42xbf16, #tpu.memory_space<vmem>>, vector<64x32xbf16>
    %69 = tpu.concatenate %53, %60, %67, %68 in 0 : vector<64x32xbf16>, vector<64x32xbf16>, vector<64x32xbf16>, vector<64x32xbf16> -> vector<256x32xbf16>
    %c0_32 = arith.constant 0 : index
    %c0_33 = arith.constant 0 : index
    %c0_34 = arith.constant 0 : index
    %c0_35 = arith.constant 0 : index
    %70 = vector.load %arg5[%c0_32, %c0_33, %c0_34, %c0_35] : memref<2x2x32x256xbf16, #tpu.memory_space<vmem>>, vector<1x1x32x256xbf16>
    %71 = vector.shape_cast %70 : vector<1x1x32x256xbf16> to vector<32x256xbf16>
    %cst_36 = arith.constant dense<0.000000e+00> : vector<32x32xf32>
    %72 = tpu.matmul %71, %69, %cst_36 {dimension_numbers = #tpu.dot_dimension_numbers<[1], [0], [0], [1], [0, 0, 1, 1], [], []>} : vector<32x256xbf16>, vector<256x32xbf16>, vector<32x32xf32> -> vector<32x32xf32>
    %c0_37 = arith.constant 0 : index
    %c1_38 = arith.constant 1 : index
    %73 = vector.load %arg9[%c0_37, %c1_38] : memref<64x42xbf16, #tpu.memory_space<vmem>>, vector<64x32xbf16>
    %c0_i32_39 = arith.constant 0 : i32
    %74 = vector.broadcast %c0_i32_39 : i32 to vector<1x32xi32>
    %75 = arith.cmpi ne, %40, %74 : vector<1x32xi32>
    %cst_40 = arith.constant 0.000000e+00 : bf16
    %76 = vector.broadcast %cst_40 : bf16 to vector<64x32xbf16>
    %77 = vector.shape_cast %75 : vector<1x32xi1> to vector<1x32xi1>
    %78 = vector.broadcast %77 : vector<1x32xi1> to vector<64x32xi1>
    %79 = arith.select %78, %73, %76 : vector<64x32xi1>, vector<64x32xbf16>
    %c0_41 = arith.constant 0 : index
    %c2 = arith.constant 2 : index
    %80 = vector.load %arg9[%c0_41, %c2] : memref<64x42xbf16, #tpu.memory_space<vmem>>, vector<64x32xbf16>
    %c0_i32_42 = arith.constant 0 : i32
    %81 = vector.broadcast %c0_i32_42 : i32 to vector<1x32xi32>
    %82 = arith.cmpi ne, %40, %81 : vector<1x32xi32>
    %cst_43 = arith.constant 0.000000e+00 : bf16
    %83 = vector.broadcast %cst_43 : bf16 to vector<64x32xbf16>
    %84 = vector.shape_cast %82 : vector<1x32xi1> to vector<1x32xi1>
    %85 = vector.broadcast %84 : vector<1x32xi1> to vector<64x32xi1>
    %86 = arith.select %85, %80, %83 : vector<64x32xi1>, vector<64x32xbf16>
    %c3_i32_44 = arith.constant 3 : i32
    %87 = vector.broadcast %c3_i32_44 : i32 to vector<1x32xi32>
    %88 = arith.cmpi ne, %36, %87 : vector<1x32xi32>
    %cst_45 = arith.constant 0.000000e+00 : bf16
    %89 = vector.broadcast %cst_45 : bf16 to vector<64x32xbf16>
    %90 = vector.shape_cast %88 : vector<1x32xi1> to vector<1x32xi1>
    %91 = vector.broadcast %90 : vector<1x32xi1> to vector<64x32xi1>
    %92 = arith.select %91, %86, %89 : vector<64x32xi1>, vector<64x32xbf16>
    %c0_46 = arith.constant 0 : index
    %c5_47 = arith.constant 5 : index
    %93 = vector.load %arg9[%c0_46, %c5_47] : memref<64x42xbf16, #tpu.memory_space<vmem>>, vector<64x32xbf16>
    %c0_48 = arith.constant 0 : index
    %c6 = arith.constant 6 : index
    %94 = vector.load %arg9[%c0_48, %c6] : memref<64x42xbf16, #tpu.memory_space<vmem>>, vector<64x32xbf16>
    %c3_i32_49 = arith.constant 3 : i32
    %95 = vector.broadcast %c3_i32_49 : i32 to vector<1x32xi32>
    %96 = arith.cmpi ne, %36, %95 : vector<1x32xi32>
    %cst_50 = arith.constant 0.000000e+00 : bf16
    %97 = vector.broadcast %cst_50 : bf16 to vector<64x32xbf16>
    %98 = vector.shape_cast %96 : vector<1x32xi1> to vector<1x32xi1>
    %99 = vector.broadcast %98 : vector<1x32xi1> to vector<64x32xi1>
    %100 = arith.select %99, %94, %97 : vector<64x32xi1>, vector<64x32xbf16>
    %101 = tpu.concatenate %79, %92, %93, %100 in 0 : vector<64x32xbf16>, vector<64x32xbf16>, vector<64x32xbf16>, vector<64x32xbf16> -> vector<256x32xbf16>
    %c0_51 = arith.constant 0 : index
    %c1_52 = arith.constant 1 : index
    %c0_53 = arith.constant 0 : index
    %c0_54 = arith.constant 0 : index
    %102 = vector.load %arg5[%c0_51, %c1_52, %c0_53, %c0_54] : memref<2x2x32x256xbf16, #tpu.memory_space<vmem>>, vector<1x1x32x256xbf16>
    %103 = vector.shape_cast %102 : vector<1x1x32x256xbf16> to vector<32x256xbf16>
    %cst_55 = arith.constant dense<0.000000e+00> : vector<32x32xf32>
    %104 = tpu.matmul %103, %101, %cst_55 {dimension_numbers = #tpu.dot_dimension_numbers<[1], [0], [0], [1], [0, 0, 1, 1], [], []>} : vector<32x256xbf16>, vector<256x32xbf16>, vector<32x32xf32> -> vector<32x32xf32>
    %c0_56 = arith.constant 0 : index
    %c4_57 = arith.constant 4 : index
    %105 = vector.load %arg9[%c0_56, %c4_57] : memref<64x42xbf16, #tpu.memory_space<vmem>>, vector<64x32xbf16>
    %c0_i32_58 = arith.constant 0 : i32
    %106 = vector.broadcast %c0_i32_58 : i32 to vector<1x32xi32>
    %107 = arith.cmpi ne, %36, %106 : vector<1x32xi32>
    %cst_59 = arith.constant 0.000000e+00 : bf16
    %108 = vector.broadcast %cst_59 : bf16 to vector<64x32xbf16>
    %109 = vector.shape_cast %107 : vector<1x32xi1> to vector<1x32xi1>
    %110 = vector.broadcast %109 : vector<1x32xi1> to vector<64x32xi1>
    %111 = arith.select %110, %105, %108 : vector<64x32xi1>, vector<64x32xbf16>
    %c0_60 = arith.constant 0 : index
    %c5_61 = arith.constant 5 : index
    %112 = vector.load %arg9[%c0_60, %c5_61] : memref<64x42xbf16, #tpu.memory_space<vmem>>, vector<64x32xbf16>
    %c0_62 = arith.constant 0 : index
    %c8 = arith.constant 8 : index
    %113 = vector.load %arg9[%c0_62, %c8] : memref<64x42xbf16, #tpu.memory_space<vmem>>, vector<64x32xbf16>
    %c3_i32_63 = arith.constant 3 : i32
    %114 = vector.broadcast %c3_i32_63 : i32 to vector<1x32xi32>
    %115 = arith.cmpi ne, %40, %114 : vector<1x32xi32>
    %cst_64 = arith.constant 0.000000e+00 : bf16
    %116 = vector.broadcast %cst_64 : bf16 to vector<64x32xbf16>
    %117 = vector.shape_cast %115 : vector<1x32xi1> to vector<1x32xi1>
    %118 = vector.broadcast %117 : vector<1x32xi1> to vector<64x32xi1>
    %119 = arith.select %118, %113, %116 : vector<64x32xi1>, vector<64x32xbf16>
    %c0_i32_65 = arith.constant 0 : i32
    %120 = vector.broadcast %c0_i32_65 : i32 to vector<1x32xi32>
    %121 = arith.cmpi ne, %36, %120 : vector<1x32xi32>
    %cst_66 = arith.constant 0.000000e+00 : bf16
    %122 = vector.broadcast %cst_66 : bf16 to vector<64x32xbf16>
    %123 = vector.shape_cast %121 : vector<1x32xi1> to vector<1x32xi1>
    %124 = vector.broadcast %123 : vector<1x32xi1> to vector<64x32xi1>
    %125 = arith.select %124, %119, %122 : vector<64x32xi1>, vector<64x32xbf16>
    %c0_67 = arith.constant 0 : index
    %c9 = arith.constant 9 : index
    %126 = vector.load %arg9[%c0_67, %c9] : memref<64x42xbf16, #tpu.memory_space<vmem>>, vector<64x32xbf16>
    %c3_i32_68 = arith.constant 3 : i32
    %127 = vector.broadcast %c3_i32_68 : i32 to vector<1x32xi32>
    %128 = arith.cmpi ne, %40, %127 : vector<1x32xi32>
    %cst_69 = arith.constant 0.000000e+00 : bf16
    %129 = vector.broadcast %cst_69 : bf16 to vector<64x32xbf16>
    %130 = vector.shape_cast %128 : vector<1x32xi1> to vector<1x32xi1>
    %131 = vector.broadcast %130 : vector<1x32xi1> to vector<64x32xi1>
    %132 = arith.select %131, %126, %129 : vector<64x32xi1>, vector<64x32xbf16>
    %133 = tpu.concatenate %111, %112, %125, %132 in 0 : vector<64x32xbf16>, vector<64x32xbf16>, vector<64x32xbf16>, vector<64x32xbf16> -> vector<256x32xbf16>
    %c1_70 = arith.constant 1 : index
    %c0_71 = arith.constant 0 : index
    %c0_72 = arith.constant 0 : index
    %c0_73 = arith.constant 0 : index
    %134 = vector.load %arg5[%c1_70, %c0_71, %c0_72, %c0_73] : memref<2x2x32x256xbf16, #tpu.memory_space<vmem>>, vector<1x1x32x256xbf16>
    %135 = vector.shape_cast %134 : vector<1x1x32x256xbf16> to vector<32x256xbf16>
    %cst_74 = arith.constant dense<0.000000e+00> : vector<32x32xf32>
    %136 = tpu.matmul %135, %133, %cst_74 {dimension_numbers = #tpu.dot_dimension_numbers<[1], [0], [0], [1], [0, 0, 1, 1], [], []>} : vector<32x256xbf16>, vector<256x32xbf16>, vector<32x32xf32> -> vector<32x32xf32>
    %c0_75 = arith.constant 0 : index
    %c5_76 = arith.constant 5 : index
    %137 = vector.load %arg9[%c0_75, %c5_76] : memref<64x42xbf16, #tpu.memory_space<vmem>>, vector<64x32xbf16>
    %c0_77 = arith.constant 0 : index
    %c6_78 = arith.constant 6 : index
    %138 = vector.load %arg9[%c0_77, %c6_78] : memref<64x42xbf16, #tpu.memory_space<vmem>>, vector<64x32xbf16>
    %c3_i32_79 = arith.constant 3 : i32
    %139 = vector.broadcast %c3_i32_79 : i32 to vector<1x32xi32>
    %140 = arith.cmpi ne, %36, %139 : vector<1x32xi32>
    %cst_80 = arith.constant 0.000000e+00 : bf16
    %141 = vector.broadcast %cst_80 : bf16 to vector<64x32xbf16>
    %142 = vector.shape_cast %140 : vector<1x32xi1> to vector<1x32xi1>
    %143 = vector.broadcast %142 : vector<1x32xi1> to vector<64x32xi1>
    %144 = arith.select %143, %138, %141 : vector<64x32xi1>, vector<64x32xbf16>
    %c0_81 = arith.constant 0 : index
    %c9_82 = arith.constant 9 : index
    %145 = vector.load %arg9[%c0_81, %c9_82] : memref<64x42xbf16, #tpu.memory_space<vmem>>, vector<64x32xbf16>
    %c3_i32_83 = arith.constant 3 : i32
    %146 = vector.broadcast %c3_i32_83 : i32 to vector<1x32xi32>
    %147 = arith.cmpi ne, %40, %146 : vector<1x32xi32>
    %cst_84 = arith.constant 0.000000e+00 : bf16
    %148 = vector.broadcast %cst_84 : bf16 to vector<64x32xbf16>
    %149 = vector.shape_cast %147 : vector<1x32xi1> to vector<1x32xi1>
    %150 = vector.broadcast %149 : vector<1x32xi1> to vector<64x32xi1>
    %151 = arith.select %150, %145, %148 : vector<64x32xi1>, vector<64x32xbf16>
    %c0_85 = arith.constant 0 : index
    %c10 = arith.constant 10 : index
    %152 = vector.load %arg9[%c0_85, %c10] : memref<64x42xbf16, #tpu.memory_space<vmem>>, vector<64x32xbf16>
    %c3_i32_86 = arith.constant 3 : i32
    %153 = vector.broadcast %c3_i32_86 : i32 to vector<1x32xi32>
    %154 = arith.cmpi ne, %40, %153 : vector<1x32xi32>
    %cst_87 = arith.constant 0.000000e+00 : bf16
    %155 = vector.broadcast %cst_87 : bf16 to vector<64x32xbf16>
    %156 = vector.shape_cast %154 : vector<1x32xi1> to vector<1x32xi1>
    %157 = vector.broadcast %156 : vector<1x32xi1> to vector<64x32xi1>
    %158 = arith.select %157, %152, %155 : vector<64x32xi1>, vector<64x32xbf16>
    %c3_i32_88 = arith.constant 3 : i32
    %159 = vector.broadcast %c3_i32_88 : i32 to vector<1x32xi32>
    %160 = arith.cmpi ne, %36, %159 : vector<1x32xi32>
    %cst_89 = arith.constant 0.000000e+00 : bf16
    %161 = vector.broadcast %cst_89 : bf16 to vector<64x32xbf16>
    %162 = vector.shape_cast %160 : vector<1x32xi1> to vector<1x32xi1>
    %163 = vector.broadcast %162 : vector<1x32xi1> to vector<64x32xi1>
    %164 = arith.select %163, %158, %161 : vector<64x32xi1>, vector<64x32xbf16>
    %165 = tpu.concatenate %137, %144, %151, %164 in 0 : vector<64x32xbf16>, vector<64x32xbf16>, vector<64x32xbf16>, vector<64x32xbf16> -> vector<256x32xbf16>
    %c1_90 = arith.constant 1 : index
    %c1_91 = arith.constant 1 : index
    %c0_92 = arith.constant 0 : index
    %c0_93 = arith.constant 0 : index
    %166 = vector.load %arg5[%c1_90, %c1_91, %c0_92, %c0_93] : memref<2x2x32x256xbf16, #tpu.memory_space<vmem>>, vector<1x1x32x256xbf16>
    %167 = vector.shape_cast %166 : vector<1x1x32x256xbf16> to vector<32x256xbf16>
    %cst_94 = arith.constant dense<0.000000e+00> : vector<32x32xf32>
    %168 = tpu.matmul %167, %165, %cst_94 {dimension_numbers = #tpu.dot_dimension_numbers<[1], [0], [0], [1], [0, 0, 1, 1], [], []>} : vector<32x256xbf16>, vector<256x32xbf16>, vector<32x32xf32> -> vector<32x32xf32>
    %cst_95 = arith.constant dense<0.000000e+00> : vector<32xf32>
    %169 = vector.multi_reduction <add>, %72, %cst_95 [1] : vector<32x32xf32> to vector<32xf32>
    %170 = vector.shape_cast %169 : vector<32xf32> to vector<32x1xf32>
    %cst_96 = arith.constant 0.000000e+00 : f32
    %171 = vector.broadcast %cst_96 : f32 to vector<32x1xf32>
    %172 = arith.addf %171, %170 : vector<32x1xf32>
    %cst_97 = arith.constant dense<0.000000e+00> : vector<32xf32>
    %173 = vector.multi_reduction <add>, %104, %cst_97 [1] : vector<32x32xf32> to vector<32xf32>
    %174 = vector.shape_cast %173 : vector<32xf32> to vector<32x1xf32>
    %175 = arith.addf %172, %174 : vector<32x1xf32>
    %cst_98 = arith.constant dense<0.000000e+00> : vector<32xf32>
    %176 = vector.multi_reduction <add>, %136, %cst_98 [1] : vector<32x32xf32> to vector<32xf32>
    %177 = vector.shape_cast %176 : vector<32xf32> to vector<32x1xf32>
    %178 = arith.addf %175, %177 : vector<32x1xf32>
    %cst_99 = arith.constant dense<0.000000e+00> : vector<32xf32>
    %179 = vector.multi_reduction <add>, %168, %cst_99 [1] : vector<32x32xf32> to vector<32xf32>
    %180 = vector.shape_cast %179 : vector<32xf32> to vector<32x1xf32>
    %181 = arith.addf %178, %180 : vector<32x1xf32>
    %182 = arith.mulf %72, %72 : vector<32x32xf32>
    %cst_100 = arith.constant dense<0.000000e+00> : vector<32xf32>
    %183 = vector.multi_reduction <add>, %182, %cst_100 [1] : vector<32x32xf32> to vector<32xf32>
    %184 = vector.shape_cast %183 : vector<32xf32> to vector<32x1xf32>
    %cst_101 = arith.constant 0.000000e+00 : f32
    %185 = vector.broadcast %cst_101 : f32 to vector<32x1xf32>
    %186 = arith.addf %185, %184 : vector<32x1xf32>
    %187 = arith.mulf %104, %104 : vector<32x32xf32>
    %cst_102 = arith.constant dense<0.000000e+00> : vector<32xf32>
    %188 = vector.multi_reduction <add>, %187, %cst_102 [1] : vector<32x32xf32> to vector<32xf32>
    %189 = vector.shape_cast %188 : vector<32xf32> to vector<32x1xf32>
    %190 = arith.addf %186, %189 : vector<32x1xf32>
    %191 = arith.mulf %136, %136 : vector<32x32xf32>
    %cst_103 = arith.constant dense<0.000000e+00> : vector<32xf32>
    %192 = vector.multi_reduction <add>, %191, %cst_103 [1] : vector<32x32xf32> to vector<32xf32>
    %193 = vector.shape_cast %192 : vector<32xf32> to vector<32x1xf32>
    %194 = arith.addf %190, %193 : vector<32x1xf32>
    %195 = arith.mulf %168, %168 : vector<32x32xf32>
    %cst_104 = arith.constant dense<0.000000e+00> : vector<32xf32>
    %196 = vector.multi_reduction <add>, %195, %cst_104 [1] : vector<32x32xf32> to vector<32xf32>
    %197 = vector.shape_cast %196 : vector<32xf32> to vector<32x1xf32>
    %198 = arith.addf %194, %197 : vector<32x1xf32>
    %cst_105 = arith.constant 7.812500e-03 : f32
    %199 = vector.broadcast %cst_105 : f32 to vector<32x1xf32>
    %200 = arith.mulf %181, %199 : vector<32x1xf32>
    %cst_106 = arith.constant 7.812500e-03 : f32
    %201 = vector.broadcast %cst_106 : f32 to vector<32x1xf32>
    %202 = arith.mulf %198, %201 : vector<32x1xf32>
    %203 = arith.mulf %200, %200 : vector<32x1xf32>
    %204 = arith.subf %202, %203 : vector<32x1xf32>
    %cst_107 = arith.constant 0.000000e+00 : f32
    %205 = vector.broadcast %cst_107 : f32 to vector<32x1xf32>
    %206 = arith.maximumf %204, %205 : vector<32x1xf32>
    %c0_108 = arith.constant 0 : index
    %c0_109 = arith.constant 0 : index
    %207 = vector.load %arg6[%c0_108, %c0_109] : memref<32x1xf32, #tpu.memory_space<vmem>>, vector<32x1xf32>
    %cst_110 = arith.constant 9.99999974E-6 : f32
    %208 = vector.broadcast %cst_110 : f32 to vector<32x1xf32>
    %209 = arith.addf %206, %208 : vector<32x1xf32>
    %210 = math.rsqrt %209 : vector<32x1xf32>
    %211 = arith.mulf %207, %210 : vector<32x1xf32>
    %c0_111 = arith.constant 0 : index
    %c0_112 = arith.constant 0 : index
    %212 = vector.load %arg7[%c0_111, %c0_112] : memref<32x1xf32, #tpu.memory_space<vmem>>, vector<32x1xf32>
    %213 = arith.mulf %200, %211 : vector<32x1xf32>
    %214 = arith.subf %212, %213 : vector<32x1xf32>
    %215 = vector.broadcast %211 : vector<32x1xf32> to vector<32x32xf32>
    %216 = arith.mulf %72, %215 : vector<32x32xf32>
    %217 = vector.broadcast %214 : vector<32x1xf32> to vector<32x32xf32>
    %218 = arith.addf %216, %217 : vector<32x32xf32>
    %cst_113 = arith.constant 0.000000e+00 : f32
    %219 = vector.broadcast %cst_113 : f32 to vector<32x32xf32>
    %220 = arith.maximumf %218, %219 : vector<32x32xf32>
    %221 = vector.broadcast %211 : vector<32x1xf32> to vector<32x32xf32>
    %222 = arith.mulf %104, %221 : vector<32x32xf32>
    %223 = vector.broadcast %214 : vector<32x1xf32> to vector<32x32xf32>
    %224 = arith.addf %222, %223 : vector<32x32xf32>
    %cst_114 = arith.constant 0.000000e+00 : f32
    %225 = vector.broadcast %cst_114 : f32 to vector<32x32xf32>
    %226 = arith.maximumf %224, %225 : vector<32x32xf32>
    %227 = vector.broadcast %211 : vector<32x1xf32> to vector<32x32xf32>
    %228 = arith.mulf %136, %227 : vector<32x32xf32>
    %229 = vector.broadcast %214 : vector<32x1xf32> to vector<32x32xf32>
    %230 = arith.addf %228, %229 : vector<32x32xf32>
    %cst_115 = arith.constant 0.000000e+00 : f32
    %231 = vector.broadcast %cst_115 : f32 to vector<32x32xf32>
    %232 = arith.maximumf %230, %231 : vector<32x32xf32>
    %233 = vector.broadcast %211 : vector<32x1xf32> to vector<32x32xf32>
    %234 = arith.mulf %168, %233 : vector<32x32xf32>
    %235 = vector.broadcast %214 : vector<32x1xf32> to vector<32x32xf32>
    %236 = arith.addf %234, %235 : vector<32x32xf32>
    %cst_116 = arith.constant 0.000000e+00 : f32
    %237 = vector.broadcast %cst_116 : f32 to vector<32x32xf32>
    %238 = arith.maximumf %236, %237 : vector<32x32xf32>
    %239 = arith.truncf %220 : vector<32x32xf32> to vector<32x32xbf16>
    %c0_117 = arith.constant 0 : index
    %c0_118 = arith.constant 0 : index
    %c0_119 = arith.constant 0 : index
    %c0_120 = arith.constant 0 : index
    %240 = vector.load %arg8[%c0_117, %c0_118, %c0_119, %c0_120] : memref<2x2x32x32xbf16, #tpu.memory_space<vmem>>, vector<1x1x32x32xbf16>
    %241 = vector.shape_cast %240 : vector<1x1x32x32xbf16> to vector<32x32xbf16>
    %242 = vector.shape_cast %239 : vector<32x32xbf16> to vector<1x1x32x32xbf16>
    tpu.vector_store %arg8[%c0_117, %c0_118, %c0_119, %c0_120], %242 {strides = array<i32>} : memref<2x2x32x32xbf16, #tpu.memory_space<vmem>>, vector<1x1x32x32xbf16>,
    %243 = arith.truncf %226 : vector<32x32xf32> to vector<32x32xbf16>
    %c0_121 = arith.constant 0 : index
    %c1_122 = arith.constant 1 : index
    %c0_123 = arith.constant 0 : index
    %c0_124 = arith.constant 0 : index
    %244 = vector.load %arg8[%c0_121, %c1_122, %c0_123, %c0_124] : memref<2x2x32x32xbf16, #tpu.memory_space<vmem>>, vector<1x1x32x32xbf16>
    %245 = vector.shape_cast %244 : vector<1x1x32x32xbf16> to vector<32x32xbf16>
    %246 = vector.shape_cast %243 : vector<32x32xbf16> to vector<1x1x32x32xbf16>
    tpu.vector_store %arg8[%c0_121, %c1_122, %c0_123, %c0_124], %246 {strides = array<i32>} : memref<2x2x32x32xbf16, #tpu.memory_space<vmem>>, vector<1x1x32x32xbf16>,
    %247 = arith.truncf %232 : vector<32x32xf32> to vector<32x32xbf16>
    %c1_125 = arith.constant 1 : index
    %c0_126 = arith.constant 0 : index
    %c0_127 = arith.constant 0 : index
    %c0_128 = arith.constant 0 : index
    %248 = vector.load %arg8[%c1_125, %c0_126, %c0_127, %c0_128] : memref<2x2x32x32xbf16, #tpu.memory_space<vmem>>, vector<1x1x32x32xbf16>
    %249 = vector.shape_cast %248 : vector<1x1x32x32xbf16> to vector<32x32xbf16>
    %250 = vector.shape_cast %247 : vector<32x32xbf16> to vector<1x1x32x32xbf16>
    tpu.vector_store %arg8[%c1_125, %c0_126, %c0_127, %c0_128], %250 {strides = array<i32>} : memref<2x2x32x32xbf16, #tpu.memory_space<vmem>>, vector<1x1x32x32xbf16>,
    %251 = arith.truncf %238 : vector<32x32xf32> to vector<32x32xbf16>
    %c1_129 = arith.constant 1 : index
    %c1_130 = arith.constant 1 : index
    %c0_131 = arith.constant 0 : index
    %c0_132 = arith.constant 0 : index
    %252 = vector.load %arg8[%c1_129, %c1_130, %c0_131, %c0_132] : memref<2x2x32x32xbf16, #tpu.memory_space<vmem>>, vector<1x1x32x32xbf16>
    %253 = vector.shape_cast %252 : vector<1x1x32x32xbf16> to vector<32x32xbf16>
    %254 = vector.shape_cast %251 : vector<32x32xbf16> to vector<1x1x32x32xbf16>
    tpu.vector_store %arg8[%c1_129, %c1_130, %c0_131, %c0_132], %254 {strides = array<i32>} : memref<2x2x32x32xbf16, #tpu.memory_space<vmem>>, vector<1x1x32x32xbf16>,
    return
  }
  func.func @transform_0(%arg0: i32) -> (i32, i32) {
    %c0_i32 = arith.constant 0 : i32
    %c0_i32_0 = arith.constant 0 : i32
    %c0_i32_1 = arith.constant 0 : i32
    return %c0_i32, %c0_i32_0 : i32, i32
  }
  func.func @transform_1(%arg0: i32) -> (i32, i32) {
    %c0_i32 = arith.constant 0 : i32
    %c0_i32_0 = arith.constant 0 : i32
    %c0_i32_1 = arith.constant 0 : i32
    return %c0_i32, %c0_i32_0 : i32, i32
  }
  func.func @transform_2(%arg0: i32) -> (i32, i32) {
    %c0_i32 = arith.constant 0 : i32
    %c0_i32_0 = arith.constant 0 : i32
    %c0_i32_1 = arith.constant 0 : i32
    return %c0_i32, %c0_i32_0 : i32, i32
  }
  func.func @transform_3(%arg0: i32) -> (i32, i32) {
    %c0_i32 = arith.constant 0 : i32
    %c0_i32_0 = arith.constant 0 : i32
    %c0_i32_1 = arith.constant 0 : i32
    return %c0_i32, %c0_i32_0 : i32, i32
  }
  func.func @transform_4(%arg0: i32) -> (i32, i32, i32, i32) {
    %c0_i32 = arith.constant 0 : i32
    %c0_i32_0 = arith.constant 0 : i32
    %c0_i32_1 = arith.constant 0 : i32
    %c0_i32_2 = arith.constant 0 : i32
    %c0_i32_3 = arith.constant 0 : i32
    return %c0_i32, %c0_i32_0, %c0_i32_1, %c0_i32_2 : i32, i32, i32, i32
  }
  func.func @transform_5(%arg0: i32) -> (i32, i32) {
    %c0_i32 = arith.constant 0 : i32
    %c0_i32_0 = arith.constant 0 : i32
    %c0_i32_1 = arith.constant 0 : i32
    return %c0_i32, %c0_i32_0 : i32, i32
  }
  func.func @transform_6(%arg0: i32) -> (i32, i32) {
    %c0_i32 = arith.constant 0 : i32
    %c0_i32_0 = arith.constant 0 : i32
    %c0_i32_1 = arith.constant 0 : i32
    return %c0_i32, %c0_i32_0 : i32, i32
  }
  func.func @transform_7(%arg0: i32) -> (i32, i32, i32, i32) {
    %c0_i32 = arith.constant 0 : i32
    %c0_i32_0 = arith.constant 0 : i32
    %c0_i32_1 = arith.constant 0 : i32
    %c0_i32_2 = arith.constant 0 : i32
    %c0_i32_3 = arith.constant 0 : i32
    return %c0_i32, %c0_i32_0, %c0_i32_1, %c0_i32_2 : i32, i32, i32, i32
  }
}

module attributes {stable_mosaic.version = 11 : i64} {
  func.func @_convt_bn_relu_kernel(%arg0: i32, %arg1: memref<32x146xbf16, #tpu.memory_space<vmem>>, %arg2: memref<2x2x16x128xbf16, #tpu.memory_space<vmem>>, %arg3: memref<16x1xf32, #tpu.memory_space<vmem>>, %arg4: memref<16x1xf32, #tpu.memory_space<vmem>>, %arg5: memref<2x2x16x128xbf16, #tpu.memory_space<vmem>>) attributes {dimension_semantics = [#tpu.dimension_semantics<arbitrary>], iteration_bounds = array<i64: 1>, scalar_prefetch = 0 : i64, scratch_operands = 0 : i64, tpu.core_type = #tpu.core_type<tc>, window_params = [{pipeline_mode = #tpu.pipeline_mode<synchronous>, transform_indices = @transform_0, window_bounds = array<i64: 32, 146>}, {pipeline_mode = #tpu.pipeline_mode<synchronous>, transform_indices = @transform_1, window_bounds = array<i64: 2, 2, 16, 128>}, {pipeline_mode = #tpu.pipeline_mode<synchronous>, transform_indices = @transform_2, window_bounds = array<i64: 16, 1>}, {pipeline_mode = #tpu.pipeline_mode<synchronous>, transform_indices = @transform_3, window_bounds = array<i64: 16, 1>}, {pipeline_mode = #tpu.pipeline_mode<synchronous>, transform_indices = @transform_4, window_bounds = array<i64: 2, 2, 16, 128>}]} {
    %0 = tpu.iota {dimensions = array<i32: 1>} : vector<1x128xi32>
    %c7_i32 = arith.constant 7 : i32
    %1 = vector.broadcast %c7_i32 : i32 to vector<1x128xi32>
    %2 = arith.andi %0, %1 : vector<1x128xi32>
    %c3_i32 = arith.constant 3 : i32
    %3 = vector.broadcast %c3_i32 : i32 to vector<1x128xi32>
    %4 = arith.shrsi %0, %3 : vector<1x128xi32>
    %c7_i32_0 = arith.constant 7 : i32
    %5 = vector.broadcast %c7_i32_0 : i32 to vector<1x128xi32>
    %6 = arith.andi %4, %5 : vector<1x128xi32>
    %c0 = arith.constant 0 : index
    %c0_1 = arith.constant 0 : index
    %7 = vector.load %arg1[%c0, %c0_1] : memref<32x146xbf16, #tpu.memory_space<vmem>>, vector<32x128xbf16>
    %c0_i32 = arith.constant 0 : i32
    %8 = vector.broadcast %c0_i32 : i32 to vector<1x128xi32>
    %9 = arith.cmpi ne, %6, %8 : vector<1x128xi32>
    %cst = arith.constant 0.000000e+00 : bf16
    %10 = vector.broadcast %cst : bf16 to vector<32x128xbf16>
    %11 = vector.shape_cast %9 : vector<1x128xi1> to vector<1x128xi1>
    %12 = vector.broadcast %11 : vector<1x128xi1> to vector<32x128xi1>
    %13 = arith.select %12, %7, %10 : vector<32x128xi1>, vector<32x128xbf16>
    %c0_i32_2 = arith.constant 0 : i32
    %14 = vector.broadcast %c0_i32_2 : i32 to vector<1x128xi32>
    %15 = arith.cmpi ne, %2, %14 : vector<1x128xi32>
    %cst_3 = arith.constant 0.000000e+00 : bf16
    %16 = vector.broadcast %cst_3 : bf16 to vector<32x128xbf16>
    %17 = vector.shape_cast %15 : vector<1x128xi1> to vector<1x128xi1>
    %18 = vector.broadcast %17 : vector<1x128xi1> to vector<32x128xi1>
    %19 = arith.select %18, %13, %16 : vector<32x128xi1>, vector<32x128xbf16>
    %c0_4 = arith.constant 0 : index
    %c1 = arith.constant 1 : index
    %20 = vector.load %arg1[%c0_4, %c1] : memref<32x146xbf16, #tpu.memory_space<vmem>>, vector<32x128xbf16>
    %c0_i32_5 = arith.constant 0 : i32
    %21 = vector.broadcast %c0_i32_5 : i32 to vector<1x128xi32>
    %22 = arith.cmpi ne, %6, %21 : vector<1x128xi32>
    %cst_6 = arith.constant 0.000000e+00 : bf16
    %23 = vector.broadcast %cst_6 : bf16 to vector<32x128xbf16>
    %24 = vector.shape_cast %22 : vector<1x128xi1> to vector<1x128xi1>
    %25 = vector.broadcast %24 : vector<1x128xi1> to vector<32x128xi1>
    %26 = arith.select %25, %20, %23 : vector<32x128xi1>, vector<32x128xbf16>
    %c0_7 = arith.constant 0 : index
    %c8 = arith.constant 8 : index
    %27 = vector.load %arg1[%c0_7, %c8] : memref<32x146xbf16, #tpu.memory_space<vmem>>, vector<32x128xbf16>
    %c0_i32_8 = arith.constant 0 : i32
    %28 = vector.broadcast %c0_i32_8 : i32 to vector<1x128xi32>
    %29 = arith.cmpi ne, %2, %28 : vector<1x128xi32>
    %cst_9 = arith.constant 0.000000e+00 : bf16
    %30 = vector.broadcast %cst_9 : bf16 to vector<32x128xbf16>
    %31 = vector.shape_cast %29 : vector<1x128xi1> to vector<1x128xi1>
    %32 = vector.broadcast %31 : vector<1x128xi1> to vector<32x128xi1>
    %33 = arith.select %32, %27, %30 : vector<32x128xi1>, vector<32x128xbf16>
    %c0_10 = arith.constant 0 : index
    %c9 = arith.constant 9 : index
    %34 = vector.load %arg1[%c0_10, %c9] : memref<32x146xbf16, #tpu.memory_space<vmem>>, vector<32x128xbf16>
    %35 = tpu.concatenate %19, %26, %33, %34 in 0 : vector<32x128xbf16>, vector<32x128xbf16>, vector<32x128xbf16>, vector<32x128xbf16> -> vector<128x128xbf16>
    %c0_11 = arith.constant 0 : index
    %c0_12 = arith.constant 0 : index
    %c0_13 = arith.constant 0 : index
    %c0_14 = arith.constant 0 : index
    %36 = vector.load %arg2[%c0_11, %c0_12, %c0_13, %c0_14] : memref<2x2x16x128xbf16, #tpu.memory_space<vmem>>, vector<1x1x16x128xbf16>
    %37 = vector.shape_cast %36 : vector<1x1x16x128xbf16> to vector<16x128xbf16>
    %cst_15 = arith.constant dense<0.000000e+00> : vector<16x128xf32>
    %38 = tpu.matmul %37, %35, %cst_15 {dimension_numbers = #tpu.dot_dimension_numbers<[1], [0], [0], [1], [0, 0, 1, 1], [], []>} : vector<16x128xbf16>, vector<128x128xbf16>, vector<16x128xf32> -> vector<16x128xf32>
    %c0_16 = arith.constant 0 : index
    %c1_17 = arith.constant 1 : index
    %39 = vector.load %arg1[%c0_16, %c1_17] : memref<32x146xbf16, #tpu.memory_space<vmem>>, vector<32x128xbf16>
    %c0_i32_18 = arith.constant 0 : i32
    %40 = vector.broadcast %c0_i32_18 : i32 to vector<1x128xi32>
    %41 = arith.cmpi ne, %6, %40 : vector<1x128xi32>
    %cst_19 = arith.constant 0.000000e+00 : bf16
    %42 = vector.broadcast %cst_19 : bf16 to vector<32x128xbf16>
    %43 = vector.shape_cast %41 : vector<1x128xi1> to vector<1x128xi1>
    %44 = vector.broadcast %43 : vector<1x128xi1> to vector<32x128xi1>
    %45 = arith.select %44, %39, %42 : vector<32x128xi1>, vector<32x128xbf16>
    %c0_20 = arith.constant 0 : index
    %c2 = arith.constant 2 : index
    %46 = vector.load %arg1[%c0_20, %c2] : memref<32x146xbf16, #tpu.memory_space<vmem>>, vector<32x128xbf16>
    %c0_i32_21 = arith.constant 0 : i32
    %47 = vector.broadcast %c0_i32_21 : i32 to vector<1x128xi32>
    %48 = arith.cmpi ne, %6, %47 : vector<1x128xi32>
    %cst_22 = arith.constant 0.000000e+00 : bf16
    %49 = vector.broadcast %cst_22 : bf16 to vector<32x128xbf16>
    %50 = vector.shape_cast %48 : vector<1x128xi1> to vector<1x128xi1>
    %51 = vector.broadcast %50 : vector<1x128xi1> to vector<32x128xi1>
    %52 = arith.select %51, %46, %49 : vector<32x128xi1>, vector<32x128xbf16>
    %c7_i32_23 = arith.constant 7 : i32
    %53 = vector.broadcast %c7_i32_23 : i32 to vector<1x128xi32>
    %54 = arith.cmpi ne, %2, %53 : vector<1x128xi32>
    %cst_24 = arith.constant 0.000000e+00 : bf16
    %55 = vector.broadcast %cst_24 : bf16 to vector<32x128xbf16>
    %56 = vector.shape_cast %54 : vector<1x128xi1> to vector<1x128xi1>
    %57 = vector.broadcast %56 : vector<1x128xi1> to vector<32x128xi1>
    %58 = arith.select %57, %52, %55 : vector<32x128xi1>, vector<32x128xbf16>
    %c0_25 = arith.constant 0 : index
    %c9_26 = arith.constant 9 : index
    %59 = vector.load %arg1[%c0_25, %c9_26] : memref<32x146xbf16, #tpu.memory_space<vmem>>, vector<32x128xbf16>
    %c0_27 = arith.constant 0 : index
    %c10 = arith.constant 10 : index
    %60 = vector.load %arg1[%c0_27, %c10] : memref<32x146xbf16, #tpu.memory_space<vmem>>, vector<32x128xbf16>
    %c7_i32_28 = arith.constant 7 : i32
    %61 = vector.broadcast %c7_i32_28 : i32 to vector<1x128xi32>
    %62 = arith.cmpi ne, %2, %61 : vector<1x128xi32>
    %cst_29 = arith.constant 0.000000e+00 : bf16
    %63 = vector.broadcast %cst_29 : bf16 to vector<32x128xbf16>
    %64 = vector.shape_cast %62 : vector<1x128xi1> to vector<1x128xi1>
    %65 = vector.broadcast %64 : vector<1x128xi1> to vector<32x128xi1>
    %66 = arith.select %65, %60, %63 : vector<32x128xi1>, vector<32x128xbf16>
    %67 = tpu.concatenate %45, %58, %59, %66 in 0 : vector<32x128xbf16>, vector<32x128xbf16>, vector<32x128xbf16>, vector<32x128xbf16> -> vector<128x128xbf16>
    %c0_30 = arith.constant 0 : index
    %c1_31 = arith.constant 1 : index
    %c0_32 = arith.constant 0 : index
    %c0_33 = arith.constant 0 : index
    %68 = vector.load %arg2[%c0_30, %c1_31, %c0_32, %c0_33] : memref<2x2x16x128xbf16, #tpu.memory_space<vmem>>, vector<1x1x16x128xbf16>
    %69 = vector.shape_cast %68 : vector<1x1x16x128xbf16> to vector<16x128xbf16>
    %cst_34 = arith.constant dense<0.000000e+00> : vector<16x128xf32>
    %70 = tpu.matmul %69, %67, %cst_34 {dimension_numbers = #tpu.dot_dimension_numbers<[1], [0], [0], [1], [0, 0, 1, 1], [], []>} : vector<16x128xbf16>, vector<128x128xbf16>, vector<16x128xf32> -> vector<16x128xf32>
    %c0_35 = arith.constant 0 : index
    %c8_36 = arith.constant 8 : index
    %71 = vector.load %arg1[%c0_35, %c8_36] : memref<32x146xbf16, #tpu.memory_space<vmem>>, vector<32x128xbf16>
    %c0_i32_37 = arith.constant 0 : i32
    %72 = vector.broadcast %c0_i32_37 : i32 to vector<1x128xi32>
    %73 = arith.cmpi ne, %2, %72 : vector<1x128xi32>
    %cst_38 = arith.constant 0.000000e+00 : bf16
    %74 = vector.broadcast %cst_38 : bf16 to vector<32x128xbf16>
    %75 = vector.shape_cast %73 : vector<1x128xi1> to vector<1x128xi1>
    %76 = vector.broadcast %75 : vector<1x128xi1> to vector<32x128xi1>
    %77 = arith.select %76, %71, %74 : vector<32x128xi1>, vector<32x128xbf16>
    %c0_39 = arith.constant 0 : index
    %c9_40 = arith.constant 9 : index
    %78 = vector.load %arg1[%c0_39, %c9_40] : memref<32x146xbf16, #tpu.memory_space<vmem>>, vector<32x128xbf16>
    %c0_41 = arith.constant 0 : index
    %c16 = arith.constant 16 : index
    %79 = vector.load %arg1[%c0_41, %c16] : memref<32x146xbf16, #tpu.memory_space<vmem>>, vector<32x128xbf16>
    %c7_i32_42 = arith.constant 7 : i32
    %80 = vector.broadcast %c7_i32_42 : i32 to vector<1x128xi32>
    %81 = arith.cmpi ne, %6, %80 : vector<1x128xi32>
    %cst_43 = arith.constant 0.000000e+00 : bf16
    %82 = vector.broadcast %cst_43 : bf16 to vector<32x128xbf16>
    %83 = vector.shape_cast %81 : vector<1x128xi1> to vector<1x128xi1>
    %84 = vector.broadcast %83 : vector<1x128xi1> to vector<32x128xi1>
    %85 = arith.select %84, %79, %82 : vector<32x128xi1>, vector<32x128xbf16>
    %c0_i32_44 = arith.constant 0 : i32
    %86 = vector.broadcast %c0_i32_44 : i32 to vector<1x128xi32>
    %87 = arith.cmpi ne, %2, %86 : vector<1x128xi32>
    %cst_45 = arith.constant 0.000000e+00 : bf16
    %88 = vector.broadcast %cst_45 : bf16 to vector<32x128xbf16>
    %89 = vector.shape_cast %87 : vector<1x128xi1> to vector<1x128xi1>
    %90 = vector.broadcast %89 : vector<1x128xi1> to vector<32x128xi1>
    %91 = arith.select %90, %85, %88 : vector<32x128xi1>, vector<32x128xbf16>
    %c0_46 = arith.constant 0 : index
    %c17 = arith.constant 17 : index
    %92 = vector.load %arg1[%c0_46, %c17] : memref<32x146xbf16, #tpu.memory_space<vmem>>, vector<32x128xbf16>
    %c7_i32_47 = arith.constant 7 : i32
    %93 = vector.broadcast %c7_i32_47 : i32 to vector<1x128xi32>
    %94 = arith.cmpi ne, %6, %93 : vector<1x128xi32>
    %cst_48 = arith.constant 0.000000e+00 : bf16
    %95 = vector.broadcast %cst_48 : bf16 to vector<32x128xbf16>
    %96 = vector.shape_cast %94 : vector<1x128xi1> to vector<1x128xi1>
    %97 = vector.broadcast %96 : vector<1x128xi1> to vector<32x128xi1>
    %98 = arith.select %97, %92, %95 : vector<32x128xi1>, vector<32x128xbf16>
    %99 = tpu.concatenate %77, %78, %91, %98 in 0 : vector<32x128xbf16>, vector<32x128xbf16>, vector<32x128xbf16>, vector<32x128xbf16> -> vector<128x128xbf16>
    %c1_49 = arith.constant 1 : index
    %c0_50 = arith.constant 0 : index
    %c0_51 = arith.constant 0 : index
    %c0_52 = arith.constant 0 : index
    %100 = vector.load %arg2[%c1_49, %c0_50, %c0_51, %c0_52] : memref<2x2x16x128xbf16, #tpu.memory_space<vmem>>, vector<1x1x16x128xbf16>
    %101 = vector.shape_cast %100 : vector<1x1x16x128xbf16> to vector<16x128xbf16>
    %cst_53 = arith.constant dense<0.000000e+00> : vector<16x128xf32>
    %102 = tpu.matmul %101, %99, %cst_53 {dimension_numbers = #tpu.dot_dimension_numbers<[1], [0], [0], [1], [0, 0, 1, 1], [], []>} : vector<16x128xbf16>, vector<128x128xbf16>, vector<16x128xf32> -> vector<16x128xf32>
    %c0_54 = arith.constant 0 : index
    %c9_55 = arith.constant 9 : index
    %103 = vector.load %arg1[%c0_54, %c9_55] : memref<32x146xbf16, #tpu.memory_space<vmem>>, vector<32x128xbf16>
    %c0_56 = arith.constant 0 : index
    %c10_57 = arith.constant 10 : index
    %104 = vector.load %arg1[%c0_56, %c10_57] : memref<32x146xbf16, #tpu.memory_space<vmem>>, vector<32x128xbf16>
    %c7_i32_58 = arith.constant 7 : i32
    %105 = vector.broadcast %c7_i32_58 : i32 to vector<1x128xi32>
    %106 = arith.cmpi ne, %2, %105 : vector<1x128xi32>
    %cst_59 = arith.constant 0.000000e+00 : bf16
    %107 = vector.broadcast %cst_59 : bf16 to vector<32x128xbf16>
    %108 = vector.shape_cast %106 : vector<1x128xi1> to vector<1x128xi1>
    %109 = vector.broadcast %108 : vector<1x128xi1> to vector<32x128xi1>
    %110 = arith.select %109, %104, %107 : vector<32x128xi1>, vector<32x128xbf16>
    %c0_60 = arith.constant 0 : index
    %c17_61 = arith.constant 17 : index
    %111 = vector.load %arg1[%c0_60, %c17_61] : memref<32x146xbf16, #tpu.memory_space<vmem>>, vector<32x128xbf16>
    %c7_i32_62 = arith.constant 7 : i32
    %112 = vector.broadcast %c7_i32_62 : i32 to vector<1x128xi32>
    %113 = arith.cmpi ne, %6, %112 : vector<1x128xi32>
    %cst_63 = arith.constant 0.000000e+00 : bf16
    %114 = vector.broadcast %cst_63 : bf16 to vector<32x128xbf16>
    %115 = vector.shape_cast %113 : vector<1x128xi1> to vector<1x128xi1>
    %116 = vector.broadcast %115 : vector<1x128xi1> to vector<32x128xi1>
    %117 = arith.select %116, %111, %114 : vector<32x128xi1>, vector<32x128xbf16>
    %c0_64 = arith.constant 0 : index
    %c18 = arith.constant 18 : index
    %118 = vector.load %arg1[%c0_64, %c18] : memref<32x146xbf16, #tpu.memory_space<vmem>>, vector<32x128xbf16>
    %c7_i32_65 = arith.constant 7 : i32
    %119 = vector.broadcast %c7_i32_65 : i32 to vector<1x128xi32>
    %120 = arith.cmpi ne, %6, %119 : vector<1x128xi32>
    %cst_66 = arith.constant 0.000000e+00 : bf16
    %121 = vector.broadcast %cst_66 : bf16 to vector<32x128xbf16>
    %122 = vector.shape_cast %120 : vector<1x128xi1> to vector<1x128xi1>
    %123 = vector.broadcast %122 : vector<1x128xi1> to vector<32x128xi1>
    %124 = arith.select %123, %118, %121 : vector<32x128xi1>, vector<32x128xbf16>
    %c7_i32_67 = arith.constant 7 : i32
    %125 = vector.broadcast %c7_i32_67 : i32 to vector<1x128xi32>
    %126 = arith.cmpi ne, %2, %125 : vector<1x128xi32>
    %cst_68 = arith.constant 0.000000e+00 : bf16
    %127 = vector.broadcast %cst_68 : bf16 to vector<32x128xbf16>
    %128 = vector.shape_cast %126 : vector<1x128xi1> to vector<1x128xi1>
    %129 = vector.broadcast %128 : vector<1x128xi1> to vector<32x128xi1>
    %130 = arith.select %129, %124, %127 : vector<32x128xi1>, vector<32x128xbf16>
    %131 = tpu.concatenate %103, %110, %117, %130 in 0 : vector<32x128xbf16>, vector<32x128xbf16>, vector<32x128xbf16>, vector<32x128xbf16> -> vector<128x128xbf16>
    %c1_69 = arith.constant 1 : index
    %c1_70 = arith.constant 1 : index
    %c0_71 = arith.constant 0 : index
    %c0_72 = arith.constant 0 : index
    %132 = vector.load %arg2[%c1_69, %c1_70, %c0_71, %c0_72] : memref<2x2x16x128xbf16, #tpu.memory_space<vmem>>, vector<1x1x16x128xbf16>
    %133 = vector.shape_cast %132 : vector<1x1x16x128xbf16> to vector<16x128xbf16>
    %cst_73 = arith.constant dense<0.000000e+00> : vector<16x128xf32>
    %134 = tpu.matmul %133, %131, %cst_73 {dimension_numbers = #tpu.dot_dimension_numbers<[1], [0], [0], [1], [0, 0, 1, 1], [], []>} : vector<16x128xbf16>, vector<128x128xbf16>, vector<16x128xf32> -> vector<16x128xf32>
    %cst_74 = arith.constant dense<0.000000e+00> : vector<16xf32>
    %135 = vector.multi_reduction <add>, %38, %cst_74 [1] : vector<16x128xf32> to vector<16xf32>
    %136 = vector.shape_cast %135 : vector<16xf32> to vector<16x1xf32>
    %cst_75 = arith.constant 0.000000e+00 : f32
    %137 = vector.broadcast %cst_75 : f32 to vector<16x1xf32>
    %138 = arith.addf %137, %136 : vector<16x1xf32>
    %cst_76 = arith.constant dense<0.000000e+00> : vector<16xf32>
    %139 = vector.multi_reduction <add>, %70, %cst_76 [1] : vector<16x128xf32> to vector<16xf32>
    %140 = vector.shape_cast %139 : vector<16xf32> to vector<16x1xf32>
    %141 = arith.addf %138, %140 : vector<16x1xf32>
    %cst_77 = arith.constant dense<0.000000e+00> : vector<16xf32>
    %142 = vector.multi_reduction <add>, %102, %cst_77 [1] : vector<16x128xf32> to vector<16xf32>
    %143 = vector.shape_cast %142 : vector<16xf32> to vector<16x1xf32>
    %144 = arith.addf %141, %143 : vector<16x1xf32>
    %cst_78 = arith.constant dense<0.000000e+00> : vector<16xf32>
    %145 = vector.multi_reduction <add>, %134, %cst_78 [1] : vector<16x128xf32> to vector<16xf32>
    %146 = vector.shape_cast %145 : vector<16xf32> to vector<16x1xf32>
    %147 = arith.addf %144, %146 : vector<16x1xf32>
    %148 = arith.mulf %38, %38 : vector<16x128xf32>
    %cst_79 = arith.constant dense<0.000000e+00> : vector<16xf32>
    %149 = vector.multi_reduction <add>, %148, %cst_79 [1] : vector<16x128xf32> to vector<16xf32>
    %150 = vector.shape_cast %149 : vector<16xf32> to vector<16x1xf32>
    %cst_80 = arith.constant 0.000000e+00 : f32
    %151 = vector.broadcast %cst_80 : f32 to vector<16x1xf32>
    %152 = arith.addf %151, %150 : vector<16x1xf32>
    %153 = arith.mulf %70, %70 : vector<16x128xf32>
    %cst_81 = arith.constant dense<0.000000e+00> : vector<16xf32>
    %154 = vector.multi_reduction <add>, %153, %cst_81 [1] : vector<16x128xf32> to vector<16xf32>
    %155 = vector.shape_cast %154 : vector<16xf32> to vector<16x1xf32>
    %156 = arith.addf %152, %155 : vector<16x1xf32>
    %157 = arith.mulf %102, %102 : vector<16x128xf32>
    %cst_82 = arith.constant dense<0.000000e+00> : vector<16xf32>
    %158 = vector.multi_reduction <add>, %157, %cst_82 [1] : vector<16x128xf32> to vector<16xf32>
    %159 = vector.shape_cast %158 : vector<16xf32> to vector<16x1xf32>
    %160 = arith.addf %156, %159 : vector<16x1xf32>
    %161 = arith.mulf %134, %134 : vector<16x128xf32>
    %cst_83 = arith.constant dense<0.000000e+00> : vector<16xf32>
    %162 = vector.multi_reduction <add>, %161, %cst_83 [1] : vector<16x128xf32> to vector<16xf32>
    %163 = vector.shape_cast %162 : vector<16xf32> to vector<16x1xf32>
    %164 = arith.addf %160, %163 : vector<16x1xf32>
    %cst_84 = arith.constant 0.001953125 : f32
    %165 = vector.broadcast %cst_84 : f32 to vector<16x1xf32>
    %166 = arith.mulf %147, %165 : vector<16x1xf32>
    %cst_85 = arith.constant 0.001953125 : f32
    %167 = vector.broadcast %cst_85 : f32 to vector<16x1xf32>
    %168 = arith.mulf %164, %167 : vector<16x1xf32>
    %169 = arith.mulf %166, %166 : vector<16x1xf32>
    %170 = arith.subf %168, %169 : vector<16x1xf32>
    %cst_86 = arith.constant 0.000000e+00 : f32
    %171 = vector.broadcast %cst_86 : f32 to vector<16x1xf32>
    %172 = arith.maximumf %170, %171 : vector<16x1xf32>
    %c0_87 = arith.constant 0 : index
    %c0_88 = arith.constant 0 : index
    %173 = vector.load %arg3[%c0_87, %c0_88] : memref<16x1xf32, #tpu.memory_space<vmem>>, vector<16x1xf32>
    %cst_89 = arith.constant 9.99999974E-6 : f32
    %174 = vector.broadcast %cst_89 : f32 to vector<16x1xf32>
    %175 = arith.addf %172, %174 : vector<16x1xf32>
    %176 = math.rsqrt %175 : vector<16x1xf32>
    %177 = arith.mulf %173, %176 : vector<16x1xf32>
    %c0_90 = arith.constant 0 : index
    %c0_91 = arith.constant 0 : index
    %178 = vector.load %arg4[%c0_90, %c0_91] : memref<16x1xf32, #tpu.memory_space<vmem>>, vector<16x1xf32>
    %179 = arith.mulf %166, %177 : vector<16x1xf32>
    %180 = arith.subf %178, %179 : vector<16x1xf32>
    %181 = vector.broadcast %177 : vector<16x1xf32> to vector<16x128xf32>
    %182 = arith.mulf %38, %181 : vector<16x128xf32>
    %183 = vector.broadcast %180 : vector<16x1xf32> to vector<16x128xf32>
    %184 = arith.addf %182, %183 : vector<16x128xf32>
    %cst_92 = arith.constant 0.000000e+00 : f32
    %185 = vector.broadcast %cst_92 : f32 to vector<16x128xf32>
    %186 = arith.maximumf %184, %185 : vector<16x128xf32>
    %187 = vector.broadcast %177 : vector<16x1xf32> to vector<16x128xf32>
    %188 = arith.mulf %70, %187 : vector<16x128xf32>
    %189 = vector.broadcast %180 : vector<16x1xf32> to vector<16x128xf32>
    %190 = arith.addf %188, %189 : vector<16x128xf32>
    %cst_93 = arith.constant 0.000000e+00 : f32
    %191 = vector.broadcast %cst_93 : f32 to vector<16x128xf32>
    %192 = arith.maximumf %190, %191 : vector<16x128xf32>
    %193 = vector.broadcast %177 : vector<16x1xf32> to vector<16x128xf32>
    %194 = arith.mulf %102, %193 : vector<16x128xf32>
    %195 = vector.broadcast %180 : vector<16x1xf32> to vector<16x128xf32>
    %196 = arith.addf %194, %195 : vector<16x128xf32>
    %cst_94 = arith.constant 0.000000e+00 : f32
    %197 = vector.broadcast %cst_94 : f32 to vector<16x128xf32>
    %198 = arith.maximumf %196, %197 : vector<16x128xf32>
    %199 = vector.broadcast %177 : vector<16x1xf32> to vector<16x128xf32>
    %200 = arith.mulf %134, %199 : vector<16x128xf32>
    %201 = vector.broadcast %180 : vector<16x1xf32> to vector<16x128xf32>
    %202 = arith.addf %200, %201 : vector<16x128xf32>
    %cst_95 = arith.constant 0.000000e+00 : f32
    %203 = vector.broadcast %cst_95 : f32 to vector<16x128xf32>
    %204 = arith.maximumf %202, %203 : vector<16x128xf32>
    %205 = arith.truncf %186 : vector<16x128xf32> to vector<16x128xbf16>
    %c0_96 = arith.constant 0 : index
    %c0_97 = arith.constant 0 : index
    %c0_98 = arith.constant 0 : index
    %c0_99 = arith.constant 0 : index
    %206 = vector.load %arg5[%c0_96, %c0_97, %c0_98, %c0_99] : memref<2x2x16x128xbf16, #tpu.memory_space<vmem>>, vector<1x1x16x128xbf16>
    %207 = vector.shape_cast %206 : vector<1x1x16x128xbf16> to vector<16x128xbf16>
    %208 = vector.shape_cast %205 : vector<16x128xbf16> to vector<1x1x16x128xbf16>
    tpu.vector_store %arg5[%c0_96, %c0_97, %c0_98, %c0_99], %208 {strides = array<i32>} : memref<2x2x16x128xbf16, #tpu.memory_space<vmem>>, vector<1x1x16x128xbf16>,
    %209 = arith.truncf %192 : vector<16x128xf32> to vector<16x128xbf16>
    %c0_100 = arith.constant 0 : index
    %c1_101 = arith.constant 1 : index
    %c0_102 = arith.constant 0 : index
    %c0_103 = arith.constant 0 : index
    %210 = vector.load %arg5[%c0_100, %c1_101, %c0_102, %c0_103] : memref<2x2x16x128xbf16, #tpu.memory_space<vmem>>, vector<1x1x16x128xbf16>
    %211 = vector.shape_cast %210 : vector<1x1x16x128xbf16> to vector<16x128xbf16>
    %212 = vector.shape_cast %209 : vector<16x128xbf16> to vector<1x1x16x128xbf16>
    tpu.vector_store %arg5[%c0_100, %c1_101, %c0_102, %c0_103], %212 {strides = array<i32>} : memref<2x2x16x128xbf16, #tpu.memory_space<vmem>>, vector<1x1x16x128xbf16>,
    %213 = arith.truncf %198 : vector<16x128xf32> to vector<16x128xbf16>
    %c1_104 = arith.constant 1 : index
    %c0_105 = arith.constant 0 : index
    %c0_106 = arith.constant 0 : index
    %c0_107 = arith.constant 0 : index
    %214 = vector.load %arg5[%c1_104, %c0_105, %c0_106, %c0_107] : memref<2x2x16x128xbf16, #tpu.memory_space<vmem>>, vector<1x1x16x128xbf16>
    %215 = vector.shape_cast %214 : vector<1x1x16x128xbf16> to vector<16x128xbf16>
    %216 = vector.shape_cast %213 : vector<16x128xbf16> to vector<1x1x16x128xbf16>
    tpu.vector_store %arg5[%c1_104, %c0_105, %c0_106, %c0_107], %216 {strides = array<i32>} : memref<2x2x16x128xbf16, #tpu.memory_space<vmem>>, vector<1x1x16x128xbf16>,
    %217 = arith.truncf %204 : vector<16x128xf32> to vector<16x128xbf16>
    %c1_108 = arith.constant 1 : index
    %c1_109 = arith.constant 1 : index
    %c0_110 = arith.constant 0 : index
    %c0_111 = arith.constant 0 : index
    %218 = vector.load %arg5[%c1_108, %c1_109, %c0_110, %c0_111] : memref<2x2x16x128xbf16, #tpu.memory_space<vmem>>, vector<1x1x16x128xbf16>
    %219 = vector.shape_cast %218 : vector<1x1x16x128xbf16> to vector<16x128xbf16>
    %220 = vector.shape_cast %217 : vector<16x128xbf16> to vector<1x1x16x128xbf16>
    tpu.vector_store %arg5[%c1_108, %c1_109, %c0_110, %c0_111], %220 {strides = array<i32>} : memref<2x2x16x128xbf16, #tpu.memory_space<vmem>>, vector<1x1x16x128xbf16>,
    return
  }
  func.func @transform_0(%arg0: i32) -> (i32, i32) {
    %c0_i32 = arith.constant 0 : i32
    %c0_i32_0 = arith.constant 0 : i32
    %c0_i32_1 = arith.constant 0 : i32
    return %c0_i32, %c0_i32_0 : i32, i32
  }
  func.func @transform_1(%arg0: i32) -> (i32, i32, i32, i32) {
    %c0_i32 = arith.constant 0 : i32
    %c0_i32_0 = arith.constant 0 : i32
    %c0_i32_1 = arith.constant 0 : i32
    %c0_i32_2 = arith.constant 0 : i32
    %c0_i32_3 = arith.constant 0 : i32
    return %c0_i32, %c0_i32_0, %c0_i32_1, %c0_i32_2 : i32, i32, i32, i32
  }
  func.func @transform_2(%arg0: i32) -> (i32, i32) {
    %c0_i32 = arith.constant 0 : i32
    %c0_i32_0 = arith.constant 0 : i32
    %c0_i32_1 = arith.constant 0 : i32
    return %c0_i32, %c0_i32_0 : i32, i32
  }
  func.func @transform_3(%arg0: i32) -> (i32, i32) {
    %c0_i32 = arith.constant 0 : i32
    %c0_i32_0 = arith.constant 0 : i32
    %c0_i32_1 = arith.constant 0 : i32
    return %c0_i32, %c0_i32_0 : i32, i32
  }
  func.func @transform_4(%arg0: i32) -> (i32, i32, i32, i32) {
    %c0_i32 = arith.constant 0 : i32
    %c0_i32_0 = arith.constant 0 : i32
    %c0_i32_1 = arith.constant 0 : i32
    %c0_i32_2 = arith.constant 0 : i32
    %c0_i32_3 = arith.constant 0 : i32
    return %c0_i32, %c0_i32_0, %c0_i32_1, %c0_i32_2 : i32, i32, i32, i32
  }
}

module attributes {stable_mosaic.version = 11 : i64} {
  func.func @_convt_bn_relu_kernel(%arg0: i32, %arg1: memref<16x546xbf16, #tpu.memory_space<vmem>>, %arg2: memref<2x2x8x64xbf16, #tpu.memory_space<vmem>>, %arg3: memref<8x1xf32, #tpu.memory_space<vmem>>, %arg4: memref<8x1xf32, #tpu.memory_space<vmem>>, %arg5: memref<2x2x8x512xbf16, #tpu.memory_space<vmem>>) attributes {dimension_semantics = [#tpu.dimension_semantics<arbitrary>], iteration_bounds = array<i64: 1>, scalar_prefetch = 0 : i64, scratch_operands = 0 : i64, tpu.core_type = #tpu.core_type<tc>, window_params = [{pipeline_mode = #tpu.pipeline_mode<synchronous>, transform_indices = @transform_0, window_bounds = array<i64: 16, 546>}, {pipeline_mode = #tpu.pipeline_mode<synchronous>, transform_indices = @transform_1, window_bounds = array<i64: 2, 2, 8, 64>}, {pipeline_mode = #tpu.pipeline_mode<synchronous>, transform_indices = @transform_2, window_bounds = array<i64: 8, 1>}, {pipeline_mode = #tpu.pipeline_mode<synchronous>, transform_indices = @transform_3, window_bounds = array<i64: 8, 1>}, {pipeline_mode = #tpu.pipeline_mode<synchronous>, transform_indices = @transform_4, window_bounds = array<i64: 2, 2, 8, 512>}]} {
    %0 = tpu.iota {dimensions = array<i32: 1>} : vector<1x512xi32>
    %c15_i32 = arith.constant 15 : i32
    %1 = vector.broadcast %c15_i32 : i32 to vector<1x512xi32>
    %2 = arith.andi %0, %1 : vector<1x512xi32>
    %c4_i32 = arith.constant 4 : i32
    %3 = vector.broadcast %c4_i32 : i32 to vector<1x512xi32>
    %4 = arith.shrsi %0, %3 : vector<1x512xi32>
    %c15_i32_0 = arith.constant 15 : i32
    %5 = vector.broadcast %c15_i32_0 : i32 to vector<1x512xi32>
    %6 = arith.andi %4, %5 : vector<1x512xi32>
    %c0 = arith.constant 0 : index
    %c0_1 = arith.constant 0 : index
    %7 = vector.load %arg1[%c0, %c0_1] : memref<16x546xbf16, #tpu.memory_space<vmem>>, vector<16x512xbf16>
    %c0_i32 = arith.constant 0 : i32
    %8 = vector.broadcast %c0_i32 : i32 to vector<1x512xi32>
    %9 = arith.cmpi ne, %6, %8 : vector<1x512xi32>
    %cst = arith.constant 0.000000e+00 : bf16
    %10 = vector.broadcast %cst : bf16 to vector<16x512xbf16>
    %11 = vector.shape_cast %9 : vector<1x512xi1> to vector<1x512xi1>
    %12 = vector.broadcast %11 : vector<1x512xi1> to vector<16x512xi1>
    %13 = arith.select %12, %7, %10 : vector<16x512xi1>, vector<16x512xbf16>
    %c0_i32_2 = arith.constant 0 : i32
    %14 = vector.broadcast %c0_i32_2 : i32 to vector<1x512xi32>
    %15 = arith.cmpi ne, %2, %14 : vector<1x512xi32>
    %cst_3 = arith.constant 0.000000e+00 : bf16
    %16 = vector.broadcast %cst_3 : bf16 to vector<16x512xbf16>
    %17 = vector.shape_cast %15 : vector<1x512xi1> to vector<1x512xi1>
    %18 = vector.broadcast %17 : vector<1x512xi1> to vector<16x512xi1>
    %19 = arith.select %18, %13, %16 : vector<16x512xi1>, vector<16x512xbf16>
    %c0_4 = arith.constant 0 : index
    %c1 = arith.constant 1 : index
    %20 = vector.load %arg1[%c0_4, %c1] : memref<16x546xbf16, #tpu.memory_space<vmem>>, vector<16x512xbf16>
    %c0_i32_5 = arith.constant 0 : i32
    %21 = vector.broadcast %c0_i32_5 : i32 to vector<1x512xi32>
    %22 = arith.cmpi ne, %6, %21 : vector<1x512xi32>
    %cst_6 = arith.constant 0.000000e+00 : bf16
    %23 = vector.broadcast %cst_6 : bf16 to vector<16x512xbf16>
    %24 = vector.shape_cast %22 : vector<1x512xi1> to vector<1x512xi1>
    %25 = vector.broadcast %24 : vector<1x512xi1> to vector<16x512xi1>
    %26 = arith.select %25, %20, %23 : vector<16x512xi1>, vector<16x512xbf16>
    %c0_7 = arith.constant 0 : index
    %c16 = arith.constant 16 : index
    %27 = vector.load %arg1[%c0_7, %c16] : memref<16x546xbf16, #tpu.memory_space<vmem>>, vector<16x512xbf16>
    %c0_i32_8 = arith.constant 0 : i32
    %28 = vector.broadcast %c0_i32_8 : i32 to vector<1x512xi32>
    %29 = arith.cmpi ne, %2, %28 : vector<1x512xi32>
    %cst_9 = arith.constant 0.000000e+00 : bf16
    %30 = vector.broadcast %cst_9 : bf16 to vector<16x512xbf16>
    %31 = vector.shape_cast %29 : vector<1x512xi1> to vector<1x512xi1>
    %32 = vector.broadcast %31 : vector<1x512xi1> to vector<16x512xi1>
    %33 = arith.select %32, %27, %30 : vector<16x512xi1>, vector<16x512xbf16>
    %c0_10 = arith.constant 0 : index
    %c17 = arith.constant 17 : index
    %34 = vector.load %arg1[%c0_10, %c17] : memref<16x546xbf16, #tpu.memory_space<vmem>>, vector<16x512xbf16>
    %35 = tpu.concatenate %19, %26, %33, %34 in 0 : vector<16x512xbf16>, vector<16x512xbf16>, vector<16x512xbf16>, vector<16x512xbf16> -> vector<64x512xbf16>
    %c0_11 = arith.constant 0 : index
    %c0_12 = arith.constant 0 : index
    %c0_13 = arith.constant 0 : index
    %c0_14 = arith.constant 0 : index
    %36 = vector.load %arg2[%c0_11, %c0_12, %c0_13, %c0_14] : memref<2x2x8x64xbf16, #tpu.memory_space<vmem>>, vector<1x1x8x64xbf16>
    %37 = vector.shape_cast %36 : vector<1x1x8x64xbf16> to vector<8x64xbf16>
    %cst_15 = arith.constant dense<0.000000e+00> : vector<8x512xf32>
    %38 = tpu.matmul %37, %35, %cst_15 {dimension_numbers = #tpu.dot_dimension_numbers<[1], [0], [0], [1], [0, 0, 1, 1], [], []>} : vector<8x64xbf16>, vector<64x512xbf16>, vector<8x512xf32> -> vector<8x512xf32>
    %c0_16 = arith.constant 0 : index
    %c1_17 = arith.constant 1 : index
    %39 = vector.load %arg1[%c0_16, %c1_17] : memref<16x546xbf16, #tpu.memory_space<vmem>>, vector<16x512xbf16>
    %c0_i32_18 = arith.constant 0 : i32
    %40 = vector.broadcast %c0_i32_18 : i32 to vector<1x512xi32>
    %41 = arith.cmpi ne, %6, %40 : vector<1x512xi32>
    %cst_19 = arith.constant 0.000000e+00 : bf16
    %42 = vector.broadcast %cst_19 : bf16 to vector<16x512xbf16>
    %43 = vector.shape_cast %41 : vector<1x512xi1> to vector<1x512xi1>
    %44 = vector.broadcast %43 : vector<1x512xi1> to vector<16x512xi1>
    %45 = arith.select %44, %39, %42 : vector<16x512xi1>, vector<16x512xbf16>
    %c0_20 = arith.constant 0 : index
    %c2 = arith.constant 2 : index
    %46 = vector.load %arg1[%c0_20, %c2] : memref<16x546xbf16, #tpu.memory_space<vmem>>, vector<16x512xbf16>
    %c0_i32_21 = arith.constant 0 : i32
    %47 = vector.broadcast %c0_i32_21 : i32 to vector<1x512xi32>
    %48 = arith.cmpi ne, %6, %47 : vector<1x512xi32>
    %cst_22 = arith.constant 0.000000e+00 : bf16
    %49 = vector.broadcast %cst_22 : bf16 to vector<16x512xbf16>
    %50 = vector.shape_cast %48 : vector<1x512xi1> to vector<1x512xi1>
    %51 = vector.broadcast %50 : vector<1x512xi1> to vector<16x512xi1>
    %52 = arith.select %51, %46, %49 : vector<16x512xi1>, vector<16x512xbf16>
    %c15_i32_23 = arith.constant 15 : i32
    %53 = vector.broadcast %c15_i32_23 : i32 to vector<1x512xi32>
    %54 = arith.cmpi ne, %2, %53 : vector<1x512xi32>
    %cst_24 = arith.constant 0.000000e+00 : bf16
    %55 = vector.broadcast %cst_24 : bf16 to vector<16x512xbf16>
    %56 = vector.shape_cast %54 : vector<1x512xi1> to vector<1x512xi1>
    %57 = vector.broadcast %56 : vector<1x512xi1> to vector<16x512xi1>
    %58 = arith.select %57, %52, %55 : vector<16x512xi1>, vector<16x512xbf16>
    %c0_25 = arith.constant 0 : index
    %c17_26 = arith.constant 17 : index
    %59 = vector.load %arg1[%c0_25, %c17_26] : memref<16x546xbf16, #tpu.memory_space<vmem>>, vector<16x512xbf16>
    %c0_27 = arith.constant 0 : index
    %c18 = arith.constant 18 : index
    %60 = vector.load %arg1[%c0_27, %c18] : memref<16x546xbf16, #tpu.memory_space<vmem>>, vector<16x512xbf16>
    %c15_i32_28 = arith.constant 15 : i32
    %61 = vector.broadcast %c15_i32_28 : i32 to vector<1x512xi32>
    %62 = arith.cmpi ne, %2, %61 : vector<1x512xi32>
    %cst_29 = arith.constant 0.000000e+00 : bf16
    %63 = vector.broadcast %cst_29 : bf16 to vector<16x512xbf16>
    %64 = vector.shape_cast %62 : vector<1x512xi1> to vector<1x512xi1>
    %65 = vector.broadcast %64 : vector<1x512xi1> to vector<16x512xi1>
    %66 = arith.select %65, %60, %63 : vector<16x512xi1>, vector<16x512xbf16>
    %67 = tpu.concatenate %45, %58, %59, %66 in 0 : vector<16x512xbf16>, vector<16x512xbf16>, vector<16x512xbf16>, vector<16x512xbf16> -> vector<64x512xbf16>
    %c0_30 = arith.constant 0 : index
    %c1_31 = arith.constant 1 : index
    %c0_32 = arith.constant 0 : index
    %c0_33 = arith.constant 0 : index
    %68 = vector.load %arg2[%c0_30, %c1_31, %c0_32, %c0_33] : memref<2x2x8x64xbf16, #tpu.memory_space<vmem>>, vector<1x1x8x64xbf16>
    %69 = vector.shape_cast %68 : vector<1x1x8x64xbf16> to vector<8x64xbf16>
    %cst_34 = arith.constant dense<0.000000e+00> : vector<8x512xf32>
    %70 = tpu.matmul %69, %67, %cst_34 {dimension_numbers = #tpu.dot_dimension_numbers<[1], [0], [0], [1], [0, 0, 1, 1], [], []>} : vector<8x64xbf16>, vector<64x512xbf16>, vector<8x512xf32> -> vector<8x512xf32>
    %c0_35 = arith.constant 0 : index
    %c16_36 = arith.constant 16 : index
    %71 = vector.load %arg1[%c0_35, %c16_36] : memref<16x546xbf16, #tpu.memory_space<vmem>>, vector<16x512xbf16>
    %c0_i32_37 = arith.constant 0 : i32
    %72 = vector.broadcast %c0_i32_37 : i32 to vector<1x512xi32>
    %73 = arith.cmpi ne, %2, %72 : vector<1x512xi32>
    %cst_38 = arith.constant 0.000000e+00 : bf16
    %74 = vector.broadcast %cst_38 : bf16 to vector<16x512xbf16>
    %75 = vector.shape_cast %73 : vector<1x512xi1> to vector<1x512xi1>
    %76 = vector.broadcast %75 : vector<1x512xi1> to vector<16x512xi1>
    %77 = arith.select %76, %71, %74 : vector<16x512xi1>, vector<16x512xbf16>
    %c0_39 = arith.constant 0 : index
    %c17_40 = arith.constant 17 : index
    %78 = vector.load %arg1[%c0_39, %c17_40] : memref<16x546xbf16, #tpu.memory_space<vmem>>, vector<16x512xbf16>
    %c0_41 = arith.constant 0 : index
    %c32 = arith.constant 32 : index
    %79 = vector.load %arg1[%c0_41, %c32] : memref<16x546xbf16, #tpu.memory_space<vmem>>, vector<16x512xbf16>
    %c15_i32_42 = arith.constant 15 : i32
    %80 = vector.broadcast %c15_i32_42 : i32 to vector<1x512xi32>
    %81 = arith.cmpi ne, %6, %80 : vector<1x512xi32>
    %cst_43 = arith.constant 0.000000e+00 : bf16
    %82 = vector.broadcast %cst_43 : bf16 to vector<16x512xbf16>
    %83 = vector.shape_cast %81 : vector<1x512xi1> to vector<1x512xi1>
    %84 = vector.broadcast %83 : vector<1x512xi1> to vector<16x512xi1>
    %85 = arith.select %84, %79, %82 : vector<16x512xi1>, vector<16x512xbf16>
    %c0_i32_44 = arith.constant 0 : i32
    %86 = vector.broadcast %c0_i32_44 : i32 to vector<1x512xi32>
    %87 = arith.cmpi ne, %2, %86 : vector<1x512xi32>
    %cst_45 = arith.constant 0.000000e+00 : bf16
    %88 = vector.broadcast %cst_45 : bf16 to vector<16x512xbf16>
    %89 = vector.shape_cast %87 : vector<1x512xi1> to vector<1x512xi1>
    %90 = vector.broadcast %89 : vector<1x512xi1> to vector<16x512xi1>
    %91 = arith.select %90, %85, %88 : vector<16x512xi1>, vector<16x512xbf16>
    %c0_46 = arith.constant 0 : index
    %c33 = arith.constant 33 : index
    %92 = vector.load %arg1[%c0_46, %c33] : memref<16x546xbf16, #tpu.memory_space<vmem>>, vector<16x512xbf16>
    %c15_i32_47 = arith.constant 15 : i32
    %93 = vector.broadcast %c15_i32_47 : i32 to vector<1x512xi32>
    %94 = arith.cmpi ne, %6, %93 : vector<1x512xi32>
    %cst_48 = arith.constant 0.000000e+00 : bf16
    %95 = vector.broadcast %cst_48 : bf16 to vector<16x512xbf16>
    %96 = vector.shape_cast %94 : vector<1x512xi1> to vector<1x512xi1>
    %97 = vector.broadcast %96 : vector<1x512xi1> to vector<16x512xi1>
    %98 = arith.select %97, %92, %95 : vector<16x512xi1>, vector<16x512xbf16>
    %99 = tpu.concatenate %77, %78, %91, %98 in 0 : vector<16x512xbf16>, vector<16x512xbf16>, vector<16x512xbf16>, vector<16x512xbf16> -> vector<64x512xbf16>
    %c1_49 = arith.constant 1 : index
    %c0_50 = arith.constant 0 : index
    %c0_51 = arith.constant 0 : index
    %c0_52 = arith.constant 0 : index
    %100 = vector.load %arg2[%c1_49, %c0_50, %c0_51, %c0_52] : memref<2x2x8x64xbf16, #tpu.memory_space<vmem>>, vector<1x1x8x64xbf16>
    %101 = vector.shape_cast %100 : vector<1x1x8x64xbf16> to vector<8x64xbf16>
    %cst_53 = arith.constant dense<0.000000e+00> : vector<8x512xf32>
    %102 = tpu.matmul %101, %99, %cst_53 {dimension_numbers = #tpu.dot_dimension_numbers<[1], [0], [0], [1], [0, 0, 1, 1], [], []>} : vector<8x64xbf16>, vector<64x512xbf16>, vector<8x512xf32> -> vector<8x512xf32>
    %c0_54 = arith.constant 0 : index
    %c17_55 = arith.constant 17 : index
    %103 = vector.load %arg1[%c0_54, %c17_55] : memref<16x546xbf16, #tpu.memory_space<vmem>>, vector<16x512xbf16>
    %c0_56 = arith.constant 0 : index
    %c18_57 = arith.constant 18 : index
    %104 = vector.load %arg1[%c0_56, %c18_57] : memref<16x546xbf16, #tpu.memory_space<vmem>>, vector<16x512xbf16>
    %c15_i32_58 = arith.constant 15 : i32
    %105 = vector.broadcast %c15_i32_58 : i32 to vector<1x512xi32>
    %106 = arith.cmpi ne, %2, %105 : vector<1x512xi32>
    %cst_59 = arith.constant 0.000000e+00 : bf16
    %107 = vector.broadcast %cst_59 : bf16 to vector<16x512xbf16>
    %108 = vector.shape_cast %106 : vector<1x512xi1> to vector<1x512xi1>
    %109 = vector.broadcast %108 : vector<1x512xi1> to vector<16x512xi1>
    %110 = arith.select %109, %104, %107 : vector<16x512xi1>, vector<16x512xbf16>
    %c0_60 = arith.constant 0 : index
    %c33_61 = arith.constant 33 : index
    %111 = vector.load %arg1[%c0_60, %c33_61] : memref<16x546xbf16, #tpu.memory_space<vmem>>, vector<16x512xbf16>
    %c15_i32_62 = arith.constant 15 : i32
    %112 = vector.broadcast %c15_i32_62 : i32 to vector<1x512xi32>
    %113 = arith.cmpi ne, %6, %112 : vector<1x512xi32>
    %cst_63 = arith.constant 0.000000e+00 : bf16
    %114 = vector.broadcast %cst_63 : bf16 to vector<16x512xbf16>
    %115 = vector.shape_cast %113 : vector<1x512xi1> to vector<1x512xi1>
    %116 = vector.broadcast %115 : vector<1x512xi1> to vector<16x512xi1>
    %117 = arith.select %116, %111, %114 : vector<16x512xi1>, vector<16x512xbf16>
    %c0_64 = arith.constant 0 : index
    %c34 = arith.constant 34 : index
    %118 = vector.load %arg1[%c0_64, %c34] : memref<16x546xbf16, #tpu.memory_space<vmem>>, vector<16x512xbf16>
    %c15_i32_65 = arith.constant 15 : i32
    %119 = vector.broadcast %c15_i32_65 : i32 to vector<1x512xi32>
    %120 = arith.cmpi ne, %6, %119 : vector<1x512xi32>
    %cst_66 = arith.constant 0.000000e+00 : bf16
    %121 = vector.broadcast %cst_66 : bf16 to vector<16x512xbf16>
    %122 = vector.shape_cast %120 : vector<1x512xi1> to vector<1x512xi1>
    %123 = vector.broadcast %122 : vector<1x512xi1> to vector<16x512xi1>
    %124 = arith.select %123, %118, %121 : vector<16x512xi1>, vector<16x512xbf16>
    %c15_i32_67 = arith.constant 15 : i32
    %125 = vector.broadcast %c15_i32_67 : i32 to vector<1x512xi32>
    %126 = arith.cmpi ne, %2, %125 : vector<1x512xi32>
    %cst_68 = arith.constant 0.000000e+00 : bf16
    %127 = vector.broadcast %cst_68 : bf16 to vector<16x512xbf16>
    %128 = vector.shape_cast %126 : vector<1x512xi1> to vector<1x512xi1>
    %129 = vector.broadcast %128 : vector<1x512xi1> to vector<16x512xi1>
    %130 = arith.select %129, %124, %127 : vector<16x512xi1>, vector<16x512xbf16>
    %131 = tpu.concatenate %103, %110, %117, %130 in 0 : vector<16x512xbf16>, vector<16x512xbf16>, vector<16x512xbf16>, vector<16x512xbf16> -> vector<64x512xbf16>
    %c1_69 = arith.constant 1 : index
    %c1_70 = arith.constant 1 : index
    %c0_71 = arith.constant 0 : index
    %c0_72 = arith.constant 0 : index
    %132 = vector.load %arg2[%c1_69, %c1_70, %c0_71, %c0_72] : memref<2x2x8x64xbf16, #tpu.memory_space<vmem>>, vector<1x1x8x64xbf16>
    %133 = vector.shape_cast %132 : vector<1x1x8x64xbf16> to vector<8x64xbf16>
    %cst_73 = arith.constant dense<0.000000e+00> : vector<8x512xf32>
    %134 = tpu.matmul %133, %131, %cst_73 {dimension_numbers = #tpu.dot_dimension_numbers<[1], [0], [0], [1], [0, 0, 1, 1], [], []>} : vector<8x64xbf16>, vector<64x512xbf16>, vector<8x512xf32> -> vector<8x512xf32>
    %cst_74 = arith.constant dense<0.000000e+00> : vector<8xf32>
    %135 = vector.multi_reduction <add>, %38, %cst_74 [1] : vector<8x512xf32> to vector<8xf32>
    %136 = vector.shape_cast %135 : vector<8xf32> to vector<8x1xf32>
    %cst_75 = arith.constant 0.000000e+00 : f32
    %137 = vector.broadcast %cst_75 : f32 to vector<8x1xf32>
    %138 = arith.addf %137, %136 : vector<8x1xf32>
    %cst_76 = arith.constant dense<0.000000e+00> : vector<8xf32>
    %139 = vector.multi_reduction <add>, %70, %cst_76 [1] : vector<8x512xf32> to vector<8xf32>
    %140 = vector.shape_cast %139 : vector<8xf32> to vector<8x1xf32>
    %141 = arith.addf %138, %140 : vector<8x1xf32>
    %cst_77 = arith.constant dense<0.000000e+00> : vector<8xf32>
    %142 = vector.multi_reduction <add>, %102, %cst_77 [1] : vector<8x512xf32> to vector<8xf32>
    %143 = vector.shape_cast %142 : vector<8xf32> to vector<8x1xf32>
    %144 = arith.addf %141, %143 : vector<8x1xf32>
    %cst_78 = arith.constant dense<0.000000e+00> : vector<8xf32>
    %145 = vector.multi_reduction <add>, %134, %cst_78 [1] : vector<8x512xf32> to vector<8xf32>
    %146 = vector.shape_cast %145 : vector<8xf32> to vector<8x1xf32>
    %147 = arith.addf %144, %146 : vector<8x1xf32>
    %148 = arith.mulf %38, %38 : vector<8x512xf32>
    %cst_79 = arith.constant dense<0.000000e+00> : vector<8xf32>
    %149 = vector.multi_reduction <add>, %148, %cst_79 [1] : vector<8x512xf32> to vector<8xf32>
    %150 = vector.shape_cast %149 : vector<8xf32> to vector<8x1xf32>
    %cst_80 = arith.constant 0.000000e+00 : f32
    %151 = vector.broadcast %cst_80 : f32 to vector<8x1xf32>
    %152 = arith.addf %151, %150 : vector<8x1xf32>
    %153 = arith.mulf %70, %70 : vector<8x512xf32>
    %cst_81 = arith.constant dense<0.000000e+00> : vector<8xf32>
    %154 = vector.multi_reduction <add>, %153, %cst_81 [1] : vector<8x512xf32> to vector<8xf32>
    %155 = vector.shape_cast %154 : vector<8xf32> to vector<8x1xf32>
    %156 = arith.addf %152, %155 : vector<8x1xf32>
    %157 = arith.mulf %102, %102 : vector<8x512xf32>
    %cst_82 = arith.constant dense<0.000000e+00> : vector<8xf32>
    %158 = vector.multi_reduction <add>, %157, %cst_82 [1] : vector<8x512xf32> to vector<8xf32>
    %159 = vector.shape_cast %158 : vector<8xf32> to vector<8x1xf32>
    %160 = arith.addf %156, %159 : vector<8x1xf32>
    %161 = arith.mulf %134, %134 : vector<8x512xf32>
    %cst_83 = arith.constant dense<0.000000e+00> : vector<8xf32>
    %162 = vector.multi_reduction <add>, %161, %cst_83 [1] : vector<8x512xf32> to vector<8xf32>
    %163 = vector.shape_cast %162 : vector<8xf32> to vector<8x1xf32>
    %164 = arith.addf %160, %163 : vector<8x1xf32>
    %cst_84 = arith.constant 4.8828125E-4 : f32
    %165 = vector.broadcast %cst_84 : f32 to vector<8x1xf32>
    %166 = arith.mulf %147, %165 : vector<8x1xf32>
    %cst_85 = arith.constant 4.8828125E-4 : f32
    %167 = vector.broadcast %cst_85 : f32 to vector<8x1xf32>
    %168 = arith.mulf %164, %167 : vector<8x1xf32>
    %169 = arith.mulf %166, %166 : vector<8x1xf32>
    %170 = arith.subf %168, %169 : vector<8x1xf32>
    %cst_86 = arith.constant 0.000000e+00 : f32
    %171 = vector.broadcast %cst_86 : f32 to vector<8x1xf32>
    %172 = arith.maximumf %170, %171 : vector<8x1xf32>
    %c0_87 = arith.constant 0 : index
    %c0_88 = arith.constant 0 : index
    %173 = vector.load %arg3[%c0_87, %c0_88] : memref<8x1xf32, #tpu.memory_space<vmem>>, vector<8x1xf32>
    %cst_89 = arith.constant 9.99999974E-6 : f32
    %174 = vector.broadcast %cst_89 : f32 to vector<8x1xf32>
    %175 = arith.addf %172, %174 : vector<8x1xf32>
    %176 = math.rsqrt %175 : vector<8x1xf32>
    %177 = arith.mulf %173, %176 : vector<8x1xf32>
    %c0_90 = arith.constant 0 : index
    %c0_91 = arith.constant 0 : index
    %178 = vector.load %arg4[%c0_90, %c0_91] : memref<8x1xf32, #tpu.memory_space<vmem>>, vector<8x1xf32>
    %179 = arith.mulf %166, %177 : vector<8x1xf32>
    %180 = arith.subf %178, %179 : vector<8x1xf32>
    %181 = vector.broadcast %177 : vector<8x1xf32> to vector<8x512xf32>
    %182 = arith.mulf %38, %181 : vector<8x512xf32>
    %183 = vector.broadcast %180 : vector<8x1xf32> to vector<8x512xf32>
    %184 = arith.addf %182, %183 : vector<8x512xf32>
    %cst_92 = arith.constant 0.000000e+00 : f32
    %185 = vector.broadcast %cst_92 : f32 to vector<8x512xf32>
    %186 = arith.maximumf %184, %185 : vector<8x512xf32>
    %187 = vector.broadcast %177 : vector<8x1xf32> to vector<8x512xf32>
    %188 = arith.mulf %70, %187 : vector<8x512xf32>
    %189 = vector.broadcast %180 : vector<8x1xf32> to vector<8x512xf32>
    %190 = arith.addf %188, %189 : vector<8x512xf32>
    %cst_93 = arith.constant 0.000000e+00 : f32
    %191 = vector.broadcast %cst_93 : f32 to vector<8x512xf32>
    %192 = arith.maximumf %190, %191 : vector<8x512xf32>
    %193 = vector.broadcast %177 : vector<8x1xf32> to vector<8x512xf32>
    %194 = arith.mulf %102, %193 : vector<8x512xf32>
    %195 = vector.broadcast %180 : vector<8x1xf32> to vector<8x512xf32>
    %196 = arith.addf %194, %195 : vector<8x512xf32>
    %cst_94 = arith.constant 0.000000e+00 : f32
    %197 = vector.broadcast %cst_94 : f32 to vector<8x512xf32>
    %198 = arith.maximumf %196, %197 : vector<8x512xf32>
    %199 = vector.broadcast %177 : vector<8x1xf32> to vector<8x512xf32>
    %200 = arith.mulf %134, %199 : vector<8x512xf32>
    %201 = vector.broadcast %180 : vector<8x1xf32> to vector<8x512xf32>
    %202 = arith.addf %200, %201 : vector<8x512xf32>
    %cst_95 = arith.constant 0.000000e+00 : f32
    %203 = vector.broadcast %cst_95 : f32 to vector<8x512xf32>
    %204 = arith.maximumf %202, %203 : vector<8x512xf32>
    %205 = arith.truncf %186 : vector<8x512xf32> to vector<8x512xbf16>
    %c0_96 = arith.constant 0 : index
    %c0_97 = arith.constant 0 : index
    %c0_98 = arith.constant 0 : index
    %c0_99 = arith.constant 0 : index
    %206 = vector.load %arg5[%c0_96, %c0_97, %c0_98, %c0_99] : memref<2x2x8x512xbf16, #tpu.memory_space<vmem>>, vector<1x1x8x512xbf16>
    %207 = vector.shape_cast %206 : vector<1x1x8x512xbf16> to vector<8x512xbf16>
    %208 = vector.shape_cast %205 : vector<8x512xbf16> to vector<1x1x8x512xbf16>
    tpu.vector_store %arg5[%c0_96, %c0_97, %c0_98, %c0_99], %208 {strides = array<i32>} : memref<2x2x8x512xbf16, #tpu.memory_space<vmem>>, vector<1x1x8x512xbf16>,
    %209 = arith.truncf %192 : vector<8x512xf32> to vector<8x512xbf16>
    %c0_100 = arith.constant 0 : index
    %c1_101 = arith.constant 1 : index
    %c0_102 = arith.constant 0 : index
    %c0_103 = arith.constant 0 : index
    %210 = vector.load %arg5[%c0_100, %c1_101, %c0_102, %c0_103] : memref<2x2x8x512xbf16, #tpu.memory_space<vmem>>, vector<1x1x8x512xbf16>
    %211 = vector.shape_cast %210 : vector<1x1x8x512xbf16> to vector<8x512xbf16>
    %212 = vector.shape_cast %209 : vector<8x512xbf16> to vector<1x1x8x512xbf16>
    tpu.vector_store %arg5[%c0_100, %c1_101, %c0_102, %c0_103], %212 {strides = array<i32>} : memref<2x2x8x512xbf16, #tpu.memory_space<vmem>>, vector<1x1x8x512xbf16>,
    %213 = arith.truncf %198 : vector<8x512xf32> to vector<8x512xbf16>
    %c1_104 = arith.constant 1 : index
    %c0_105 = arith.constant 0 : index
    %c0_106 = arith.constant 0 : index
    %c0_107 = arith.constant 0 : index
    %214 = vector.load %arg5[%c1_104, %c0_105, %c0_106, %c0_107] : memref<2x2x8x512xbf16, #tpu.memory_space<vmem>>, vector<1x1x8x512xbf16>
    %215 = vector.shape_cast %214 : vector<1x1x8x512xbf16> to vector<8x512xbf16>
    %216 = vector.shape_cast %213 : vector<8x512xbf16> to vector<1x1x8x512xbf16>
    tpu.vector_store %arg5[%c1_104, %c0_105, %c0_106, %c0_107], %216 {strides = array<i32>} : memref<2x2x8x512xbf16, #tpu.memory_space<vmem>>, vector<1x1x8x512xbf16>,
    %217 = arith.truncf %204 : vector<8x512xf32> to vector<8x512xbf16>
    %c1_108 = arith.constant 1 : index
    %c1_109 = arith.constant 1 : index
    %c0_110 = arith.constant 0 : index
    %c0_111 = arith.constant 0 : index
    %218 = vector.load %arg5[%c1_108, %c1_109, %c0_110, %c0_111] : memref<2x2x8x512xbf16, #tpu.memory_space<vmem>>, vector<1x1x8x512xbf16>
    %219 = vector.shape_cast %218 : vector<1x1x8x512xbf16> to vector<8x512xbf16>
    %220 = vector.shape_cast %217 : vector<8x512xbf16> to vector<1x1x8x512xbf16>
    tpu.vector_store %arg5[%c1_108, %c1_109, %c0_110, %c0_111], %220 {strides = array<i32>} : memref<2x2x8x512xbf16, #tpu.memory_space<vmem>>, vector<1x1x8x512xbf16>,
    return
  }
  func.func @transform_0(%arg0: i32) -> (i32, i32) {
    %c0_i32 = arith.constant 0 : i32
    %c0_i32_0 = arith.constant 0 : i32
    %c0_i32_1 = arith.constant 0 : i32
    return %c0_i32, %c0_i32_0 : i32, i32
  }
  func.func @transform_1(%arg0: i32) -> (i32, i32, i32, i32) {
    %c0_i32 = arith.constant 0 : i32
    %c0_i32_0 = arith.constant 0 : i32
    %c0_i32_1 = arith.constant 0 : i32
    %c0_i32_2 = arith.constant 0 : i32
    %c0_i32_3 = arith.constant 0 : i32
    return %c0_i32, %c0_i32_0, %c0_i32_1, %c0_i32_2 : i32, i32, i32, i32
  }
  func.func @transform_2(%arg0: i32) -> (i32, i32) {
    %c0_i32 = arith.constant 0 : i32
    %c0_i32_0 = arith.constant 0 : i32
    %c0_i32_1 = arith.constant 0 : i32
    return %c0_i32, %c0_i32_0 : i32, i32
  }
  func.func @transform_3(%arg0: i32) -> (i32, i32) {
    %c0_i32 = arith.constant 0 : i32
    %c0_i32_0 = arith.constant 0 : i32
    %c0_i32_1 = arith.constant 0 : i32
    return %c0_i32, %c0_i32_0 : i32, i32
  }
  func.func @transform_4(%arg0: i32) -> (i32, i32, i32, i32) {
    %c0_i32 = arith.constant 0 : i32
    %c0_i32_0 = arith.constant 0 : i32
    %c0_i32_1 = arith.constant 0 : i32
    %c0_i32_2 = arith.constant 0 : i32
    %c0_i32_3 = arith.constant 0 : i32
    return %c0_i32, %c0_i32_0, %c0_i32_1, %c0_i32_2 : i32, i32, i32, i32
  }
}

module attributes {stable_mosaic.version = 11 : i64} {
  func.func @_convt_tanh_kernel(%arg0: i32, %arg1: memref<8x2114xbf16, #tpu.memory_space<vmem>>, %arg2: memref<2x2x3x32xbf16, #tpu.memory_space<vmem>>, %arg3: memref<2x2x3x2048xf32, #tpu.memory_space<vmem>>) attributes {dimension_semantics = [#tpu.dimension_semantics<arbitrary>], iteration_bounds = array<i64: 1>, scalar_prefetch = 0 : i64, scratch_operands = 0 : i64, tpu.core_type = #tpu.core_type<tc>, window_params = [{pipeline_mode = #tpu.pipeline_mode<synchronous>, transform_indices = @transform_0, window_bounds = array<i64: 8, 2114>}, {pipeline_mode = #tpu.pipeline_mode<synchronous>, transform_indices = @transform_1, window_bounds = array<i64: 2, 2, 3, 32>}, {pipeline_mode = #tpu.pipeline_mode<synchronous>, transform_indices = @transform_2, window_bounds = array<i64: 2, 2, 3, 2048>}]} {
    %0 = tpu.iota {dimensions = array<i32: 1>} : vector<1x2048xi32>
    %c31_i32 = arith.constant 31 : i32
    %1 = vector.broadcast %c31_i32 : i32 to vector<1x2048xi32>
    %2 = arith.andi %0, %1 : vector<1x2048xi32>
    %c5_i32 = arith.constant 5 : i32
    %3 = vector.broadcast %c5_i32 : i32 to vector<1x2048xi32>
    %4 = arith.shrsi %0, %3 : vector<1x2048xi32>
    %c31_i32_0 = arith.constant 31 : i32
    %5 = vector.broadcast %c31_i32_0 : i32 to vector<1x2048xi32>
    %6 = arith.andi %4, %5 : vector<1x2048xi32>
    %c0 = arith.constant 0 : index
    %c0_1 = arith.constant 0 : index
    %7 = vector.load %arg1[%c0, %c0_1] : memref<8x2114xbf16, #tpu.memory_space<vmem>>, vector<8x2048xbf16>
    %c0_i32 = arith.constant 0 : i32
    %8 = vector.broadcast %c0_i32 : i32 to vector<1x2048xi32>
    %9 = arith.cmpi ne, %6, %8 : vector<1x2048xi32>
    %cst = arith.constant 0.000000e+00 : bf16
    %10 = vector.broadcast %cst : bf16 to vector<8x2048xbf16>
    %11 = vector.shape_cast %9 : vector<1x2048xi1> to vector<1x2048xi1>
    %12 = vector.broadcast %11 : vector<1x2048xi1> to vector<8x2048xi1>
    %13 = arith.select %12, %7, %10 : vector<8x2048xi1>, vector<8x2048xbf16>
    %c0_i32_2 = arith.constant 0 : i32
    %14 = vector.broadcast %c0_i32_2 : i32 to vector<1x2048xi32>
    %15 = arith.cmpi ne, %2, %14 : vector<1x2048xi32>
    %cst_3 = arith.constant 0.000000e+00 : bf16
    %16 = vector.broadcast %cst_3 : bf16 to vector<8x2048xbf16>
    %17 = vector.shape_cast %15 : vector<1x2048xi1> to vector<1x2048xi1>
    %18 = vector.broadcast %17 : vector<1x2048xi1> to vector<8x2048xi1>
    %19 = arith.select %18, %13, %16 : vector<8x2048xi1>, vector<8x2048xbf16>
    %c0_4 = arith.constant 0 : index
    %c1 = arith.constant 1 : index
    %20 = vector.load %arg1[%c0_4, %c1] : memref<8x2114xbf16, #tpu.memory_space<vmem>>, vector<8x2048xbf16>
    %c0_i32_5 = arith.constant 0 : i32
    %21 = vector.broadcast %c0_i32_5 : i32 to vector<1x2048xi32>
    %22 = arith.cmpi ne, %6, %21 : vector<1x2048xi32>
    %cst_6 = arith.constant 0.000000e+00 : bf16
    %23 = vector.broadcast %cst_6 : bf16 to vector<8x2048xbf16>
    %24 = vector.shape_cast %22 : vector<1x2048xi1> to vector<1x2048xi1>
    %25 = vector.broadcast %24 : vector<1x2048xi1> to vector<8x2048xi1>
    %26 = arith.select %25, %20, %23 : vector<8x2048xi1>, vector<8x2048xbf16>
    %c0_7 = arith.constant 0 : index
    %c32 = arith.constant 32 : index
    %27 = vector.load %arg1[%c0_7, %c32] : memref<8x2114xbf16, #tpu.memory_space<vmem>>, vector<8x2048xbf16>
    %c0_i32_8 = arith.constant 0 : i32
    %28 = vector.broadcast %c0_i32_8 : i32 to vector<1x2048xi32>
    %29 = arith.cmpi ne, %2, %28 : vector<1x2048xi32>
    %cst_9 = arith.constant 0.000000e+00 : bf16
    %30 = vector.broadcast %cst_9 : bf16 to vector<8x2048xbf16>
    %31 = vector.shape_cast %29 : vector<1x2048xi1> to vector<1x2048xi1>
    %32 = vector.broadcast %31 : vector<1x2048xi1> to vector<8x2048xi1>
    %33 = arith.select %32, %27, %30 : vector<8x2048xi1>, vector<8x2048xbf16>
    %c0_10 = arith.constant 0 : index
    %c33 = arith.constant 33 : index
    %34 = vector.load %arg1[%c0_10, %c33] : memref<8x2114xbf16, #tpu.memory_space<vmem>>, vector<8x2048xbf16>
    %35 = tpu.concatenate %19, %26, %33, %34 in 0 : vector<8x2048xbf16>, vector<8x2048xbf16>, vector<8x2048xbf16>, vector<8x2048xbf16> -> vector<32x2048xbf16>
    %c0_11 = arith.constant 0 : index
    %c0_12 = arith.constant 0 : index
    %c0_13 = arith.constant 0 : index
    %c0_14 = arith.constant 0 : index
    %36 = vector.load %arg2[%c0_11, %c0_12, %c0_13, %c0_14] : memref<2x2x3x32xbf16, #tpu.memory_space<vmem>>, vector<1x1x3x32xbf16>
    %37 = vector.shape_cast %36 : vector<1x1x3x32xbf16> to vector<3x32xbf16>
    %cst_15 = arith.constant dense<0.000000e+00> : vector<3x2048xf32>
    %38 = tpu.matmul %37, %35, %cst_15 {dimension_numbers = #tpu.dot_dimension_numbers<[1], [0], [0], [1], [0, 0, 1, 1], [], []>} : vector<3x32xbf16>, vector<32x2048xbf16>, vector<3x2048xf32> -> vector<3x2048xf32>
    %c0_16 = arith.constant 0 : index
    %c1_17 = arith.constant 1 : index
    %39 = vector.load %arg1[%c0_16, %c1_17] : memref<8x2114xbf16, #tpu.memory_space<vmem>>, vector<8x2048xbf16>
    %c0_i32_18 = arith.constant 0 : i32
    %40 = vector.broadcast %c0_i32_18 : i32 to vector<1x2048xi32>
    %41 = arith.cmpi ne, %6, %40 : vector<1x2048xi32>
    %cst_19 = arith.constant 0.000000e+00 : bf16
    %42 = vector.broadcast %cst_19 : bf16 to vector<8x2048xbf16>
    %43 = vector.shape_cast %41 : vector<1x2048xi1> to vector<1x2048xi1>
    %44 = vector.broadcast %43 : vector<1x2048xi1> to vector<8x2048xi1>
    %45 = arith.select %44, %39, %42 : vector<8x2048xi1>, vector<8x2048xbf16>
    %c0_20 = arith.constant 0 : index
    %c2 = arith.constant 2 : index
    %46 = vector.load %arg1[%c0_20, %c2] : memref<8x2114xbf16, #tpu.memory_space<vmem>>, vector<8x2048xbf16>
    %c0_i32_21 = arith.constant 0 : i32
    %47 = vector.broadcast %c0_i32_21 : i32 to vector<1x2048xi32>
    %48 = arith.cmpi ne, %6, %47 : vector<1x2048xi32>
    %cst_22 = arith.constant 0.000000e+00 : bf16
    %49 = vector.broadcast %cst_22 : bf16 to vector<8x2048xbf16>
    %50 = vector.shape_cast %48 : vector<1x2048xi1> to vector<1x2048xi1>
    %51 = vector.broadcast %50 : vector<1x2048xi1> to vector<8x2048xi1>
    %52 = arith.select %51, %46, %49 : vector<8x2048xi1>, vector<8x2048xbf16>
    %c31_i32_23 = arith.constant 31 : i32
    %53 = vector.broadcast %c31_i32_23 : i32 to vector<1x2048xi32>
    %54 = arith.cmpi ne, %2, %53 : vector<1x2048xi32>
    %cst_24 = arith.constant 0.000000e+00 : bf16
    %55 = vector.broadcast %cst_24 : bf16 to vector<8x2048xbf16>
    %56 = vector.shape_cast %54 : vector<1x2048xi1> to vector<1x2048xi1>
    %57 = vector.broadcast %56 : vector<1x2048xi1> to vector<8x2048xi1>
    %58 = arith.select %57, %52, %55 : vector<8x2048xi1>, vector<8x2048xbf16>
    %c0_25 = arith.constant 0 : index
    %c33_26 = arith.constant 33 : index
    %59 = vector.load %arg1[%c0_25, %c33_26] : memref<8x2114xbf16, #tpu.memory_space<vmem>>, vector<8x2048xbf16>
    %c0_27 = arith.constant 0 : index
    %c34 = arith.constant 34 : index
    %60 = vector.load %arg1[%c0_27, %c34] : memref<8x2114xbf16, #tpu.memory_space<vmem>>, vector<8x2048xbf16>
    %c31_i32_28 = arith.constant 31 : i32
    %61 = vector.broadcast %c31_i32_28 : i32 to vector<1x2048xi32>
    %62 = arith.cmpi ne, %2, %61 : vector<1x2048xi32>
    %cst_29 = arith.constant 0.000000e+00 : bf16
    %63 = vector.broadcast %cst_29 : bf16 to vector<8x2048xbf16>
    %64 = vector.shape_cast %62 : vector<1x2048xi1> to vector<1x2048xi1>
    %65 = vector.broadcast %64 : vector<1x2048xi1> to vector<8x2048xi1>
    %66 = arith.select %65, %60, %63 : vector<8x2048xi1>, vector<8x2048xbf16>
    %67 = tpu.concatenate %45, %58, %59, %66 in 0 : vector<8x2048xbf16>, vector<8x2048xbf16>, vector<8x2048xbf16>, vector<8x2048xbf16> -> vector<32x2048xbf16>
    %c0_30 = arith.constant 0 : index
    %c1_31 = arith.constant 1 : index
    %c0_32 = arith.constant 0 : index
    %c0_33 = arith.constant 0 : index
    %68 = vector.load %arg2[%c0_30, %c1_31, %c0_32, %c0_33] : memref<2x2x3x32xbf16, #tpu.memory_space<vmem>>, vector<1x1x3x32xbf16>
    %69 = vector.shape_cast %68 : vector<1x1x3x32xbf16> to vector<3x32xbf16>
    %cst_34 = arith.constant dense<0.000000e+00> : vector<3x2048xf32>
    %70 = tpu.matmul %69, %67, %cst_34 {dimension_numbers = #tpu.dot_dimension_numbers<[1], [0], [0], [1], [0, 0, 1, 1], [], []>} : vector<3x32xbf16>, vector<32x2048xbf16>, vector<3x2048xf32> -> vector<3x2048xf32>
    %c0_35 = arith.constant 0 : index
    %c32_36 = arith.constant 32 : index
    %71 = vector.load %arg1[%c0_35, %c32_36] : memref<8x2114xbf16, #tpu.memory_space<vmem>>, vector<8x2048xbf16>
    %c0_i32_37 = arith.constant 0 : i32
    %72 = vector.broadcast %c0_i32_37 : i32 to vector<1x2048xi32>
    %73 = arith.cmpi ne, %2, %72 : vector<1x2048xi32>
    %cst_38 = arith.constant 0.000000e+00 : bf16
    %74 = vector.broadcast %cst_38 : bf16 to vector<8x2048xbf16>
    %75 = vector.shape_cast %73 : vector<1x2048xi1> to vector<1x2048xi1>
    %76 = vector.broadcast %75 : vector<1x2048xi1> to vector<8x2048xi1>
    %77 = arith.select %76, %71, %74 : vector<8x2048xi1>, vector<8x2048xbf16>
    %c0_39 = arith.constant 0 : index
    %c33_40 = arith.constant 33 : index
    %78 = vector.load %arg1[%c0_39, %c33_40] : memref<8x2114xbf16, #tpu.memory_space<vmem>>, vector<8x2048xbf16>
    %c0_41 = arith.constant 0 : index
    %c64 = arith.constant 64 : index
    %79 = vector.load %arg1[%c0_41, %c64] : memref<8x2114xbf16, #tpu.memory_space<vmem>>, vector<8x2048xbf16>
    %c31_i32_42 = arith.constant 31 : i32
    %80 = vector.broadcast %c31_i32_42 : i32 to vector<1x2048xi32>
    %81 = arith.cmpi ne, %6, %80 : vector<1x2048xi32>
    %cst_43 = arith.constant 0.000000e+00 : bf16
    %82 = vector.broadcast %cst_43 : bf16 to vector<8x2048xbf16>
    %83 = vector.shape_cast %81 : vector<1x2048xi1> to vector<1x2048xi1>
    %84 = vector.broadcast %83 : vector<1x2048xi1> to vector<8x2048xi1>
    %85 = arith.select %84, %79, %82 : vector<8x2048xi1>, vector<8x2048xbf16>
    %c0_i32_44 = arith.constant 0 : i32
    %86 = vector.broadcast %c0_i32_44 : i32 to vector<1x2048xi32>
    %87 = arith.cmpi ne, %2, %86 : vector<1x2048xi32>
    %cst_45 = arith.constant 0.000000e+00 : bf16
    %88 = vector.broadcast %cst_45 : bf16 to vector<8x2048xbf16>
    %89 = vector.shape_cast %87 : vector<1x2048xi1> to vector<1x2048xi1>
    %90 = vector.broadcast %89 : vector<1x2048xi1> to vector<8x2048xi1>
    %91 = arith.select %90, %85, %88 : vector<8x2048xi1>, vector<8x2048xbf16>
    %c0_46 = arith.constant 0 : index
    %c65 = arith.constant 65 : index
    %92 = vector.load %arg1[%c0_46, %c65] : memref<8x2114xbf16, #tpu.memory_space<vmem>>, vector<8x2048xbf16>
    %c31_i32_47 = arith.constant 31 : i32
    %93 = vector.broadcast %c31_i32_47 : i32 to vector<1x2048xi32>
    %94 = arith.cmpi ne, %6, %93 : vector<1x2048xi32>
    %cst_48 = arith.constant 0.000000e+00 : bf16
    %95 = vector.broadcast %cst_48 : bf16 to vector<8x2048xbf16>
    %96 = vector.shape_cast %94 : vector<1x2048xi1> to vector<1x2048xi1>
    %97 = vector.broadcast %96 : vector<1x2048xi1> to vector<8x2048xi1>
    %98 = arith.select %97, %92, %95 : vector<8x2048xi1>, vector<8x2048xbf16>
    %99 = tpu.concatenate %77, %78, %91, %98 in 0 : vector<8x2048xbf16>, vector<8x2048xbf16>, vector<8x2048xbf16>, vector<8x2048xbf16> -> vector<32x2048xbf16>
    %c1_49 = arith.constant 1 : index
    %c0_50 = arith.constant 0 : index
    %c0_51 = arith.constant 0 : index
    %c0_52 = arith.constant 0 : index
    %100 = vector.load %arg2[%c1_49, %c0_50, %c0_51, %c0_52] : memref<2x2x3x32xbf16, #tpu.memory_space<vmem>>, vector<1x1x3x32xbf16>
    %101 = vector.shape_cast %100 : vector<1x1x3x32xbf16> to vector<3x32xbf16>
    %cst_53 = arith.constant dense<0.000000e+00> : vector<3x2048xf32>
    %102 = tpu.matmul %101, %99, %cst_53 {dimension_numbers = #tpu.dot_dimension_numbers<[1], [0], [0], [1], [0, 0, 1, 1], [], []>} : vector<3x32xbf16>, vector<32x2048xbf16>, vector<3x2048xf32> -> vector<3x2048xf32>
    %c0_54 = arith.constant 0 : index
    %c33_55 = arith.constant 33 : index
    %103 = vector.load %arg1[%c0_54, %c33_55] : memref<8x2114xbf16, #tpu.memory_space<vmem>>, vector<8x2048xbf16>
    %c0_56 = arith.constant 0 : index
    %c34_57 = arith.constant 34 : index
    %104 = vector.load %arg1[%c0_56, %c34_57] : memref<8x2114xbf16, #tpu.memory_space<vmem>>, vector<8x2048xbf16>
    %c31_i32_58 = arith.constant 31 : i32
    %105 = vector.broadcast %c31_i32_58 : i32 to vector<1x2048xi32>
    %106 = arith.cmpi ne, %2, %105 : vector<1x2048xi32>
    %cst_59 = arith.constant 0.000000e+00 : bf16
    %107 = vector.broadcast %cst_59 : bf16 to vector<8x2048xbf16>
    %108 = vector.shape_cast %106 : vector<1x2048xi1> to vector<1x2048xi1>
    %109 = vector.broadcast %108 : vector<1x2048xi1> to vector<8x2048xi1>
    %110 = arith.select %109, %104, %107 : vector<8x2048xi1>, vector<8x2048xbf16>
    %c0_60 = arith.constant 0 : index
    %c65_61 = arith.constant 65 : index
    %111 = vector.load %arg1[%c0_60, %c65_61] : memref<8x2114xbf16, #tpu.memory_space<vmem>>, vector<8x2048xbf16>
    %c31_i32_62 = arith.constant 31 : i32
    %112 = vector.broadcast %c31_i32_62 : i32 to vector<1x2048xi32>
    %113 = arith.cmpi ne, %6, %112 : vector<1x2048xi32>
    %cst_63 = arith.constant 0.000000e+00 : bf16
    %114 = vector.broadcast %cst_63 : bf16 to vector<8x2048xbf16>
    %115 = vector.shape_cast %113 : vector<1x2048xi1> to vector<1x2048xi1>
    %116 = vector.broadcast %115 : vector<1x2048xi1> to vector<8x2048xi1>
    %117 = arith.select %116, %111, %114 : vector<8x2048xi1>, vector<8x2048xbf16>
    %c0_64 = arith.constant 0 : index
    %c66 = arith.constant 66 : index
    %118 = vector.load %arg1[%c0_64, %c66] : memref<8x2114xbf16, #tpu.memory_space<vmem>>, vector<8x2048xbf16>
    %c31_i32_65 = arith.constant 31 : i32
    %119 = vector.broadcast %c31_i32_65 : i32 to vector<1x2048xi32>
    %120 = arith.cmpi ne, %6, %119 : vector<1x2048xi32>
    %cst_66 = arith.constant 0.000000e+00 : bf16
    %121 = vector.broadcast %cst_66 : bf16 to vector<8x2048xbf16>
    %122 = vector.shape_cast %120 : vector<1x2048xi1> to vector<1x2048xi1>
    %123 = vector.broadcast %122 : vector<1x2048xi1> to vector<8x2048xi1>
    %124 = arith.select %123, %118, %121 : vector<8x2048xi1>, vector<8x2048xbf16>
    %c31_i32_67 = arith.constant 31 : i32
    %125 = vector.broadcast %c31_i32_67 : i32 to vector<1x2048xi32>
    %126 = arith.cmpi ne, %2, %125 : vector<1x2048xi32>
    %cst_68 = arith.constant 0.000000e+00 : bf16
    %127 = vector.broadcast %cst_68 : bf16 to vector<8x2048xbf16>
    %128 = vector.shape_cast %126 : vector<1x2048xi1> to vector<1x2048xi1>
    %129 = vector.broadcast %128 : vector<1x2048xi1> to vector<8x2048xi1>
    %130 = arith.select %129, %124, %127 : vector<8x2048xi1>, vector<8x2048xbf16>
    %131 = tpu.concatenate %103, %110, %117, %130 in 0 : vector<8x2048xbf16>, vector<8x2048xbf16>, vector<8x2048xbf16>, vector<8x2048xbf16> -> vector<32x2048xbf16>
    %c1_69 = arith.constant 1 : index
    %c1_70 = arith.constant 1 : index
    %c0_71 = arith.constant 0 : index
    %c0_72 = arith.constant 0 : index
    %132 = vector.load %arg2[%c1_69, %c1_70, %c0_71, %c0_72] : memref<2x2x3x32xbf16, #tpu.memory_space<vmem>>, vector<1x1x3x32xbf16>
    %133 = vector.shape_cast %132 : vector<1x1x3x32xbf16> to vector<3x32xbf16>
    %cst_73 = arith.constant dense<0.000000e+00> : vector<3x2048xf32>
    %134 = tpu.matmul %133, %131, %cst_73 {dimension_numbers = #tpu.dot_dimension_numbers<[1], [0], [0], [1], [0, 0, 1, 1], [], []>} : vector<3x32xbf16>, vector<32x2048xbf16>, vector<3x2048xf32> -> vector<3x2048xf32>
    %135 = math.tanh %38 : vector<3x2048xf32>
    %c0_74 = arith.constant 0 : index
    %c0_75 = arith.constant 0 : index
    %c0_76 = arith.constant 0 : index
    %c0_77 = arith.constant 0 : index
    %136 = vector.load %arg3[%c0_74, %c0_75, %c0_76, %c0_77] : memref<2x2x3x2048xf32, #tpu.memory_space<vmem>>, vector<1x1x3x2048xf32>
    %137 = vector.shape_cast %136 : vector<1x1x3x2048xf32> to vector<3x2048xf32>
    %138 = vector.shape_cast %135 : vector<3x2048xf32> to vector<1x1x3x2048xf32>
    tpu.vector_store %arg3[%c0_74, %c0_75, %c0_76, %c0_77], %138 {strides = array<i32>} : memref<2x2x3x2048xf32, #tpu.memory_space<vmem>>, vector<1x1x3x2048xf32>,
    %139 = math.tanh %70 : vector<3x2048xf32>
    %c0_78 = arith.constant 0 : index
    %c1_79 = arith.constant 1 : index
    %c0_80 = arith.constant 0 : index
    %c0_81 = arith.constant 0 : index
    %140 = vector.load %arg3[%c0_78, %c1_79, %c0_80, %c0_81] : memref<2x2x3x2048xf32, #tpu.memory_space<vmem>>, vector<1x1x3x2048xf32>
    %141 = vector.shape_cast %140 : vector<1x1x3x2048xf32> to vector<3x2048xf32>
    %142 = vector.shape_cast %139 : vector<3x2048xf32> to vector<1x1x3x2048xf32>
    tpu.vector_store %arg3[%c0_78, %c1_79, %c0_80, %c0_81], %142 {strides = array<i32>} : memref<2x2x3x2048xf32, #tpu.memory_space<vmem>>, vector<1x1x3x2048xf32>,
    %143 = math.tanh %102 : vector<3x2048xf32>
    %c1_82 = arith.constant 1 : index
    %c0_83 = arith.constant 0 : index
    %c0_84 = arith.constant 0 : index
    %c0_85 = arith.constant 0 : index
    %144 = vector.load %arg3[%c1_82, %c0_83, %c0_84, %c0_85] : memref<2x2x3x2048xf32, #tpu.memory_space<vmem>>, vector<1x1x3x2048xf32>
    %145 = vector.shape_cast %144 : vector<1x1x3x2048xf32> to vector<3x2048xf32>
    %146 = vector.shape_cast %143 : vector<3x2048xf32> to vector<1x1x3x2048xf32>
    tpu.vector_store %arg3[%c1_82, %c0_83, %c0_84, %c0_85], %146 {strides = array<i32>} : memref<2x2x3x2048xf32, #tpu.memory_space<vmem>>, vector<1x1x3x2048xf32>,
    %147 = math.tanh %134 : vector<3x2048xf32>
    %c1_86 = arith.constant 1 : index
    %c1_87 = arith.constant 1 : index
    %c0_88 = arith.constant 0 : index
    %c0_89 = arith.constant 0 : index
    %148 = vector.load %arg3[%c1_86, %c1_87, %c0_88, %c0_89] : memref<2x2x3x2048xf32, #tpu.memory_space<vmem>>, vector<1x1x3x2048xf32>
    %149 = vector.shape_cast %148 : vector<1x1x3x2048xf32> to vector<3x2048xf32>
    %150 = vector.shape_cast %147 : vector<3x2048xf32> to vector<1x1x3x2048xf32>
    tpu.vector_store %arg3[%c1_86, %c1_87, %c0_88, %c0_89], %150 {strides = array<i32>} : memref<2x2x3x2048xf32, #tpu.memory_space<vmem>>, vector<1x1x3x2048xf32>,
    return
  }
  func.func @transform_0(%arg0: i32) -> (i32, i32) {
    %c0_i32 = arith.constant 0 : i32
    %c0_i32_0 = arith.constant 0 : i32
    %c0_i32_1 = arith.constant 0 : i32
    return %c0_i32, %c0_i32_0 : i32, i32
  }
  func.func @transform_1(%arg0: i32) -> (i32, i32, i32, i32) {
    %c0_i32 = arith.constant 0 : i32
    %c0_i32_0 = arith.constant 0 : i32
    %c0_i32_1 = arith.constant 0 : i32
    %c0_i32_2 = arith.constant 0 : i32
    %c0_i32_3 = arith.constant 0 : i32
    return %c0_i32, %c0_i32_0, %c0_i32_1, %c0_i32_2 : i32, i32, i32, i32
  }
  func.func @transform_2(%arg0: i32) -> (i32, i32, i32, i32) {
    %c0_i32 = arith.constant 0 : i32
    %c0_i32_0 = arith.constant 0 : i32
    %c0_i32_1 = arith.constant 0 : i32
    %c0_i32_2 = arith.constant 0 : i32
    %c0_i32_3 = arith.constant 0 : i32
    return %c0_i32, %c0_i32_0, %c0_i32_1, %c0_i32_2 : i32, i32, i32, i32
  }
}

</mosaic_0001>

<llo_original>
// kernel: generator_forward.5
$region0: #{generator_forward.5}
  #allocation0 [shape = 'u32[]', space=smem, size = 0x4, offset = 0x4, fixed_abs, tag = 'smem constant byte address 0x4 - core index']
  #allocation1 [shape = 'u32[144,128]{1,0:T(1,128)}', space=vmem, size = 0x12000, scoped, tag = 'internal scratch']
  %s0 = inlined_call_operand.vmem [shape: bf16[32,146], index: 0, kind: input, shape index: {}]
  %s1 = inlined_call_operand.hbm [shape: bf16[2,2,16,128], index: 1, kind: input, shape index: {}]
  %s2 = inlined_call_operand.vmem [shape: f32[16,1], index: 2, kind: input, shape index: {}]
  %s3 = inlined_call_operand.vmem [shape: f32[16,1], index: 3, kind: input, shape index: {}]
  %s4 = inlined_call_operand.vmem [shape: bf16[2,2,16,128], index: 4, kind: output, shape index: {}]
  %s5 = sld [smem:[#allocation0]]
  $region30: #{generator_forward.5} parent=0
    _
  %s7 = ssub.s32 1, %s5
  %s8 = scalar_select 0, %s7, %s5
  $region1: #{generator_forward.5} parent=0
    #allocation2 [shape = 'u8[16384]{0}', space=vmem, size = 0x4000, scoped, tag = 'input window, operand 1, single buffered']
    #allocation3 [shape = 's32[1]{0}', space=sflag, size = 0x4, scoped, tag = 'scoped memory for generator_forward.5']
    %9 = vsyncpa [#allocation3], 0
    // Predicated region
    $region2: #{generator_forward.5} parent=1 // pred_check
      _
    $region3: #{generator_forward.5} parent=1 // pred_check_branch
      %11 = sbr.rel (0) target = $region5
    $region4: #{generator_forward.5} parent=1 // pred_region
      _
    $region5: #{generator_forward.5} parent=1 // pred_fallthru
      _
    // Predicated region
    $region6: #{generator_forward.5} parent=1 // pred_check
      _
    $region7: #{generator_forward.5} parent=1 // pred_check_branch
      %13 = sbr.rel (0) target = $region9
    $region8: #{generator_forward.5} parent=1 // pred_region
      %s15 = ssub.s32 512, 512
      %16 = vsyncadd [#allocation3], %s15
      %s17 = sshll.u32 [#allocation2], 4
      %s18 = int_to_ptr.vmem [resolvable:$true] %s17
      %23 = dma.hbm_to_vmem [thread:$0]  %s1, 512, %s18, [#allocation3], 64, 64, 4
    $region9: #{generator_forward.5} parent=1 // pred_fallthru
      _
    // Predicated region
    $region10: #{generator_forward.5} parent=1 // pred_check
      _
    $region11: #{generator_forward.5} parent=1 // pred_check_branch
      %25 = sbr.rel (0) target = $region13
    $region12: #{generator_forward.5} parent=1 // pred_region
      _
    $region13: #{generator_forward.5} parent=1 // pred_fallthru
      _
    // Predicated region
    $region14: #{generator_forward.5} parent=1 // pred_check
      _
    $region15: #{generator_forward.5} parent=1 // pred_check_branch
      %27 = sbr.rel (0) target = $region17
    $region16: #{generator_forward.5} parent=1 // pred_region
      _
    $region17: #{generator_forward.5} parent=1 // pred_fallthru
      _
    // Predicated region
    $region18: #{generator_forward.5} parent=1 // pred_check
      _
    $region19: #{generator_forward.5} parent=1 // pred_check_branch
      %29 = sbr.rel (0) target = $region21
    $region20: #{generator_forward.5} parent=1 // pred_region
      %30 = dma.done [#allocation3], 512
    $region21: #{generator_forward.5} parent=1 // pred_fallthru
      _
    %v34 = vlaneseq
    %v35 = vand.u32 %v34, 127
    %v36 = vand.u32 %v35, 7
    %v37 = vshra.s32 %v35, 3
    %v38 = vand.u32 %v37, 7
    %v39 = vld [vmem:[%s0] sm:$0xf]
    %v40 = vld [vmem:[%s0 + $0x8] sm:$0xf]
    %v41 = vld [vmem:[%s0 + $0x10] sm:$0xf]
    %v42 = vld [vmem:[%s0 + $0x18] sm:$0xf]
    %vm43 = vcmp.ne.s32.totalorder %v38, 0
    %v44 = vsel %vm43, 1, 0
    %vm45 = vcmp.eq.s32.totalorder %v44, 1
    %vm46 = vmpackc.low %vm45, %vm45
    %v47 = vsel %vm46, %v39, 0
    %v48 = vsel %vm46, %v40, 0
    %v49 = vsel %vm46, %v41, 0
    %v50 = vsel %vm46, %v42, 0
    %vm51 = vcmp.ne.s32.totalorder %v36, 0
    %v52 = vsel %vm51, 1, 0
    %vm53 = vcmp.eq.s32.totalorder %v52, 1
    %vm54 = vmpackc.low %vm53, %vm53
    %v55 = vsel %vm54, %v47, 0
    %v56 = vsel %vm54, %v48, 0
    %v57 = vsel %vm54, %v49, 0
    %v58 = vsel %vm54, %v50, 0
    %v59 = vld [vmem:[%s0] sm:$0xff]
    %v60 = vld [vmem:[%s0 + $0x8] sm:$0xff]
    %v61 = vld [vmem:[%s0 + $0x10] sm:$0xff]
    %v62 = vld [vmem:[%s0 + $0x18] sm:$0xff]
    %v63 = vsel %vm46, 65537, 0
    %64 = vrot.lane.b32.xlu0 %v63, 1
    %v65 = vpop.permute.xlu0 %64
    %v66 = vrot.slane %v65, 4
    %vm67 = vcmask 7168
    %v68 = vsel %vm67, %v66, %v65
    %vm69 = vcmp.ne.s16.totalorder %v68, 0
    %v70 = vsel %vm69, %v59, 0
    %v71 = vsel %vm69, %v60, 0
    %v72 = vsel %vm69, %v61, 0
    %v73 = vsel %vm69, %v62, 0
    %v74 = vsel %vm54, 65537, 0
    %75 = vrot.lane.b32.xlu0 %v74, 8
    %v76 = vpop.permute.xlu0 %75
    %v77 = vrot.slane %v76, 4
    %vm78 = vcmask 64512
    %v79 = vsel %vm78, %v77, %v76
    %vm80 = vcmp.ne.s16.totalorder %v79, 0
    %v81 = vsel %vm80, %v59, 0
    %v82 = vsel %vm80, %v60, 0
    %v83 = vsel %vm80, %v61, 0
    %v84 = vsel %vm80, %v62, 0
    %v89 = vunpack.c.l.b16 %v55
    %v90 = vunpack.c.l.b16 %v56
    %v91 = vunpack.c.l.b16 %v57
    %v92 = vunpack.c.l.b16 %v58
    %v93 = vpack.c.b16 %v90, %v89
    %v94 = vpack.c.b16 %v92, %v91
    %v101 = vunpack.c.l.b16 %v70
    %v102 = vunpack.c.h.b16 %v70
    %v103 = vunpack.c.l.b16 %v71
    %v104 = vunpack.c.h.b16 %v71
    %v105 = vunpack.c.l.b16 %v72
    %v106 = vunpack.c.h.b16 %v72
    %v107 = vunpack.c.l.b16 %v73
    %v108 = vunpack.c.h.b16 %v73
    %v109 = vpack.c.b16 %v103, %v101
    %v110 = vpack.c.b16 %v104, %v102
    %v111 = vpack.c.b16 %v107, %v105
    %v112 = vpack.c.b16 %v108, %v106
    %113 = vrot.lane.b32.xlu0 %v109, 127
    %v114 = vpop.permute.xlu0 %113
    %115 = vrot.lane.b32.xlu0 %v110, 127
    %v116 = vpop.permute.xlu0 %115
    %117 = vrot.lane.b32.xlu0 %v111, 127
    %v118 = vpop.permute.xlu0 %117
    %119 = vrot.lane.b32.xlu0 %v112, 127
    %v120 = vpop.permute.xlu0 %119
    %vm121 = vcmask 1039360
    %v122 = vsel %vm121, %v114, %v116
    %v123 = vsel %vm121, %v118, %v120
    %v130 = vunpack.c.l.b16 %v81
    %v131 = vunpack.c.h.b16 %v81
    %v132 = vunpack.c.l.b16 %v82
    %v133 = vunpack.c.h.b16 %v82
    %v134 = vunpack.c.l.b16 %v83
    %v135 = vunpack.c.h.b16 %v83
    %v136 = vunpack.c.l.b16 %v84
    %v137 = vunpack.c.h.b16 %v84
    %v138 = vpack.c.b16 %v132, %v130
    %v139 = vpack.c.b16 %v133, %v131
    %v140 = vpack.c.b16 %v136, %v134
    %v141 = vpack.c.b16 %v137, %v135
    %142 = vrot.lane.b32.xlu0 %v138, 120
    %v143 = vpop.permute.xlu0 %142
    %144 = vrot.lane.b32.xlu0 %v139, 120
    %v145 = vpop.permute.xlu0 %144
    %146 = vrot.lane.b32.xlu0 %v140, 120
    %v147 = vpop.permute.xlu0 %146
    %148 = vrot.lane.b32.xlu0 %v141, 120
    %v149 = vpop.permute.xlu0 %148
    %vm150 = vcmask 982016
    %v151 = vsel %vm150, %v143, %v145
    %v152 = vsel %vm150, %v147, %v149
    %v159 = vunpack.c.l.b16 %v59
    %v160 = vunpack.c.h.b16 %v59
    %v161 = vunpack.c.l.b16 %v60
    %v162 = vunpack.c.h.b16 %v60
    %v163 = vunpack.c.l.b16 %v61
    %v164 = vunpack.c.h.b16 %v61
    %v165 = vunpack.c.l.b16 %v62
    %v166 = vunpack.c.h.b16 %v62
    %v167 = vpack.c.b16 %v161, %v159
    %v168 = vpack.c.b16 %v162, %v160
    %v169 = vpack.c.b16 %v165, %v163
    %v170 = vpack.c.b16 %v166, %v164
    %171 = vrot.lane.b32.xlu0 %v167, 119
    %v172 = vpop.permute.xlu0 %171
    %173 = vrot.lane.b32.xlu0 %v168, 119
    %v174 = vpop.permute.xlu0 %173
    %175 = vrot.lane.b32.xlu0 %v169, 119
    %v176 = vpop.permute.xlu0 %175
    %177 = vrot.lane.b32.xlu0 %v170, 119
    %v178 = vpop.permute.xlu0 %177
    %vm179 = vcmask 973824
    %v180 = vsel %vm179, %v172, %v174
    %v181 = vsel %vm179, %v176, %v178
    %v184 = vld [vmem:[#allocation2] sm:$0xf]
    %v185 = vld [vmem:[#allocation2 + $0x4] sm:$0xf]
    %v188 = vunpack.c.l.b16 %v184
    %v189 = vunpack.c.l.b16 %v185
    %v190 = vpack.c.b16 %v189, %v188
    %192 = vmatprep.subr.bf16.mxu0 0
    %193 = vmatpush1.bf16.msra.mxu0 %v93
    %194 = vmatprep.subr.bf16.mxu0 0
    %195 = vmatpush1.bf16.msra.mxu0 %v94
    %196 = vmatprep.subr.bf16.mxu0 0
    %197 = vmatpush1.bf16.msra.mxu0 %v122
    %198 = vmatprep.subr.bf16.mxu0 0
    %199 = vmatpush1.bf16.msra.mxu0 %v123
    %200 = vmatprep.subr.bf16.mxu0 0
    %201 = vmatpush1.bf16.msra.mxu0 %v151
    %202 = vmatprep.subr.bf16.mxu0 0
    %203 = vmatpush1.bf16.msra.mxu0 %v152
    %204 = vmatprep.subr.bf16.mxu0 0
    %205 = vmatpush1.bf16.msra.mxu0 %v180
    %206 = vmatprep.subr.bf16.mxu0 0
    %207 = vmatpush1.bf16.msra.mxu0 %v181
    %208 = vmatprep.subr.bf16.mxu0 0
    %209 = vmatpush1.bf16.msra.mxu0 0
    %210 = vmatprep.subr.bf16.mxu0 0
    %211 = vmatpush1.bf16.msra.mxu0 0
    %212 = vmatprep.subr.bf16.mxu0 0
    %213 = vmatpush1.bf16.msra.mxu0 0
    %214 = vmatprep.subr.bf16.mxu0 0
    %215 = vmatpush1.bf16.msra.mxu0 0
    %216 = vmatprep.subr.bf16.mxu0 0
    %217 = vmatpush1.bf16.msra.mxu0 0
    %218 = vmatprep.subr.bf16.mxu0 0
    %219 = vmatpush1.bf16.msra.mxu0 0
    %220 = vmatprep.subr.bf16.mxu0 0
    %221 = vmatpush1.bf16.msra.mxu0 0
    %222 = vmatprep.subr.bf16.mxu0 0
    %223 = vmatpush1.bf16.msra.mxu0 0
    %224 = vmatprep.mubr.bf16.mxu0 0
    %225 = vmatmul.mubr.bf16.gmra.mrb[0].mxu0 %v190
    %v226 = vpop.f32.mrb[0].mxu0
    %v227 = vadd.f32 0.0, %v226
    %v228 = vpop.f32.mrb[0].mxu0
    %v229 = vpop.f32.mrb[0].mxu0
    %v230 = vadd.f32 0.0, %v229
    %v231 = vpop.f32.mrb[0].mxu0
    %232 = vdwg.mxu0
    %233 = vrot.lane.b32.xlu0 %v63, 2
    %v234 = vpop.permute.xlu0 %233
    %v235 = vrot.slane %v234, 4
    %vm236 = vcmask 15360
    %v237 = vsel %vm236, %v235, %v234
    %vm238 = vcmp.ne.s16.totalorder %v237, 0
    %v239 = vsel %vm238, %v59, 0
    %v240 = vsel %vm238, %v60, 0
    %v241 = vsel %vm238, %v61, 0
    %v242 = vsel %vm238, %v62, 0
    %vm243 = vcmp.ne.s32.totalorder %v36, 7
    %v244 = vsel %vm243, 1, 0
    %vm245 = vcmp.eq.s32.totalorder %v244, 1
    %vm246 = vmpackc.low %vm245, %vm245
    %v247 = vsel %vm246, 65537, 0
    %248 = vrot.lane.b32.xlu0 %v247, 2
    %v249 = vpop.permute.xlu0 %248
    %v250 = vrot.slane %v249, 4
    %v251 = vsel %vm236, %v250, %v249
    %vm252 = vcmp.ne.s16.totalorder %v251, 0
    %v253 = vsel %vm252, %v239, 0
    %v254 = vsel %vm252, %v240, 0
    %v255 = vsel %vm252, %v241, 0
    %v256 = vsel %vm252, %v242, 0
    %257 = vrot.lane.b32.xlu0 %v247, 10
    %v258 = vpop.permute.xlu0 %257
    %v259 = vrot.slane %v258, 4
    %vm260 = vcmask 80896
    %v261 = vsel %vm260, %v259, %v258
    %vm262 = vcmp.ne.s16.totalorder %v261, 0
    %v263 = vsel %vm262, %v59, 0
    %v264 = vsel %vm262, %v60, 0
    %v265 = vsel %vm262, %v61, 0
    %v266 = vsel %vm262, %v62, 0
    %v271 = vunpack.c.l.b16 %v253
    %v272 = vunpack.c.h.b16 %v253
    %v273 = vunpack.c.l.b16 %v254
    %v274 = vunpack.c.h.b16 %v254
    %v275 = vunpack.c.l.b16 %v255
    %v276 = vunpack.c.h.b16 %v255
    %v277 = vunpack.c.l.b16 %v256
    %v278 = vunpack.c.h.b16 %v256
    %v279 = vpack.c.b16 %v273, %v271
    %v280 = vpack.c.b16 %v274, %v272
    %v281 = vpack.c.b16 %v277, %v275
    %v282 = vpack.c.b16 %v278, %v276
    %283 = vrot.lane.b32.xlu0 %v279, 127
    %v284 = vpop.permute.xlu0 %283
    %285 = vrot.lane.b32.xlu0 %v280, 127
    %v286 = vpop.permute.xlu0 %285
    %287 = vrot.lane.b32.xlu0 %v281, 127
    %v288 = vpop.permute.xlu0 %287
    %289 = vrot.lane.b32.xlu0 %v282, 127
    %v290 = vpop.permute.xlu0 %289
    %v291 = vsel %vm121, %v284, %v286
    %v292 = vsel %vm121, %v288, %v290
    %293 = vrot.lane.b32.xlu0 %v167, 120
    %v294 = vpop.permute.xlu0 %293
    %295 = vrot.lane.b32.xlu0 %v168, 120
    %v296 = vpop.permute.xlu0 %295
    %297 = vrot.lane.b32.xlu0 %v169, 120
    %v298 = vpop.permute.xlu0 %297
    %299 = vrot.lane.b32.xlu0 %v170, 120
    %v300 = vpop.permute.xlu0 %299
    %v301 = vsel %vm150, %v294, %v296
    %v302 = vsel %vm150, %v298, %v300
    %v307 = vunpack.c.l.b16 %v263
    %v308 = vunpack.c.h.b16 %v263
    %v309 = vunpack.c.l.b16 %v264
    %v310 = vunpack.c.h.b16 %v264
    %v311 = vunpack.c.l.b16 %v265
    %v312 = vunpack.c.h.b16 %v265
    %v313 = vunpack.c.l.b16 %v266
    %v314 = vunpack.c.h.b16 %v266
    %v315 = vpack.c.b16 %v309, %v307
    %v316 = vpack.c.b16 %v310, %v308
    %v317 = vpack.c.b16 %v313, %v311
    %v318 = vpack.c.b16 %v314, %v312
    %319 = vrot.lane.b32.xlu0 %v315, 119
    %v320 = vpop.permute.xlu0 %319
    %321 = vrot.lane.b32.xlu0 %v316, 119
    %v322 = vpop.permute.xlu0 %321
    %323 = vrot.lane.b32.xlu0 %v317, 119
    %v324 = vpop.permute.xlu0 %323
    %325 = vrot.lane.b32.xlu0 %v318, 119
    %v326 = vpop.permute.xlu0 %325
    %v327 = vsel %vm179, %v320, %v322
    %v328 = vsel %vm179, %v324, %v326
    %s329 = scalar_lea.vmem [#allocation2], 8
    %v330 = vld [vmem:[%s329] sm:$0xf]
    %v331 = vld [vmem:[%s329 + $0x4] sm:$0xf]
    %v334 = vunpack.c.l.b16 %v330
    %v335 = vunpack.c.l.b16 %v331
    %v336 = vpack.c.b16 %v335, %v334
    %338 = vrot.lane.b32.xlu0 %v291, 127
    %v339 = vpop.permute.xlu0 %338
    %340 = vrot.lane.b32.xlu0 %v286, 127
    %v341 = vpop.permute.xlu0 %340
    %342 = vrot.lane.b32.xlu0 %v292, 127
    %v343 = vpop.permute.xlu0 %342
    %344 = vrot.lane.b32.xlu0 %v290, 127
    %v345 = vpop.permute.xlu0 %344
    %346 = vrot.lane.b32.xlu0 %v301, 127
    %v347 = vpop.permute.xlu0 %346
    %348 = vrot.lane.b32.xlu0 %v296, 127
    %v349 = vpop.permute.xlu0 %348
    %350 = vrot.lane.b32.xlu0 %v302, 127
    %v351 = vpop.permute.xlu0 %350
    %352 = vrot.lane.b32.xlu0 %v300, 127
    %v353 = vpop.permute.xlu0 %352
    %354 = vrot.lane.b32.xlu0 %v327, 127
    %v355 = vpop.permute.xlu0 %354
    %356 = vrot.lane.b32.xlu0 %v322, 127
    %v357 = vpop.permute.xlu0 %356
    %358 = vrot.lane.b32.xlu0 %v328, 127
    %v359 = vpop.permute.xlu0 %358
    %360 = vrot.lane.b32.xlu0 %v326, 127
    %v361 = vpop.permute.xlu0 %360
    %v362 = vsel %vm121, %v339, %v341
    %v363 = vsel %vm121, %v343, %v345
    %v364 = vsel %vm121, %v347, %v349
    %v365 = vsel %vm121, %v351, %v353
    %v366 = vsel %vm121, %v355, %v357
    %v367 = vsel %vm121, %v359, %v361
    %374 = vmatprep.subr.bf16.mxu0 0
    %375 = vmatpush1.bf16.msra.mxu0 %v122
    %376 = vmatprep.subr.bf16.mxu0 0
    %377 = vmatpush1.bf16.msra.mxu0 %v123
    %378 = vmatprep.subr.bf16.mxu0 0
    %379 = vmatpush1.bf16.msra.mxu0 %v362
    %380 = vmatprep.subr.bf16.mxu0 0
    %381 = vmatpush1.bf16.msra.mxu0 %v363
    %382 = vmatprep.subr.bf16.mxu0 0
    %383 = vmatpush1.bf16.msra.mxu0 %v364
    %384 = vmatprep.subr.bf16.mxu0 0
    %385 = vmatpush1.bf16.msra.mxu0 %v365
    %386 = vmatprep.subr.bf16.mxu0 0
    %387 = vmatpush1.bf16.msra.mxu0 %v366
    %388 = vmatprep.subr.bf16.mxu0 0
    %389 = vmatpush1.bf16.msra.mxu0 %v367
    %390 = vmatprep.subr.bf16.mxu0 0
    %391 = vmatpush1.bf16.msra.mxu0 0
    %392 = vmatprep.subr.bf16.mxu0 0
    %393 = vmatpush1.bf16.msra.mxu0 0
    %394 = vmatprep.subr.bf16.mxu0 0
    %395 = vmatpush1.bf16.msra.mxu0 0
    %396 = vmatprep.subr.bf16.mxu0 0
    %397 = vmatpush1.bf16.msra.mxu0 0
    %398 = vmatprep.subr.bf16.mxu0 0
    %399 = vmatpush1.bf16.msra.mxu0 0
    %400 = vmatprep.subr.bf16.mxu0 0
    %401 = vmatpush1.bf16.msra.mxu0 0
    %402 = vmatprep.subr.bf16.mxu0 0
    %403 = vmatpush1.bf16.msra.mxu0 0
    %404 = vmatprep.subr.bf16.mxu0 0
    %405 = vmatpush1.bf16.msra.mxu0 0
    %406 = vmatprep.mubr.bf16.mxu0 0
    %407 = vmatmul.mubr.bf16.gmra.mrb[0].mxu0 %v336
    %v408 = vpop.f32.mrb[0].mxu0
    %v409 = vadd.f32 0.0, %v408
    %v410 = vpop.f32.mrb[0].mxu0
    %v411 = vpop.f32.mrb[0].mxu0
    %v412 = vadd.f32 0.0, %v411
    %v413 = vpop.f32.mrb[0].mxu0
    %414 = vdwg.mxu0
    %vm415 = vcmp.ne.s32.totalorder %v38, 7
    %v416 = vsel %vm415, 1, 0
    %vm417 = vcmp.eq.s32.totalorder %v416, 1
    %vm418 = vmpackc.low %vm417, %vm417
    %v419 = vsel %vm418, 65537, 0
    %420 = vrot.lane.b32.xlu0 %v419, 16
    %v421 = vpop.permute.xlu0 %420
    %v422 = vrot.slane %v421, 4
    %vm423 = vcmask 130048
    %v424 = vsel %vm423, %v422, %v421
    %vm425 = vcmp.ne.s16.totalorder %v424, 0
    %v426 = vsel %vm425, %v59, 0
    %v427 = vsel %vm425, %v60, 0
    %v428 = vsel %vm425, %v61, 0
    %v429 = vsel %vm425, %v62, 0
    %430 = vrot.lane.b32.xlu0 %v74, 16
    %v431 = vpop.permute.xlu0 %430
    %v432 = vrot.slane %v431, 4
    %v433 = vsel %vm423, %v432, %v431
    %vm434 = vcmp.ne.s16.totalorder %v433, 0
    %v435 = vsel %vm434, %v426, 0
    %v436 = vsel %vm434, %v427, 0
    %v437 = vsel %vm434, %v428, 0
    %v438 = vsel %vm434, %v429, 0
    %439 = vrot.lane.b32.xlu0 %v419, 17
    %v440 = vpop.permute.xlu0 %439
    %v441 = vrot.slane %v440, 4
    %vm442 = vcmask 138240
    %v443 = vsel %vm442, %v441, %v440
    %vm444 = vcmp.ne.s16.totalorder %v443, 0
    %v445 = vsel %vm444, %v59, 0
    %v446 = vsel %vm444, %v60, 0
    %v447 = vsel %vm444, %v61, 0
    %v448 = vsel %vm444, %v62, 0
    %449 = vrot.lane.b32.xlu0 %v167, 127
    %v450 = vpop.permute.xlu0 %449
    %451 = vrot.lane.b32.xlu0 %v168, 127
    %v452 = vpop.permute.xlu0 %451
    %453 = vrot.lane.b32.xlu0 %v169, 127
    %v454 = vpop.permute.xlu0 %453
    %455 = vrot.lane.b32.xlu0 %v170, 127
    %v456 = vpop.permute.xlu0 %455
    %v457 = vsel %vm121, %v450, %v452
    %v458 = vsel %vm121, %v454, %v456
    %v463 = vunpack.c.l.b16 %v435
    %v464 = vunpack.c.h.b16 %v435
    %v465 = vunpack.c.l.b16 %v436
    %v466 = vunpack.c.h.b16 %v436
    %v467 = vunpack.c.l.b16 %v437
    %v468 = vunpack.c.h.b16 %v437
    %v469 = vunpack.c.l.b16 %v438
    %v470 = vunpack.c.h.b16 %v438
    %v471 = vpack.c.b16 %v465, %v463
    %v472 = vpack.c.b16 %v466, %v464
    %v473 = vpack.c.b16 %v469, %v467
    %v474 = vpack.c.b16 %v470, %v468
    %475 = vrot.lane.b32.xlu0 %v471, 120
    %v476 = vpop.permute.xlu0 %475
    %477 = vrot.lane.b32.xlu0 %v472, 120
    %v478 = vpop.permute.xlu0 %477
    %479 = vrot.lane.b32.xlu0 %v473, 120
    %v480 = vpop.permute.xlu0 %479
    %481 = vrot.lane.b32.xlu0 %v474, 120
    %v482 = vpop.permute.xlu0 %481
    %v483 = vsel %vm150, %v476, %v478
    %v484 = vsel %vm150, %v480, %v482
    %v489 = vunpack.c.l.b16 %v445
    %v490 = vunpack.c.h.b16 %v445
    %v491 = vunpack.c.l.b16 %v446
    %v492 = vunpack.c.h.b16 %v446
    %v493 = vunpack.c.l.b16 %v447
    %v494 = vunpack.c.h.b16 %v447
    %v495 = vunpack.c.l.b16 %v448
    %v496 = vunpack.c.h.b16 %v448
    %v497 = vpack.c.b16 %v491, %v489
    %v498 = vpack.c.b16 %v492, %v490
    %v499 = vpack.c.b16 %v495, %v493
    %v500 = vpack.c.b16 %v496, %v494
    %501 = vrot.lane.b32.xlu0 %v497, 119
    %v502 = vpop.permute.xlu0 %501
    %503 = vrot.lane.b32.xlu0 %v498, 119
    %v504 = vpop.permute.xlu0 %503
    %505 = vrot.lane.b32.xlu0 %v499, 119
    %v506 = vpop.permute.xlu0 %505
    %507 = vrot.lane.b32.xlu0 %v500, 119
    %v508 = vpop.permute.xlu0 %507
    %v509 = vsel %vm179, %v502, %v504
    %v510 = vsel %vm179, %v506, %v508
    %s511 = scalar_lea.vmem [#allocation2], 16
    %v512 = vld [vmem:[%s511] sm:$0xf]
    %v513 = vld [vmem:[%s511 + $0x4] sm:$0xf]
    %v516 = vunpack.c.l.b16 %v512
    %v517 = vunpack.c.l.b16 %v513
    %v518 = vpack.c.b16 %v517, %v516
    %520 = vrot.lane.b32.xlu0 %v457, 120
    %v521 = vpop.permute.xlu0 %520
    %522 = vrot.lane.b32.xlu0 %v452, 120
    %v523 = vpop.permute.xlu0 %522
    %524 = vrot.lane.b32.xlu0 %v458, 120
    %v525 = vpop.permute.xlu0 %524
    %526 = vrot.lane.b32.xlu0 %v456, 120
    %v527 = vpop.permute.xlu0 %526
    %528 = vrot.lane.b32.xlu0 %v483, 120
    %v529 = vpop.permute.xlu0 %528
    %530 = vrot.lane.b32.xlu0 %v478, 120
    %v531 = vpop.permute.xlu0 %530
    %532 = vrot.lane.b32.xlu0 %v484, 120
    %v533 = vpop.permute.xlu0 %532
    %534 = vrot.lane.b32.xlu0 %v482, 120
    %v535 = vpop.permute.xlu0 %534
    %536 = vrot.lane.b32.xlu0 %v509, 120
    %v537 = vpop.permute.xlu0 %536
    %538 = vrot.lane.b32.xlu0 %v504, 120
    %v539 = vpop.permute.xlu0 %538
    %540 = vrot.lane.b32.xlu0 %v510, 120
    %v541 = vpop.permute.xlu0 %540
    %542 = vrot.lane.b32.xlu0 %v508, 120
    %v543 = vpop.permute.xlu0 %542
    %v544 = vsel %vm150, %v521, %v523
    %v545 = vsel %vm150, %v525, %v527
    %v546 = vsel %vm150, %v529, %v531
    %v547 = vsel %vm150, %v533, %v535
    %v548 = vsel %vm150, %v537, %v539
    %v549 = vsel %vm150, %v541, %v543
    %556 = vmatprep.subr.bf16.mxu0 0
    %557 = vmatpush1.bf16.msra.mxu0 %v151
    %558 = vmatprep.subr.bf16.mxu0 0
    %559 = vmatpush1.bf16.msra.mxu0 %v152
    %560 = vmatprep.subr.bf16.mxu0 0
    %561 = vmatpush1.bf16.msra.mxu0 %v544
    %562 = vmatprep.subr.bf16.mxu0 0
    %563 = vmatpush1.bf16.msra.mxu0 %v545
    %564 = vmatprep.subr.bf16.mxu0 0
    %565 = vmatpush1.bf16.msra.mxu0 %v546
    %566 = vmatprep.subr.bf16.mxu0 0
    %567 = vmatpush1.bf16.msra.mxu0 %v547
    %568 = vmatprep.subr.bf16.mxu0 0
    %569 = vmatpush1.bf16.msra.mxu0 %v548
    %570 = vmatprep.subr.bf16.mxu0 0
    %571 = vmatpush1.bf16.msra.mxu0 %v549
    %572 = vmatprep.subr.bf16.mxu0 0
    %573 = vmatpush1.bf16.msra.mxu0 0
    %574 = vmatprep.subr.bf16.mxu0 0
    %575 = vmatpush1.bf16.msra.mxu0 0
    %576 = vmatprep.subr.bf16.mxu0 0
    %577 = vmatpush1.bf16.msra.mxu0 0
    %578 = vmatprep.subr.bf16.mxu0 0
    %579 = vmatpush1.bf16.msra.mxu0 0
    %580 = vmatprep.subr.bf16.mxu0 0
    %581 = vmatpush1.bf16.msra.mxu0 0
    %582 = vmatprep.subr.bf16.mxu0 0
    %583 = vmatpush1.bf16.msra.mxu0 0
    %584 = vmatprep.subr.bf16.mxu0 0
    %585 = vmatpush1.bf16.msra.mxu0 0
    %586 = vmatprep.subr.bf16.mxu0 0
    %587 = vmatpush1.bf16.msra.mxu0 0
    %588 = vmatprep.mubr.bf16.mxu0 0
    %589 = vmatmul.mubr.bf16.gmra.mrb[0].mxu0 %v518
    %v590 = vpop.f32.mrb[0].mxu0
    %v591 = vadd.f32 0.0, %v590
    %v592 = vpop.f32.mrb[0].mxu0
    %v593 = vpop.f32.mrb[0].mxu0
    %v594 = vadd.f32 0.0, %v593
    %v595 = vpop.f32.mrb[0].mxu0
    %596 = vdwg.mxu0
    %597 = vrot.lane.b32.xlu0 %v419, 18
    %v598 = vpop.permute.xlu0 %597
    %v599 = vrot.slane %v598, 4
    %vm600 = vcmask 146432
    %v601 = vsel %vm600, %v599, %v598
    %vm602 = vcmp.ne.s16.totalorder %v601, 0
    %v603 = vsel %vm602, %v59, 0
    %v604 = vsel %vm602, %v60, 0
    %v605 = vsel %vm602, %v61, 0
    %v606 = vsel %vm602, %v62, 0
    %607 = vrot.lane.b32.xlu0 %v247, 18
    %v608 = vpop.permute.xlu0 %607
    %v609 = vrot.slane %v608, 4
    %v610 = vsel %vm600, %v609, %v608
    %vm611 = vcmp.ne.s16.totalorder %v610, 0
    %v612 = vsel %vm611, %v603, 0
    %v613 = vsel %vm611, %v604, 0
    %v614 = vsel %vm611, %v605, 0
    %v615 = vsel %vm611, %v606, 0
    %616 = vrot.lane.b32.xlu0 %v315, 127
    %v617 = vpop.permute.xlu0 %616
    %618 = vrot.lane.b32.xlu0 %v316, 127
    %v619 = vpop.permute.xlu0 %618
    %620 = vrot.lane.b32.xlu0 %v317, 127
    %v621 = vpop.permute.xlu0 %620
    %622 = vrot.lane.b32.xlu0 %v318, 127
    %v623 = vpop.permute.xlu0 %622
    %v624 = vsel %vm121, %v617, %v619
    %v625 = vsel %vm121, %v621, %v623
    %626 = vrot.lane.b32.xlu0 %v497, 120
    %v627 = vpop.permute.xlu0 %626
    %628 = vrot.lane.b32.xlu0 %v498, 120
    %v629 = vpop.permute.xlu0 %628
    %630 = vrot.lane.b32.xlu0 %v499, 120
    %v631 = vpop.permute.xlu0 %630
    %632 = vrot.lane.b32.xlu0 %v500, 120
    %v633 = vpop.permute.xlu0 %632
    %v634 = vsel %vm150, %v627, %v629
    %v635 = vsel %vm150, %v631, %v633
    %v640 = vunpack.c.l.b16 %v612
    %v641 = vunpack.c.h.b16 %v612
    %v642 = vunpack.c.l.b16 %v613
    %v643 = vunpack.c.h.b16 %v613
    %v644 = vunpack.c.l.b16 %v614
    %v645 = vunpack.c.h.b16 %v614
    %v646 = vunpack.c.l.b16 %v615
    %v647 = vunpack.c.h.b16 %v615
    %v648 = vpack.c.b16 %v642, %v640
    %v649 = vpack.c.b16 %v643, %v641
    %v650 = vpack.c.b16 %v646, %v644
    %v651 = vpack.c.b16 %v647, %v645
    %652 = vrot.lane.b32.xlu0 %v648, 119
    %v653 = vpop.permute.xlu0 %652
    %654 = vrot.lane.b32.xlu0 %v649, 119
    %v655 = vpop.permute.xlu0 %654
    %656 = vrot.lane.b32.xlu0 %v650, 119
    %v657 = vpop.permute.xlu0 %656
    %658 = vrot.lane.b32.xlu0 %v651, 119
    %v659 = vpop.permute.xlu0 %658
    %v660 = vsel %vm179, %v653, %v655
    %v661 = vsel %vm179, %v657, %v659
    %s662 = scalar_lea.vmem [#allocation2], 24
    %v663 = vld [vmem:[%s662] sm:$0xf]
    %v664 = vld [vmem:[%s662 + $0x4] sm:$0xf]
    %v667 = vunpack.c.l.b16 %v663
    %v668 = vunpack.c.l.b16 %v664
    %v669 = vpack.c.b16 %v668, %v667
    %671 = vrot.lane.b32.xlu0 %v624, 119
    %v672 = vpop.permute.xlu0 %671
    %673 = vrot.lane.b32.xlu0 %v619, 119
    %v674 = vpop.permute.xlu0 %673
    %675 = vrot.lane.b32.xlu0 %v625, 119
    %v676 = vpop.permute.xlu0 %675
    %677 = vrot.lane.b32.xlu0 %v623, 119
    %v678 = vpop.permute.xlu0 %677
    %679 = vrot.lane.b32.xlu0 %v634, 119
    %v680 = vpop.permute.xlu0 %679
    %681 = vrot.lane.b32.xlu0 %v629, 119
    %v682 = vpop.permute.xlu0 %681
    %683 = vrot.lane.b32.xlu0 %v635, 119
    %v684 = vpop.permute.xlu0 %683
    %685 = vrot.lane.b32.xlu0 %v633, 119
    %v686 = vpop.permute.xlu0 %685
    %687 = vrot.lane.b32.xlu0 %v660, 119
    %v688 = vpop.permute.xlu0 %687
    %689 = vrot.lane.b32.xlu0 %v655, 119
    %v690 = vpop.permute.xlu0 %689
    %691 = vrot.lane.b32.xlu0 %v661, 119
    %v692 = vpop.permute.xlu0 %691
    %693 = vrot.lane.b32.xlu0 %v659, 119
    %v694 = vpop.permute.xlu0 %693
    %v695 = vsel %vm179, %v672, %v674
    %v696 = vsel %vm179, %v676, %v678
    %v697 = vsel %vm179, %v680, %v682
    %v698 = vsel %vm179, %v684, %v686
    %v699 = vsel %vm179, %v688, %v690
    %v700 = vsel %vm179, %v692, %v694
    %707 = vmatprep.subr.bf16.mxu0 0
    %708 = vmatpush1.bf16.msra.mxu0 %v180
    %709 = vmatprep.subr.bf16.mxu0 0
    %710 = vmatpush1.bf16.msra.mxu0 %v181
    %711 = vmatprep.subr.bf16.mxu0 0
    %712 = vmatpush1.bf16.msra.mxu0 %v695
    %713 = vmatprep.subr.bf16.mxu0 0
    %714 = vmatpush1.bf16.msra.mxu0 %v696
    %715 = vmatprep.subr.bf16.mxu0 0
    %716 = vmatpush1.bf16.msra.mxu0 %v697
    %717 = vmatprep.subr.bf16.mxu0 0
    %718 = vmatpush1.bf16.msra.mxu0 %v698
    %719 = vmatprep.subr.bf16.mxu0 0
    %720 = vmatpush1.bf16.msra.mxu0 %v699
    %721 = vmatprep.subr.bf16.mxu0 0
    %722 = vmatpush1.bf16.msra.mxu0 %v700
    %723 = vmatprep.subr.bf16.mxu0 0
    %724 = vmatpush1.bf16.msra.mxu0 0
    %725 = vmatprep.subr.bf16.mxu0 0
    %726 = vmatpush1.bf16.msra.mxu0 0
    %727 = vmatprep.subr.bf16.mxu0 0
    %728 = vmatpush1.bf16.msra.mxu0 0
    %729 = vmatprep.subr.bf16.mxu0 0
    %730 = vmatpush1.bf16.msra.mxu0 0
    %731 = vmatprep.subr.bf16.mxu0 0
    %732 = vmatpush1.bf16.msra.mxu0 0
    %733 = vmatprep.subr.bf16.mxu0 0
    %734 = vmatpush1.bf16.msra.mxu0 0
    %735 = vmatprep.subr.bf16.mxu0 0
    %736 = vmatpush1.bf16.msra.mxu0 0
    %737 = vmatprep.subr.bf16.mxu0 0
    %738 = vmatpush1.bf16.msra.mxu0 0
    %739 = vmatprep.mubr.bf16.mxu0 0
    %740 = vmatmul.mubr.bf16.gmra.mrb[0].mxu0 %v669
    %v741 = vpop.f32.mrb[0].mxu0
    %v742 = vadd.f32 0.0, %v741
    %v743 = vpop.f32.mrb[0].mxu0
    %v744 = vpop.f32.mrb[0].mxu0
    %v745 = vadd.f32 0.0, %v744
    %v746 = vpop.f32.mrb[0].mxu0
    %747 = vdwg.mxu0
    %748 = vadd.xlane.f32.xlu0 %v227
    %v749 = vpop.xlane.xlu0 %748
    %750 = vadd.xlane.f32.xlu0 %v230
    %v751 = vpop.xlane.xlu0 %750
    %v752 = vadd.f32 %v749, 0.0
    %v753 = vadd.f32 %v751, 0.0
    %754 = vadd.xlane.f32.xlu0 %v409
    %v755 = vpop.xlane.xlu0 %754
    %756 = vadd.xlane.f32.xlu0 %v412
    %v757 = vpop.xlane.xlu0 %756
    %v758 = vadd.f32 %v752, %v755
    %v759 = vadd.f32 %v753, %v757
    %760 = vadd.xlane.f32.xlu0 %v591
    %v761 = vpop.xlane.xlu0 %760
    %762 = vadd.xlane.f32.xlu0 %v594
    %v763 = vpop.xlane.xlu0 %762
    %v764 = vadd.f32 %v758, %v761
    %v765 = vadd.f32 %v759, %v763
    %766 = vadd.xlane.f32.xlu0 %v742
    %v767 = vpop.xlane.xlu0 %766
    %768 = vadd.xlane.f32.xlu0 %v745
    %v769 = vpop.xlane.xlu0 %768
    %v770 = vadd.f32 %v764, %v767
    %v771 = vadd.f32 %v765, %v769
    %v772 = vmul.f32 %v227, %v227
    %v773 = vmul.f32 %v230, %v230
    %774 = vadd.xlane.f32.xlu0 %v772
    %v775 = vpop.xlane.xlu0 %774
    %776 = vadd.xlane.f32.xlu0 %v773
    %v777 = vpop.xlane.xlu0 %776
    %v778 = vadd.f32 %v775, 0.0
    %v779 = vadd.f32 %v777, 0.0
    %v780 = vmul.f32 %v409, %v409
    %v781 = vmul.f32 %v412, %v412
    %782 = vadd.xlane.f32.xlu0 %v780
    %v783 = vpop.xlane.xlu0 %782
    %784 = vadd.xlane.f32.xlu0 %v781
    %v785 = vpop.xlane.xlu0 %784
    %v786 = vadd.f32 %v778, %v783
    %v787 = vadd.f32 %v779, %v785
    %v788 = vmul.f32 %v591, %v591
    %v789 = vmul.f32 %v594, %v594
    %790 = vadd.xlane.f32.xlu0 %v788
    %v791 = vpop.xlane.xlu0 %790
    %792 = vadd.xlane.f32.xlu0 %v789
    %v793 = vpop.xlane.xlu0 %792
    %v794 = vadd.f32 %v786, %v791
    %v795 = vadd.f32 %v787, %v793
    %v796 = vmul.f32 %v742, %v742
    %v797 = vmul.f32 %v745, %v745
    %798 = vadd.xlane.f32.xlu0 %v796
    %v799 = vpop.xlane.xlu0 %798
    %800 = vadd.xlane.f32.xlu0 %v797
    %v801 = vpop.xlane.xlu0 %800
    %v802 = vadd.f32 %v794, %v799
    %v803 = vadd.f32 %v795, %v801
    %v804 = vmul.f32 %v770, 0.001953125
    %v805 = vmul.f32 %v771, 0.001953125
    %v806 = vmul.f32 %v802, 0.001953125
    %v807 = vmul.f32 %v803, 0.001953125
    %v808 = vmul.f32 %v804, %v804
    %v809 = vmul.f32 %v805, %v805
    %v810 = vsub.f32 %v806, %v808
    %v811 = vsub.f32 %v807, %v809
    %v812 = vmax.f32 %v810, 0.0
    %v813 = vmax.f32 %v811, 0.0
    %v814 = vld [vmem:[%s2] sm:$0xff]
    %v815 = vld [vmem:[%s2 + $0x8] sm:$0xff]
    %v816 = vadd.f32 %v812, 1e-05
    %v817 = vadd.f32 %v813, 1e-05
    %v818 = vrsqrt.pop %v816
    %v819 = vrsqrt.pop %v817
    %v820 = vmul.f32 %v814, %v818
    %v821 = vmul.f32 %v815, %v819
    %v822 = vld [vmem:[%s3] sm:$0xff]
    %v823 = vld [vmem:[%s3 + $0x8] sm:$0xff]
    %v824 = vmul.f32 %v804, %v820
    %v825 = vmul.f32 %v805, %v821
    %v826 = vsub.f32 %v822, %v824
    %v827 = vsub.f32 %v823, %v825
    %829 = vset.pattern.permute.xlu0 0
    %830 = vperm.xlu0 %829, %v820
    %v831 = vpop.permute.xlu0 %830
    %834 = vset.pattern.permute.xlu0 0
    %835 = vperm.xlu0 %834, %v821
    %v836 = vpop.permute.xlu0 %835
    %v838 = vmul.f32 %v227, %v831
    %v839 = vmul.f32 %v230, %v836
    %841 = vset.pattern.permute.xlu0 0
    %842 = vperm.xlu0 %841, %v826
    %v843 = vpop.permute.xlu0 %842
    %846 = vset.pattern.permute.xlu0 0
    %847 = vperm.xlu0 %846, %v827
    %v848 = vpop.permute.xlu0 %847
    %v850 = vadd.f32 %v838, %v843
    %v851 = vadd.f32 %v839, %v848
    %v852 = vmax.f32 %v850, 0.0
    %v853 = vmax.f32 %v851, 0.0
    %v854 = vmul.f32 %v409, %v831
    %v855 = vmul.f32 %v412, %v836
    %v856 = vadd.f32 %v854, %v843
    %v857 = vadd.f32 %v855, %v848
    %v858 = vmax.f32 %v856, 0.0
    %v859 = vmax.f32 %v857, 0.0
    %v860 = vmul.f32 %v591, %v831
    %v861 = vmul.f32 %v594, %v836
    %v862 = vadd.f32 %v860, %v843
    %v863 = vadd.f32 %v861, %v848
    %v864 = vmax.f32 %v862, 0.0
    %v865 = vmax.f32 %v863, 0.0
    %v866 = vmul.f32 %v742, %v831
    %v867 = vmul.f32 %v745, %v836
    %v868 = vadd.f32 %v866, %v843
    %v869 = vadd.f32 %v867, %v848
    %v870 = vmax.f32 %v868, 0.0
    %v871 = vmax.f32 %v869, 0.0
    %v872 = vpack.c.bf16 %v853, %v852
    %v874 = vunpack.c.l.b16 %v872
    %v875 = vunpack.c.h.b16 %v872
    %v876 = vpack.c.b16 %v874, %v874
    %v877 = vpack.c.b16 %v875, %v875
    %880 = vst [vmem:[%s4] sm:$0xf] %v876
    %881 = vst [vmem:[%s4 + $0x4] sm:$0xf] %v877
    %v882 = vpack.c.bf16 %v859, %v858
    %v884 = vunpack.c.l.b16 %v882
    %v885 = vunpack.c.h.b16 %v882
    %v886 = vpack.c.b16 %v884, %v884
    %v887 = vpack.c.b16 %v885, %v885
    %s890 = scalar_lea.vmem %s4, 8
    %891 = vst [vmem:[%s890] sm:$0xf] %v886
    %892 = vst [vmem:[%s890 + $0x4] sm:$0xf] %v887
    %v893 = vpack.c.bf16 %v865, %v864
    %v895 = vunpack.c.l.b16 %v893
    %v896 = vunpack.c.h.b16 %v893
    %v897 = vpack.c.b16 %v895, %v895
    %v898 = vpack.c.b16 %v896, %v896
    %s901 = scalar_lea.vmem %s4, 16
    %902 = vst [vmem:[%s901] sm:$0xf] %v897
    %903 = vst [vmem:[%s901 + $0x4] sm:$0xf] %v898
    %v904 = vpack.c.bf16 %v871, %v870
    %v906 = vunpack.c.l.b16 %v904
    %v907 = vunpack.c.h.b16 %v904
    %v908 = vpack.c.b16 %v906, %v906
    %v909 = vpack.c.b16 %v907, %v907
    %s912 = scalar_lea.vmem %s4, 24
    %913 = vst [vmem:[%s912] sm:$0xf] %v908
    %914 = vst [vmem:[%s912 + $0x4] sm:$0xf] %v909
    // Predicated region
    $region22: #{generator_forward.5} parent=1 // pred_check
      _
    $region23: #{generator_forward.5} parent=1 // pred_check_branch
      %916 = sbr.rel (0) target = $region25
    $region24: #{generator_forward.5} parent=1 // pred_region
      _
    $region25: #{generator_forward.5} parent=1 // pred_fallthru
      _
    // Predicated region
    $region26: #{generator_forward.5} parent=1 // pred_check
      _
    $region27: #{generator_forward.5} parent=1 // pred_check_branch
      %918 = sbr.rel (0) target = $region29
    $region28: #{generator_forward.5} parent=1 // pred_region
      _
    $region29: #{generator_forward.5} parent=1 // pred_fallthru
      _
    %919 = vsyncpa [#allocation3], 1

// kernel: generator_forward.4
$region0: #{generator_forward.4}
  #allocation0 [shape = 'u32[]', space=smem, size = 0x4, offset = 0x4, fixed_abs, tag = 'smem constant byte address 0x4 - core index']
  #allocation1 [shape = 'u32[144,128]{1,0:T(1,128)}', space=vmem, size = 0x12000, scoped, tag = 'internal scratch']
  #allocation2 [shape = 'bf16[64,42]{1,0:T(16,128)(2,1)}', space=vmem, size = 0x4000, scoped, tag = 'scratch operand']
  %s0 = inlined_call_operand.vmem [shape: bf16[256,32], index: 0, kind: input, shape index: {}]
  %s1 = inlined_call_operand.hbm [shape: bf16[64,256], index: 1, kind: input, shape index: {}]
  %s2 = inlined_call_operand.vmem [shape: f32[64,1], index: 2, kind: input, shape index: {}]
  %s3 = inlined_call_operand.vmem [shape: f32[64,1], index: 3, kind: input, shape index: {}]
  %s4 = inlined_call_operand.hbm [shape: bf16[2,2,32,256], index: 4, kind: input, shape index: {}]
  %s5 = inlined_call_operand.vmem [shape: f32[32,1], index: 5, kind: input, shape index: {}]
  %s6 = inlined_call_operand.vmem [shape: f32[32,1], index: 6, kind: input, shape index: {}]
  %s7 = inlined_call_operand.vmem [shape: bf16[2,2,32,32], index: 7, kind: output, shape index: {}]
  %s8 = sld [smem:[#allocation0]]
  $region46: #{generator_forward.4} parent=0
    _
  %s10 = ssub.s32 1, %s8
  %s11 = scalar_select 0, %s10, %s8
  $region1: #{generator_forward.4} parent=0
    #allocation3 [shape = 'u8[32768]{0}', space=vmem, size = 0x8000, scoped, tag = 'input window, operand 1, single buffered']
    #allocation4 [shape = 's32[1]{0}', space=sflag, size = 0x4, scoped, tag = 'scoped memory for generator_forward.4']
    #allocation5 [shape = 'u8[65536]{0}', space=vmem, size = 0x10000, scoped, tag = 'input window, operand 4, single buffered']
    #allocation6 [shape = 's32[1]{0}', space=sflag, size = 0x4, scoped, tag = 'scoped memory for generator_forward.4']
    %12 = vsyncpa [#allocation4], 0
    %13 = vsyncpa [#allocation6], 0
    // Predicated region
    $region2: #{generator_forward.4} parent=1 // pred_check
      _
    $region3: #{generator_forward.4} parent=1 // pred_check_branch
      %15 = sbr.rel (0) target = $region5
    $region4: #{generator_forward.4} parent=1 // pred_region
      _
    $region5: #{generator_forward.4} parent=1 // pred_fallthru
      _
    // Predicated region
    $region6: #{generator_forward.4} parent=1 // pred_check
      _
    $region7: #{generator_forward.4} parent=1 // pred_check_branch
      %17 = sbr.rel (0) target = $region9
    $region8: #{generator_forward.4} parent=1 // pred_region
      %s19 = ssub.s32 1024, 1024
      %20 = vsyncadd [#allocation4], %s19
      %s21 = sshll.u32 [#allocation3], 4
      %s22 = int_to_ptr.vmem [resolvable:$true] %s21
      %27 = dma.hbm_to_vmem [thread:$0]  %s1, 1024, %s22, [#allocation4], 128, 128, 8
    $region9: #{generator_forward.4} parent=1 // pred_fallthru
      _
    // Predicated region
    $region10: #{generator_forward.4} parent=1 // pred_check
      _
    $region11: #{generator_forward.4} parent=1 // pred_check_branch
      %29 = sbr.rel (0) target = $region13
    $region12: #{generator_forward.4} parent=1 // pred_region
      _
    $region13: #{generator_forward.4} parent=1 // pred_fallthru
      _
    // Predicated region
    $region14: #{generator_forward.4} parent=1 // pred_check
      _
    $region15: #{generator_forward.4} parent=1 // pred_check_branch
      %31 = sbr.rel (0) target = $region17
    $region16: #{generator_forward.4} parent=1 // pred_region
      _
    $region17: #{generator_forward.4} parent=1 // pred_fallthru
      _
    // Predicated region
    $region18: #{generator_forward.4} parent=1 // pred_check
      _
    $region19: #{generator_forward.4} parent=1 // pred_check_branch
      %33 = sbr.rel (0) target = $region21
    $region20: #{generator_forward.4} parent=1 // pred_region
      %s35 = ssub.s32 2048, 2048
      %36 = vsyncadd [#allocation6], %s35
      %s37 = sshll.u32 [#allocation5], 4
      %s38 = int_to_ptr.vmem [resolvable:$true] %s37
      %43 = dma.hbm_to_vmem [thread:$0]  %s4, 2048, %s38, [#allocation6], 128, 128, 8
    $region21: #{generator_forward.4} parent=1 // pred_fallthru
      _
    // Predicated region
    $region22: #{generator_forward.4} parent=1 // pred_check
      _
    $region23: #{generator_forward.4} parent=1 // pred_check_branch
      %45 = sbr.rel (0) target = $region25
    $region24: #{generator_forward.4} parent=1 // pred_region
      _
    $region25: #{generator_forward.4} parent=1 // pred_fallthru
      _
    // Predicated region
    $region26: #{generator_forward.4} parent=1 // pred_check
      _
    $region27: #{generator_forward.4} parent=1 // pred_check_branch
      %47 = sbr.rel (0) target = $region29
    $region28: #{generator_forward.4} parent=1 // pred_region
      _
    $region29: #{generator_forward.4} parent=1 // pred_fallthru
      _
    // Predicated region
    $region30: #{generator_forward.4} parent=1 // pred_check
      _
    $region31: #{generator_forward.4} parent=1 // pred_check_branch
      %49 = sbr.rel (0) target = $region33
    $region32: #{generator_forward.4} parent=1 // pred_region
      %50 = dma.done [#allocation4], 1024
    $region33: #{generator_forward.4} parent=1 // pred_fallthru
      _
    // Predicated region
    $region34: #{generator_forward.4} parent=1 // pred_check
      _
    $region35: #{generator_forward.4} parent=1 // pred_check_branch
      %52 = sbr.rel (0) target = $region37
    $region36: #{generator_forward.4} parent=1 // pred_region
      %53 = dma.done [#allocation6], 2048
    $region37: #{generator_forward.4} parent=1 // pred_fallthru
      _
    %v57 = vld [vmem:[#allocation3] sm:$0xff]
    %v58 = vld [vmem:[#allocation3 + $0x8] sm:$0xff]
    %v59 = vld [vmem:[#allocation3 + $0x10] sm:$0xff]
    %v60 = vld [vmem:[#allocation3 + $0x18] sm:$0xff]
    %v61 = vld [vmem:[#allocation3 + $0x20] sm:$0xff]
    %v62 = vld [vmem:[#allocation3 + $0x28] sm:$0xff]
    %v63 = vld [vmem:[#allocation3 + $0x30] sm:$0xff]
    %v64 = vld [vmem:[#allocation3 + $0x38] sm:$0xff]
    %v65 = vld [vmem:[%s0] sm:$0xf]
    %v66 = vld [vmem:[%s0 + $0x4] sm:$0xf]
    %v67 = vld [vmem:[%s0 + $0x8] sm:$0xf]
    %v68 = vld [vmem:[%s0 + $0xc] sm:$0xf]
    %v69 = vld [vmem:[%s0 + $0x10] sm:$0xf]
    %v70 = vld [vmem:[%s0 + $0x14] sm:$0xf]
    %v71 = vld [vmem:[%s0 + $0x18] sm:$0xf]
    %v72 = vld [vmem:[%s0 + $0x1c] sm:$0xf]
    %v73 = vld [vmem:[%s0 + $0x20] sm:$0xf]
    %v74 = vld [vmem:[%s0 + $0x24] sm:$0xf]
    %v75 = vld [vmem:[%s0 + $0x28] sm:$0xf]
    %v76 = vld [vmem:[%s0 + $0x2c] sm:$0xf]
    %v77 = vld [vmem:[%s0 + $0x30] sm:$0xf]
    %v78 = vld [vmem:[%s0 + $0x34] sm:$0xf]
    %v79 = vld [vmem:[%s0 + $0x38] sm:$0xf]
    %v80 = vld [vmem:[%s0 + $0x3c] sm:$0xf]
    %v81 = vld [vmem:[%s0 + $0x40] sm:$0xf]
    %v82 = vld [vmem:[%s0 + $0x44] sm:$0xf]
    %v83 = vld [vmem:[%s0 + $0x48] sm:$0xf]
    %v84 = vld [vmem:[%s0 + $0x4c] sm:$0xf]
    %v85 = vld [vmem:[%s0 + $0x50] sm:$0xf]
    %v86 = vld [vmem:[%s0 + $0x54] sm:$0xf]
    %v87 = vld [vmem:[%s0 + $0x58] sm:$0xf]
    %v88 = vld [vmem:[%s0 + $0x5c] sm:$0xf]
    %v89 = vld [vmem:[%s0 + $0x60] sm:$0xf]
    %v90 = vld [vmem:[%s0 + $0x64] sm:$0xf]
    %v91 = vld [vmem:[%s0 + $0x68] sm:$0xf]
    %v92 = vld [vmem:[%s0 + $0x6c] sm:$0xf]
    %v93 = vld [vmem:[%s0 + $0x70] sm:$0xf]
    %v94 = vld [vmem:[%s0 + $0x74] sm:$0xf]
    %v95 = vld [vmem:[%s0 + $0x78] sm:$0xf]
    %v96 = vld [vmem:[%s0 + $0x7c] sm:$0xf]
    %v105 = vunpack.c.l.b16 %v57
    %v106 = vunpack.c.h.b16 %v57
    %v107 = vunpack.c.l.b16 %v58
    %v108 = vunpack.c.h.b16 %v58
    %v109 = vunpack.c.l.b16 %v59
    %v110 = vunpack.c.h.b16 %v59
    %v111 = vunpack.c.l.b16 %v60
    %v112 = vunpack.c.h.b16 %v60
    %v113 = vunpack.c.l.b16 %v61
    %v114 = vunpack.c.h.b16 %v61
    %v115 = vunpack.c.l.b16 %v62
    %v116 = vunpack.c.h.b16 %v62
    %v117 = vunpack.c.l.b16 %v63
    %v118 = vunpack.c.h.b16 %v63
    %v119 = vunpack.c.l.b16 %v64
    %v120 = vunpack.c.h.b16 %v64
    %v121 = vpack.c.b16 %v107, %v105
    %v122 = vpack.c.b16 %v108, %v106
    %v123 = vpack.c.b16 %v111, %v109
    %v124 = vpack.c.b16 %v112, %v110
    %v125 = vpack.c.b16 %v115, %v113
    %v126 = vpack.c.b16 %v116, %v114
    %v127 = vpack.c.b16 %v119, %v117
    %v128 = vpack.c.b16 %v120, %v118
    %v169 = vunpack.c.l.b16 %v65
    %v170 = vunpack.c.l.b16 %v66
    %v171 = vunpack.c.l.b16 %v67
    %v172 = vunpack.c.l.b16 %v68
    %v173 = vunpack.c.l.b16 %v69
    %v174 = vunpack.c.l.b16 %v70
    %v175 = vunpack.c.l.b16 %v71
    %v176 = vunpack.c.l.b16 %v72
    %v177 = vunpack.c.l.b16 %v73
    %v178 = vunpack.c.l.b16 %v74
    %v179 = vunpack.c.l.b16 %v75
    %v180 = vunpack.c.l.b16 %v76
    %v181 = vunpack.c.l.b16 %v77
    %v182 = vunpack.c.l.b16 %v78
    %v183 = vunpack.c.l.b16 %v79
    %v184 = vunpack.c.l.b16 %v80
    %v185 = vunpack.c.l.b16 %v81
    %v186 = vunpack.c.l.b16 %v82
    %v187 = vunpack.c.l.b16 %v83
    %v188 = vunpack.c.l.b16 %v84
    %v189 = vunpack.c.l.b16 %v85
    %v190 = vunpack.c.l.b16 %v86
    %v191 = vunpack.c.l.b16 %v87
    %v192 = vunpack.c.l.b16 %v88
    %v193 = vunpack.c.l.b16 %v89
    %v194 = vunpack.c.l.b16 %v90
    %v195 = vunpack.c.l.b16 %v91
    %v196 = vunpack.c.l.b16 %v92
    %v197 = vunpack.c.l.b16 %v93
    %v198 = vunpack.c.l.b16 %v94
    %v199 = vunpack.c.l.b16 %v95
    %v200 = vunpack.c.l.b16 %v96
    %v201 = vpack.c.b16 %v170, %v169
    %v202 = vpack.c.b16 %v172, %v171
    %v203 = vpack.c.b16 %v174, %v173
    %v204 = vpack.c.b16 %v176, %v175
    %v205 = vpack.c.b16 %v178, %v177
    %v206 = vpack.c.b16 %v180, %v179
    %v207 = vpack.c.b16 %v182, %v181
    %v208 = vpack.c.b16 %v184, %v183
    %v209 = vpack.c.b16 %v186, %v185
    %v210 = vpack.c.b16 %v188, %v187
    %v211 = vpack.c.b16 %v190, %v189
    %v212 = vpack.c.b16 %v192, %v191
    %v213 = vpack.c.b16 %v194, %v193
    %v214 = vpack.c.b16 %v196, %v195
    %v215 = vpack.c.b16 %v198, %v197
    %v216 = vpack.c.b16 %v200, %v199
    %233 = vmatprep.subr.bf16.mxu0 0
    %234 = vmatpush1.bf16.msra.mxu0 %v201
    %235 = vmatprep.subr.bf16.mxu0 0
    %236 = vmatpush1.bf16.msra.mxu0 %v202
    %237 = vmatprep.subr.bf16.mxu0 0
    %238 = vmatpush1.bf16.msra.mxu0 %v203
    %239 = vmatprep.subr.bf16.mxu0 0
    %240 = vmatpush1.bf16.msra.mxu0 %v204
    %241 = vmatprep.subr.bf16.mxu0 0
    %242 = vmatpush1.bf16.msra.mxu0 %v205
    %243 = vmatprep.subr.bf16.mxu0 0
    %244 = vmatpush1.bf16.msra.mxu0 %v206
    %245 = vmatprep.subr.bf16.mxu0 0
    %246 = vmatpush1.bf16.msra.mxu0 %v207
    %247 = vmatprep.subr.bf16.mxu0 0
    %248 = vmatpush1.bf16.msra.mxu0 %v208
    %249 = vmatprep.subr.bf16.mxu0 0
    %250 = vmatpush1.bf16.msra.mxu0 %v209
    %251 = vmatprep.subr.bf16.mxu0 0
    %252 = vmatpush1.bf16.msra.mxu0 %v210
    %253 = vmatprep.subr.bf16.mxu0 0
    %254 = vmatpush1.bf16.msra.mxu0 %v211
    %255 = vmatprep.subr.bf16.mxu0 0
    %256 = vmatpush1.bf16.msra.mxu0 %v212
    %257 = vmatprep.subr.bf16.mxu0 0
    %258 = vmatpush1.bf16.msra.mxu0 %v213
    %259 = vmatprep.subr.bf16.mxu0 0
    %260 = vmatpush1.bf16.msra.mxu0 %v214
    %261 = vmatprep.subr.bf16.mxu0 0
    %262 = vmatpush1.bf16.msra.mxu0 %v215
    %263 = vmatprep.subr.bf16.mxu0 0
    %264 = vmatpush1.bf16.msra.mxu0 %v216
    %265 = vmatprep.mubr.bf16.mxu0 %v122
    %266 = vmatmul.mubr.bf16.gmra.mrb[0].mxu0 %v121
    %v267 = vpop.f32.mrb[0].mxu0
    %v268 = vadd.f32 0.0, %v267
    %v269 = vpop.f32.mrb[0].mxu0
    %v270 = vpop.f32.mrb[0].mxu0
    %v271 = vadd.f32 0.0, %v270
    %v272 = vpop.f32.mrb[0].mxu0
    %273 = vmatprep.mubr.bf16.mxu0 %v124
    %274 = vmatmul.mubr.bf16.gmra.mrb[0].mxu0 %v123
    %v275 = vpop.f32.mrb[0].mxu0
    %v276 = vadd.f32 0.0, %v275
    %v277 = vpop.f32.mrb[0].mxu0
    %v278 = vpop.f32.mrb[0].mxu0
    %v279 = vadd.f32 0.0, %v278
    %v280 = vpop.f32.mrb[0].mxu0
    %281 = vmatprep.mubr.bf16.mxu0 %v126
    %282 = vmatmul.mubr.bf16.gmra.mrb[0].mxu0 %v125
    %v283 = vpop.f32.mrb[0].mxu0
    %v284 = vadd.f32 0.0, %v283
    %v285 = vpop.f32.mrb[0].mxu0
    %v286 = vpop.f32.mrb[0].mxu0
    %v287 = vadd.f32 0.0, %v286
    %v288 = vpop.f32.mrb[0].mxu0
    %289 = vmatprep.mubr.bf16.mxu0 %v128
    %290 = vmatmul.mubr.bf16.gmra.mrb[0].mxu0 %v127
    %v291 = vpop.f32.mrb[0].mxu0
    %v292 = vadd.f32 0.0, %v291
    %v293 = vpop.f32.mrb[0].mxu0
    %v294 = vpop.f32.mrb[0].mxu0
    %v295 = vadd.f32 0.0, %v294
    %v296 = vpop.f32.mrb[0].mxu0
    %297 = vdwg.mxu0
    %vm298 = vcmask 261120
    %v299 = vsel %vm298, %v268, 0.0
    %300 = vadd.xlane.f32.xlu0 %v299
    %v301 = vpop.xlane.xlu0 %300
    %v302 = vsel %vm298, %v271, 0.0
    %303 = vadd.xlane.f32.xlu0 %v302
    %v304 = vpop.xlane.xlu0 %303
    %v305 = vsel %vm298, %v276, 0.0
    %306 = vadd.xlane.f32.xlu0 %v305
    %v307 = vpop.xlane.xlu0 %306
    %v308 = vsel %vm298, %v279, 0.0
    %309 = vadd.xlane.f32.xlu0 %v308
    %v310 = vpop.xlane.xlu0 %309
    %v311 = vsel %vm298, %v284, 0.0
    %312 = vadd.xlane.f32.xlu0 %v311
    %v313 = vpop.xlane.xlu0 %312
    %v314 = vsel %vm298, %v287, 0.0
    %315 = vadd.xlane.f32.xlu0 %v314
    %v316 = vpop.xlane.xlu0 %315
    %v317 = vsel %vm298, %v292, 0.0
    %318 = vadd.xlane.f32.xlu0 %v317
    %v319 = vpop.xlane.xlu0 %318
    %v320 = vsel %vm298, %v295, 0.0
    %321 = vadd.xlane.f32.xlu0 %v320
    %v322 = vpop.xlane.xlu0 %321
    %v323 = vmul.f32 %v301, 0.03125
    %v324 = vmul.f32 %v304, 0.03125
    %v325 = vmul.f32 %v307, 0.03125
    %v326 = vmul.f32 %v310, 0.03125
    %v327 = vmul.f32 %v313, 0.03125
    %v328 = vmul.f32 %v316, 0.03125
    %v329 = vmul.f32 %v319, 0.03125
    %v330 = vmul.f32 %v322, 0.03125
    %v331 = vmul.f32 %v268, %v268
    %v332 = vmul.f32 %v271, %v271
    %v333 = vmul.f32 %v276, %v276
    %v334 = vmul.f32 %v279, %v279
    %v335 = vmul.f32 %v284, %v284
    %v336 = vmul.f32 %v287, %v287
    %v337 = vmul.f32 %v292, %v292
    %v338 = vmul.f32 %v295, %v295
    %v339 = vsel %vm298, %v331, 0.0
    %340 = vadd.xlane.f32.xlu0 %v339
    %v341 = vpop.xlane.xlu0 %340
    %v342 = vsel %vm298, %v332, 0.0
    %343 = vadd.xlane.f32.xlu0 %v342
    %v344 = vpop.xlane.xlu0 %343
    %v345 = vsel %vm298, %v333, 0.0
    %346 = vadd.xlane.f32.xlu0 %v345
    %v347 = vpop.xlane.xlu0 %346
    %v348 = vsel %vm298, %v334, 0.0
    %349 = vadd.xlane.f32.xlu0 %v348
    %v350 = vpop.xlane.xlu0 %349
    %v351 = vsel %vm298, %v335, 0.0
    %352 = vadd.xlane.f32.xlu0 %v351
    %v353 = vpop.xlane.xlu0 %352
    %v354 = vsel %vm298, %v336, 0.0
    %355 = vadd.xlane.f32.xlu0 %v354
    %v356 = vpop.xlane.xlu0 %355
    %v357 = vsel %vm298, %v337, 0.0
    %358 = vadd.xlane.f32.xlu0 %v357
    %v359 = vpop.xlane.xlu0 %358
    %v360 = vsel %vm298, %v338, 0.0
    %361 = vadd.xlane.f32.xlu0 %v360
    %v362 = vpop.xlane.xlu0 %361
    %v363 = vmul.f32 %v341, 0.03125
    %v364 = vmul.f32 %v344, 0.03125
    %v365 = vmul.f32 %v347, 0.03125
    %v366 = vmul.f32 %v350, 0.03125
    %v367 = vmul.f32 %v353, 0.03125
    %v368 = vmul.f32 %v356, 0.03125
    %v369 = vmul.f32 %v359, 0.03125
    %v370 = vmul.f32 %v362, 0.03125
    %v371 = vmul.f32 %v323, %v323
    %v372 = vmul.f32 %v324, %v324
    %v373 = vmul.f32 %v325, %v325
    %v374 = vmul.f32 %v326, %v326
    %v375 = vmul.f32 %v327, %v327
    %v376 = vmul.f32 %v328, %v328
    %v377 = vmul.f32 %v329, %v329
    %v378 = vmul.f32 %v330, %v330
    %v379 = vsub.f32 %v363, %v371
    %v380 = vsub.f32 %v364, %v372
    %v381 = vsub.f32 %v365, %v373
    %v382 = vsub.f32 %v366, %v374
    %v383 = vsub.f32 %v367, %v375
    %v384 = vsub.f32 %v368, %v376
    %v385 = vsub.f32 %v369, %v377
    %v386 = vsub.f32 %v370, %v378
    %v387 = vmax.f32 %v379, 0.0
    %v388 = vmax.f32 %v380, 0.0
    %v389 = vmax.f32 %v381, 0.0
    %v390 = vmax.f32 %v382, 0.0
    %v391 = vmax.f32 %v383, 0.0
    %v392 = vmax.f32 %v384, 0.0
    %v393 = vmax.f32 %v385, 0.0
    %v394 = vmax.f32 %v386, 0.0
    %v395 = vld [vmem:[%s2] sm:$0xff]
    %v396 = vld [vmem:[%s2 + $0x8] sm:$0xff]
    %v397 = vld [vmem:[%s2 + $0x10] sm:$0xff]
    %v398 = vld [vmem:[%s2 + $0x18] sm:$0xff]
    %v399 = vld [vmem:[%s2 + $0x20] sm:$0xff]
    %v400 = vld [vmem:[%s2 + $0x28] sm:$0xff]
    %v401 = vld [vmem:[%s2 + $0x30] sm:$0xff]
    %v402 = vld [vmem:[%s2 + $0x38] sm:$0xff]
    %v403 = vadd.f32 %v387, 1e-05
    %v404 = vadd.f32 %v388, 1e-05
    %v405 = vadd.f32 %v389, 1e-05
    %v406 = vadd.f32 %v390, 1e-05
    %v407 = vadd.f32 %v391, 1e-05
    %v408 = vadd.f32 %v392, 1e-05
    %v409 = vadd.f32 %v393, 1e-05
    %v410 = vadd.f32 %v394, 1e-05
    %v411 = vrsqrt.pop %v403
    %v412 = vrsqrt.pop %v404
    %v413 = vrsqrt.pop %v405
    %v414 = vrsqrt.pop %v406
    %v415 = vrsqrt.pop %v407
    %v416 = vrsqrt.pop %v408
    %v417 = vrsqrt.pop %v409
    %v418 = vrsqrt.pop %v410
    %v419 = vmul.f32 %v395, %v411
    %v420 = vmul.f32 %v396, %v412
    %v421 = vmul.f32 %v397, %v413
    %v422 = vmul.f32 %v398, %v414
    %v423 = vmul.f32 %v399, %v415
    %v424 = vmul.f32 %v400, %v416
    %v425 = vmul.f32 %v401, %v417
    %v426 = vmul.f32 %v402, %v418
    %v427 = vld [vmem:[%s3] sm:$0xff]
    %v428 = vld [vmem:[%s3 + $0x8] sm:$0xff]
    %v429 = vld [vmem:[%s3 + $0x10] sm:$0xff]
    %v430 = vld [vmem:[%s3 + $0x18] sm:$0xff]
    %v431 = vld [vmem:[%s3 + $0x20] sm:$0xff]
    %v432 = vld [vmem:[%s3 + $0x28] sm:$0xff]
    %v433 = vld [vmem:[%s3 + $0x30] sm:$0xff]
    %v434 = vld [vmem:[%s3 + $0x38] sm:$0xff]
    %v435 = vmul.f32 %v323, %v419
    %v436 = vmul.f32 %v324, %v420
    %v437 = vmul.f32 %v325, %v421
    %v438 = vmul.f32 %v326, %v422
    %v439 = vmul.f32 %v327, %v423
    %v440 = vmul.f32 %v328, %v424
    %v441 = vmul.f32 %v329, %v425
    %v442 = vmul.f32 %v330, %v426
    %v443 = vsub.f32 %v427, %v435
    %v444 = vsub.f32 %v428, %v436
    %v445 = vsub.f32 %v429, %v437
    %v446 = vsub.f32 %v430, %v438
    %v447 = vsub.f32 %v431, %v439
    %v448 = vsub.f32 %v432, %v440
    %v449 = vsub.f32 %v433, %v441
    %v450 = vsub.f32 %v434, %v442
    %452 = vset.pattern.permute.xlu0 0
    %453 = vperm.xlu0 %452, %v419
    %v454 = vpop.permute.xlu0 %453
    %457 = vset.pattern.permute.xlu0 0
    %458 = vperm.xlu0 %457, %v420
    %v459 = vpop.permute.xlu0 %458
    %462 = vset.pattern.permute.xlu0 0
    %463 = vperm.xlu0 %462, %v421
    %v464 = vpop.permute.xlu0 %463
    %467 = vset.pattern.permute.xlu0 0
    %468 = vperm.xlu0 %467, %v422
    %v469 = vpop.permute.xlu0 %468
    %472 = vset.pattern.permute.xlu0 0
    %473 = vperm.xlu0 %472, %v423
    %v474 = vpop.permute.xlu0 %473
    %477 = vset.pattern.permute.xlu0 0
    %478 = vperm.xlu0 %477, %v424
    %v479 = vpop.permute.xlu0 %478
    %482 = vset.pattern.permute.xlu0 0
    %483 = vperm.xlu0 %482, %v425
    %v484 = vpop.permute.xlu0 %483
    %487 = vset.pattern.permute.xlu0 0
    %488 = vperm.xlu0 %487, %v426
    %v489 = vpop.permute.xlu0 %488
    %v491 = vmul.f32 %v268, %v454
    %v492 = vmul.f32 %v271, %v459
    %v493 = vmul.f32 %v276, %v464
    %v494 = vmul.f32 %v279, %v469
    %v495 = vmul.f32 %v284, %v474
    %v496 = vmul.f32 %v287, %v479
    %v497 = vmul.f32 %v292, %v484
    %v498 = vmul.f32 %v295, %v489
    %500 = vset.pattern.permute.xlu0 0
    %501 = vperm.xlu0 %500, %v443
    %v502 = vpop.permute.xlu0 %501
    %505 = vset.pattern.permute.xlu0 0
    %506 = vperm.xlu0 %505, %v444
    %v507 = vpop.permute.xlu0 %506
    %510 = vset.pattern.permute.xlu0 0
    %511 = vperm.xlu0 %510, %v445
    %v512 = vpop.permute.xlu0 %511
    %515 = vset.pattern.permute.xlu0 0
    %516 = vperm.xlu0 %515, %v446
    %v517 = vpop.permute.xlu0 %516
    %520 = vset.pattern.permute.xlu0 0
    %521 = vperm.xlu0 %520, %v447
    %v522 = vpop.permute.xlu0 %521
    %525 = vset.pattern.permute.xlu0 0
    %526 = vperm.xlu0 %525, %v448
    %v527 = vpop.permute.xlu0 %526
    %530 = vset.pattern.permute.xlu0 0
    %531 = vperm.xlu0 %530, %v449
    %v532 = vpop.permute.xlu0 %531
    %535 = vset.pattern.permute.xlu0 0
    %536 = vperm.xlu0 %535, %v450
    %v537 = vpop.permute.xlu0 %536
    %v539 = vadd.f32 %v491, %v502
    %v540 = vadd.f32 %v492, %v507
    %v541 = vadd.f32 %v493, %v512
    %v542 = vadd.f32 %v494, %v517
    %v543 = vadd.f32 %v495, %v522
    %v544 = vadd.f32 %v496, %v527
    %v545 = vadd.f32 %v497, %v532
    %v546 = vadd.f32 %v498, %v537
    %v547 = vmax.f32 %v539, 0.0
    %v548 = vmax.f32 %v540, 0.0
    %v549 = vmax.f32 %v541, 0.0
    %v550 = vmax.f32 %v542, 0.0
    %v551 = vmax.f32 %v543, 0.0
    %v552 = vmax.f32 %v544, 0.0
    %v553 = vmax.f32 %v545, 0.0
    %v554 = vmax.f32 %v546, 0.0
    %vm555 = vcmask 343040
    %556 = vst.msk [vmem:[#allocation2] sm:$0xff] %vm555, 0
    %557 = vst.msk [vmem:[#allocation2 + $0x8] sm:$0xff] %vm555, 0
    %558 = vst.msk [vmem:[#allocation2 + $0x10] sm:$0xff] %vm555, 0
    %559 = vst.msk [vmem:[#allocation2 + $0x18] sm:$0xff] %vm555, 0
    %v560 = vpack.c.bf16 %v548, %v547
    %v561 = vpack.c.bf16 %v550, %v549
    %v562 = vpack.c.bf16 %v552, %v551
    %v563 = vpack.c.bf16 %v554, %v553
    %568 = vrot.lane.b32.xlu0 %v560, 5
    %v569 = vpop.permute.xlu0 %568
    %570 = vrot.lane.b32.xlu0 %v561, 5
    %v571 = vpop.permute.xlu0 %570
    %572 = vrot.lane.b32.xlu0 %v562, 5
    %v573 = vpop.permute.xlu0 %572
    %574 = vrot.lane.b32.xlu0 %v563, 5
    %v575 = vpop.permute.xlu0 %574
    %vm580 = vcmask 302120
    %581 = vst.msk [vmem:[#allocation2] sm:$0xff] %vm580, %v569
    %582 = vst.msk [vmem:[#allocation2 + $0x8] sm:$0xff] %vm580, %v571
    %583 = vst.msk [vmem:[#allocation2 + $0x10] sm:$0xff] %vm580, %v573
    %584 = vst.msk [vmem:[#allocation2 + $0x18] sm:$0xff] %vm580, %v575
    %v585 = vlaneseq
    %v586 = vand.u32 %v585, 127
    %v587 = vand.u32 %v586, 3
    %v588 = vshra.s32 %v586, 2
    %v589 = vand.u32 %v588, 3
    %v590 = vld [vmem:[#allocation2] sm:$0xff]
    %v591 = vld [vmem:[#allocation2 + $0x8] sm:$0xff]
    %v592 = vld [vmem:[#allocation2 + $0x10] sm:$0xff]
    %v593 = vld [vmem:[#allocation2 + $0x18] sm:$0xff]
    %vm594 = vcmp.ne.s32.totalorder %v589, 0
    %v595 = vsel %vm594, 1, 0
    %vm596 = vcmp.eq.s32.totalorder %v595, 1
    %vm597 = vmpackc.low %vm596, %vm596
    %v598 = vsel %vm597, 65537, 0
    %v599 = vlaneseq
    %v600 = vshrl.u32 %v599, 7
    %v601 = vsub.s32 0, %v600
    %v602 = vrot.slane %v598, %v601
    %vm603 = vcmp.ne.s16.totalorder %v602, 0
    %v604 = vsel %vm603, %v590, 0
    %v605 = vsel %vm603, %v591, 0
    %v606 = vsel %vm603, %v592, 0
    %v607 = vsel %vm603, %v593, 0
    %vm608 = vcmp.ne.s32.totalorder %v587, 0
    %v609 = vsel %vm608, 1, 0
    %vm610 = vcmp.eq.s32.totalorder %v609, 1
    %vm611 = vmpackc.low %vm610, %vm610
    %v612 = vsel %vm611, 65537, 0
    %v613 = vlaneseq
    %v614 = vshrl.u32 %v613, 7
    %v615 = vsub.s32 0, %v614
    %v616 = vrot.slane %v612, %v615
    %vm617 = vcmp.ne.s16.totalorder %v616, 0
    %v618 = vsel %vm617, %v604, 0
    %v619 = vsel %vm617, %v605, 0
    %v620 = vsel %vm617, %v606, 0
    %v621 = vsel %vm617, %v607, 0
    %622 = vrot.lane.b32.xlu0 %v602, 1
    %v623 = vpop.permute.xlu0 %622
    %vm624 = vcmp.ne.s16.totalorder %v623, 0
    %v625 = vsel %vm624, %v590, 0
    %v626 = vsel %vm624, %v591, 0
    %v627 = vsel %vm624, %v592, 0
    %v628 = vsel %vm624, %v593, 0
    %629 = vrot.lane.b32.xlu0 %v616, 4
    %v630 = vpop.permute.xlu0 %629
    %vm631 = vcmp.ne.s16.totalorder %v630, 0
    %v632 = vsel %vm631, %v590, 0
    %v633 = vsel %vm631, %v591, 0
    %v634 = vsel %vm631, %v592, 0
    %v635 = vsel %vm631, %v593, 0
    %640 = vrot.lane.b32.xlu0 %v625, 127
    %v641 = vpop.permute.xlu0 %640
    %642 = vrot.lane.b32.xlu0 %v626, 127
    %v643 = vpop.permute.xlu0 %642
    %644 = vrot.lane.b32.xlu0 %v627, 127
    %v645 = vpop.permute.xlu0 %644
    %646 = vrot.lane.b32.xlu0 %v628, 127
    %v647 = vpop.permute.xlu0 %646
    %656 = vrot.lane.b32.xlu0 %v632, 124
    %v657 = vpop.permute.xlu0 %656
    %658 = vrot.lane.b32.xlu0 %v633, 124
    %v659 = vpop.permute.xlu0 %658
    %660 = vrot.lane.b32.xlu0 %v634, 124
    %v661 = vpop.permute.xlu0 %660
    %662 = vrot.lane.b32.xlu0 %v635, 124
    %v663 = vpop.permute.xlu0 %662
    %672 = vrot.lane.b32.xlu0 %v590, 123
    %v673 = vpop.permute.xlu0 %672
    %674 = vrot.lane.b32.xlu0 %v591, 123
    %v675 = vpop.permute.xlu0 %674
    %676 = vrot.lane.b32.xlu0 %v592, 123
    %v677 = vpop.permute.xlu0 %676
    %678 = vrot.lane.b32.xlu0 %v593, 123
    %v679 = vpop.permute.xlu0 %678
    %v684 = vld [vmem:[#allocation5] sm:$0xff]
    %v685 = vld [vmem:[#allocation5 + $0x8] sm:$0xff]
    %v686 = vld [vmem:[#allocation5 + $0x10] sm:$0xff]
    %v687 = vld [vmem:[#allocation5 + $0x18] sm:$0xff]
    %v692 = vunpack.c.l.b16 %v684
    %v693 = vunpack.c.h.b16 %v684
    %v694 = vunpack.c.l.b16 %v685
    %v695 = vunpack.c.h.b16 %v685
    %v696 = vunpack.c.l.b16 %v686
    %v697 = vunpack.c.h.b16 %v686
    %v698 = vunpack.c.l.b16 %v687
    %v699 = vunpack.c.h.b16 %v687
    %v700 = vpack.c.b16 %v694, %v692
    %v701 = vpack.c.b16 %v695, %v693
    %v702 = vpack.c.b16 %v698, %v696
    %v703 = vpack.c.b16 %v699, %v697
    %708 = vmatprep.subr.bf16.mxu0 0
    %709 = vmatpush1.bf16.msra.mxu0 %v618
    %710 = vmatprep.subr.bf16.mxu0 0
    %711 = vmatpush1.bf16.msra.mxu0 %v619
    %712 = vmatprep.subr.bf16.mxu0 0
    %713 = vmatpush1.bf16.msra.mxu0 %v620
    %714 = vmatprep.subr.bf16.mxu0 0
    %715 = vmatpush1.bf16.msra.mxu0 %v621
    %716 = vmatprep.subr.bf16.mxu0 0
    %717 = vmatpush1.bf16.msra.mxu0 %v641
    %718 = vmatprep.subr.bf16.mxu0 0
    %719 = vmatpush1.bf16.msra.mxu0 %v643
    %720 = vmatprep.subr.bf16.mxu0 0
    %721 = vmatpush1.bf16.msra.mxu0 %v645
    %722 = vmatprep.subr.bf16.mxu0 0
    %723 = vmatpush1.bf16.msra.mxu0 %v647
    %724 = vmatprep.subr.bf16.mxu0 0
    %725 = vmatpush1.bf16.msra.mxu0 %v657
    %726 = vmatprep.subr.bf16.mxu0 0
    %727 = vmatpush1.bf16.msra.mxu0 %v659
    %728 = vmatprep.subr.bf16.mxu0 0
    %729 = vmatpush1.bf16.msra.mxu0 %v661
    %730 = vmatprep.subr.bf16.mxu0 0
    %731 = vmatpush1.bf16.msra.mxu0 %v663
    %732 = vmatprep.subr.bf16.mxu0 0
    %733 = vmatpush1.bf16.msra.mxu0 %v673
    %734 = vmatprep.subr.bf16.mxu0 0
    %735 = vmatpush1.bf16.msra.mxu0 %v675
    %736 = vmatprep.subr.bf16.mxu0 0
    %737 = vmatpush1.bf16.msra.mxu0 %v677
    %738 = vmatprep.subr.bf16.mxu0 0
    %739 = vmatpush1.bf16.msra.mxu0 %v679
    %740 = vmatprep.mubr.bf16.mxu0 %v701
    %741 = vmatmul.mubr.bf16.gmra.mrb[0].mxu0 %v700
    %v742 = vpop.f32.mrb[0].mxu0
    %v743 = vadd.f32 0.0, %v742
    %v744 = vpop.f32.mrb[0].mxu0
    %v745 = vpop.f32.mrb[0].mxu0
    %v746 = vadd.f32 0.0, %v745
    %v747 = vpop.f32.mrb[0].mxu0
    %748 = vmatprep.mubr.bf16.mxu0 %v703
    %749 = vmatmul.mubr.bf16.gmra.mrb[0].mxu0 %v702
    %v750 = vpop.f32.mrb[0].mxu0
    %v751 = vadd.f32 0.0, %v750
    %v752 = vpop.f32.mrb[0].mxu0
    %v753 = vpop.f32.mrb[0].mxu0
    %v754 = vadd.f32 0.0, %v753
    %v755 = vpop.f32.mrb[0].mxu0
    %756 = vdwg.mxu0
    %757 = vrot.lane.b32.xlu0 %v602, 2
    %v758 = vpop.permute.xlu0 %757
    %vm759 = vcmp.ne.s16.totalorder %v758, 0
    %v760 = vsel %vm759, %v590, 0
    %v761 = vsel %vm759, %v591, 0
    %v762 = vsel %vm759, %v592, 0
    %v763 = vsel %vm759, %v593, 0
    %vm764 = vcmp.ne.s32.totalorder %v587, 3
    %v765 = vsel %vm764, 1, 0
    %vm766 = vcmp.eq.s32.totalorder %v765, 1
    %vm767 = vmpackc.low %vm766, %vm766
    %v768 = vsel %vm767, 65537, 0
    %v769 = vlaneseq
    %v770 = vshrl.u32 %v769, 7
    %v771 = vsub.s32 0, %v770
    %v772 = vrot.slane %v768, %v771
    %773 = vrot.lane.b32.xlu0 %v772, 2
    %v774 = vpop.permute.xlu0 %773
    %vm775 = vcmp.ne.s16.totalorder %v774, 0
    %v776 = vsel %vm775, %v760, 0
    %v777 = vsel %vm775, %v761, 0
    %v778 = vsel %vm775, %v762, 0
    %v779 = vsel %vm775, %v763, 0
    %780 = vrot.lane.b32.xlu0 %v772, 6
    %v781 = vpop.permute.xlu0 %780
    %vm782 = vcmp.ne.s16.totalorder %v781, 0
    %v783 = vsel %vm782, %v590, 0
    %v784 = vsel %vm782, %v591, 0
    %v785 = vsel %vm782, %v592, 0
    %v786 = vsel %vm782, %v593, 0
    %791 = vrot.lane.b32.xlu0 %v776, 127
    %v792 = vpop.permute.xlu0 %791
    %793 = vrot.lane.b32.xlu0 %v777, 127
    %v794 = vpop.permute.xlu0 %793
    %795 = vrot.lane.b32.xlu0 %v778, 127
    %v796 = vpop.permute.xlu0 %795
    %797 = vrot.lane.b32.xlu0 %v779, 127
    %v798 = vpop.permute.xlu0 %797
    %799 = vrot.lane.b32.xlu0 %v590, 124
    %v800 = vpop.permute.xlu0 %799
    %801 = vrot.lane.b32.xlu0 %v591, 124
    %v802 = vpop.permute.xlu0 %801
    %803 = vrot.lane.b32.xlu0 %v592, 124
    %v804 = vpop.permute.xlu0 %803
    %805 = vrot.lane.b32.xlu0 %v593, 124
    %v806 = vpop.permute.xlu0 %805
    %811 = vrot.lane.b32.xlu0 %v783, 123
    %v812 = vpop.permute.xlu0 %811
    %813 = vrot.lane.b32.xlu0 %v784, 123
    %v814 = vpop.permute.xlu0 %813
    %815 = vrot.lane.b32.xlu0 %v785, 123
    %v816 = vpop.permute.xlu0 %815
    %817 = vrot.lane.b32.xlu0 %v786, 123
    %v818 = vpop.permute.xlu0 %817
    %s819 = scalar_lea.vmem [#allocation5], 32
    %v820 = vld [vmem:[%s819] sm:$0xff]
    %v821 = vld [vmem:[%s819 + $0x8] sm:$0xff]
    %v822 = vld [vmem:[%s819 + $0x10] sm:$0xff]
    %v823 = vld [vmem:[%s819 + $0x18] sm:$0xff]
    %v828 = vunpack.c.l.b16 %v820
    %v829 = vunpack.c.h.b16 %v820
    %v830 = vunpack.c.l.b16 %v821
    %v831 = vunpack.c.h.b16 %v821
    %v832 = vunpack.c.l.b16 %v822
    %v833 = vunpack.c.h.b16 %v822
    %v834 = vunpack.c.l.b16 %v823
    %v835 = vunpack.c.h.b16 %v823
    %v836 = vpack.c.b16 %v830, %v828
    %v837 = vpack.c.b16 %v831, %v829
    %v838 = vpack.c.b16 %v834, %v832
    %v839 = vpack.c.b16 %v835, %v833
    %844 = vrot.lane.b32.xlu0 %v792, 127
    %v845 = vpop.permute.xlu0 %844
    %846 = vrot.lane.b32.xlu0 %v794, 127
    %v847 = vpop.permute.xlu0 %846
    %848 = vrot.lane.b32.xlu0 %v796, 127
    %v849 = vpop.permute.xlu0 %848
    %850 = vrot.lane.b32.xlu0 %v798, 127
    %v851 = vpop.permute.xlu0 %850
    %852 = vrot.lane.b32.xlu0 %v800, 127
    %v853 = vpop.permute.xlu0 %852
    %854 = vrot.lane.b32.xlu0 %v802, 127
    %v855 = vpop.permute.xlu0 %854
    %856 = vrot.lane.b32.xlu0 %v804, 127
    %v857 = vpop.permute.xlu0 %856
    %858 = vrot.lane.b32.xlu0 %v806, 127
    %v859 = vpop.permute.xlu0 %858
    %860 = vrot.lane.b32.xlu0 %v812, 127
    %v861 = vpop.permute.xlu0 %860
    %862 = vrot.lane.b32.xlu0 %v814, 127
    %v863 = vpop.permute.xlu0 %862
    %864 = vrot.lane.b32.xlu0 %v816, 127
    %v865 = vpop.permute.xlu0 %864
    %866 = vrot.lane.b32.xlu0 %v818, 127
    %v867 = vpop.permute.xlu0 %866
    %880 = vmatprep.subr.bf16.mxu0 0
    %881 = vmatpush1.bf16.msra.mxu0 %v641
    %882 = vmatprep.subr.bf16.mxu0 0
    %883 = vmatpush1.bf16.msra.mxu0 %v643
    %884 = vmatprep.subr.bf16.mxu0 0
    %885 = vmatpush1.bf16.msra.mxu0 %v645
    %886 = vmatprep.subr.bf16.mxu0 0
    %887 = vmatpush1.bf16.msra.mxu0 %v647
    %888 = vmatprep.subr.bf16.mxu0 0
    %889 = vmatpush1.bf16.msra.mxu0 %v845
    %890 = vmatprep.subr.bf16.mxu0 0
    %891 = vmatpush1.bf16.msra.mxu0 %v847
    %892 = vmatprep.subr.bf16.mxu0 0
    %893 = vmatpush1.bf16.msra.mxu0 %v849
    %894 = vmatprep.subr.bf16.mxu0 0
    %895 = vmatpush1.bf16.msra.mxu0 %v851
    %896 = vmatprep.subr.bf16.mxu0 0
    %897 = vmatpush1.bf16.msra.mxu0 %v853
    %898 = vmatprep.subr.bf16.mxu0 0
    %899 = vmatpush1.bf16.msra.mxu0 %v855
    %900 = vmatprep.subr.bf16.mxu0 0
    %901 = vmatpush1.bf16.msra.mxu0 %v857
    %902 = vmatprep.subr.bf16.mxu0 0
    %903 = vmatpush1.bf16.msra.mxu0 %v859
    %904 = vmatprep.subr.bf16.mxu0 0
    %905 = vmatpush1.bf16.msra.mxu0 %v861
    %906 = vmatprep.subr.bf16.mxu0 0
    %907 = vmatpush1.bf16.msra.mxu0 %v863
    %908 = vmatprep.subr.bf16.mxu0 0
    %909 = vmatpush1.bf16.msra.mxu0 %v865
    %910 = vmatprep.subr.bf16.mxu0 0
    %911 = vmatpush1.bf16.msra.mxu0 %v867
    %912 = vmatprep.mubr.bf16.mxu0 %v837
    %913 = vmatmul.mubr.bf16.gmra.mrb[0].mxu0 %v836
    %v914 = vpop.f32.mrb[0].mxu0
    %v915 = vadd.f32 0.0, %v914
    %v916 = vpop.f32.mrb[0].mxu0
    %v917 = vpop.f32.mrb[0].mxu0
    %v918 = vadd.f32 0.0, %v917
    %v919 = vpop.f32.mrb[0].mxu0
    %920 = vmatprep.mubr.bf16.mxu0 %v839
    %921 = vmatmul.mubr.bf16.gmra.mrb[0].mxu0 %v838
    %v922 = vpop.f32.mrb[0].mxu0
    %v923 = vadd.f32 0.0, %v922
    %v924 = vpop.f32.mrb[0].mxu0
    %v925 = vpop.f32.mrb[0].mxu0
    %v926 = vadd.f32 0.0, %v925
    %v927 = vpop.f32.mrb[0].mxu0
    %928 = vdwg.mxu0
    %vm929 = vcmp.ne.s32.totalorder %v589, 3
    %v930 = vsel %vm929, 1, 0
    %vm931 = vcmp.eq.s32.totalorder %v930, 1
    %vm932 = vmpackc.low %vm931, %vm931
    %v933 = vsel %vm932, 65537, 0
    %v934 = vlaneseq
    %v935 = vshrl.u32 %v934, 7
    %v936 = vsub.s32 0, %v935
    %v937 = vrot.slane %v933, %v936
    %938 = vrot.lane.b32.xlu0 %v937, 8
    %v939 = vpop.permute.xlu0 %938
    %vm940 = vcmp.ne.s16.totalorder %v939, 0
    %v941 = vsel %vm940, %v590, 0
    %v942 = vsel %vm940, %v591, 0
    %v943 = vsel %vm940, %v592, 0
    %v944 = vsel %vm940, %v593, 0
    %945 = vrot.lane.b32.xlu0 %v616, 8
    %v946 = vpop.permute.xlu0 %945
    %vm947 = vcmp.ne.s16.totalorder %v946, 0
    %v948 = vsel %vm947, %v941, 0
    %v949 = vsel %vm947, %v942, 0
    %v950 = vsel %vm947, %v943, 0
    %v951 = vsel %vm947, %v944, 0
    %952 = vrot.lane.b32.xlu0 %v937, 9
    %v953 = vpop.permute.xlu0 %952
    %vm954 = vcmp.ne.s16.totalorder %v953, 0
    %v955 = vsel %vm954, %v590, 0
    %v956 = vsel %vm954, %v591, 0
    %v957 = vsel %vm954, %v592, 0
    %v958 = vsel %vm954, %v593, 0
    %959 = vrot.lane.b32.xlu0 %v590, 127
    %v960 = vpop.permute.xlu0 %959
    %961 = vrot.lane.b32.xlu0 %v591, 127
    %v962 = vpop.permute.xlu0 %961
    %963 = vrot.lane.b32.xlu0 %v592, 127
    %v964 = vpop.permute.xlu0 %963
    %965 = vrot.lane.b32.xlu0 %v593, 127
    %v966 = vpop.permute.xlu0 %965
    %971 = vrot.lane.b32.xlu0 %v948, 124
    %v972 = vpop.permute.xlu0 %971
    %973 = vrot.lane.b32.xlu0 %v949, 124
    %v974 = vpop.permute.xlu0 %973
    %975 = vrot.lane.b32.xlu0 %v950, 124
    %v976 = vpop.permute.xlu0 %975
    %977 = vrot.lane.b32.xlu0 %v951, 124
    %v978 = vpop.permute.xlu0 %977
    %983 = vrot.lane.b32.xlu0 %v955, 123
    %v984 = vpop.permute.xlu0 %983
    %985 = vrot.lane.b32.xlu0 %v956, 123
    %v986 = vpop.permute.xlu0 %985
    %987 = vrot.lane.b32.xlu0 %v957, 123
    %v988 = vpop.permute.xlu0 %987
    %989 = vrot.lane.b32.xlu0 %v958, 123
    %v990 = vpop.permute.xlu0 %989
    %s991 = scalar_lea.vmem [#allocation5], 64
    %v992 = vld [vmem:[%s991] sm:$0xff]
    %v993 = vld [vmem:[%s991 + $0x8] sm:$0xff]
    %v994 = vld [vmem:[%s991 + $0x10] sm:$0xff]
    %v995 = vld [vmem:[%s991 + $0x18] sm:$0xff]
    %v1000 = vunpack.c.l.b16 %v992
    %v1001 = vunpack.c.h.b16 %v992
    %v1002 = vunpack.c.l.b16 %v993
    %v1003 = vunpack.c.h.b16 %v993
    %v1004 = vunpack.c.l.b16 %v994
    %v1005 = vunpack.c.h.b16 %v994
    %v1006 = vunpack.c.l.b16 %v995
    %v1007 = vunpack.c.h.b16 %v995
    %v1008 = vpack.c.b16 %v1002, %v1000
    %v1009 = vpack.c.b16 %v1003, %v1001
    %v1010 = vpack.c.b16 %v1006, %v1004
    %v1011 = vpack.c.b16 %v1007, %v1005
    %1016 = vrot.lane.b32.xlu0 %v960, 124
    %v1017 = vpop.permute.xlu0 %1016
    %1018 = vrot.lane.b32.xlu0 %v962, 124
    %v1019 = vpop.permute.xlu0 %1018
    %1020 = vrot.lane.b32.xlu0 %v964, 124
    %v1021 = vpop.permute.xlu0 %1020
    %1022 = vrot.lane.b32.xlu0 %v966, 124
    %v1023 = vpop.permute.xlu0 %1022
    %1024 = vrot.lane.b32.xlu0 %v972, 124
    %v1025 = vpop.permute.xlu0 %1024
    %1026 = vrot.lane.b32.xlu0 %v974, 124
    %v1027 = vpop.permute.xlu0 %1026
    %1028 = vrot.lane.b32.xlu0 %v976, 124
    %v1029 = vpop.permute.xlu0 %1028
    %1030 = vrot.lane.b32.xlu0 %v978, 124
    %v1031 = vpop.permute.xlu0 %1030
    %1032 = vrot.lane.b32.xlu0 %v984, 124
    %v1033 = vpop.permute.xlu0 %1032
    %1034 = vrot.lane.b32.xlu0 %v986, 124
    %v1035 = vpop.permute.xlu0 %1034
    %1036 = vrot.lane.b32.xlu0 %v988, 124
    %v1037 = vpop.permute.xlu0 %1036
    %1038 = vrot.lane.b32.xlu0 %v990, 124
    %v1039 = vpop.permute.xlu0 %1038
    %1052 = vmatprep.subr.bf16.mxu0 0
    %1053 = vmatpush1.bf16.msra.mxu0 %v657
    %1054 = vmatprep.subr.bf16.mxu0 0
    %1055 = vmatpush1.bf16.msra.mxu0 %v659
    %1056 = vmatprep.subr.bf16.mxu0 0
    %1057 = vmatpush1.bf16.msra.mxu0 %v661
    %1058 = vmatprep.subr.bf16.mxu0 0
    %1059 = vmatpush1.bf16.msra.mxu0 %v663
    %1060 = vmatprep.subr.bf16.mxu0 0
    %1061 = vmatpush1.bf16.msra.mxu0 %v1017
    %1062 = vmatprep.subr.bf16.mxu0 0
    %1063 = vmatpush1.bf16.msra.mxu0 %v1019
    %1064 = vmatprep.subr.bf16.mxu0 0
    %1065 = vmatpush1.bf16.msra.mxu0 %v1021
    %1066 = vmatprep.subr.bf16.mxu0 0
    %1067 = vmatpush1.bf16.msra.mxu0 %v1023
    %1068 = vmatprep.subr.bf16.mxu0 0
    %1069 = vmatpush1.bf16.msra.mxu0 %v1025
    %1070 = vmatprep.subr.bf16.mxu0 0
    %1071 = vmatpush1.bf16.msra.mxu0 %v1027
    %1072 = vmatprep.subr.bf16.mxu0 0
    %1073 = vmatpush1.bf16.msra.mxu0 %v1029
    %1074 = vmatprep.subr.bf16.mxu0 0
    %1075 = vmatpush1.bf16.msra.mxu0 %v1031
    %1076 = vmatprep.subr.bf16.mxu0 0
    %1077 = vmatpush1.bf16.msra.mxu0 %v1033
    %1078 = vmatprep.subr.bf16.mxu0 0
    %1079 = vmatpush1.bf16.msra.mxu0 %v1035
    %1080 = vmatprep.subr.bf16.mxu0 0
    %1081 = vmatpush1.bf16.msra.mxu0 %v1037
    %1082 = vmatprep.subr.bf16.mxu0 0
    %1083 = vmatpush1.bf16.msra.mxu0 %v1039
    %1084 = vmatprep.mubr.bf16.mxu0 %v1009
    %1085 = vmatmul.mubr.bf16.gmra.mrb[0].mxu0 %v1008
    %v1086 = vpop.f32.mrb[0].mxu0
    %v1087 = vadd.f32 0.0, %v1086
    %v1088 = vpop.f32.mrb[0].mxu0
    %v1089 = vpop.f32.mrb[0].mxu0
    %v1090 = vadd.f32 0.0, %v1089
    %v1091 = vpop.f32.mrb[0].mxu0
    %1092 = vmatprep.mubr.bf16.mxu0 %v1011
    %1093 = vmatmul.mubr.bf16.gmra.mrb[0].mxu0 %v1010
    %v1094 = vpop.f32.mrb[0].mxu0
    %v1095 = vadd.f32 0.0, %v1094
    %v1096 = vpop.f32.mrb[0].mxu0
    %v1097 = vpop.f32.mrb[0].mxu0
    %v1098 = vadd.f32 0.0, %v1097
    %v1099 = vpop.f32.mrb[0].mxu0
    %1100 = vdwg.mxu0
    %1101 = vrot.lane.b32.xlu0 %v937, 10
    %v1102 = vpop.permute.xlu0 %1101
    %vm1103 = vcmp.ne.s16.totalorder %v1102, 0
    %v1104 = vsel %vm1103, %v590, 0
    %v1105 = vsel %vm1103, %v591, 0
    %v1106 = vsel %vm1103, %v592, 0
    %v1107 = vsel %vm1103, %v593, 0
    %1108 = vrot.lane.b32.xlu0 %v772, 10
    %v1109 = vpop.permute.xlu0 %1108
    %vm1110 = vcmp.ne.s16.totalorder %v1109, 0
    %v1111 = vsel %vm1110, %v1104, 0
    %v1112 = vsel %vm1110, %v1105, 0
    %v1113 = vsel %vm1110, %v1106, 0
    %v1114 = vsel %vm1110, %v1107, 0
    %1115 = vrot.lane.b32.xlu0 %v783, 127
    %v1116 = vpop.permute.xlu0 %1115
    %1117 = vrot.lane.b32.xlu0 %v784, 127
    %v1118 = vpop.permute.xlu0 %1117
    %1119 = vrot.lane.b32.xlu0 %v785, 127
    %v1120 = vpop.permute.xlu0 %1119
    %1121 = vrot.lane.b32.xlu0 %v786, 127
    %v1122 = vpop.permute.xlu0 %1121
    %1123 = vrot.lane.b32.xlu0 %v955, 124
    %v1124 = vpop.permute.xlu0 %1123
    %1125 = vrot.lane.b32.xlu0 %v956, 124
    %v1126 = vpop.permute.xlu0 %1125
    %1127 = vrot.lane.b32.xlu0 %v957, 124
    %v1128 = vpop.permute.xlu0 %1127
    %1129 = vrot.lane.b32.xlu0 %v958, 124
    %v1130 = vpop.permute.xlu0 %1129
    %1135 = vrot.lane.b32.xlu0 %v1111, 123
    %v1136 = vpop.permute.xlu0 %1135
    %1137 = vrot.lane.b32.xlu0 %v1112, 123
    %v1138 = vpop.permute.xlu0 %1137
    %1139 = vrot.lane.b32.xlu0 %v1113, 123
    %v1140 = vpop.permute.xlu0 %1139
    %1141 = vrot.lane.b32.xlu0 %v1114, 123
    %v1142 = vpop.permute.xlu0 %1141
    %s1143 = scalar_lea.vmem [#allocation5], 96
    %v1144 = vld [vmem:[%s1143] sm:$0xff]
    %v1145 = vld [vmem:[%s1143 + $0x8] sm:$0xff]
    %v1146 = vld [vmem:[%s1143 + $0x10] sm:$0xff]
    %v1147 = vld [vmem:[%s1143 + $0x18] sm:$0xff]
    %v1152 = vunpack.c.l.b16 %v1144
    %v1153 = vunpack.c.h.b16 %v1144
    %v1154 = vunpack.c.l.b16 %v1145
    %v1155 = vunpack.c.h.b16 %v1145
    %v1156 = vunpack.c.l.b16 %v1146
    %v1157 = vunpack.c.h.b16 %v1146
    %v1158 = vunpack.c.l.b16 %v1147
    %v1159 = vunpack.c.h.b16 %v1147
    %v1160 = vpack.c.b16 %v1154, %v1152
    %v1161 = vpack.c.b16 %v1155, %v1153
    %v1162 = vpack.c.b16 %v1158, %v1156
    %v1163 = vpack.c.b16 %v1159, %v1157
    %1168 = vrot.lane.b32.xlu0 %v1116, 123
    %v1169 = vpop.permute.xlu0 %1168
    %1170 = vrot.lane.b32.xlu0 %v1118, 123
    %v1171 = vpop.permute.xlu0 %1170
    %1172 = vrot.lane.b32.xlu0 %v1120, 123
    %v1173 = vpop.permute.xlu0 %1172
    %1174 = vrot.lane.b32.xlu0 %v1122, 123
    %v1175 = vpop.permute.xlu0 %1174
    %1176 = vrot.lane.b32.xlu0 %v1124, 123
    %v1177 = vpop.permute.xlu0 %1176
    %1178 = vrot.lane.b32.xlu0 %v1126, 123
    %v1179 = vpop.permute.xlu0 %1178
    %1180 = vrot.lane.b32.xlu0 %v1128, 123
    %v1181 = vpop.permute.xlu0 %1180
    %1182 = vrot.lane.b32.xlu0 %v1130, 123
    %v1183 = vpop.permute.xlu0 %1182
    %1184 = vrot.lane.b32.xlu0 %v1136, 123
    %v1185 = vpop.permute.xlu0 %1184
    %1186 = vrot.lane.b32.xlu0 %v1138, 123
    %v1187 = vpop.permute.xlu0 %1186
    %1188 = vrot.lane.b32.xlu0 %v1140, 123
    %v1189 = vpop.permute.xlu0 %1188
    %1190 = vrot.lane.b32.xlu0 %v1142, 123
    %v1191 = vpop.permute.xlu0 %1190
    %1204 = vmatprep.subr.bf16.mxu0 0
    %1205 = vmatpush1.bf16.msra.mxu0 %v673
    %1206 = vmatprep.subr.bf16.mxu0 0
    %1207 = vmatpush1.bf16.msra.mxu0 %v675
    %1208 = vmatprep.subr.bf16.mxu0 0
    %1209 = vmatpush1.bf16.msra.mxu0 %v677
    %1210 = vmatprep.subr.bf16.mxu0 0
    %1211 = vmatpush1.bf16.msra.mxu0 %v679
    %1212 = vmatprep.subr.bf16.mxu0 0
    %1213 = vmatpush1.bf16.msra.mxu0 %v1169
    %1214 = vmatprep.subr.bf16.mxu0 0
    %1215 = vmatpush1.bf16.msra.mxu0 %v1171
    %1216 = vmatprep.subr.bf16.mxu0 0
    %1217 = vmatpush1.bf16.msra.mxu0 %v1173
    %1218 = vmatprep.subr.bf16.mxu0 0
    %1219 = vmatpush1.bf16.msra.mxu0 %v1175
    %1220 = vmatprep.subr.bf16.mxu0 0
    %1221 = vmatpush1.bf16.msra.mxu0 %v1177
    %1222 = vmatprep.subr.bf16.mxu0 0
    %1223 = vmatpush1.bf16.msra.mxu0 %v1179
    %1224 = vmatprep.subr.bf16.mxu0 0
    %1225 = vmatpush1.bf16.msra.mxu0 %v1181
    %1226 = vmatprep.subr.bf16.mxu0 0
    %1227 = vmatpush1.bf16.msra.mxu0 %v1183
    %1228 = vmatprep.subr.bf16.mxu0 0
    %1229 = vmatpush1.bf16.msra.mxu0 %v1185
    %1230 = vmatprep.subr.bf16.mxu0 0
    %1231 = vmatpush1.bf16.msra.mxu0 %v1187
    %1232 = vmatprep.subr.bf16.mxu0 0
    %1233 = vmatpush1.bf16.msra.mxu0 %v1189
    %1234 = vmatprep.subr.bf16.mxu0 0
    %1235 = vmatpush1.bf16.msra.mxu0 %v1191
    %1236 = vmatprep.mubr.bf16.mxu0 %v1161
    %1237 = vmatmul.mubr.bf16.gmra.mrb[0].mxu0 %v1160
    %v1238 = vpop.f32.mrb[0].mxu0
    %v1239 = vadd.f32 0.0, %v1238
    %v1240 = vpop.f32.mrb[0].mxu0
    %v1241 = vpop.f32.mrb[0].mxu0
    %v1242 = vadd.f32 0.0, %v1241
    %v1243 = vpop.f32.mrb[0].mxu0
    %1244 = vmatprep.mubr.bf16.mxu0 %v1163
    %1245 = vmatmul.mubr.bf16.gmra.mrb[0].mxu0 %v1162
    %v1246 = vpop.f32.mrb[0].mxu0
    %v1247 = vadd.f32 0.0, %v1246
    %v1248 = vpop.f32.mrb[0].mxu0
    %v1249 = vpop.f32.mrb[0].mxu0
    %v1250 = vadd.f32 0.0, %v1249
    %v1251 = vpop.f32.mrb[0].mxu0
    %1252 = vdwg.mxu0
    %v1253 = vsel %vm298, %v743, 0.0
    %1254 = vadd.xlane.f32.xlu0 %v1253
    %v1255 = vpop.xlane.xlu0 %1254
    %v1256 = vsel %vm298, %v746, 0.0
    %1257 = vadd.xlane.f32.xlu0 %v1256
    %v1258 = vpop.xlane.xlu0 %1257
    %v1259 = vsel %vm298, %v751, 0.0
    %1260 = vadd.xlane.f32.xlu0 %v1259
    %v1261 = vpop.xlane.xlu0 %1260
    %v1262 = vsel %vm298, %v754, 0.0
    %1263 = vadd.xlane.f32.xlu0 %v1262
    %v1264 = vpop.xlane.xlu0 %1263
    %v1265 = vadd.f32 %v1255, 0.0
    %v1266 = vadd.f32 %v1258, 0.0
    %v1267 = vadd.f32 %v1261, 0.0
    %v1268 = vadd.f32 %v1264, 0.0
    %v1269 = vsel %vm298, %v915, 0.0
    %1270 = vadd.xlane.f32.xlu0 %v1269
    %v1271 = vpop.xlane.xlu0 %1270
    %v1272 = vsel %vm298, %v918, 0.0
    %1273 = vadd.xlane.f32.xlu0 %v1272
    %v1274 = vpop.xlane.xlu0 %1273
    %v1275 = vsel %vm298, %v923, 0.0
    %1276 = vadd.xlane.f32.xlu0 %v1275
    %v1277 = vpop.xlane.xlu0 %1276
    %v1278 = vsel %vm298, %v926, 0.0
    %1279 = vadd.xlane.f32.xlu0 %v1278
    %v1280 = vpop.xlane.xlu0 %1279
    %v1281 = vadd.f32 %v1265, %v1271
    %v1282 = vadd.f32 %v1266, %v1274
    %v1283 = vadd.f32 %v1267, %v1277
    %v1284 = vadd.f32 %v1268, %v1280
    %v1285 = vsel %vm298, %v1087, 0.0
    %1286 = vadd.xlane.f32.xlu0 %v1285
    %v1287 = vpop.xlane.xlu0 %1286
    %v1288 = vsel %vm298, %v1090, 0.0
    %1289 = vadd.xlane.f32.xlu0 %v1288
    %v1290 = vpop.xlane.xlu0 %1289
    %v1291 = vsel %vm298, %v1095, 0.0
    %1292 = vadd.xlane.f32.xlu0 %v1291
    %v1293 = vpop.xlane.xlu0 %1292
    %v1294 = vsel %vm298, %v1098, 0.0
    %1295 = vadd.xlane.f32.xlu0 %v1294
    %v1296 = vpop.xlane.xlu0 %1295
    %v1297 = vadd.f32 %v1281, %v1287
    %v1298 = vadd.f32 %v1282, %v1290
    %v1299 = vadd.f32 %v1283, %v1293
    %v1300 = vadd.f32 %v1284, %v1296
    %v1301 = vsel %vm298, %v1239, 0.0
    %1302 = vadd.xlane.f32.xlu0 %v1301
    %v1303 = vpop.xlane.xlu0 %1302
    %v1304 = vsel %vm298, %v1242, 0.0
    %1305 = vadd.xlane.f32.xlu0 %v1304
    %v1306 = vpop.xlane.xlu0 %1305
    %v1307 = vsel %vm298, %v1247, 0.0
    %1308 = vadd.xlane.f32.xlu0 %v1307
    %v1309 = vpop.xlane.xlu0 %1308
    %v1310 = vsel %vm298, %v1250, 0.0
    %1311 = vadd.xlane.f32.xlu0 %v1310
    %v1312 = vpop.xlane.xlu0 %1311
    %v1313 = vadd.f32 %v1297, %v1303
    %v1314 = vadd.f32 %v1298, %v1306
    %v1315 = vadd.f32 %v1299, %v1309
    %v1316 = vadd.f32 %v1300, %v1312
    %v1317 = vmul.f32 %v743, %v743
    %v1318 = vmul.f32 %v746, %v746
    %v1319 = vmul.f32 %v751, %v751
    %v1320 = vmul.f32 %v754, %v754
    %v1321 = vsel %vm298, %v1317, 0.0
    %1322 = vadd.xlane.f32.xlu0 %v1321
    %v1323 = vpop.xlane.xlu0 %1322
    %v1324 = vsel %vm298, %v1318, 0.0
    %1325 = vadd.xlane.f32.xlu0 %v1324
    %v1326 = vpop.xlane.xlu0 %1325
    %v1327 = vsel %vm298, %v1319, 0.0
    %1328 = vadd.xlane.f32.xlu0 %v1327
    %v1329 = vpop.xlane.xlu0 %1328
    %v1330 = vsel %vm298, %v1320, 0.0
    %1331 = vadd.xlane.f32.xlu0 %v1330
    %v1332 = vpop.xlane.xlu0 %1331
    %v1333 = vadd.f32 %v1323, 0.0
    %v1334 = vadd.f32 %v1326, 0.0
    %v1335 = vadd.f32 %v1329, 0.0
    %v1336 = vadd.f32 %v1332, 0.0
    %v1337 = vmul.f32 %v915, %v915
    %v1338 = vmul.f32 %v918, %v918
    %v1339 = vmul.f32 %v923, %v923
    %v1340 = vmul.f32 %v926, %v926
    %v1341 = vsel %vm298, %v1337, 0.0
    %1342 = vadd.xlane.f32.xlu0 %v1341
    %v1343 = vpop.xlane.xlu0 %1342
    %v1344 = vsel %vm298, %v1338, 0.0
    %1345 = vadd.xlane.f32.xlu0 %v1344
    %v1346 = vpop.xlane.xlu0 %1345
    %v1347 = vsel %vm298, %v1339, 0.0
    %1348 = vadd.xlane.f32.xlu0 %v1347
    %v1349 = vpop.xlane.xlu0 %1348
    %v1350 = vsel %vm298, %v1340, 0.0
    %1351 = vadd.xlane.f32.xlu0 %v1350
    %v1352 = vpop.xlane.xlu0 %1351
    %v1353 = vadd.f32 %v1333, %v1343
    %v1354 = vadd.f32 %v1334, %v1346
    %v1355 = vadd.f32 %v1335, %v1349
    %v1356 = vadd.f32 %v1336, %v1352
    %v1357 = vmul.f32 %v1087, %v1087
    %v1358 = vmul.f32 %v1090, %v1090
    %v1359 = vmul.f32 %v1095, %v1095
    %v1360 = vmul.f32 %v1098, %v1098
    %v1361 = vsel %vm298, %v1357, 0.0
    %1362 = vadd.xlane.f32.xlu0 %v1361
    %v1363 = vpop.xlane.xlu0 %1362
    %v1364 = vsel %vm298, %v1358, 0.0
    %1365 = vadd.xlane.f32.xlu0 %v1364
    %v1366 = vpop.xlane.xlu0 %1365
    %v1367 = vsel %vm298, %v1359, 0.0
    %1368 = vadd.xlane.f32.xlu0 %v1367
    %v1369 = vpop.xlane.xlu0 %1368
    %v1370 = vsel %vm298, %v1360, 0.0
    %1371 = vadd.xlane.f32.xlu0 %v1370
    %v1372 = vpop.xlane.xlu0 %1371
    %v1373 = vadd.f32 %v1353, %v1363
    %v1374 = vadd.f32 %v1354, %v1366
    %v1375 = vadd.f32 %v1355, %v1369
    %v1376 = vadd.f32 %v1356, %v1372
    %v1377 = vmul.f32 %v1239, %v1239
    %v1378 = vmul.f32 %v1242, %v1242
    %v1379 = vmul.f32 %v1247, %v1247
    %v1380 = vmul.f32 %v1250, %v1250
    %v1381 = vsel %vm298, %v1377, 0.0
    %1382 = vadd.xlane.f32.xlu0 %v1381
    %v1383 = vpop.xlane.xlu0 %1382
    %v1384 = vsel %vm298, %v1378, 0.0
    %1385 = vadd.xlane.f32.xlu0 %v1384
    %v1386 = vpop.xlane.xlu0 %1385
    %v1387 = vsel %vm298, %v1379, 0.0
    %1388 = vadd.xlane.f32.xlu0 %v1387
    %v1389 = vpop.xlane.xlu0 %1388
    %v1390 = vsel %vm298, %v1380, 0.0
    %1391 = vadd.xlane.f32.xlu0 %v1390
    %v1392 = vpop.xlane.xlu0 %1391
    %v1393 = vadd.f32 %v1373, %v1383
    %v1394 = vadd.f32 %v1374, %v1386
    %v1395 = vadd.f32 %v1375, %v1389
    %v1396 = vadd.f32 %v1376, %v1392
    %v1397 = vmul.f32 %v1313, 0.0078125
    %v1398 = vmul.f32 %v1314, 0.0078125
    %v1399 = vmul.f32 %v1315, 0.0078125
    %v1400 = vmul.f32 %v1316, 0.0078125
    %v1401 = vmul.f32 %v1393, 0.0078125
    %v1402 = vmul.f32 %v1394, 0.0078125
    %v1403 = vmul.f32 %v1395, 0.0078125
    %v1404 = vmul.f32 %v1396, 0.0078125
    %v1405 = vmul.f32 %v1397, %v1397
    %v1406 = vmul.f32 %v1398, %v1398
    %v1407 = vmul.f32 %v1399, %v1399
    %v1408 = vmul.f32 %v1400, %v1400
    %v1409 = vsub.f32 %v1401, %v1405
    %v1410 = vsub.f32 %v1402, %v1406
    %v1411 = vsub.f32 %v1403, %v1407
    %v1412 = vsub.f32 %v1404, %v1408
    %v1413 = vmax.f32 %v1409, 0.0
    %v1414 = vmax.f32 %v1410, 0.0
    %v1415 = vmax.f32 %v1411, 0.0
    %v1416 = vmax.f32 %v1412, 0.0
    %v1417 = vld [vmem:[%s5] sm:$0xff]
    %v1418 = vld [vmem:[%s5 + $0x8] sm:$0xff]
    %v1419 = vld [vmem:[%s5 + $0x10] sm:$0xff]
    %v1420 = vld [vmem:[%s5 + $0x18] sm:$0xff]
    %v1421 = vadd.f32 %v1413, 1e-05
    %v1422 = vadd.f32 %v1414, 1e-05
    %v1423 = vadd.f32 %v1415, 1e-05
    %v1424 = vadd.f32 %v1416, 1e-05
    %v1425 = vrsqrt.pop %v1421
    %v1426 = vrsqrt.pop %v1422
    %v1427 = vrsqrt.pop %v1423
    %v1428 = vrsqrt.pop %v1424
    %v1429 = vmul.f32 %v1417, %v1425
    %v1430 = vmul.f32 %v1418, %v1426
    %v1431 = vmul.f32 %v1419, %v1427
    %v1432 = vmul.f32 %v1420, %v1428
    %v1433 = vld [vmem:[%s6] sm:$0xff]
    %v1434 = vld [vmem:[%s6 + $0x8] sm:$0xff]
    %v1435 = vld [vmem:[%s6 + $0x10] sm:$0xff]
    %v1436 = vld [vmem:[%s6 + $0x18] sm:$0xff]
    %v1437 = vmul.f32 %v1397, %v1429
    %v1438 = vmul.f32 %v1398, %v1430
    %v1439 = vmul.f32 %v1399, %v1431
    %v1440 = vmul.f32 %v1400, %v1432
    %v1441 = vsub.f32 %v1433, %v1437
    %v1442 = vsub.f32 %v1434, %v1438
    %v1443 = vsub.f32 %v1435, %v1439
    %v1444 = vsub.f32 %v1436, %v1440
    %1446 = vset.pattern.permute.xlu0 0
    %1447 = vperm.xlu0 %1446, %v1429
    %v1448 = vpop.permute.xlu0 %1447
    %1451 = vset.pattern.permute.xlu0 0
    %1452 = vperm.xlu0 %1451, %v1430
    %v1453 = vpop.permute.xlu0 %1452
    %1456 = vset.pattern.permute.xlu0 0
    %1457 = vperm.xlu0 %1456, %v1431
    %v1458 = vpop.permute.xlu0 %1457
    %1461 = vset.pattern.permute.xlu0 0
    %1462 = vperm.xlu0 %1461, %v1432
    %v1463 = vpop.permute.xlu0 %1462
    %v1465 = vmul.f32 %v743, %v1448
    %v1466 = vmul.f32 %v746, %v1453
    %v1467 = vmul.f32 %v751, %v1458
    %v1468 = vmul.f32 %v754, %v1463
    %1470 = vset.pattern.permute.xlu0 0
    %1471 = vperm.xlu0 %1470, %v1441
    %v1472 = vpop.permute.xlu0 %1471
    %1475 = vset.pattern.permute.xlu0 0
    %1476 = vperm.xlu0 %1475, %v1442
    %v1477 = vpop.permute.xlu0 %1476
    %1480 = vset.pattern.permute.xlu0 0
    %1481 = vperm.xlu0 %1480, %v1443
    %v1482 = vpop.permute.xlu0 %1481
    %1485 = vset.pattern.permute.xlu0 0
    %1486 = vperm.xlu0 %1485, %v1444
    %v1487 = vpop.permute.xlu0 %1486
    %v1489 = vadd.f32 %v1465, %v1472
    %v1490 = vadd.f32 %v1466, %v1477
    %v1491 = vadd.f32 %v1467, %v1482
    %v1492 = vadd.f32 %v1468, %v1487
    %v1493 = vmax.f32 %v1489, 0.0
    %v1494 = vmax.f32 %v1490, 0.0
    %v1495 = vmax.f32 %v1491, 0.0
    %v1496 = vmax.f32 %v1492, 0.0
    %v1497 = vmul.f32 %v915, %v1448
    %v1498 = vmul.f32 %v918, %v1453
    %v1499 = vmul.f32 %v923, %v1458
    %v1500 = vmul.f32 %v926, %v1463
    %v1501 = vadd.f32 %v1497, %v1472
    %v1502 = vadd.f32 %v1498, %v1477
    %v1503 = vadd.f32 %v1499, %v1482
    %v1504 = vadd.f32 %v1500, %v1487
    %v1505 = vmax.f32 %v1501, 0.0
    %v1506 = vmax.f32 %v1502, 0.0
    %v1507 = vmax.f32 %v1503, 0.0
    %v1508 = vmax.f32 %v1504, 0.0
    %v1509 = vmul.f32 %v1087, %v1448
    %v1510 = vmul.f32 %v1090, %v1453
    %v1511 = vmul.f32 %v1095, %v1458
    %v1512 = vmul.f32 %v1098, %v1463
    %v1513 = vadd.f32 %v1509, %v1472
    %v1514 = vadd.f32 %v1510, %v1477
    %v1515 = vadd.f32 %v1511, %v1482
    %v1516 = vadd.f32 %v1512, %v1487
    %v1517 = vmax.f32 %v1513, 0.0
    %v1518 = vmax.f32 %v1514, 0.0
    %v1519 = vmax.f32 %v1515, 0.0
    %v1520 = vmax.f32 %v1516, 0.0
    %v1521 = vmul.f32 %v1239, %v1448
    %v1522 = vmul.f32 %v1242, %v1453
    %v1523 = vmul.f32 %v1247, %v1458
    %v1524 = vmul.f32 %v1250, %v1463
    %v1525 = vadd.f32 %v1521, %v1472
    %v1526 = vadd.f32 %v1522, %v1477
    %v1527 = vadd.f32 %v1523, %v1482
    %v1528 = vadd.f32 %v1524, %v1487
    %v1529 = vmax.f32 %v1525, 0.0
    %v1530 = vmax.f32 %v1526, 0.0
    %v1531 = vmax.f32 %v1527, 0.0
    %v1532 = vmax.f32 %v1528, 0.0
    %v1533 = vpack.c.bf16 %v1494, %v1493
    %v1534 = vpack.c.bf16 %v1496, %v1495
    %v1537 = vunpack.c.l.b16 %v1533
    %v1538 = vunpack.c.h.b16 %v1533
    %v1539 = vunpack.c.l.b16 %v1534
    %v1540 = vunpack.c.h.b16 %v1534
    %v1541 = vpack.c.b16 %v1537, %v1537
    %v1542 = vpack.c.b16 %v1538, %v1538
    %v1543 = vpack.c.b16 %v1539, %v1539
    %v1544 = vpack.c.b16 %v1540, %v1540
    %vm1549 = vcmask 257024
    %1550 = vst.msk [vmem:[%s7] sm:$0xf] %vm1549, %v1541
    %1551 = vst.msk [vmem:[%s7 + $0x4] sm:$0xf] %vm1549, %v1542
    %1552 = vst.msk [vmem:[%s7 + $0x8] sm:$0xf] %vm1549, %v1543
    %1553 = vst.msk [vmem:[%s7 + $0xc] sm:$0xf] %vm1549, %v1544
    %v1554 = vpack.c.bf16 %v1506, %v1505
    %v1555 = vpack.c.bf16 %v1508, %v1507
    %v1558 = vunpack.c.l.b16 %v1554
    %v1559 = vunpack.c.h.b16 %v1554
    %v1560 = vunpack.c.l.b16 %v1555
    %v1561 = vunpack.c.h.b16 %v1555
    %v1562 = vpack.c.b16 %v1558, %v1558
    %v1563 = vpack.c.b16 %v1559, %v1559
    %v1564 = vpack.c.b16 %v1560, %v1560
    %v1565 = vpack.c.b16 %v1561, %v1561
    %s1570 = scalar_lea.vmem %s7, 16
    %1571 = vst.msk [vmem:[%s1570] sm:$0xf] %vm1549, %v1562
    %1572 = vst.msk [vmem:[%s1570 + $0x4] sm:$0xf] %vm1549, %v1563
    %1573 = vst.msk [vmem:[%s1570 + $0x8] sm:$0xf] %vm1549, %v1564
    %1574 = vst.msk [vmem:[%s1570 + $0xc] sm:$0xf] %vm1549, %v1565
    %v1575 = vpack.c.bf16 %v1518, %v1517
    %v1576 = vpack.c.bf16 %v1520, %v1519
    %v1579 = vunpack.c.l.b16 %v1575
    %v1580 = vunpack.c.h.b16 %v1575
    %v1581 = vunpack.c.l.b16 %v1576
    %v1582 = vunpack.c.h.b16 %v1576
    %v1583 = vpack.c.b16 %v1579, %v1579
    %v1584 = vpack.c.b16 %v1580, %v1580
    %v1585 = vpack.c.b16 %v1581, %v1581
    %v1586 = vpack.c.b16 %v1582, %v1582
    %s1591 = scalar_lea.vmem %s7, 32
    %1592 = vst.msk [vmem:[%s1591] sm:$0xf] %vm1549, %v1583
    %1593 = vst.msk [vmem:[%s1591 + $0x4] sm:$0xf] %vm1549, %v1584
    %1594 = vst.msk [vmem:[%s1591 + $0x8] sm:$0xf] %vm1549, %v1585
    %1595 = vst.msk [vmem:[%s1591 + $0xc] sm:$0xf] %vm1549, %v1586
    %v1596 = vpack.c.bf16 %v1530, %v1529
    %v1597 = vpack.c.bf16 %v1532, %v1531
    %v1600 = vunpack.c.l.b16 %v1596
    %v1601 = vunpack.c.h.b16 %v1596
    %v1602 = vunpack.c.l.b16 %v1597
    %v1603 = vunpack.c.h.b16 %v1597
    %v1604 = vpack.c.b16 %v1600, %v1600
    %v1605 = vpack.c.b16 %v1601, %v1601
    %v1606 = vpack.c.b16 %v1602, %v1602
    %v1607 = vpack.c.b16 %v1603, %v1603
    %s1612 = scalar_lea.vmem %s7, 48
    %1613 = vst.msk [vmem:[%s1612] sm:$0xf] %vm1549, %v1604
    %1614 = vst.msk [vmem:[%s1612 + $0x4] sm:$0xf] %vm1549, %v1605
    %1615 = vst.msk [vmem:[%s1612 + $0x8] sm:$0xf] %vm1549, %v1606
    %1616 = vst.msk [vmem:[%s1612 + $0xc] sm:$0xf] %vm1549, %v1607
    // Predicated region
    $region38: #{generator_forward.4} parent=1 // pred_check
      _
    $region39: #{generator_forward.4} parent=1 // pred_check_branch
      %1618 = sbr.rel (0) target = $region41
    $region40: #{generator_forward.4} parent=1 // pred_region
      _
    $region41: #{generator_forward.4} parent=1 // pred_fallthru
      _
    // Predicated region
    $region42: #{generator_forward.4} parent=1 // pred_check
      _
    $region43: #{generator_forward.4} parent=1 // pred_check_branch
      %1620 = sbr.rel (0) target = $region45
    $region44: #{generator_forward.4} parent=1 // pred_region
      _
    $region45: #{generator_forward.4} parent=1 // pred_fallthru
      _
    %1621 = vsyncpa [#allocation4], 1
    %1622 = vsyncpa [#allocation6], 1

// kernel: generator_forward.6
$region0: #{generator_forward.6}
  #allocation0 [shape = 'u32[]', space=smem, size = 0x4, offset = 0x4, fixed_abs, tag = 'smem constant byte address 0x4 - core index']
  #allocation1 [shape = 'u32[144,128]{1,0:T(1,128)}', space=vmem, size = 0x12000, scoped, tag = 'internal scratch']
  %s0 = inlined_call_operand.vmem [shape: bf16[16,546], index: 0, kind: input, shape index: {}]
  %s1 = inlined_call_operand.hbm [shape: bf16[2,2,8,64], index: 1, kind: input, shape index: {}]
  %s2 = inlined_call_operand.vmem [shape: f32[8,1], index: 2, kind: input, shape index: {}]
  %s3 = inlined_call_operand.vmem [shape: f32[8,1], index: 3, kind: input, shape index: {}]
  %s4 = inlined_call_operand.vmem [shape: bf16[2,2,8,512], index: 4, kind: output, shape index: {}]
  %s5 = sld [smem:[#allocation0]]
  $region30: #{generator_forward.6} parent=0
    _
  %s7 = ssub.s32 1, %s5
  %s8 = scalar_select 0, %s7, %s5
  $region1: #{generator_forward.6} parent=0
    #allocation2 [shape = 'u8[8192]{0}', space=vmem, size = 0x2000, scoped, tag = 'input window, operand 1, single buffered']
    #allocation3 [shape = 's32[1]{0}', space=sflag, size = 0x4, scoped, tag = 'scoped memory for generator_forward.6']
    %9 = vsyncpa [#allocation3], 0
    // Predicated region
    $region2: #{generator_forward.6} parent=1 // pred_check
      _
    $region3: #{generator_forward.6} parent=1 // pred_check_branch
      %11 = sbr.rel (0) target = $region5
    $region4: #{generator_forward.6} parent=1 // pred_region
      _
    $region5: #{generator_forward.6} parent=1 // pred_fallthru
      _
    // Predicated region
    $region6: #{generator_forward.6} parent=1 // pred_check
      _
    $region7: #{generator_forward.6} parent=1 // pred_check_branch
      %13 = sbr.rel (0) target = $region9
    $region8: #{generator_forward.6} parent=1 // pred_region
      %s15 = ssub.s32 256, 256
      %16 = vsyncadd [#allocation3], %s15
      %s17 = sshll.u32 [#allocation2], 4
      %s18 = int_to_ptr.vmem [resolvable:$true] %s17
      %23 = dma.hbm_to_vmem [thread:$0]  %s1, 256, %s18, [#allocation3], 64, 64, 4
    $region9: #{generator_forward.6} parent=1 // pred_fallthru
      _
    // Predicated region
    $region10: #{generator_forward.6} parent=1 // pred_check
      _
    $region11: #{generator_forward.6} parent=1 // pred_check_branch
      %25 = sbr.rel (0) target = $region13
    $region12: #{generator_forward.6} parent=1 // pred_region
      _
    $region13: #{generator_forward.6} parent=1 // pred_fallthru
      _
    // Predicated region
    $region14: #{generator_forward.6} parent=1 // pred_check
      _
    $region15: #{generator_forward.6} parent=1 // pred_check_branch
      %27 = sbr.rel (0) target = $region17
    $region16: #{generator_forward.6} parent=1 // pred_region
      _
    $region17: #{generator_forward.6} parent=1 // pred_fallthru
      _
    // Predicated region
    $region18: #{generator_forward.6} parent=1 // pred_check
      _
    $region19: #{generator_forward.6} parent=1 // pred_check_branch
      %29 = sbr.rel (0) target = $region21
    $region20: #{generator_forward.6} parent=1 // pred_region
      %30 = dma.done [#allocation3], 256
    $region21: #{generator_forward.6} parent=1 // pred_fallthru
      _
    %v34 = vlaneseq
    %v35 = vand.u32 %v34, 127
    %v36 = vadd.s32 %v35, 128
    %v37 = vadd.s32 %v35, 256
    %v38 = vadd.s32 %v35, 384
    %v39 = vand.u32 %v35, 15
    %v40 = vand.u32 %v36, 15
    %v41 = vand.u32 %v37, 15
    %v42 = vand.u32 %v38, 15
    %v43 = vshra.s32 %v35, 4
    %v44 = vshra.s32 %v36, 4
    %v45 = vshra.s32 %v37, 4
    %v46 = vshra.s32 %v38, 4
    %v47 = vand.u32 %v43, 15
    %v48 = vand.u32 %v44, 15
    %v49 = vand.u32 %v45, 15
    %v50 = vand.u32 %v46, 15
    %v51 = vld [vmem:[%s0] sm:$0xff]
    %v52 = vld [vmem:[%s0 + $0x8] sm:$0xff]
    %v53 = vld [vmem:[%s0 + $0x14] sm:$0xff]
    %v54 = vld [vmem:[%s0 + $0x1c] sm:$0xff]
    %vm55 = vcmp.ne.s32.totalorder %v47, 0
    %vm56 = vcmp.ne.s32.totalorder %v48, 0
    %vm57 = vcmp.ne.s32.totalorder %v49, 0
    %vm58 = vcmp.ne.s32.totalorder %v50, 0
    %v59 = vsel %vm55, 1, 0
    %v60 = vsel %vm56, 1, 0
    %v61 = vsel %vm57, 1, 0
    %v62 = vsel %vm58, 1, 0
    %vm63 = vcmp.eq.s32.totalorder %v59, 1
    %vm64 = vcmp.eq.s32.totalorder %v60, 1
    %vm65 = vcmp.eq.s32.totalorder %v61, 1
    %vm66 = vcmp.eq.s32.totalorder %v62, 1
    %vm67 = vmpackc.low %vm64, %vm63
    %vm68 = vmpackc.low %vm66, %vm65
    %v69 = vsel %vm67, %v51, 0
    %v70 = vsel %vm68, %v52, 0
    %v71 = vsel %vm67, %v53, 0
    %v72 = vsel %vm68, %v54, 0
    %vm73 = vcmp.ne.s32.totalorder %v39, 0
    %vm74 = vcmp.ne.s32.totalorder %v40, 0
    %vm75 = vcmp.ne.s32.totalorder %v41, 0
    %vm76 = vcmp.ne.s32.totalorder %v42, 0
    %v77 = vsel %vm73, 1, 0
    %v78 = vsel %vm74, 1, 0
    %v79 = vsel %vm75, 1, 0
    %v80 = vsel %vm76, 1, 0
    %vm81 = vcmp.eq.s32.totalorder %v77, 1
    %vm82 = vcmp.eq.s32.totalorder %v78, 1
    %vm83 = vcmp.eq.s32.totalorder %v79, 1
    %vm84 = vcmp.eq.s32.totalorder %v80, 1
    %vm85 = vmpackc.low %vm82, %vm81
    %vm86 = vmpackc.low %vm84, %vm83
    %v87 = vsel %vm85, %v69, 0
    %v88 = vsel %vm86, %v70, 0
    %v89 = vsel %vm85, %v71, 0
    %v90 = vsel %vm86, %v72, 0
    %v91 = vld [vmem:[%s0 + $0x10] sm:$0xf]
    %v92 = vld [vmem:[%s0 + $0x24] sm:$0xf]
    %v93 = vsel %vm67, 65537, 0
    %v94 = vsel %vm68, 65537, 0
    %95 = vrot.lane.b32.xlu0 %v93, 1
    %v96 = vpop.permute.xlu0 %95
    %97 = vrot.lane.b32.xlu0 %v94, 1
    %v98 = vpop.permute.xlu0 %97
    %v99 = vrot.slane %v96, 4
    %v100 = vrot.slane %v98, 4
    %vm101 = vcmask 7168
    %v102 = vsel %vm101, %v99, %v96
    %vm103 = vcmask 1043456
    %v104 = vsel %vm103, %v99, %v100
    %v105 = vsel %vm101, %v104, %v98
    %vm106 = vcmp.ne.s16.totalorder %v102, 0
    %vm107 = vcmp.ne.s16.totalorder %v105, 0
    %vm108 = vcmp.ne.s16.totalorder %v100, 0
    %v109 = vsel %vm106, %v51, 0
    %v110 = vsel %vm107, %v52, 0
    %v111 = vsel %vm108, %v91, 0
    %v112 = vsel %vm106, %v53, 0
    %v113 = vsel %vm107, %v54, 0
    %v114 = vsel %vm108, %v92, 0
    %v115 = vsel %vm85, 65537, 0
    %v116 = vsel %vm86, 65537, 0
    %117 = vrot.lane.b32.xlu0 %v115, 16
    %v118 = vpop.permute.xlu0 %117
    %119 = vrot.lane.b32.xlu0 %v116, 16
    %v120 = vpop.permute.xlu0 %119
    %v121 = vrot.slane %v118, 4
    %v122 = vrot.slane %v120, 4
    %vm123 = vcmask 130048
    %v124 = vsel %vm123, %v121, %v118
    %v125 = vsel %vm103, %v121, %v122
    %v126 = vsel %vm123, %v125, %v120
    %vm127 = vcmp.ne.s16.totalorder %v124, 0
    %vm128 = vcmp.ne.s16.totalorder %v126, 0
    %vm129 = vcmp.ne.s16.totalorder %v122, 0
    %v130 = vsel %vm127, %v51, 0
    %v131 = vsel %vm128, %v52, 0
    %v132 = vsel %vm129, %v91, 0
    %v133 = vsel %vm127, %v53, 0
    %v134 = vsel %vm128, %v54, 0
    %v135 = vsel %vm129, %v92, 0
    %v140 = vunpack.c.l.b16 %v87
    %v141 = vunpack.c.h.b16 %v87
    %v142 = vunpack.c.l.b16 %v88
    %v143 = vunpack.c.h.b16 %v88
    %v144 = vunpack.c.l.b16 %v89
    %v145 = vunpack.c.h.b16 %v89
    %v146 = vunpack.c.l.b16 %v90
    %v147 = vunpack.c.h.b16 %v90
    %v148 = vpack.c.b16 %v144, %v140
    %v149 = vpack.c.b16 %v145, %v141
    %v150 = vpack.c.b16 %v146, %v142
    %v151 = vpack.c.b16 %v147, %v143
    %v162 = vunpack.c.l.b16 %v109
    %v163 = vunpack.c.h.b16 %v109
    %v164 = vunpack.c.l.b16 %v110
    %v165 = vunpack.c.h.b16 %v110
    %v166 = vunpack.c.l.b16 %v111
    %v167 = vunpack.c.l.b16 %v112
    %v168 = vunpack.c.h.b16 %v112
    %v169 = vunpack.c.l.b16 %v113
    %v170 = vunpack.c.h.b16 %v113
    %v171 = vunpack.c.l.b16 %v114
    %v172 = vpack.c.b16 %v167, %v162
    %v173 = vpack.c.b16 %v168, %v163
    %v174 = vpack.c.b16 %v169, %v164
    %v175 = vpack.c.b16 %v170, %v165
    %v176 = vpack.c.b16 %v171, %v166
    %177 = vrot.lane.b32.xlu0 %v172, 127
    %v178 = vpop.permute.xlu0 %177
    %179 = vrot.lane.b32.xlu0 %v173, 127
    %v180 = vpop.permute.xlu0 %179
    %181 = vrot.lane.b32.xlu0 %v174, 127
    %v182 = vpop.permute.xlu0 %181
    %183 = vrot.lane.b32.xlu0 %v175, 127
    %v184 = vpop.permute.xlu0 %183
    %185 = vrot.lane.b32.xlu0 %v176, 127
    %v186 = vpop.permute.xlu0 %185
    %vm187 = vcmask 1039360
    %v188 = vsel %vm187, %v178, %v180
    %v189 = vsel %vm187, %v180, %v182
    %v190 = vsel %vm187, %v182, %v184
    %v191 = vsel %vm187, %v184, %v186
    %v202 = vunpack.c.l.b16 %v130
    %v203 = vunpack.c.h.b16 %v130
    %v204 = vunpack.c.l.b16 %v131
    %v205 = vunpack.c.h.b16 %v131
    %v206 = vunpack.c.l.b16 %v132
    %v207 = vunpack.c.l.b16 %v133
    %v208 = vunpack.c.h.b16 %v133
    %v209 = vunpack.c.l.b16 %v134
    %v210 = vunpack.c.h.b16 %v134
    %v211 = vunpack.c.l.b16 %v135
    %v212 = vpack.c.b16 %v207, %v202
    %v213 = vpack.c.b16 %v208, %v203
    %v214 = vpack.c.b16 %v209, %v204
    %v215 = vpack.c.b16 %v210, %v205
    %v216 = vpack.c.b16 %v211, %v206
    %217 = vrot.lane.b32.xlu0 %v212, 112
    %v218 = vpop.permute.xlu0 %217
    %219 = vrot.lane.b32.xlu0 %v213, 112
    %v220 = vpop.permute.xlu0 %219
    %221 = vrot.lane.b32.xlu0 %v214, 112
    %v222 = vpop.permute.xlu0 %221
    %223 = vrot.lane.b32.xlu0 %v215, 112
    %v224 = vpop.permute.xlu0 %223
    %225 = vrot.lane.b32.xlu0 %v216, 112
    %v226 = vpop.permute.xlu0 %225
    %vm227 = vcmask 916480
    %v228 = vsel %vm227, %v218, %v220
    %v229 = vsel %vm227, %v220, %v222
    %v230 = vsel %vm227, %v222, %v224
    %v231 = vsel %vm227, %v224, %v226
    %v242 = vunpack.c.l.b16 %v51
    %v243 = vunpack.c.h.b16 %v51
    %v244 = vunpack.c.l.b16 %v52
    %v245 = vunpack.c.h.b16 %v52
    %v246 = vunpack.c.l.b16 %v91
    %v247 = vunpack.c.l.b16 %v53
    %v248 = vunpack.c.h.b16 %v53
    %v249 = vunpack.c.l.b16 %v54
    %v250 = vunpack.c.h.b16 %v54
    %v251 = vunpack.c.l.b16 %v92
    %v252 = vpack.c.b16 %v247, %v242
    %v253 = vpack.c.b16 %v248, %v243
    %v254 = vpack.c.b16 %v249, %v244
    %v255 = vpack.c.b16 %v250, %v245
    %v256 = vpack.c.b16 %v251, %v246
    %257 = vrot.lane.b32.xlu0 %v252, 111
    %v258 = vpop.permute.xlu0 %257
    %259 = vrot.lane.b32.xlu0 %v253, 111
    %v260 = vpop.permute.xlu0 %259
    %261 = vrot.lane.b32.xlu0 %v254, 111
    %v262 = vpop.permute.xlu0 %261
    %263 = vrot.lane.b32.xlu0 %v255, 111
    %v264 = vpop.permute.xlu0 %263
    %265 = vrot.lane.b32.xlu0 %v256, 111
    %v266 = vpop.permute.xlu0 %265
    %vm267 = vcmask 908288
    %v268 = vsel %vm267, %v258, %v260
    %v269 = vsel %vm267, %v260, %v262
    %v270 = vsel %vm267, %v262, %v264
    %v271 = vsel %vm267, %v264, %v266
    %v276 = vld [vmem:[#allocation2] sm:$0xf]
    %vm277 = vcmask 523264
    %v279 = vsel %vm277, %v276, 0
    %281 = vmatprep.subr.bf16.mxu0 %v149
    %282 = vmatpush1.bf16.msra.mxu0 %v148
    %283 = vmatprep.subr.bf16.mxu0 %v189
    %284 = vmatpush1.bf16.msra.mxu0 %v188
    %285 = vmatprep.subr.bf16.mxu0 %v229
    %286 = vmatpush1.bf16.msra.mxu0 %v228
    %287 = vmatprep.subr.bf16.mxu0 %v269
    %288 = vmatpush1.bf16.msra.mxu0 %v268
    %289 = vmatprep.subr.bf16.mxu0 0
    %290 = vmatpush1.bf16.msra.mxu0 0
    %291 = vmatprep.subr.bf16.mxu0 0
    %292 = vmatpush1.bf16.msra.mxu0 0
    %293 = vmatprep.subr.bf16.mxu0 0
    %294 = vmatpush1.bf16.msra.mxu0 0
    %295 = vmatprep.subr.bf16.mxu0 0
    %296 = vmatpush1.bf16.msra.mxu0 0
    %297 = vmatprep.subr.bf16.mxu0 0
    %298 = vmatpush1.bf16.msra.mxu0 0
    %299 = vmatprep.subr.bf16.mxu0 0
    %300 = vmatpush1.bf16.msra.mxu0 0
    %301 = vmatprep.subr.bf16.mxu0 0
    %302 = vmatpush1.bf16.msra.mxu0 0
    %303 = vmatprep.subr.bf16.mxu0 0
    %304 = vmatpush1.bf16.msra.mxu0 0
    %305 = vmatprep.subr.bf16.mxu0 0
    %306 = vmatpush1.bf16.msra.mxu0 0
    %307 = vmatprep.subr.bf16.mxu0 0
    %308 = vmatpush1.bf16.msra.mxu0 0
    %309 = vmatprep.subr.bf16.mxu0 0
    %310 = vmatpush1.bf16.msra.mxu0 0
    %311 = vmatprep.subr.bf16.mxu0 0
    %312 = vmatpush1.bf16.msra.mxu0 0
    %313 = vmatprep.mubr.bf16.mxu0 0
    %314 = vmatmul.mubr.bf16.gmra.mrb[0].mxu0 %v279
    %v315 = vpop.f32.mrb[0].mxu0
    %v316 = vadd.f32 0.0, %v315
    %v317 = vpop.f32.mrb[0].mxu0
    %v318 = vadd.f32 0.0, %v317
    %v319 = vpop.f32.mrb[0].mxu0
    %v320 = vpop.f32.mrb[0].mxu0
    %321 = vdwg.mxu0
    %322 = vmatprep.subr.bf16.mxu0 %v151
    %323 = vmatpush1.bf16.msra.mxu0 %v150
    %324 = vmatprep.subr.bf16.mxu0 %v191
    %325 = vmatpush1.bf16.msra.mxu0 %v190
    %326 = vmatprep.subr.bf16.mxu0 %v231
    %327 = vmatpush1.bf16.msra.mxu0 %v230
    %328 = vmatprep.subr.bf16.mxu0 %v271
    %329 = vmatpush1.bf16.msra.mxu0 %v270
    %330 = vmatprep.subr.bf16.mxu0 0
    %331 = vmatpush1.bf16.msra.mxu0 0
    %332 = vmatprep.subr.bf16.mxu0 0
    %333 = vmatpush1.bf16.msra.mxu0 0
    %334 = vmatprep.subr.bf16.mxu0 0
    %335 = vmatpush1.bf16.msra.mxu0 0
    %336 = vmatprep.subr.bf16.mxu0 0
    %337 = vmatpush1.bf16.msra.mxu0 0
    %338 = vmatprep.subr.bf16.mxu0 0
    %339 = vmatpush1.bf16.msra.mxu0 0
    %340 = vmatprep.subr.bf16.mxu0 0
    %341 = vmatpush1.bf16.msra.mxu0 0
    %342 = vmatprep.subr.bf16.mxu0 0
    %343 = vmatpush1.bf16.msra.mxu0 0
    %344 = vmatprep.subr.bf16.mxu0 0
    %345 = vmatpush1.bf16.msra.mxu0 0
    %346 = vmatprep.subr.bf16.mxu0 0
    %347 = vmatpush1.bf16.msra.mxu0 0
    %348 = vmatprep.subr.bf16.mxu0 0
    %349 = vmatpush1.bf16.msra.mxu0 0
    %350 = vmatprep.subr.bf16.mxu0 0
    %351 = vmatpush1.bf16.msra.mxu0 0
    %352 = vmatprep.subr.bf16.mxu0 0
    %353 = vmatpush1.bf16.msra.mxu0 0
    %354 = vmatprep.mubr.bf16.mxu0 0
    %355 = vmatmul.mubr.bf16.gmra.mrb[0].mxu0 %v279
    %v356 = vpop.f32.mrb[0].mxu0
    %v357 = vadd.f32 0.0, %v356
    %v358 = vpop.f32.mrb[0].mxu0
    %v359 = vadd.f32 0.0, %v358
    %v360 = vpop.f32.mrb[0].mxu0
    %v361 = vpop.f32.mrb[0].mxu0
    %362 = vdwg.mxu0
    %363 = vrot.lane.b32.xlu0 %v93, 2
    %v364 = vpop.permute.xlu0 %363
    %365 = vrot.lane.b32.xlu0 %v94, 2
    %v366 = vpop.permute.xlu0 %365
    %v367 = vrot.slane %v364, 4
    %v368 = vrot.slane %v366, 4
    %vm369 = vcmask 15360
    %v370 = vsel %vm369, %v367, %v364
    %v371 = vsel %vm103, %v367, %v368
    %v372 = vsel %vm369, %v371, %v366
    %vm373 = vcmp.ne.s16.totalorder %v370, 0
    %vm374 = vcmp.ne.s16.totalorder %v372, 0
    %vm375 = vcmp.ne.s16.totalorder %v368, 0
    %v376 = vsel %vm373, %v51, 0
    %v377 = vsel %vm374, %v52, 0
    %v378 = vsel %vm375, %v91, 0
    %v379 = vsel %vm373, %v53, 0
    %v380 = vsel %vm374, %v54, 0
    %v381 = vsel %vm375, %v92, 0
    %vm382 = vcmp.ne.s32.totalorder %v39, 15
    %vm383 = vcmp.ne.s32.totalorder %v40, 15
    %vm384 = vcmp.ne.s32.totalorder %v41, 15
    %vm385 = vcmp.ne.s32.totalorder %v42, 15
    %v386 = vsel %vm382, 1, 0
    %v387 = vsel %vm383, 1, 0
    %v388 = vsel %vm384, 1, 0
    %v389 = vsel %vm385, 1, 0
    %vm390 = vcmp.eq.s32.totalorder %v386, 1
    %vm391 = vcmp.eq.s32.totalorder %v387, 1
    %vm392 = vcmp.eq.s32.totalorder %v388, 1
    %vm393 = vcmp.eq.s32.totalorder %v389, 1
    %vm394 = vmpackc.low %vm391, %vm390
    %vm395 = vmpackc.low %vm393, %vm392
    %v396 = vsel %vm394, 65537, 0
    %v397 = vsel %vm395, 65537, 0
    %398 = vrot.lane.b32.xlu0 %v396, 2
    %v399 = vpop.permute.xlu0 %398
    %400 = vrot.lane.b32.xlu0 %v397, 2
    %v401 = vpop.permute.xlu0 %400
    %v402 = vrot.slane %v399, 4
    %v403 = vrot.slane %v401, 4
    %v404 = vsel %vm369, %v402, %v399
    %v405 = vsel %vm103, %v402, %v403
    %v406 = vsel %vm369, %v405, %v401
    %vm407 = vcmp.ne.s16.totalorder %v404, 0
    %vm408 = vcmp.ne.s16.totalorder %v406, 0
    %vm409 = vcmp.ne.s16.totalorder %v403, 0
    %v410 = vsel %vm407, %v376, 0
    %v411 = vsel %vm408, %v377, 0
    %v412 = vsel %vm409, %v378, 0
    %v413 = vsel %vm407, %v379, 0
    %v414 = vsel %vm408, %v380, 0
    %v415 = vsel %vm409, %v381, 0
    %416 = vrot.lane.b32.xlu0 %v396, 18
    %v417 = vpop.permute.xlu0 %416
    %418 = vrot.lane.b32.xlu0 %v397, 18
    %v419 = vpop.permute.xlu0 %418
    %v420 = vrot.slane %v417, 4
    %v421 = vrot.slane %v419, 4
    %vm422 = vcmask 146432
    %v423 = vsel %vm422, %v420, %v417
    %v424 = vsel %vm103, %v420, %v421
    %v425 = vsel %vm422, %v424, %v419
    %vm426 = vcmp.ne.s16.totalorder %v423, 0
    %vm427 = vcmp.ne.s16.totalorder %v425, 0
    %vm428 = vcmp.ne.s16.totalorder %v421, 0
    %v429 = vsel %vm426, %v51, 0
    %v430 = vsel %vm427, %v52, 0
    %v431 = vsel %vm428, %v91, 0
    %v432 = vsel %vm426, %v53, 0
    %v433 = vsel %vm427, %v54, 0
    %v434 = vsel %vm428, %v92, 0
    %v441 = vunpack.c.l.b16 %v410
    %v442 = vunpack.c.h.b16 %v410
    %v443 = vunpack.c.l.b16 %v411
    %v444 = vunpack.c.h.b16 %v411
    %v445 = vunpack.c.l.b16 %v412
    %v446 = vunpack.c.l.b16 %v413
    %v447 = vunpack.c.h.b16 %v413
    %v448 = vunpack.c.l.b16 %v414
    %v449 = vunpack.c.h.b16 %v414
    %v450 = vunpack.c.l.b16 %v415
    %v451 = vpack.c.b16 %v446, %v441
    %v452 = vpack.c.b16 %v447, %v442
    %v453 = vpack.c.b16 %v448, %v443
    %v454 = vpack.c.b16 %v449, %v444
    %v455 = vpack.c.b16 %v450, %v445
    %456 = vrot.lane.b32.xlu0 %v451, 127
    %v457 = vpop.permute.xlu0 %456
    %458 = vrot.lane.b32.xlu0 %v452, 127
    %v459 = vpop.permute.xlu0 %458
    %460 = vrot.lane.b32.xlu0 %v453, 127
    %v461 = vpop.permute.xlu0 %460
    %462 = vrot.lane.b32.xlu0 %v454, 127
    %v463 = vpop.permute.xlu0 %462
    %464 = vrot.lane.b32.xlu0 %v455, 127
    %v465 = vpop.permute.xlu0 %464
    %v466 = vsel %vm187, %v457, %v459
    %v467 = vsel %vm187, %v459, %v461
    %v468 = vsel %vm187, %v461, %v463
    %v469 = vsel %vm187, %v463, %v465
    %470 = vrot.lane.b32.xlu0 %v252, 112
    %v471 = vpop.permute.xlu0 %470
    %472 = vrot.lane.b32.xlu0 %v253, 112
    %v473 = vpop.permute.xlu0 %472
    %474 = vrot.lane.b32.xlu0 %v254, 112
    %v475 = vpop.permute.xlu0 %474
    %476 = vrot.lane.b32.xlu0 %v255, 112
    %v477 = vpop.permute.xlu0 %476
    %478 = vrot.lane.b32.xlu0 %v256, 112
    %v479 = vpop.permute.xlu0 %478
    %v480 = vsel %vm227, %v471, %v473
    %v481 = vsel %vm227, %v473, %v475
    %v482 = vsel %vm227, %v475, %v477
    %v483 = vsel %vm227, %v477, %v479
    %v490 = vunpack.c.l.b16 %v429
    %v491 = vunpack.c.h.b16 %v429
    %v492 = vunpack.c.l.b16 %v430
    %v493 = vunpack.c.h.b16 %v430
    %v494 = vunpack.c.l.b16 %v431
    %v495 = vunpack.c.l.b16 %v432
    %v496 = vunpack.c.h.b16 %v432
    %v497 = vunpack.c.l.b16 %v433
    %v498 = vunpack.c.h.b16 %v433
    %v499 = vunpack.c.l.b16 %v434
    %v500 = vpack.c.b16 %v495, %v490
    %v501 = vpack.c.b16 %v496, %v491
    %v502 = vpack.c.b16 %v497, %v492
    %v503 = vpack.c.b16 %v498, %v493
    %v504 = vpack.c.b16 %v499, %v494
    %505 = vrot.lane.b32.xlu0 %v500, 111
    %v506 = vpop.permute.xlu0 %505
    %507 = vrot.lane.b32.xlu0 %v501, 111
    %v508 = vpop.permute.xlu0 %507
    %509 = vrot.lane.b32.xlu0 %v502, 111
    %v510 = vpop.permute.xlu0 %509
    %511 = vrot.lane.b32.xlu0 %v503, 111
    %v512 = vpop.permute.xlu0 %511
    %513 = vrot.lane.b32.xlu0 %v504, 111
    %v514 = vpop.permute.xlu0 %513
    %v515 = vsel %vm267, %v506, %v508
    %v516 = vsel %vm267, %v508, %v510
    %v517 = vsel %vm267, %v510, %v512
    %v518 = vsel %vm267, %v512, %v514
    %s519 = scalar_lea.vmem [#allocation2], 4
    %v520 = vld [vmem:[%s519] sm:$0xf]
    %521 = vrot.lane.b32.xlu0 %v466, 127
    %v522 = vpop.permute.xlu0 %521
    %523 = vrot.lane.b32.xlu0 %v467, 127
    %v524 = vpop.permute.xlu0 %523
    %525 = vrot.lane.b32.xlu0 %v468, 127
    %v526 = vpop.permute.xlu0 %525
    %527 = vrot.lane.b32.xlu0 %v469, 127
    %v528 = vpop.permute.xlu0 %527
    %529 = vrot.lane.b32.xlu0 %v465, 127
    %v530 = vpop.permute.xlu0 %529
    %531 = vrot.lane.b32.xlu0 %v480, 127
    %v532 = vpop.permute.xlu0 %531
    %533 = vrot.lane.b32.xlu0 %v481, 127
    %v534 = vpop.permute.xlu0 %533
    %535 = vrot.lane.b32.xlu0 %v482, 127
    %v536 = vpop.permute.xlu0 %535
    %537 = vrot.lane.b32.xlu0 %v483, 127
    %v538 = vpop.permute.xlu0 %537
    %539 = vrot.lane.b32.xlu0 %v479, 127
    %v540 = vpop.permute.xlu0 %539
    %541 = vrot.lane.b32.xlu0 %v515, 127
    %v542 = vpop.permute.xlu0 %541
    %543 = vrot.lane.b32.xlu0 %v516, 127
    %v544 = vpop.permute.xlu0 %543
    %545 = vrot.lane.b32.xlu0 %v517, 127
    %v546 = vpop.permute.xlu0 %545
    %547 = vrot.lane.b32.xlu0 %v518, 127
    %v548 = vpop.permute.xlu0 %547
    %549 = vrot.lane.b32.xlu0 %v514, 127
    %v550 = vpop.permute.xlu0 %549
    %v551 = vsel %vm187, %v522, %v524
    %v552 = vsel %vm187, %v524, %v526
    %v553 = vsel %vm187, %v526, %v528
    %v554 = vsel %vm187, %v528, %v530
    %v555 = vsel %vm187, %v532, %v534
    %v556 = vsel %vm187, %v534, %v536
    %v557 = vsel %vm187, %v536, %v538
    %v558 = vsel %vm187, %v538, %v540
    %v559 = vsel %vm187, %v542, %v544
    %v560 = vsel %vm187, %v544, %v546
    %v561 = vsel %vm187, %v546, %v548
    %v562 = vsel %vm187, %v548, %v550
    %v576 = vsel %vm277, %v520, 0
    %578 = vmatprep.subr.bf16.mxu0 %v189
    %579 = vmatpush1.bf16.msra.mxu0 %v188
    %580 = vmatprep.subr.bf16.mxu0 %v552
    %581 = vmatpush1.bf16.msra.mxu0 %v551
    %582 = vmatprep.subr.bf16.mxu0 %v556
    %583 = vmatpush1.bf16.msra.mxu0 %v555
    %584 = vmatprep.subr.bf16.mxu0 %v560
    %585 = vmatpush1.bf16.msra.mxu0 %v559
    %586 = vmatprep.subr.bf16.mxu0 0
    %587 = vmatpush1.bf16.msra.mxu0 0
    %588 = vmatprep.subr.bf16.mxu0 0
    %589 = vmatpush1.bf16.msra.mxu0 0
    %590 = vmatprep.subr.bf16.mxu0 0
    %591 = vmatpush1.bf16.msra.mxu0 0
    %592 = vmatprep.subr.bf16.mxu0 0
    %593 = vmatpush1.bf16.msra.mxu0 0
    %594 = vmatprep.subr.bf16.mxu0 0
    %595 = vmatpush1.bf16.msra.mxu0 0
    %596 = vmatprep.subr.bf16.mxu0 0
    %597 = vmatpush1.bf16.msra.mxu0 0
    %598 = vmatprep.subr.bf16.mxu0 0
    %599 = vmatpush1.bf16.msra.mxu0 0
    %600 = vmatprep.subr.bf16.mxu0 0
    %601 = vmatpush1.bf16.msra.mxu0 0
    %602 = vmatprep.subr.bf16.mxu0 0
    %603 = vmatpush1.bf16.msra.mxu0 0
    %604 = vmatprep.subr.bf16.mxu0 0
    %605 = vmatpush1.bf16.msra.mxu0 0
    %606 = vmatprep.subr.bf16.mxu0 0
    %607 = vmatpush1.bf16.msra.mxu0 0
    %608 = vmatprep.subr.bf16.mxu0 0
    %609 = vmatpush1.bf16.msra.mxu0 0
    %610 = vmatprep.mubr.bf16.mxu0 0
    %611 = vmatmul.mubr.bf16.gmra.mrb[0].mxu0 %v576
    %v612 = vpop.f32.mrb[0].mxu0
    %v613 = vadd.f32 0.0, %v612
    %v614 = vpop.f32.mrb[0].mxu0
    %v615 = vadd.f32 0.0, %v614
    %v616 = vpop.f32.mrb[0].mxu0
    %v617 = vpop.f32.mrb[0].mxu0
    %618 = vdwg.mxu0
    %619 = vmatprep.subr.bf16.mxu0 %v191
    %620 = vmatpush1.bf16.msra.mxu0 %v190
    %621 = vmatprep.subr.bf16.mxu0 %v554
    %622 = vmatpush1.bf16.msra.mxu0 %v553
    %623 = vmatprep.subr.bf16.mxu0 %v558
    %624 = vmatpush1.bf16.msra.mxu0 %v557
    %625 = vmatprep.subr.bf16.mxu0 %v562
    %626 = vmatpush1.bf16.msra.mxu0 %v561
    %627 = vmatprep.subr.bf16.mxu0 0
    %628 = vmatpush1.bf16.msra.mxu0 0
    %629 = vmatprep.subr.bf16.mxu0 0
    %630 = vmatpush1.bf16.msra.mxu0 0
    %631 = vmatprep.subr.bf16.mxu0 0
    %632 = vmatpush1.bf16.msra.mxu0 0
    %633 = vmatprep.subr.bf16.mxu0 0
    %634 = vmatpush1.bf16.msra.mxu0 0
    %635 = vmatprep.subr.bf16.mxu0 0
    %636 = vmatpush1.bf16.msra.mxu0 0
    %637 = vmatprep.subr.bf16.mxu0 0
    %638 = vmatpush1.bf16.msra.mxu0 0
    %639 = vmatprep.subr.bf16.mxu0 0
    %640 = vmatpush1.bf16.msra.mxu0 0
    %641 = vmatprep.subr.bf16.mxu0 0
    %642 = vmatpush1.bf16.msra.mxu0 0
    %643 = vmatprep.subr.bf16.mxu0 0
    %644 = vmatpush1.bf16.msra.mxu0 0
    %645 = vmatprep.subr.bf16.mxu0 0
    %646 = vmatpush1.bf16.msra.mxu0 0
    %647 = vmatprep.subr.bf16.mxu0 0
    %648 = vmatpush1.bf16.msra.mxu0 0
    %649 = vmatprep.subr.bf16.mxu0 0
    %650 = vmatpush1.bf16.msra.mxu0 0
    %651 = vmatprep.mubr.bf16.mxu0 0
    %652 = vmatmul.mubr.bf16.gmra.mrb[0].mxu0 %v576
    %v653 = vpop.f32.mrb[0].mxu0
    %v654 = vadd.f32 0.0, %v653
    %v655 = vpop.f32.mrb[0].mxu0
    %v656 = vadd.f32 0.0, %v655
    %v657 = vpop.f32.mrb[0].mxu0
    %v658 = vpop.f32.mrb[0].mxu0
    %659 = vdwg.mxu0
    %vm660 = vcmp.ne.s32.totalorder %v47, 15
    %vm661 = vcmp.ne.s32.totalorder %v48, 15
    %vm662 = vcmp.ne.s32.totalorder %v49, 15
    %vm663 = vcmp.ne.s32.totalorder %v50, 15
    %v664 = vsel %vm660, 1, 0
    %v665 = vsel %vm661, 1, 0
    %v666 = vsel %vm662, 1, 0
    %v667 = vsel %vm663, 1, 0
    %vm668 = vcmp.eq.s32.totalorder %v664, 1
    %vm669 = vcmp.eq.s32.totalorder %v665, 1
    %vm670 = vcmp.eq.s32.totalorder %v666, 1
    %vm671 = vcmp.eq.s32.totalorder %v667, 1
    %vm672 = vmpackc.low %vm669, %vm668
    %vm673 = vmpackc.low %vm671, %vm670
    %v674 = vsel %vm672, 65537, 0
    %v675 = vsel %vm673, 65537, 0
    %676 = vrot.lane.b32.xlu0 %v674, 32
    %v677 = vpop.permute.xlu0 %676
    %678 = vrot.lane.b32.xlu0 %v675, 32
    %v679 = vpop.permute.xlu0 %678
    %v680 = vrot.slane %v677, 4
    %v681 = vrot.slane %v679, 4
    %vm682 = vcmask 261120
    %v683 = vsel %vm682, %v680, %v677
    %v684 = vsel %vm103, %v680, %v681
    %v685 = vsel %vm682, %v684, %v679
    %vm686 = vcmp.ne.s16.totalorder %v683, 0
    %vm687 = vcmp.ne.s16.totalorder %v685, 0
    %vm688 = vcmp.ne.s16.totalorder %v681, 0
    %v689 = vsel %vm686, %v51, 0
    %v690 = vsel %vm687, %v52, 0
    %v691 = vsel %vm688, %v91, 0
    %v692 = vsel %vm686, %v53, 0
    %v693 = vsel %vm687, %v54, 0
    %v694 = vsel %vm688, %v92, 0
    %695 = vrot.lane.b32.xlu0 %v115, 32
    %v696 = vpop.permute.xlu0 %695
    %697 = vrot.lane.b32.xlu0 %v116, 32
    %v698 = vpop.permute.xlu0 %697
    %v699 = vrot.slane %v696, 4
    %v700 = vrot.slane %v698, 4
    %v701 = vsel %vm682, %v699, %v696
    %v702 = vsel %vm103, %v699, %v700
    %v703 = vsel %vm682, %v702, %v698
    %vm704 = vcmp.ne.s16.totalorder %v701, 0
    %vm705 = vcmp.ne.s16.totalorder %v703, 0
    %vm706 = vcmp.ne.s16.totalorder %v700, 0
    %v707 = vsel %vm704, %v689, 0
    %v708 = vsel %vm705, %v690, 0
    %v709 = vsel %vm706, %v691, 0
    %v710 = vsel %vm704, %v692, 0
    %v711 = vsel %vm705, %v693, 0
    %v712 = vsel %vm706, %v694, 0
    %713 = vrot.lane.b32.xlu0 %v674, 33
    %v714 = vpop.permute.xlu0 %713
    %715 = vrot.lane.b32.xlu0 %v675, 33
    %v716 = vpop.permute.xlu0 %715
    %v717 = vrot.slane %v714, 4
    %v718 = vrot.slane %v716, 4
    %vm719 = vcmask 269312
    %v720 = vsel %vm719, %v717, %v714
    %v721 = vsel %vm103, %v717, %v718
    %v722 = vsel %vm719, %v721, %v716
    %vm723 = vcmp.ne.s16.totalorder %v720, 0
    %vm724 = vcmp.ne.s16.totalorder %v722, 0
    %vm725 = vcmp.ne.s16.totalorder %v718, 0
    %v726 = vsel %vm723, %v51, 0
    %v727 = vsel %vm724, %v52, 0
    %v728 = vsel %vm725, %v91, 0
    %v729 = vsel %vm723, %v53, 0
    %v730 = vsel %vm724, %v54, 0
    %v731 = vsel %vm725, %v92, 0
    %732 = vrot.lane.b32.xlu0 %v252, 127
    %v733 = vpop.permute.xlu0 %732
    %734 = vrot.lane.b32.xlu0 %v253, 127
    %v735 = vpop.permute.xlu0 %734
    %736 = vrot.lane.b32.xlu0 %v254, 127
    %v737 = vpop.permute.xlu0 %736
    %738 = vrot.lane.b32.xlu0 %v255, 127
    %v739 = vpop.permute.xlu0 %738
    %740 = vrot.lane.b32.xlu0 %v256, 127
    %v741 = vpop.permute.xlu0 %740
    %v742 = vsel %vm187, %v733, %v735
    %v743 = vsel %vm187, %v735, %v737
    %v744 = vsel %vm187, %v737, %v739
    %v745 = vsel %vm187, %v739, %v741
    %v752 = vunpack.c.l.b16 %v707
    %v753 = vunpack.c.h.b16 %v707
    %v754 = vunpack.c.l.b16 %v708
    %v755 = vunpack.c.h.b16 %v708
    %v756 = vunpack.c.l.b16 %v709
    %v757 = vunpack.c.l.b16 %v710
    %v758 = vunpack.c.h.b16 %v710
    %v759 = vunpack.c.l.b16 %v711
    %v760 = vunpack.c.h.b16 %v711
    %v761 = vunpack.c.l.b16 %v712
    %v762 = vpack.c.b16 %v757, %v752
    %v763 = vpack.c.b16 %v758, %v753
    %v764 = vpack.c.b16 %v759, %v754
    %v765 = vpack.c.b16 %v760, %v755
    %v766 = vpack.c.b16 %v761, %v756
    %767 = vrot.lane.b32.xlu0 %v762, 112
    %v768 = vpop.permute.xlu0 %767
    %769 = vrot.lane.b32.xlu0 %v763, 112
    %v770 = vpop.permute.xlu0 %769
    %771 = vrot.lane.b32.xlu0 %v764, 112
    %v772 = vpop.permute.xlu0 %771
    %773 = vrot.lane.b32.xlu0 %v765, 112
    %v774 = vpop.permute.xlu0 %773
    %775 = vrot.lane.b32.xlu0 %v766, 112
    %v776 = vpop.permute.xlu0 %775
    %v777 = vsel %vm227, %v768, %v770
    %v778 = vsel %vm227, %v770, %v772
    %v779 = vsel %vm227, %v772, %v774
    %v780 = vsel %vm227, %v774, %v776
    %v787 = vunpack.c.l.b16 %v726
    %v788 = vunpack.c.h.b16 %v726
    %v789 = vunpack.c.l.b16 %v727
    %v790 = vunpack.c.h.b16 %v727
    %v791 = vunpack.c.l.b16 %v728
    %v792 = vunpack.c.l.b16 %v729
    %v793 = vunpack.c.h.b16 %v729
    %v794 = vunpack.c.l.b16 %v730
    %v795 = vunpack.c.h.b16 %v730
    %v796 = vunpack.c.l.b16 %v731
    %v797 = vpack.c.b16 %v792, %v787
    %v798 = vpack.c.b16 %v793, %v788
    %v799 = vpack.c.b16 %v794, %v789
    %v800 = vpack.c.b16 %v795, %v790
    %v801 = vpack.c.b16 %v796, %v791
    %802 = vrot.lane.b32.xlu0 %v797, 111
    %v803 = vpop.permute.xlu0 %802
    %804 = vrot.lane.b32.xlu0 %v798, 111
    %v805 = vpop.permute.xlu0 %804
    %806 = vrot.lane.b32.xlu0 %v799, 111
    %v807 = vpop.permute.xlu0 %806
    %808 = vrot.lane.b32.xlu0 %v800, 111
    %v809 = vpop.permute.xlu0 %808
    %810 = vrot.lane.b32.xlu0 %v801, 111
    %v811 = vpop.permute.xlu0 %810
    %v812 = vsel %vm267, %v803, %v805
    %v813 = vsel %vm267, %v805, %v807
    %v814 = vsel %vm267, %v807, %v809
    %v815 = vsel %vm267, %v809, %v811
    %s816 = scalar_lea.vmem [#allocation2], 8
    %v817 = vld [vmem:[%s816] sm:$0xf]
    %818 = vrot.lane.b32.xlu0 %v742, 112
    %v819 = vpop.permute.xlu0 %818
    %820 = vrot.lane.b32.xlu0 %v743, 112
    %v821 = vpop.permute.xlu0 %820
    %822 = vrot.lane.b32.xlu0 %v744, 112
    %v823 = vpop.permute.xlu0 %822
    %824 = vrot.lane.b32.xlu0 %v745, 112
    %v825 = vpop.permute.xlu0 %824
    %826 = vrot.lane.b32.xlu0 %v741, 112
    %v827 = vpop.permute.xlu0 %826
    %828 = vrot.lane.b32.xlu0 %v777, 112
    %v829 = vpop.permute.xlu0 %828
    %830 = vrot.lane.b32.xlu0 %v778, 112
    %v831 = vpop.permute.xlu0 %830
    %832 = vrot.lane.b32.xlu0 %v779, 112
    %v833 = vpop.permute.xlu0 %832
    %834 = vrot.lane.b32.xlu0 %v780, 112
    %v835 = vpop.permute.xlu0 %834
    %836 = vrot.lane.b32.xlu0 %v776, 112
    %v837 = vpop.permute.xlu0 %836
    %838 = vrot.lane.b32.xlu0 %v812, 112
    %v839 = vpop.permute.xlu0 %838
    %840 = vrot.lane.b32.xlu0 %v813, 112
    %v841 = vpop.permute.xlu0 %840
    %842 = vrot.lane.b32.xlu0 %v814, 112
    %v843 = vpop.permute.xlu0 %842
    %844 = vrot.lane.b32.xlu0 %v815, 112
    %v845 = vpop.permute.xlu0 %844
    %846 = vrot.lane.b32.xlu0 %v811, 112
    %v847 = vpop.permute.xlu0 %846
    %v848 = vsel %vm227, %v819, %v821
    %v849 = vsel %vm227, %v821, %v823
    %v850 = vsel %vm227, %v823, %v825
    %v851 = vsel %vm227, %v825, %v827
    %v852 = vsel %vm227, %v829, %v831
    %v853 = vsel %vm227, %v831, %v833
    %v854 = vsel %vm227, %v833, %v835
    %v855 = vsel %vm227, %v835, %v837
    %v856 = vsel %vm227, %v839, %v841
    %v857 = vsel %vm227, %v841, %v843
    %v858 = vsel %vm227, %v843, %v845
    %v859 = vsel %vm227, %v845, %v847
    %v873 = vsel %vm277, %v817, 0
    %875 = vmatprep.subr.bf16.mxu0 %v229
    %876 = vmatpush1.bf16.msra.mxu0 %v228
    %877 = vmatprep.subr.bf16.mxu0 %v849
    %878 = vmatpush1.bf16.msra.mxu0 %v848
    %879 = vmatprep.subr.bf16.mxu0 %v853
    %880 = vmatpush1.bf16.msra.mxu0 %v852
    %881 = vmatprep.subr.bf16.mxu0 %v857
    %882 = vmatpush1.bf16.msra.mxu0 %v856
    %883 = vmatprep.subr.bf16.mxu0 0
    %884 = vmatpush1.bf16.msra.mxu0 0
    %885 = vmatprep.subr.bf16.mxu0 0
    %886 = vmatpush1.bf16.msra.mxu0 0
    %887 = vmatprep.subr.bf16.mxu0 0
    %888 = vmatpush1.bf16.msra.mxu0 0
    %889 = vmatprep.subr.bf16.mxu0 0
    %890 = vmatpush1.bf16.msra.mxu0 0
    %891 = vmatprep.subr.bf16.mxu0 0
    %892 = vmatpush1.bf16.msra.mxu0 0
    %893 = vmatprep.subr.bf16.mxu0 0
    %894 = vmatpush1.bf16.msra.mxu0 0
    %895 = vmatprep.subr.bf16.mxu0 0
    %896 = vmatpush1.bf16.msra.mxu0 0
    %897 = vmatprep.subr.bf16.mxu0 0
    %898 = vmatpush1.bf16.msra.mxu0 0
    %899 = vmatprep.subr.bf16.mxu0 0
    %900 = vmatpush1.bf16.msra.mxu0 0
    %901 = vmatprep.subr.bf16.mxu0 0
    %902 = vmatpush1.bf16.msra.mxu0 0
    %903 = vmatprep.subr.bf16.mxu0 0
    %904 = vmatpush1.bf16.msra.mxu0 0
    %905 = vmatprep.subr.bf16.mxu0 0
    %906 = vmatpush1.bf16.msra.mxu0 0
    %907 = vmatprep.mubr.bf16.mxu0 0
    %908 = vmatmul.mubr.bf16.gmra.mrb[0].mxu0 %v873
    %v909 = vpop.f32.mrb[0].mxu0
    %v910 = vadd.f32 0.0, %v909
    %v911 = vpop.f32.mrb[0].mxu0
    %v912 = vadd.f32 0.0, %v911
    %v913 = vpop.f32.mrb[0].mxu0
    %v914 = vpop.f32.mrb[0].mxu0
    %915 = vdwg.mxu0
    %916 = vmatprep.subr.bf16.mxu0 %v231
    %917 = vmatpush1.bf16.msra.mxu0 %v230
    %918 = vmatprep.subr.bf16.mxu0 %v851
    %919 = vmatpush1.bf16.msra.mxu0 %v850
    %920 = vmatprep.subr.bf16.mxu0 %v855
    %921 = vmatpush1.bf16.msra.mxu0 %v854
    %922 = vmatprep.subr.bf16.mxu0 %v859
    %923 = vmatpush1.bf16.msra.mxu0 %v858
    %924 = vmatprep.subr.bf16.mxu0 0
    %925 = vmatpush1.bf16.msra.mxu0 0
    %926 = vmatprep.subr.bf16.mxu0 0
    %927 = vmatpush1.bf16.msra.mxu0 0
    %928 = vmatprep.subr.bf16.mxu0 0
    %929 = vmatpush1.bf16.msra.mxu0 0
    %930 = vmatprep.subr.bf16.mxu0 0
    %931 = vmatpush1.bf16.msra.mxu0 0
    %932 = vmatprep.subr.bf16.mxu0 0
    %933 = vmatpush1.bf16.msra.mxu0 0
    %934 = vmatprep.subr.bf16.mxu0 0
    %935 = vmatpush1.bf16.msra.mxu0 0
    %936 = vmatprep.subr.bf16.mxu0 0
    %937 = vmatpush1.bf16.msra.mxu0 0
    %938 = vmatprep.subr.bf16.mxu0 0
    %939 = vmatpush1.bf16.msra.mxu0 0
    %940 = vmatprep.subr.bf16.mxu0 0
    %941 = vmatpush1.bf16.msra.mxu0 0
    %942 = vmatprep.subr.bf16.mxu0 0
    %943 = vmatpush1.bf16.msra.mxu0 0
    %944 = vmatprep.subr.bf16.mxu0 0
    %945 = vmatpush1.bf16.msra.mxu0 0
    %946 = vmatprep.subr.bf16.mxu0 0
    %947 = vmatpush1.bf16.msra.mxu0 0
    %948 = vmatprep.mubr.bf16.mxu0 0
    %949 = vmatmul.mubr.bf16.gmra.mrb[0].mxu0 %v873
    %v950 = vpop.f32.mrb[0].mxu0
    %v951 = vadd.f32 0.0, %v950
    %v952 = vpop.f32.mrb[0].mxu0
    %v953 = vadd.f32 0.0, %v952
    %v954 = vpop.f32.mrb[0].mxu0
    %v955 = vpop.f32.mrb[0].mxu0
    %956 = vdwg.mxu0
    %957 = vrot.lane.b32.xlu0 %v674, 34
    %v958 = vpop.permute.xlu0 %957
    %959 = vrot.lane.b32.xlu0 %v675, 34
    %v960 = vpop.permute.xlu0 %959
    %v961 = vrot.slane %v958, 4
    %v962 = vrot.slane %v960, 4
    %vm963 = vcmask 277504
    %v964 = vsel %vm963, %v961, %v958
    %v965 = vsel %vm103, %v961, %v962
    %v966 = vsel %vm963, %v965, %v960
    %vm967 = vcmp.ne.s16.totalorder %v964, 0
    %vm968 = vcmp.ne.s16.totalorder %v966, 0
    %vm969 = vcmp.ne.s16.totalorder %v962, 0
    %v970 = vsel %vm967, %v51, 0
    %v971 = vsel %vm968, %v52, 0
    %v972 = vsel %vm969, %v91, 0
    %v973 = vsel %vm967, %v53, 0
    %v974 = vsel %vm968, %v54, 0
    %v975 = vsel %vm969, %v92, 0
    %976 = vrot.lane.b32.xlu0 %v396, 34
    %v977 = vpop.permute.xlu0 %976
    %978 = vrot.lane.b32.xlu0 %v397, 34
    %v979 = vpop.permute.xlu0 %978
    %v980 = vrot.slane %v977, 4
    %v981 = vrot.slane %v979, 4
    %v982 = vsel %vm963, %v980, %v977
    %v983 = vsel %vm103, %v980, %v981
    %v984 = vsel %vm963, %v983, %v979
    %vm985 = vcmp.ne.s16.totalorder %v982, 0
    %vm986 = vcmp.ne.s16.totalorder %v984, 0
    %vm987 = vcmp.ne.s16.totalorder %v981, 0
    %v988 = vsel %vm985, %v970, 0
    %v989 = vsel %vm986, %v971, 0
    %v990 = vsel %vm987, %v972, 0
    %v991 = vsel %vm985, %v973, 0
    %v992 = vsel %vm986, %v974, 0
    %v993 = vsel %vm987, %v975, 0
    %994 = vrot.lane.b32.xlu0 %v500, 127
    %v995 = vpop.permute.xlu0 %994
    %996 = vrot.lane.b32.xlu0 %v501, 127
    %v997 = vpop.permute.xlu0 %996
    %998 = vrot.lane.b32.xlu0 %v502, 127
    %v999 = vpop.permute.xlu0 %998
    %1000 = vrot.lane.b32.xlu0 %v503, 127
    %v1001 = vpop.permute.xlu0 %1000
    %1002 = vrot.lane.b32.xlu0 %v504, 127
    %v1003 = vpop.permute.xlu0 %1002
    %v1004 = vsel %vm187, %v995, %v997
    %v1005 = vsel %vm187, %v997, %v999
    %v1006 = vsel %vm187, %v999, %v1001
    %v1007 = vsel %vm187, %v1001, %v1003
    %1008 = vrot.lane.b32.xlu0 %v797, 112
    %v1009 = vpop.permute.xlu0 %1008
    %1010 = vrot.lane.b32.xlu0 %v798, 112
    %v1011 = vpop.permute.xlu0 %1010
    %1012 = vrot.lane.b32.xlu0 %v799, 112
    %v1013 = vpop.permute.xlu0 %1012
    %1014 = vrot.lane.b32.xlu0 %v800, 112
    %v1015 = vpop.permute.xlu0 %1014
    %1016 = vrot.lane.b32.xlu0 %v801, 112
    %v1017 = vpop.permute.xlu0 %1016
    %v1018 = vsel %vm227, %v1009, %v1011
    %v1019 = vsel %vm227, %v1011, %v1013
    %v1020 = vsel %vm227, %v1013, %v1015
    %v1021 = vsel %vm227, %v1015, %v1017
    %v1028 = vunpack.c.l.b16 %v988
    %v1029 = vunpack.c.h.b16 %v988
    %v1030 = vunpack.c.l.b16 %v989
    %v1031 = vunpack.c.h.b16 %v989
    %v1032 = vunpack.c.l.b16 %v990
    %v1033 = vunpack.c.l.b16 %v991
    %v1034 = vunpack.c.h.b16 %v991
    %v1035 = vunpack.c.l.b16 %v992
    %v1036 = vunpack.c.h.b16 %v992
    %v1037 = vunpack.c.l.b16 %v993
    %v1038 = vpack.c.b16 %v1033, %v1028
    %v1039 = vpack.c.b16 %v1034, %v1029
    %v1040 = vpack.c.b16 %v1035, %v1030
    %v1041 = vpack.c.b16 %v1036, %v1031
    %v1042 = vpack.c.b16 %v1037, %v1032
    %1043 = vrot.lane.b32.xlu0 %v1038, 111
    %v1044 = vpop.permute.xlu0 %1043
    %1045 = vrot.lane.b32.xlu0 %v1039, 111
    %v1046 = vpop.permute.xlu0 %1045
    %1047 = vrot.lane.b32.xlu0 %v1040, 111
    %v1048 = vpop.permute.xlu0 %1047
    %1049 = vrot.lane.b32.xlu0 %v1041, 111
    %v1050 = vpop.permute.xlu0 %1049
    %1051 = vrot.lane.b32.xlu0 %v1042, 111
    %v1052 = vpop.permute.xlu0 %1051
    %v1053 = vsel %vm267, %v1044, %v1046
    %v1054 = vsel %vm267, %v1046, %v1048
    %v1055 = vsel %vm267, %v1048, %v1050
    %v1056 = vsel %vm267, %v1050, %v1052
    %s1057 = scalar_lea.vmem [#allocation2], 12
    %v1058 = vld [vmem:[%s1057] sm:$0xf]
    %1059 = vrot.lane.b32.xlu0 %v1004, 111
    %v1060 = vpop.permute.xlu0 %1059
    %1061 = vrot.lane.b32.xlu0 %v1005, 111
    %v1062 = vpop.permute.xlu0 %1061
    %1063 = vrot.lane.b32.xlu0 %v1006, 111
    %v1064 = vpop.permute.xlu0 %1063
    %1065 = vrot.lane.b32.xlu0 %v1007, 111
    %v1066 = vpop.permute.xlu0 %1065
    %1067 = vrot.lane.b32.xlu0 %v1003, 111
    %v1068 = vpop.permute.xlu0 %1067
    %1069 = vrot.lane.b32.xlu0 %v1018, 111
    %v1070 = vpop.permute.xlu0 %1069
    %1071 = vrot.lane.b32.xlu0 %v1019, 111
    %v1072 = vpop.permute.xlu0 %1071
    %1073 = vrot.lane.b32.xlu0 %v1020, 111
    %v1074 = vpop.permute.xlu0 %1073
    %1075 = vrot.lane.b32.xlu0 %v1021, 111
    %v1076 = vpop.permute.xlu0 %1075
    %1077 = vrot.lane.b32.xlu0 %v1017, 111
    %v1078 = vpop.permute.xlu0 %1077
    %1079 = vrot.lane.b32.xlu0 %v1053, 111
    %v1080 = vpop.permute.xlu0 %1079
    %1081 = vrot.lane.b32.xlu0 %v1054, 111
    %v1082 = vpop.permute.xlu0 %1081
    %1083 = vrot.lane.b32.xlu0 %v1055, 111
    %v1084 = vpop.permute.xlu0 %1083
    %1085 = vrot.lane.b32.xlu0 %v1056, 111
    %v1086 = vpop.permute.xlu0 %1085
    %1087 = vrot.lane.b32.xlu0 %v1052, 111
    %v1088 = vpop.permute.xlu0 %1087
    %v1089 = vsel %vm267, %v1060, %v1062
    %v1090 = vsel %vm267, %v1062, %v1064
    %v1091 = vsel %vm267, %v1064, %v1066
    %v1092 = vsel %vm267, %v1066, %v1068
    %v1093 = vsel %vm267, %v1070, %v1072
    %v1094 = vsel %vm267, %v1072, %v1074
    %v1095 = vsel %vm267, %v1074, %v1076
    %v1096 = vsel %vm267, %v1076, %v1078
    %v1097 = vsel %vm267, %v1080, %v1082
    %v1098 = vsel %vm267, %v1082, %v1084
    %v1099 = vsel %vm267, %v1084, %v1086
    %v1100 = vsel %vm267, %v1086, %v1088
    %v1114 = vsel %vm277, %v1058, 0
    %1116 = vmatprep.subr.bf16.mxu0 %v269
    %1117 = vmatpush1.bf16.msra.mxu0 %v268
    %1118 = vmatprep.subr.bf16.mxu0 %v1090
    %1119 = vmatpush1.bf16.msra.mxu0 %v1089
    %1120 = vmatprep.subr.bf16.mxu0 %v1094
    %1121 = vmatpush1.bf16.msra.mxu0 %v1093
    %1122 = vmatprep.subr.bf16.mxu0 %v1098
    %1123 = vmatpush1.bf16.msra.mxu0 %v1097
    %1124 = vmatprep.subr.bf16.mxu0 0
    %1125 = vmatpush1.bf16.msra.mxu0 0
    %1126 = vmatprep.subr.bf16.mxu0 0
    %1127 = vmatpush1.bf16.msra.mxu0 0
    %1128 = vmatprep.subr.bf16.mxu0 0
    %1129 = vmatpush1.bf16.msra.mxu0 0
    %1130 = vmatprep.subr.bf16.mxu0 0
    %1131 = vmatpush1.bf16.msra.mxu0 0
    %1132 = vmatprep.subr.bf16.mxu0 0
    %1133 = vmatpush1.bf16.msra.mxu0 0
    %1134 = vmatprep.subr.bf16.mxu0 0
    %1135 = vmatpush1.bf16.msra.mxu0 0
    %1136 = vmatprep.subr.bf16.mxu0 0
    %1137 = vmatpush1.bf16.msra.mxu0 0
    %1138 = vmatprep.subr.bf16.mxu0 0
    %1139 = vmatpush1.bf16.msra.mxu0 0
    %1140 = vmatprep.subr.bf16.mxu0 0
    %1141 = vmatpush1.bf16.msra.mxu0 0
    %1142 = vmatprep.subr.bf16.mxu0 0
    %1143 = vmatpush1.bf16.msra.mxu0 0
    %1144 = vmatprep.subr.bf16.mxu0 0
    %1145 = vmatpush1.bf16.msra.mxu0 0
    %1146 = vmatprep.subr.bf16.mxu0 0
    %1147 = vmatpush1.bf16.msra.mxu0 0
    %1148 = vmatprep.mubr.bf16.mxu0 0
    %1149 = vmatmul.mubr.bf16.gmra.mrb[0].mxu0 %v1114
    %v1150 = vpop.f32.mrb[0].mxu0
    %v1151 = vadd.f32 0.0, %v1150
    %v1152 = vpop.f32.mrb[0].mxu0
    %v1153 = vadd.f32 0.0, %v1152
    %v1154 = vpop.f32.mrb[0].mxu0
    %v1155 = vpop.f32.mrb[0].mxu0
    %1156 = vdwg.mxu0
    %1157 = vmatprep.subr.bf16.mxu0 %v271
    %1158 = vmatpush1.bf16.msra.mxu0 %v270
    %1159 = vmatprep.subr.bf16.mxu0 %v1092
    %1160 = vmatpush1.bf16.msra.mxu0 %v1091
    %1161 = vmatprep.subr.bf16.mxu0 %v1096
    %1162 = vmatpush1.bf16.msra.mxu0 %v1095
    %1163 = vmatprep.subr.bf16.mxu0 %v1100
    %1164 = vmatpush1.bf16.msra.mxu0 %v1099
    %1165 = vmatprep.subr.bf16.mxu0 0
    %1166 = vmatpush1.bf16.msra.mxu0 0
    %1167 = vmatprep.subr.bf16.mxu0 0
    %1168 = vmatpush1.bf16.msra.mxu0 0
    %1169 = vmatprep.subr.bf16.mxu0 0
    %1170 = vmatpush1.bf16.msra.mxu0 0
    %1171 = vmatprep.subr.bf16.mxu0 0
    %1172 = vmatpush1.bf16.msra.mxu0 0
    %1173 = vmatprep.subr.bf16.mxu0 0
    %1174 = vmatpush1.bf16.msra.mxu0 0
    %1175 = vmatprep.subr.bf16.mxu0 0
    %1176 = vmatpush1.bf16.msra.mxu0 0
    %1177 = vmatprep.subr.bf16.mxu0 0
    %1178 = vmatpush1.bf16.msra.mxu0 0
    %1179 = vmatprep.subr.bf16.mxu0 0
    %1180 = vmatpush1.bf16.msra.mxu0 0
    %1181 = vmatprep.subr.bf16.mxu0 0
    %1182 = vmatpush1.bf16.msra.mxu0 0
    %1183 = vmatprep.subr.bf16.mxu0 0
    %1184 = vmatpush1.bf16.msra.mxu0 0
    %1185 = vmatprep.subr.bf16.mxu0 0
    %1186 = vmatpush1.bf16.msra.mxu0 0
    %1187 = vmatprep.subr.bf16.mxu0 0
    %1188 = vmatpush1.bf16.msra.mxu0 0
    %1189 = vmatprep.mubr.bf16.mxu0 0
    %1190 = vmatmul.mubr.bf16.gmra.mrb[0].mxu0 %v1114
    %v1191 = vpop.f32.mrb[0].mxu0
    %v1192 = vadd.f32 0.0, %v1191
    %v1193 = vpop.f32.mrb[0].mxu0
    %v1194 = vadd.f32 0.0, %v1193
    %v1195 = vpop.f32.mrb[0].mxu0
    %v1196 = vpop.f32.mrb[0].mxu0
    %1197 = vdwg.mxu0
    %v1198 = vadd.f32 %v316, %v318
    %v1199 = vadd.f32 %v1198, %v357
    %v1200 = vadd.f32 %v1199, %v359
    %1201 = vadd.xlane.f32.xlu0 %v1200
    %v1202 = vpop.xlane.xlu0 %1201
    %v1203 = vadd.f32 %v1202, 0.0
    %v1204 = vadd.f32 %v613, %v615
    %v1205 = vadd.f32 %v1204, %v654
    %v1206 = vadd.f32 %v1205, %v656
    %1207 = vadd.xlane.f32.xlu0 %v1206
    %v1208 = vpop.xlane.xlu0 %1207
    %v1209 = vadd.f32 %v1203, %v1208
    %v1210 = vadd.f32 %v910, %v912
    %v1211 = vadd.f32 %v1210, %v951
    %v1212 = vadd.f32 %v1211, %v953
    %1213 = vadd.xlane.f32.xlu0 %v1212
    %v1214 = vpop.xlane.xlu0 %1213
    %v1215 = vadd.f32 %v1209, %v1214
    %v1216 = vadd.f32 %v1151, %v1153
    %v1217 = vadd.f32 %v1216, %v1192
    %v1218 = vadd.f32 %v1217, %v1194
    %1219 = vadd.xlane.f32.xlu0 %v1218
    %v1220 = vpop.xlane.xlu0 %1219
    %v1221 = vadd.f32 %v1215, %v1220
    %v1222 = vmul.f32 %v316, %v316
    %v1223 = vmul.f32 %v318, %v318
    %v1224 = vmul.f32 %v357, %v357
    %v1225 = vmul.f32 %v359, %v359
    %v1226 = vadd.f32 %v1222, %v1223
    %v1227 = vadd.f32 %v1226, %v1224
    %v1228 = vadd.f32 %v1227, %v1225
    %1229 = vadd.xlane.f32.xlu0 %v1228
    %v1230 = vpop.xlane.xlu0 %1229
    %v1231 = vadd.f32 %v1230, 0.0
    %v1232 = vmul.f32 %v613, %v613
    %v1233 = vmul.f32 %v615, %v615
    %v1234 = vmul.f32 %v654, %v654
    %v1235 = vmul.f32 %v656, %v656
    %v1236 = vadd.f32 %v1232, %v1233
    %v1237 = vadd.f32 %v1236, %v1234
    %v1238 = vadd.f32 %v1237, %v1235
    %1239 = vadd.xlane.f32.xlu0 %v1238
    %v1240 = vpop.xlane.xlu0 %1239
    %v1241 = vadd.f32 %v1231, %v1240
    %v1242 = vmul.f32 %v910, %v910
    %v1243 = vmul.f32 %v912, %v912
    %v1244 = vmul.f32 %v951, %v951
    %v1245 = vmul.f32 %v953, %v953
    %v1246 = vadd.f32 %v1242, %v1243
    %v1247 = vadd.f32 %v1246, %v1244
    %v1248 = vadd.f32 %v1247, %v1245
    %1249 = vadd.xlane.f32.xlu0 %v1248
    %v1250 = vpop.xlane.xlu0 %1249
    %v1251 = vadd.f32 %v1241, %v1250
    %v1252 = vmul.f32 %v1151, %v1151
    %v1253 = vmul.f32 %v1153, %v1153
    %v1254 = vmul.f32 %v1192, %v1192
    %v1255 = vmul.f32 %v1194, %v1194
    %v1256 = vadd.f32 %v1252, %v1253
    %v1257 = vadd.f32 %v1256, %v1254
    %v1258 = vadd.f32 %v1257, %v1255
    %1259 = vadd.xlane.f32.xlu0 %v1258
    %v1260 = vpop.xlane.xlu0 %1259
    %v1261 = vadd.f32 %v1251, %v1260
    %v1262 = vmul.f32 %v1221, 0.00048828125
    %v1263 = vmul.f32 %v1261, 0.00048828125
    %v1264 = vmul.f32 %v1262, %v1262
    %v1265 = vsub.f32 %v1263, %v1264
    %v1266 = vmax.f32 %v1265, 0.0
    %v1267 = vld [vmem:[%s2] sm:$0xff]
    %v1268 = vadd.f32 %v1266, 1e-05
    %v1269 = vrsqrt.pop %v1268
    %v1270 = vmul.f32 %v1267, %v1269
    %v1271 = vld [vmem:[%s3] sm:$0xff]
    %v1272 = vmul.f32 %v1262, %v1270
    %v1273 = vsub.f32 %v1271, %v1272
    %1275 = vset.pattern.permute.xlu0 0
    %1276 = vperm.xlu0 %1275, %v1270
    %v1277 = vpop.permute.xlu0 %1276
    %v1279 = vmul.f32 %v316, %v1277
    %v1280 = vmul.f32 %v318, %v1277
    %v1281 = vmul.f32 %v357, %v1277
    %v1282 = vmul.f32 %v359, %v1277
    %1284 = vset.pattern.permute.xlu0 0
    %1285 = vperm.xlu0 %1284, %v1273
    %v1286 = vpop.permute.xlu0 %1285
    %v1288 = vadd.f32 %v1279, %v1286
    %v1289 = vadd.f32 %v1280, %v1286
    %v1290 = vadd.f32 %v1281, %v1286
    %v1291 = vadd.f32 %v1282, %v1286
    %v1292 = vmax.f32 %v1288, 0.0
    %v1293 = vmax.f32 %v1289, 0.0
    %v1294 = vmax.f32 %v1290, 0.0
    %v1295 = vmax.f32 %v1291, 0.0
    %v1296 = vmul.f32 %v613, %v1277
    %v1297 = vmul.f32 %v615, %v1277
    %v1298 = vmul.f32 %v654, %v1277
    %v1299 = vmul.f32 %v656, %v1277
    %v1300 = vadd.f32 %v1296, %v1286
    %v1301 = vadd.f32 %v1297, %v1286
    %v1302 = vadd.f32 %v1298, %v1286
    %v1303 = vadd.f32 %v1299, %v1286
    %v1304 = vmax.f32 %v1300, 0.0
    %v1305 = vmax.f32 %v1301, 0.0
    %v1306 = vmax.f32 %v1302, 0.0
    %v1307 = vmax.f32 %v1303, 0.0
    %v1308 = vmul.f32 %v910, %v1277
    %v1309 = vmul.f32 %v912, %v1277
    %v1310 = vmul.f32 %v951, %v1277
    %v1311 = vmul.f32 %v953, %v1277
    %v1312 = vadd.f32 %v1308, %v1286
    %v1313 = vadd.f32 %v1309, %v1286
    %v1314 = vadd.f32 %v1310, %v1286
    %v1315 = vadd.f32 %v1311, %v1286
    %v1316 = vmax.f32 %v1312, 0.0
    %v1317 = vmax.f32 %v1313, 0.0
    %v1318 = vmax.f32 %v1314, 0.0
    %v1319 = vmax.f32 %v1315, 0.0
    %v1320 = vmul.f32 %v1151, %v1277
    %v1321 = vmul.f32 %v1153, %v1277
    %v1322 = vmul.f32 %v1192, %v1277
    %v1323 = vmul.f32 %v1194, %v1277
    %v1324 = vadd.f32 %v1320, %v1286
    %v1325 = vadd.f32 %v1321, %v1286
    %v1326 = vadd.f32 %v1322, %v1286
    %v1327 = vadd.f32 %v1323, %v1286
    %v1328 = vmax.f32 %v1324, 0.0
    %v1329 = vmax.f32 %v1325, 0.0
    %v1330 = vmax.f32 %v1326, 0.0
    %v1331 = vmax.f32 %v1327, 0.0
    %v1332 = vpack.c.bf16 %v1292, %v1292
    %v1333 = vpack.c.bf16 %v1293, %v1293
    %v1334 = vpack.c.bf16 %v1294, %v1294
    %v1335 = vpack.c.bf16 %v1295, %v1295
    %v1340 = vunpack.c.l.b16 %v1332
    %v1341 = vunpack.c.l.b16 %v1333
    %v1342 = vunpack.c.l.b16 %v1334
    %v1343 = vunpack.c.l.b16 %v1335
    %v1344 = vpack.c.b16 %v1341, %v1340
    %v1345 = vpack.c.b16 %v1343, %v1342
    %1348 = vst [vmem:[%s4] sm:$0xff] %v1344
    %1349 = vst [vmem:[%s4 + $0x8] sm:$0xff] %v1345
    %v1350 = vpack.c.bf16 %v1304, %v1304
    %v1351 = vpack.c.bf16 %v1305, %v1305
    %v1352 = vpack.c.bf16 %v1306, %v1306
    %v1353 = vpack.c.bf16 %v1307, %v1307
    %v1358 = vunpack.c.l.b16 %v1350
    %v1359 = vunpack.c.l.b16 %v1351
    %v1360 = vunpack.c.l.b16 %v1352
    %v1361 = vunpack.c.l.b16 %v1353
    %v1362 = vpack.c.b16 %v1359, %v1358
    %v1363 = vpack.c.b16 %v1361, %v1360
    %s1366 = scalar_lea.vmem %s4, 16
    %1367 = vst [vmem:[%s1366] sm:$0xff] %v1362
    %1368 = vst [vmem:[%s1366 + $0x8] sm:$0xff] %v1363
    %v1369 = vpack.c.bf16 %v1316, %v1316
    %v1370 = vpack.c.bf16 %v1317, %v1317
    %v1371 = vpack.c.bf16 %v1318, %v1318
    %v1372 = vpack.c.bf16 %v1319, %v1319
    %v1377 = vunpack.c.l.b16 %v1369
    %v1378 = vunpack.c.l.b16 %v1370
    %v1379 = vunpack.c.l.b16 %v1371
    %v1380 = vunpack.c.l.b16 %v1372
    %v1381 = vpack.c.b16 %v1378, %v1377
    %v1382 = vpack.c.b16 %v1380, %v1379
    %s1385 = scalar_lea.vmem %s4, 32
    %1386 = vst [vmem:[%s1385] sm:$0xff] %v1381
    %1387 = vst [vmem:[%s1385 + $0x8] sm:$0xff] %v1382
    %v1388 = vpack.c.bf16 %v1328, %v1328
    %v1389 = vpack.c.bf16 %v1329, %v1329
    %v1390 = vpack.c.bf16 %v1330, %v1330
    %v1391 = vpack.c.bf16 %v1331, %v1331
    %v1396 = vunpack.c.l.b16 %v1388
    %v1397 = vunpack.c.l.b16 %v1389
    %v1398 = vunpack.c.l.b16 %v1390
    %v1399 = vunpack.c.l.b16 %v1391
    %v1400 = vpack.c.b16 %v1397, %v1396
    %v1401 = vpack.c.b16 %v1399, %v1398
    %s1404 = scalar_lea.vmem %s4, 48
    %1405 = vst [vmem:[%s1404] sm:$0xff] %v1400
    %1406 = vst [vmem:[%s1404 + $0x8] sm:$0xff] %v1401
    // Predicated region
    $region22: #{generator_forward.6} parent=1 // pred_check
      _
    $region23: #{generator_forward.6} parent=1 // pred_check_branch
      %1408 = sbr.rel (0) target = $region25
    $region24: #{generator_forward.6} parent=1 // pred_region
      _
    $region25: #{generator_forward.6} parent=1 // pred_fallthru
      _
    // Predicated region
    $region26: #{generator_forward.6} parent=1 // pred_check
      _
    $region27: #{generator_forward.6} parent=1 // pred_check_branch
      %1410 = sbr.rel (0) target = $region29
    $region28: #{generator_forward.6} parent=1 // pred_region
      _
    $region29: #{generator_forward.6} parent=1 // pred_fallthru
      _
    %1411 = vsyncpa [#allocation3], 1

// kernel: generator_forward.7
$region0: #{generator_forward.7}
  #allocation0 [shape = 'u32[]', space=smem, size = 0x4, offset = 0x4, fixed_abs, tag = 'smem constant byte address 0x4 - core index']
  #allocation1 [shape = 'u32[144,128]{1,0:T(1,128)}', space=vmem, size = 0x12000, scoped, tag = 'internal scratch']
  %s0 = inlined_call_operand.vmem [shape: bf16[8,2114], index: 0, kind: input, shape index: {}]
  %s1 = inlined_call_operand.vmem [shape: bf16[2,2,3,32], index: 1, kind: input, shape index: {}]
  %s2 = inlined_call_operand.vmem [shape: f32[2,2,3,2048], index: 2, kind: output, shape index: {}]
  %s3 = sld [smem:[#allocation0]]
  $region18: #{generator_forward.7} parent=0
    _
  %s5 = ssub.s32 1, %s3
  %s6 = scalar_select 0, %s5, %s3
  // Predicated region
  $region2: #{generator_forward.7} parent=0 // pred_check
    _
  $region3: #{generator_forward.7} parent=0 // pred_check_branch
    %8 = sbr.rel (0) target = $region5
  $region4: #{generator_forward.7} parent=0 // pred_region
    _
  $region5: #{generator_forward.7} parent=0 // pred_fallthru
    _
  // Predicated region
  $region6: #{generator_forward.7} parent=0 // pred_check
    _
  $region7: #{generator_forward.7} parent=0 // pred_check_branch
    %10 = sbr.rel (0) target = $region9
  $region8: #{generator_forward.7} parent=0 // pred_region
    _
  $region9: #{generator_forward.7} parent=0 // pred_fallthru
    _
  %v14 = vlaneseq
  %v15 = vand.u32 %v14, 127
  %v16 = vadd.s32 %v15, 128
  %v17 = vadd.s32 %v15, 256
  %v18 = vadd.s32 %v15, 384
  %v19 = vadd.s32 %v15, 512
  %v20 = vadd.s32 %v15, 640
  %v21 = vadd.s32 %v15, 768
  %v22 = vadd.s32 %v15, 896
  %v23 = vadd.s32 %v15, 1024
  %v24 = vadd.s32 %v15, 1152
  %v25 = vadd.s32 %v15, 1280
  %v26 = vadd.s32 %v15, 1408
  %v27 = vadd.s32 %v15, 1536
  %v28 = vadd.s32 %v15, 1664
  %v29 = vadd.s32 %v15, 1792
  %v30 = vadd.s32 %v15, 1920
  %v31 = vand.u32 %v15, 31
  %v32 = vand.u32 %v16, 31
  %v33 = vand.u32 %v17, 31
  %v34 = vand.u32 %v18, 31
  %v35 = vand.u32 %v19, 31
  %v36 = vand.u32 %v20, 31
  %v37 = vand.u32 %v21, 31
  %v38 = vand.u32 %v22, 31
  %v39 = vand.u32 %v23, 31
  %v40 = vand.u32 %v24, 31
  %v41 = vand.u32 %v25, 31
  %v42 = vand.u32 %v26, 31
  %v43 = vand.u32 %v27, 31
  %v44 = vand.u32 %v28, 31
  %v45 = vand.u32 %v29, 31
  %v46 = vand.u32 %v30, 31
  %v47 = vshra.s32 %v15, 5
  %v48 = vshra.s32 %v16, 5
  %v49 = vshra.s32 %v17, 5
  %v50 = vshra.s32 %v18, 5
  %v51 = vshra.s32 %v19, 5
  %v52 = vshra.s32 %v20, 5
  %v53 = vshra.s32 %v21, 5
  %v54 = vshra.s32 %v22, 5
  %v55 = vshra.s32 %v23, 5
  %v56 = vshra.s32 %v24, 5
  %v57 = vshra.s32 %v25, 5
  %v58 = vshra.s32 %v26, 5
  %v59 = vshra.s32 %v27, 5
  %v60 = vshra.s32 %v28, 5
  %v61 = vshra.s32 %v29, 5
  %v62 = vshra.s32 %v30, 5
  %v63 = vand.u32 %v47, 31
  %v64 = vand.u32 %v48, 31
  %v65 = vand.u32 %v49, 31
  %v66 = vand.u32 %v50, 31
  %v67 = vand.u32 %v51, 31
  %v68 = vand.u32 %v52, 31
  %v69 = vand.u32 %v53, 31
  %v70 = vand.u32 %v54, 31
  %v71 = vand.u32 %v55, 31
  %v72 = vand.u32 %v56, 31
  %v73 = vand.u32 %v57, 31
  %v74 = vand.u32 %v58, 31
  %v75 = vand.u32 %v59, 31
  %v76 = vand.u32 %v60, 31
  %v77 = vand.u32 %v61, 31
  %v78 = vand.u32 %v62, 31
  %v79 = vld [vmem:[%s0] sm:$0xff]
  %v80 = vld [vmem:[%s0 + $0x8] sm:$0xff]
  %v81 = vld [vmem:[%s0 + $0x10] sm:$0xff]
  %v82 = vld [vmem:[%s0 + $0x18] sm:$0xff]
  %v83 = vld [vmem:[%s0 + $0x20] sm:$0xff]
  %v84 = vld [vmem:[%s0 + $0x28] sm:$0xff]
  %v85 = vld [vmem:[%s0 + $0x30] sm:$0xff]
  %v86 = vld [vmem:[%s0 + $0x38] sm:$0xff]
  %vm87 = vcmp.ne.s32.totalorder %v63, 0
  %vm88 = vcmp.ne.s32.totalorder %v64, 0
  %vm89 = vcmp.ne.s32.totalorder %v65, 0
  %vm90 = vcmp.ne.s32.totalorder %v66, 0
  %vm91 = vcmp.ne.s32.totalorder %v67, 0
  %vm92 = vcmp.ne.s32.totalorder %v68, 0
  %vm93 = vcmp.ne.s32.totalorder %v69, 0
  %vm94 = vcmp.ne.s32.totalorder %v70, 0
  %vm95 = vcmp.ne.s32.totalorder %v71, 0
  %vm96 = vcmp.ne.s32.totalorder %v72, 0
  %vm97 = vcmp.ne.s32.totalorder %v73, 0
  %vm98 = vcmp.ne.s32.totalorder %v74, 0
  %vm99 = vcmp.ne.s32.totalorder %v75, 0
  %vm100 = vcmp.ne.s32.totalorder %v76, 0
  %vm101 = vcmp.ne.s32.totalorder %v77, 0
  %vm102 = vcmp.ne.s32.totalorder %v78, 0
  %v103 = vsel %vm87, 1, 0
  %v104 = vsel %vm88, 1, 0
  %v105 = vsel %vm89, 1, 0
  %v106 = vsel %vm90, 1, 0
  %v107 = vsel %vm91, 1, 0
  %v108 = vsel %vm92, 1, 0
  %v109 = vsel %vm93, 1, 0
  %v110 = vsel %vm94, 1, 0
  %v111 = vsel %vm95, 1, 0
  %v112 = vsel %vm96, 1, 0
  %v113 = vsel %vm97, 1, 0
  %v114 = vsel %vm98, 1, 0
  %v115 = vsel %vm99, 1, 0
  %v116 = vsel %vm100, 1, 0
  %v117 = vsel %vm101, 1, 0
  %v118 = vsel %vm102, 1, 0
  %vm119 = vcmp.eq.s32.totalorder %v103, 1
  %vm120 = vcmp.eq.s32.totalorder %v104, 1
  %vm121 = vcmp.eq.s32.totalorder %v105, 1
  %vm122 = vcmp.eq.s32.totalorder %v106, 1
  %vm123 = vcmp.eq.s32.totalorder %v107, 1
  %vm124 = vcmp.eq.s32.totalorder %v108, 1
  %vm125 = vcmp.eq.s32.totalorder %v109, 1
  %vm126 = vcmp.eq.s32.totalorder %v110, 1
  %vm127 = vcmp.eq.s32.totalorder %v111, 1
  %vm128 = vcmp.eq.s32.totalorder %v112, 1
  %vm129 = vcmp.eq.s32.totalorder %v113, 1
  %vm130 = vcmp.eq.s32.totalorder %v114, 1
  %vm131 = vcmp.eq.s32.totalorder %v115, 1
  %vm132 = vcmp.eq.s32.totalorder %v116, 1
  %vm133 = vcmp.eq.s32.totalorder %v117, 1
  %vm134 = vcmp.eq.s32.totalorder %v118, 1
  %vm135 = vmpackc.low %vm120, %vm119
  %vm136 = vmpackc.low %vm122, %vm121
  %vm137 = vmpackc.low %vm124, %vm123
  %vm138 = vmpackc.low %vm126, %vm125
  %vm139 = vmpackc.low %vm128, %vm127
  %vm140 = vmpackc.low %vm130, %vm129
  %vm141 = vmpackc.low %vm132, %vm131
  %vm142 = vmpackc.low %vm134, %vm133
  %v143 = vsel %vm135, %v79, 0
  %v144 = vsel %vm136, %v80, 0
  %v145 = vsel %vm137, %v81, 0
  %v146 = vsel %vm138, %v82, 0
  %v147 = vsel %vm139, %v83, 0
  %v148 = vsel %vm140, %v84, 0
  %v149 = vsel %vm141, %v85, 0
  %v150 = vsel %vm142, %v86, 0
  %vm151 = vcmp.ne.s32.totalorder %v31, 0
  %vm152 = vcmp.ne.s32.totalorder %v32, 0
  %vm153 = vcmp.ne.s32.totalorder %v33, 0
  %vm154 = vcmp.ne.s32.totalorder %v34, 0
  %vm155 = vcmp.ne.s32.totalorder %v35, 0
  %vm156 = vcmp.ne.s32.totalorder %v36, 0
  %vm157 = vcmp.ne.s32.totalorder %v37, 0
  %vm158 = vcmp.ne.s32.totalorder %v38, 0
  %vm159 = vcmp.ne.s32.totalorder %v39, 0
  %vm160 = vcmp.ne.s32.totalorder %v40, 0
  %vm161 = vcmp.ne.s32.totalorder %v41, 0
  %vm162 = vcmp.ne.s32.totalorder %v42, 0
  %vm163 = vcmp.ne.s32.totalorder %v43, 0
  %vm164 = vcmp.ne.s32.totalorder %v44, 0
  %vm165 = vcmp.ne.s32.totalorder %v45, 0
  %vm166 = vcmp.ne.s32.totalorder %v46, 0
  %v167 = vsel %vm151, 1, 0
  %v168 = vsel %vm152, 1, 0
  %v169 = vsel %vm153, 1, 0
  %v170 = vsel %vm154, 1, 0
  %v171 = vsel %vm155, 1, 0
  %v172 = vsel %vm156, 1, 0
  %v173 = vsel %vm157, 1, 0
  %v174 = vsel %vm158, 1, 0
  %v175 = vsel %vm159, 1, 0
  %v176 = vsel %vm160, 1, 0
  %v177 = vsel %vm161, 1, 0
  %v178 = vsel %vm162, 1, 0
  %v179 = vsel %vm163, 1, 0
  %v180 = vsel %vm164, 1, 0
  %v181 = vsel %vm165, 1, 0
  %v182 = vsel %vm166, 1, 0
  %vm183 = vcmp.eq.s32.totalorder %v167, 1
  %vm184 = vcmp.eq.s32.totalorder %v168, 1
  %vm185 = vcmp.eq.s32.totalorder %v169, 1
  %vm186 = vcmp.eq.s32.totalorder %v170, 1
  %vm187 = vcmp.eq.s32.totalorder %v171, 1
  %vm188 = vcmp.eq.s32.totalorder %v172, 1
  %vm189 = vcmp.eq.s32.totalorder %v173, 1
  %vm190 = vcmp.eq.s32.totalorder %v174, 1
  %vm191 = vcmp.eq.s32.totalorder %v175, 1
  %vm192 = vcmp.eq.s32.totalorder %v176, 1
  %vm193 = vcmp.eq.s32.totalorder %v177, 1
  %vm194 = vcmp.eq.s32.totalorder %v178, 1
  %vm195 = vcmp.eq.s32.totalorder %v179, 1
  %vm196 = vcmp.eq.s32.totalorder %v180, 1
  %vm197 = vcmp.eq.s32.totalorder %v181, 1
  %vm198 = vcmp.eq.s32.totalorder %v182, 1
  %vm199 = vmpackc.low %vm184, %vm183
  %vm200 = vmpackc.low %vm186, %vm185
  %vm201 = vmpackc.low %vm188, %vm187
  %vm202 = vmpackc.low %vm190, %vm189
  %vm203 = vmpackc.low %vm192, %vm191
  %vm204 = vmpackc.low %vm194, %vm193
  %vm205 = vmpackc.low %vm196, %vm195
  %vm206 = vmpackc.low %vm198, %vm197
  %v207 = vsel %vm199, %v143, 0
  %v208 = vsel %vm200, %v144, 0
  %v209 = vsel %vm201, %v145, 0
  %v210 = vsel %vm202, %v146, 0
  %v211 = vsel %vm203, %v147, 0
  %v212 = vsel %vm204, %v148, 0
  %v213 = vsel %vm205, %v149, 0
  %v214 = vsel %vm206, %v150, 0
  %v215 = vld [vmem:[%s0 + $0x40] sm:$0xf]
  %v216 = vsel %vm135, 65537, 0
  %v217 = vsel %vm136, 65537, 0
  %v218 = vsel %vm137, 65537, 0
  %v219 = vsel %vm138, 65537, 0
  %v220 = vsel %vm139, 65537, 0
  %v221 = vsel %vm140, 65537, 0
  %v222 = vsel %vm141, 65537, 0
  %v223 = vsel %vm142, 65537, 0
  %224 = vrot.lane.b32.xlu0 %v216, 1
  %v225 = vpop.permute.xlu0 %224
  %226 = vrot.lane.b32.xlu0 %v217, 1
  %v227 = vpop.permute.xlu0 %226
  %228 = vrot.lane.b32.xlu0 %v218, 1
  %v229 = vpop.permute.xlu0 %228
  %230 = vrot.lane.b32.xlu0 %v219, 1
  %v231 = vpop.permute.xlu0 %230
  %232 = vrot.lane.b32.xlu0 %v220, 1
  %v233 = vpop.permute.xlu0 %232
  %234 = vrot.lane.b32.xlu0 %v221, 1
  %v235 = vpop.permute.xlu0 %234
  %236 = vrot.lane.b32.xlu0 %v222, 1
  %v237 = vpop.permute.xlu0 %236
  %238 = vrot.lane.b32.xlu0 %v223, 1
  %v239 = vpop.permute.xlu0 %238
  %v240 = vrot.slane %v225, 4
  %v241 = vrot.slane %v227, 4
  %v242 = vrot.slane %v229, 4
  %v243 = vrot.slane %v231, 4
  %v244 = vrot.slane %v233, 4
  %v245 = vrot.slane %v235, 4
  %v246 = vrot.slane %v237, 4
  %v247 = vrot.slane %v239, 4
  %vm248 = vcmask 7168
  %v249 = vsel %vm248, %v240, %v225
  %vm250 = vcmask 1043456
  %v251 = vsel %vm250, %v240, %v241
  %v252 = vsel %vm248, %v251, %v227
  %v253 = vsel %vm250, %v241, %v242
  %v254 = vsel %vm248, %v253, %v229
  %v255 = vsel %vm250, %v242, %v243
  %v256 = vsel %vm248, %v255, %v231
  %v257 = vsel %vm250, %v243, %v244
  %v258 = vsel %vm248, %v257, %v233
  %v259 = vsel %vm250, %v244, %v245
  %v260 = vsel %vm248, %v259, %v235
  %v261 = vsel %vm250, %v245, %v246
  %v262 = vsel %vm248, %v261, %v237
  %v263 = vsel %vm250, %v246, %v247
  %v264 = vsel %vm248, %v263, %v239
  %vm265 = vcmp.ne.s16.totalorder %v249, 0
  %vm266 = vcmp.ne.s16.totalorder %v252, 0
  %vm267 = vcmp.ne.s16.totalorder %v254, 0
  %vm268 = vcmp.ne.s16.totalorder %v256, 0
  %vm269 = vcmp.ne.s16.totalorder %v258, 0
  %vm270 = vcmp.ne.s16.totalorder %v260, 0
  %vm271 = vcmp.ne.s16.totalorder %v262, 0
  %vm272 = vcmp.ne.s16.totalorder %v264, 0
  %vm273 = vcmp.ne.s16.totalorder %v247, 0
  %v274 = vsel %vm265, %v79, 0
  %v275 = vsel %vm266, %v80, 0
  %v276 = vsel %vm267, %v81, 0
  %v277 = vsel %vm268, %v82, 0
  %v278 = vsel %vm269, %v83, 0
  %v279 = vsel %vm270, %v84, 0
  %v280 = vsel %vm271, %v85, 0
  %v281 = vsel %vm272, %v86, 0
  %v282 = vsel %vm273, %v215, 0
  %v283 = vsel %vm199, 65537, 0
  %v284 = vsel %vm200, 65537, 0
  %v285 = vsel %vm201, 65537, 0
  %v286 = vsel %vm202, 65537, 0
  %v287 = vsel %vm203, 65537, 0
  %v288 = vsel %vm204, 65537, 0
  %v289 = vsel %vm205, 65537, 0
  %v290 = vsel %vm206, 65537, 0
  %291 = vrot.lane.b32.xlu0 %v283, 32
  %v292 = vpop.permute.xlu0 %291
  %293 = vrot.lane.b32.xlu0 %v284, 32
  %v294 = vpop.permute.xlu0 %293
  %295 = vrot.lane.b32.xlu0 %v285, 32
  %v296 = vpop.permute.xlu0 %295
  %297 = vrot.lane.b32.xlu0 %v286, 32
  %v298 = vpop.permute.xlu0 %297
  %299 = vrot.lane.b32.xlu0 %v287, 32
  %v300 = vpop.permute.xlu0 %299
  %301 = vrot.lane.b32.xlu0 %v288, 32
  %v302 = vpop.permute.xlu0 %301
  %303 = vrot.lane.b32.xlu0 %v289, 32
  %v304 = vpop.permute.xlu0 %303
  %305 = vrot.lane.b32.xlu0 %v290, 32
  %v306 = vpop.permute.xlu0 %305
  %v307 = vrot.slane %v292, 4
  %v308 = vrot.slane %v294, 4
  %v309 = vrot.slane %v296, 4
  %v310 = vrot.slane %v298, 4
  %v311 = vrot.slane %v300, 4
  %v312 = vrot.slane %v302, 4
  %v313 = vrot.slane %v304, 4
  %v314 = vrot.slane %v306, 4
  %vm315 = vcmask 261120
  %v316 = vsel %vm315, %v307, %v292
  %v317 = vsel %vm250, %v307, %v308
  %v318 = vsel %vm315, %v317, %v294
  %v319 = vsel %vm250, %v308, %v309
  %v320 = vsel %vm315, %v319, %v296
  %v321 = vsel %vm250, %v309, %v310
  %v322 = vsel %vm315, %v321, %v298
  %v323 = vsel %vm250, %v310, %v311
  %v324 = vsel %vm315, %v323, %v300
  %v325 = vsel %vm250, %v311, %v312
  %v326 = vsel %vm315, %v325, %v302
  %v327 = vsel %vm250, %v312, %v313
  %v328 = vsel %vm315, %v327, %v304
  %v329 = vsel %vm250, %v313, %v314
  %v330 = vsel %vm315, %v329, %v306
  %vm331 = vcmp.ne.s16.totalorder %v316, 0
  %vm332 = vcmp.ne.s16.totalorder %v318, 0
  %vm333 = vcmp.ne.s16.totalorder %v320, 0
  %vm334 = vcmp.ne.s16.totalorder %v322, 0
  %vm335 = vcmp.ne.s16.totalorder %v324, 0
  %vm336 = vcmp.ne.s16.totalorder %v326, 0
  %vm337 = vcmp.ne.s16.totalorder %v328, 0
  %vm338 = vcmp.ne.s16.totalorder %v330, 0
  %vm339 = vcmp.ne.s16.totalorder %v314, 0
  %v340 = vsel %vm331, %v79, 0
  %v341 = vsel %vm332, %v80, 0
  %v342 = vsel %vm333, %v81, 0
  %v343 = vsel %vm334, %v82, 0
  %v344 = vsel %vm335, %v83, 0
  %v345 = vsel %vm336, %v84, 0
  %v346 = vsel %vm337, %v85, 0
  %v347 = vsel %vm338, %v86, 0
  %v348 = vsel %vm339, %v215, 0
  %v357 = vunpack.c.l.b16 %v207
  %v358 = vunpack.c.h.b16 %v207
  %v359 = vunpack.c.l.b16 %v208
  %v360 = vunpack.c.h.b16 %v208
  %v361 = vunpack.c.l.b16 %v209
  %v362 = vunpack.c.h.b16 %v209
  %v363 = vunpack.c.l.b16 %v210
  %v364 = vunpack.c.h.b16 %v210
  %v365 = vunpack.c.l.b16 %v211
  %v366 = vunpack.c.h.b16 %v211
  %v367 = vunpack.c.l.b16 %v212
  %v368 = vunpack.c.h.b16 %v212
  %v369 = vunpack.c.l.b16 %v213
  %v370 = vunpack.c.h.b16 %v213
  %v371 = vunpack.c.l.b16 %v214
  %v372 = vunpack.c.h.b16 %v214
  %v373 = vpack.c.b16 %v357, %v357
  %v374 = vpack.c.b16 %v358, %v358
  %v375 = vpack.c.b16 %v359, %v359
  %v376 = vpack.c.b16 %v360, %v360
  %v377 = vpack.c.b16 %v361, %v361
  %v378 = vpack.c.b16 %v362, %v362
  %v379 = vpack.c.b16 %v363, %v363
  %v380 = vpack.c.b16 %v364, %v364
  %v381 = vpack.c.b16 %v365, %v365
  %v382 = vpack.c.b16 %v366, %v366
  %v383 = vpack.c.b16 %v367, %v367
  %v384 = vpack.c.b16 %v368, %v368
  %v385 = vpack.c.b16 %v369, %v369
  %v386 = vpack.c.b16 %v370, %v370
  %v387 = vpack.c.b16 %v371, %v371
  %v388 = vpack.c.b16 %v372, %v372
  %v398 = vunpack.c.l.b16 %v274
  %v399 = vunpack.c.h.b16 %v274
  %v400 = vunpack.c.l.b16 %v275
  %v401 = vunpack.c.h.b16 %v275
  %v402 = vunpack.c.l.b16 %v276
  %v403 = vunpack.c.h.b16 %v276
  %v404 = vunpack.c.l.b16 %v277
  %v405 = vunpack.c.h.b16 %v277
  %v406 = vunpack.c.l.b16 %v278
  %v407 = vunpack.c.h.b16 %v278
  %v408 = vunpack.c.l.b16 %v279
  %v409 = vunpack.c.h.b16 %v279
  %v410 = vunpack.c.l.b16 %v280
  %v411 = vunpack.c.h.b16 %v280
  %v412 = vunpack.c.l.b16 %v281
  %v413 = vunpack.c.h.b16 %v281
  %v414 = vunpack.c.l.b16 %v282
  %v415 = vpack.c.b16 %v398, %v398
  %v416 = vpack.c.b16 %v399, %v399
  %v417 = vpack.c.b16 %v400, %v400
  %v418 = vpack.c.b16 %v401, %v401
  %v419 = vpack.c.b16 %v402, %v402
  %v420 = vpack.c.b16 %v403, %v403
  %v421 = vpack.c.b16 %v404, %v404
  %v422 = vpack.c.b16 %v405, %v405
  %v423 = vpack.c.b16 %v406, %v406
  %v424 = vpack.c.b16 %v407, %v407
  %v425 = vpack.c.b16 %v408, %v408
  %v426 = vpack.c.b16 %v409, %v409
  %v427 = vpack.c.b16 %v410, %v410
  %v428 = vpack.c.b16 %v411, %v411
  %v429 = vpack.c.b16 %v412, %v412
  %v430 = vpack.c.b16 %v413, %v413
  %v431 = vpack.c.b16 %v414, %v414
  %432 = vrot.lane.b32.xlu0 %v415, 127
  %v433 = vpop.permute.xlu0 %432
  %434 = vrot.lane.b32.xlu0 %v416, 127
  %v435 = vpop.permute.xlu0 %434
  %436 = vrot.lane.b32.xlu0 %v417, 127
  %v437 = vpop.permute.xlu0 %436
  %438 = vrot.lane.b32.xlu0 %v418, 127
  %v439 = vpop.permute.xlu0 %438
  %440 = vrot.lane.b32.xlu0 %v419, 127
  %v441 = vpop.permute.xlu0 %440
  %442 = vrot.lane.b32.xlu0 %v420, 127
  %v443 = vpop.permute.xlu0 %442
  %444 = vrot.lane.b32.xlu0 %v421, 127
  %v445 = vpop.permute.xlu0 %444
  %446 = vrot.lane.b32.xlu0 %v422, 127
  %v447 = vpop.permute.xlu0 %446
  %448 = vrot.lane.b32.xlu0 %v423, 127
  %v449 = vpop.permute.xlu0 %448
  %450 = vrot.lane.b32.xlu0 %v424, 127
  %v451 = vpop.permute.xlu0 %450
  %452 = vrot.lane.b32.xlu0 %v425, 127
  %v453 = vpop.permute.xlu0 %452
  %454 = vrot.lane.b32.xlu0 %v426, 127
  %v455 = vpop.permute.xlu0 %454
  %456 = vrot.lane.b32.xlu0 %v427, 127
  %v457 = vpop.permute.xlu0 %456
  %458 = vrot.lane.b32.xlu0 %v428, 127
  %v459 = vpop.permute.xlu0 %458
  %460 = vrot.lane.b32.xlu0 %v429, 127
  %v461 = vpop.permute.xlu0 %460
  %462 = vrot.lane.b32.xlu0 %v430, 127
  %v463 = vpop.permute.xlu0 %462
  %464 = vrot.lane.b32.xlu0 %v431, 127
  %v465 = vpop.permute.xlu0 %464
  %vm466 = vcmask 1039360
  %v467 = vsel %vm466, %v433, %v435
  %v468 = vsel %vm466, %v435, %v437
  %v469 = vsel %vm466, %v437, %v439
  %v470 = vsel %vm466, %v439, %v441
  %v471 = vsel %vm466, %v441, %v443
  %v472 = vsel %vm466, %v443, %v445
  %v473 = vsel %vm466, %v445, %v447
  %v474 = vsel %vm466, %v447, %v449
  %v475 = vsel %vm466, %v449, %v451
  %v476 = vsel %vm466, %v451, %v453
  %v477 = vsel %vm466, %v453, %v455
  %v478 = vsel %vm466, %v455, %v457
  %v479 = vsel %vm466, %v457, %v459
  %v480 = vsel %vm466, %v459, %v461
  %v481 = vsel %vm466, %v461, %v463
  %v482 = vsel %vm466, %v463, %v465
  %v492 = vunpack.c.l.b16 %v340
  %v493 = vunpack.c.h.b16 %v340
  %v494 = vunpack.c.l.b16 %v341
  %v495 = vunpack.c.h.b16 %v341
  %v496 = vunpack.c.l.b16 %v342
  %v497 = vunpack.c.h.b16 %v342
  %v498 = vunpack.c.l.b16 %v343
  %v499 = vunpack.c.h.b16 %v343
  %v500 = vunpack.c.l.b16 %v344
  %v501 = vunpack.c.h.b16 %v344
  %v502 = vunpack.c.l.b16 %v345
  %v503 = vunpack.c.h.b16 %v345
  %v504 = vunpack.c.l.b16 %v346
  %v505 = vunpack.c.h.b16 %v346
  %v506 = vunpack.c.l.b16 %v347
  %v507 = vunpack.c.h.b16 %v347
  %v508 = vunpack.c.l.b16 %v348
  %v509 = vpack.c.b16 %v492, %v492
  %v510 = vpack.c.b16 %v493, %v493
  %v511 = vpack.c.b16 %v494, %v494
  %v512 = vpack.c.b16 %v495, %v495
  %v513 = vpack.c.b16 %v496, %v496
  %v514 = vpack.c.b16 %v497, %v497
  %v515 = vpack.c.b16 %v498, %v498
  %v516 = vpack.c.b16 %v499, %v499
  %v517 = vpack.c.b16 %v500, %v500
  %v518 = vpack.c.b16 %v501, %v501
  %v519 = vpack.c.b16 %v502, %v502
  %v520 = vpack.c.b16 %v503, %v503
  %v521 = vpack.c.b16 %v504, %v504
  %v522 = vpack.c.b16 %v505, %v505
  %v523 = vpack.c.b16 %v506, %v506
  %v524 = vpack.c.b16 %v507, %v507
  %v525 = vpack.c.b16 %v508, %v508
  %526 = vrot.lane.b32.xlu0 %v509, 96
  %v527 = vpop.permute.xlu0 %526
  %528 = vrot.lane.b32.xlu0 %v510, 96
  %v529 = vpop.permute.xlu0 %528
  %530 = vrot.lane.b32.xlu0 %v511, 96
  %v531 = vpop.permute.xlu0 %530
  %532 = vrot.lane.b32.xlu0 %v512, 96
  %v533 = vpop.permute.xlu0 %532
  %534 = vrot.lane.b32.xlu0 %v513, 96
  %v535 = vpop.permute.xlu0 %534
  %536 = vrot.lane.b32.xlu0 %v514, 96
  %v537 = vpop.permute.xlu0 %536
  %538 = vrot.lane.b32.xlu0 %v515, 96
  %v539 = vpop.permute.xlu0 %538
  %540 = vrot.lane.b32.xlu0 %v516, 96
  %v541 = vpop.permute.xlu0 %540
  %542 = vrot.lane.b32.xlu0 %v517, 96
  %v543 = vpop.permute.xlu0 %542
  %544 = vrot.lane.b32.xlu0 %v518, 96
  %v545 = vpop.permute.xlu0 %544
  %546 = vrot.lane.b32.xlu0 %v519, 96
  %v547 = vpop.permute.xlu0 %546
  %548 = vrot.lane.b32.xlu0 %v520, 96
  %v549 = vpop.permute.xlu0 %548
  %550 = vrot.lane.b32.xlu0 %v521, 96
  %v551 = vpop.permute.xlu0 %550
  %552 = vrot.lane.b32.xlu0 %v522, 96
  %v553 = vpop.permute.xlu0 %552
  %554 = vrot.lane.b32.xlu0 %v523, 96
  %v555 = vpop.permute.xlu0 %554
  %556 = vrot.lane.b32.xlu0 %v524, 96
  %v557 = vpop.permute.xlu0 %556
  %558 = vrot.lane.b32.xlu0 %v525, 96
  %v559 = vpop.permute.xlu0 %558
  %vm560 = vcmask 785408
  %v561 = vsel %vm560, %v527, %v529
  %v562 = vsel %vm560, %v529, %v531
  %v563 = vsel %vm560, %v531, %v533
  %v564 = vsel %vm560, %v533, %v535
  %v565 = vsel %vm560, %v535, %v537
  %v566 = vsel %vm560, %v537, %v539
  %v567 = vsel %vm560, %v539, %v541
  %v568 = vsel %vm560, %v541, %v543
  %v569 = vsel %vm560, %v543, %v545
  %v570 = vsel %vm560, %v545, %v547
  %v571 = vsel %vm560, %v547, %v549
  %v572 = vsel %vm560, %v549, %v551
  %v573 = vsel %vm560, %v551, %v553
  %v574 = vsel %vm560, %v553, %v555
  %v575 = vsel %vm560, %v555, %v557
  %v576 = vsel %vm560, %v557, %v559
  %v586 = vunpack.c.l.b16 %v79
  %v587 = vunpack.c.h.b16 %v79
  %v588 = vunpack.c.l.b16 %v80
  %v589 = vunpack.c.h.b16 %v80
  %v590 = vunpack.c.l.b16 %v81
  %v591 = vunpack.c.h.b16 %v81
  %v592 = vunpack.c.l.b16 %v82
  %v593 = vunpack.c.h.b16 %v82
  %v594 = vunpack.c.l.b16 %v83
  %v595 = vunpack.c.h.b16 %v83
  %v596 = vunpack.c.l.b16 %v84
  %v597 = vunpack.c.h.b16 %v84
  %v598 = vunpack.c.l.b16 %v85
  %v599 = vunpack.c.h.b16 %v85
  %v600 = vunpack.c.l.b16 %v86
  %v601 = vunpack.c.h.b16 %v86
  %v602 = vunpack.c.l.b16 %v215
  %v603 = vpack.c.b16 %v586, %v586
  %v604 = vpack.c.b16 %v587, %v587
  %v605 = vpack.c.b16 %v588, %v588
  %v606 = vpack.c.b16 %v589, %v589
  %v607 = vpack.c.b16 %v590, %v590
  %v608 = vpack.c.b16 %v591, %v591
  %v609 = vpack.c.b16 %v592, %v592
  %v610 = vpack.c.b16 %v593, %v593
  %v611 = vpack.c.b16 %v594, %v594
  %v612 = vpack.c.b16 %v595, %v595
  %v613 = vpack.c.b16 %v596, %v596
  %v614 = vpack.c.b16 %v597, %v597
  %v615 = vpack.c.b16 %v598, %v598
  %v616 = vpack.c.b16 %v599, %v599
  %v617 = vpack.c.b16 %v600, %v600
  %v618 = vpack.c.b16 %v601, %v601
  %v619 = vpack.c.b16 %v602, %v602
  %620 = vrot.lane.b32.xlu0 %v603, 95
  %v621 = vpop.permute.xlu0 %620
  %622 = vrot.lane.b32.xlu0 %v604, 95
  %v623 = vpop.permute.xlu0 %622
  %624 = vrot.lane.b32.xlu0 %v605, 95
  %v625 = vpop.permute.xlu0 %624
  %626 = vrot.lane.b32.xlu0 %v606, 95
  %v627 = vpop.permute.xlu0 %626
  %628 = vrot.lane.b32.xlu0 %v607, 95
  %v629 = vpop.permute.xlu0 %628
  %630 = vrot.lane.b32.xlu0 %v608, 95
  %v631 = vpop.permute.xlu0 %630
  %632 = vrot.lane.b32.xlu0 %v609, 95
  %v633 = vpop.permute.xlu0 %632
  %634 = vrot.lane.b32.xlu0 %v610, 95
  %v635 = vpop.permute.xlu0 %634
  %636 = vrot.lane.b32.xlu0 %v611, 95
  %v637 = vpop.permute.xlu0 %636
  %638 = vrot.lane.b32.xlu0 %v612, 95
  %v639 = vpop.permute.xlu0 %638
  %640 = vrot.lane.b32.xlu0 %v613, 95
  %v641 = vpop.permute.xlu0 %640
  %642 = vrot.lane.b32.xlu0 %v614, 95
  %v643 = vpop.permute.xlu0 %642
  %644 = vrot.lane.b32.xlu0 %v615, 95
  %v645 = vpop.permute.xlu0 %644
  %646 = vrot.lane.b32.xlu0 %v616, 95
  %v647 = vpop.permute.xlu0 %646
  %648 = vrot.lane.b32.xlu0 %v617, 95
  %v649 = vpop.permute.xlu0 %648
  %650 = vrot.lane.b32.xlu0 %v618, 95
  %v651 = vpop.permute.xlu0 %650
  %652 = vrot.lane.b32.xlu0 %v619, 95
  %v653 = vpop.permute.xlu0 %652
  %vm654 = vcmask 777216
  %v655 = vsel %vm654, %v621, %v623
  %v656 = vsel %vm654, %v623, %v625
  %v657 = vsel %vm654, %v625, %v627
  %v658 = vsel %vm654, %v627, %v629
  %v659 = vsel %vm654, %v629, %v631
  %v660 = vsel %vm654, %v631, %v633
  %v661 = vsel %vm654, %v633, %v635
  %v662 = vsel %vm654, %v635, %v637
  %v663 = vsel %vm654, %v637, %v639
  %v664 = vsel %vm654, %v639, %v641
  %v665 = vsel %vm654, %v641, %v643
  %v666 = vsel %vm654, %v643, %v645
  %v667 = vsel %vm654, %v645, %v647
  %v668 = vsel %vm654, %v647, %v649
  %v669 = vsel %vm654, %v649, %v651
  %v670 = vsel %vm654, %v651, %v653
  %vm671 = vcmask 1043456
  %v674 = vsel %vm671, %v373, %v467
  %v678 = vsel %vm671, %v374, %v468
  %v682 = vsel %vm671, %v375, %v469
  %v686 = vsel %vm671, %v376, %v470
  %v690 = vsel %vm671, %v377, %v471
  %v694 = vsel %vm671, %v378, %v472
  %v698 = vsel %vm671, %v379, %v473
  %v702 = vsel %vm671, %v380, %v474
  %v706 = vsel %vm671, %v381, %v475
  %v710 = vsel %vm671, %v382, %v476
  %v714 = vsel %vm671, %v383, %v477
  %v718 = vsel %vm671, %v384, %v478
  %v722 = vsel %vm671, %v385, %v479
  %v726 = vsel %vm671, %v386, %v480
  %v730 = vsel %vm671, %v387, %v481
  %v734 = vsel %vm671, %v388, %v482
  %v738 = vsel %vm671, %v561, %v655
  %v742 = vsel %vm671, %v562, %v656
  %v746 = vsel %vm671, %v563, %v657
  %v750 = vsel %vm671, %v564, %v658
  %v754 = vsel %vm671, %v565, %v659
  %v758 = vsel %vm671, %v566, %v660
  %v762 = vsel %vm671, %v567, %v661
  %v766 = vsel %vm671, %v568, %v662
  %v770 = vsel %vm671, %v569, %v663
  %v774 = vsel %vm671, %v570, %v664
  %v778 = vsel %vm671, %v571, %v665
  %v782 = vsel %vm671, %v572, %v666
  %v786 = vsel %vm671, %v573, %v667
  %v790 = vsel %vm671, %v574, %v668
  %v794 = vsel %vm671, %v575, %v669
  %v798 = vsel %vm671, %v576, %v670
  %v800 = vld [vmem:[%s1] sm:$0x3]
  %vm801 = vcmask 261120
  %v803 = vsel %vm801, %v800, 0
  %805 = vmatprep.subr.bf16.mxu0 %v678
  %806 = vmatpush1.bf16.msra.mxu0 %v674
  %807 = vmatprep.subr.bf16.mxu0 %v742
  %808 = vmatpush1.bf16.msra.mxu0 %v738
  %809 = vmatprep.subr.bf16.mxu0 0
  %810 = vmatpush1.bf16.msra.mxu0 0
  %811 = vmatprep.subr.bf16.mxu0 0
  %812 = vmatpush1.bf16.msra.mxu0 0
  %813 = vmatprep.subr.bf16.mxu0 0
  %814 = vmatpush1.bf16.msra.mxu0 0
  %815 = vmatprep.subr.bf16.mxu0 0
  %816 = vmatpush1.bf16.msra.mxu0 0
  %817 = vmatprep.subr.bf16.mxu0 0
  %818 = vmatpush1.bf16.msra.mxu0 0
  %819 = vmatprep.subr.bf16.mxu0 0
  %820 = vmatpush1.bf16.msra.mxu0 0
  %821 = vmatprep.subr.bf16.mxu0 0
  %822 = vmatpush1.bf16.msra.mxu0 0
  %823 = vmatprep.subr.bf16.mxu0 0
  %824 = vmatpush1.bf16.msra.mxu0 0
  %825 = vmatprep.subr.bf16.mxu0 0
  %826 = vmatpush1.bf16.msra.mxu0 0
  %827 = vmatprep.subr.bf16.mxu0 0
  %828 = vmatpush1.bf16.msra.mxu0 0
  %829 = vmatprep.subr.bf16.mxu0 0
  %830 = vmatpush1.bf16.msra.mxu0 0
  %831 = vmatprep.subr.bf16.mxu0 0
  %832 = vmatpush1.bf16.msra.mxu0 0
  %833 = vmatprep.subr.bf16.mxu0 0
  %834 = vmatpush1.bf16.msra.mxu0 0
  %835 = vmatprep.subr.bf16.mxu0 0
  %836 = vmatpush1.bf16.msra.mxu0 0
  %837 = vmatprep.mubr.bf16.mxu0 0
  %838 = vmatmul.mubr.bf16.gmra.mrb[0].mxu0 %v803
  %v839 = vpop.f32.mrb[0].mxu0
  %v840 = vadd.f32 0.0, %v839
  %v841 = vpop.f32.mrb[0].mxu0
  %v842 = vadd.f32 0.0, %v841
  %v843 = vpop.f32.mrb[0].mxu0
  %v844 = vpop.f32.mrb[0].mxu0
  %845 = vdwg.mxu0
  %846 = vmatprep.subr.bf16.mxu0 %v686
  %847 = vmatpush1.bf16.msra.mxu0 %v682
  %848 = vmatprep.subr.bf16.mxu0 %v750
  %849 = vmatpush1.bf16.msra.mxu0 %v746
  %850 = vmatprep.subr.bf16.mxu0 0
  %851 = vmatpush1.bf16.msra.mxu0 0
  %852 = vmatprep.subr.bf16.mxu0 0
  %853 = vmatpush1.bf16.msra.mxu0 0
  %854 = vmatprep.subr.bf16.mxu0 0
  %855 = vmatpush1.bf16.msra.mxu0 0
  %856 = vmatprep.subr.bf16.mxu0 0
  %857 = vmatpush1.bf16.msra.mxu0 0
  %858 = vmatprep.subr.bf16.mxu0 0
  %859 = vmatpush1.bf16.msra.mxu0 0
  %860 = vmatprep.subr.bf16.mxu0 0
  %861 = vmatpush1.bf16.msra.mxu0 0
  %862 = vmatprep.subr.bf16.mxu0 0
  %863 = vmatpush1.bf16.msra.mxu0 0
  %864 = vmatprep.subr.bf16.mxu0 0
  %865 = vmatpush1.bf16.msra.mxu0 0
  %866 = vmatprep.subr.bf16.mxu0 0
  %867 = vmatpush1.bf16.msra.mxu0 0
  %868 = vmatprep.subr.bf16.mxu0 0
  %869 = vmatpush1.bf16.msra.mxu0 0
  %870 = vmatprep.subr.bf16.mxu0 0
  %871 = vmatpush1.bf16.msra.mxu0 0
  %872 = vmatprep.subr.bf16.mxu0 0
  %873 = vmatpush1.bf16.msra.mxu0 0
  %874 = vmatprep.subr.bf16.mxu0 0
  %875 = vmatpush1.bf16.msra.mxu0 0
  %876 = vmatprep.subr.bf16.mxu0 0
  %877 = vmatpush1.bf16.msra.mxu0 0
  %878 = vmatprep.mubr.bf16.mxu0 0
  %879 = vmatmul.mubr.bf16.gmra.mrb[0].mxu0 %v803
  %v880 = vpop.f32.mrb[0].mxu0
  %v881 = vadd.f32 0.0, %v880
  %v882 = vpop.f32.mrb[0].mxu0
  %v883 = vadd.f32 0.0, %v882
  %v884 = vpop.f32.mrb[0].mxu0
  %v885 = vpop.f32.mrb[0].mxu0
  %886 = vdwg.mxu0
  %887 = vmatprep.subr.bf16.mxu0 %v694
  %888 = vmatpush1.bf16.msra.mxu0 %v690
  %889 = vmatprep.subr.bf16.mxu0 %v758
  %890 = vmatpush1.bf16.msra.mxu0 %v754
  %891 = vmatprep.subr.bf16.mxu0 0
  %892 = vmatpush1.bf16.msra.mxu0 0
  %893 = vmatprep.subr.bf16.mxu0 0
  %894 = vmatpush1.bf16.msra.mxu0 0
  %895 = vmatprep.subr.bf16.mxu0 0
  %896 = vmatpush1.bf16.msra.mxu0 0
  %897 = vmatprep.subr.bf16.mxu0 0
  %898 = vmatpush1.bf16.msra.mxu0 0
  %899 = vmatprep.subr.bf16.mxu0 0
  %900 = vmatpush1.bf16.msra.mxu0 0
  %901 = vmatprep.subr.bf16.mxu0 0
  %902 = vmatpush1.bf16.msra.mxu0 0
  %903 = vmatprep.subr.bf16.mxu0 0
  %904 = vmatpush1.bf16.msra.mxu0 0
  %905 = vmatprep.subr.bf16.mxu0 0
  %906 = vmatpush1.bf16.msra.mxu0 0
  %907 = vmatprep.subr.bf16.mxu0 0
  %908 = vmatpush1.bf16.msra.mxu0 0
  %909 = vmatprep.subr.bf16.mxu0 0
  %910 = vmatpush1.bf16.msra.mxu0 0
  %911 = vmatprep.subr.bf16.mxu0 0
  %912 = vmatpush1.bf16.msra.mxu0 0
  %913 = vmatprep.subr.bf16.mxu0 0
  %914 = vmatpush1.bf16.msra.mxu0 0
  %915 = vmatprep.subr.bf16.mxu0 0
  %916 = vmatpush1.bf16.msra.mxu0 0
  %917 = vmatprep.subr.bf16.mxu0 0
  %918 = vmatpush1.bf16.msra.mxu0 0
  %919 = vmatprep.mubr.bf16.mxu0 0
  %920 = vmatmul.mubr.bf16.gmra.mrb[0].mxu0 %v803
  %v921 = vpop.f32.mrb[0].mxu0
  %v922 = vadd.f32 0.0, %v921
  %v923 = vpop.f32.mrb[0].mxu0
  %v924 = vadd.f32 0.0, %v923
  %v925 = vpop.f32.mrb[0].mxu0
  %v926 = vpop.f32.mrb[0].mxu0
  %927 = vdwg.mxu0
  %928 = vmatprep.subr.bf16.mxu0 %v702
  %929 = vmatpush1.bf16.msra.mxu0 %v698
  %930 = vmatprep.subr.bf16.mxu0 %v766
  %931 = vmatpush1.bf16.msra.mxu0 %v762
  %932 = vmatprep.subr.bf16.mxu0 0
  %933 = vmatpush1.bf16.msra.mxu0 0
  %934 = vmatprep.subr.bf16.mxu0 0
  %935 = vmatpush1.bf16.msra.mxu0 0
  %936 = vmatprep.subr.bf16.mxu0 0
  %937 = vmatpush1.bf16.msra.mxu0 0
  %938 = vmatprep.subr.bf16.mxu0 0
  %939 = vmatpush1.bf16.msra.mxu0 0
  %940 = vmatprep.subr.bf16.mxu0 0
  %941 = vmatpush1.bf16.msra.mxu0 0
  %942 = vmatprep.subr.bf16.mxu0 0
  %943 = vmatpush1.bf16.msra.mxu0 0
  %944 = vmatprep.subr.bf16.mxu0 0
  %945 = vmatpush1.bf16.msra.mxu0 0
  %946 = vmatprep.subr.bf16.mxu0 0
  %947 = vmatpush1.bf16.msra.mxu0 0
  %948 = vmatprep.subr.bf16.mxu0 0
  %949 = vmatpush1.bf16.msra.mxu0 0
  %950 = vmatprep.subr.bf16.mxu0 0
  %951 = vmatpush1.bf16.msra.mxu0 0
  %952 = vmatprep.subr.bf16.mxu0 0
  %953 = vmatpush1.bf16.msra.mxu0 0
  %954 = vmatprep.subr.bf16.mxu0 0
  %955 = vmatpush1.bf16.msra.mxu0 0
  %956 = vmatprep.subr.bf16.mxu0 0
  %957 = vmatpush1.bf16.msra.mxu0 0
  %958 = vmatprep.subr.bf16.mxu0 0
  %959 = vmatpush1.bf16.msra.mxu0 0
  %960 = vmatprep.mubr.bf16.mxu0 0
  %961 = vmatmul.mubr.bf16.gmra.mrb[0].mxu0 %v803
  %v962 = vpop.f32.mrb[0].mxu0
  %v963 = vadd.f32 0.0, %v962
  %v964 = vpop.f32.mrb[0].mxu0
  %v965 = vadd.f32 0.0, %v964
  %v966 = vpop.f32.mrb[0].mxu0
  %v967 = vpop.f32.mrb[0].mxu0
  %968 = vdwg.mxu0
  %969 = vmatprep.subr.bf16.mxu0 %v710
  %970 = vmatpush1.bf16.msra.mxu0 %v706
  %971 = vmatprep.subr.bf16.mxu0 %v774
  %972 = vmatpush1.bf16.msra.mxu0 %v770
  %973 = vmatprep.subr.bf16.mxu0 0
  %974 = vmatpush1.bf16.msra.mxu0 0
  %975 = vmatprep.subr.bf16.mxu0 0
  %976 = vmatpush1.bf16.msra.mxu0 0
  %977 = vmatprep.subr.bf16.mxu0 0
  %978 = vmatpush1.bf16.msra.mxu0 0
  %979 = vmatprep.subr.bf16.mxu0 0
  %980 = vmatpush1.bf16.msra.mxu0 0
  %981 = vmatprep.subr.bf16.mxu0 0
  %982 = vmatpush1.bf16.msra.mxu0 0
  %983 = vmatprep.subr.bf16.mxu0 0
  %984 = vmatpush1.bf16.msra.mxu0 0
  %985 = vmatprep.subr.bf16.mxu0 0
  %986 = vmatpush1.bf16.msra.mxu0 0
  %987 = vmatprep.subr.bf16.mxu0 0
  %988 = vmatpush1.bf16.msra.mxu0 0
  %989 = vmatprep.subr.bf16.mxu0 0
  %990 = vmatpush1.bf16.msra.mxu0 0
  %991 = vmatprep.subr.bf16.mxu0 0
  %992 = vmatpush1.bf16.msra.mxu0 0
  %993 = vmatprep.subr.bf16.mxu0 0
  %994 = vmatpush1.bf16.msra.mxu0 0
  %995 = vmatprep.subr.bf16.mxu0 0
  %996 = vmatpush1.bf16.msra.mxu0 0
  %997 = vmatprep.subr.bf16.mxu0 0
  %998 = vmatpush1.bf16.msra.mxu0 0
  %999 = vmatprep.subr.bf16.mxu0 0
  %1000 = vmatpush1.bf16.msra.mxu0 0
  %1001 = vmatprep.mubr.bf16.mxu0 0
  %1002 = vmatmul.mubr.bf16.gmra.mrb[0].mxu0 %v803
  %v1003 = vpop.f32.mrb[0].mxu0
  %v1004 = vadd.f32 0.0, %v1003
  %v1005 = vpop.f32.mrb[0].mxu0
  %v1006 = vadd.f32 0.0, %v1005
  %v1007 = vpop.f32.mrb[0].mxu0
  %v1008 = vpop.f32.mrb[0].mxu0
  %1009 = vdwg.mxu0
  %1010 = vmatprep.subr.bf16.mxu0 %v718
  %1011 = vmatpush1.bf16.msra.mxu0 %v714
  %1012 = vmatprep.subr.bf16.mxu0 %v782
  %1013 = vmatpush1.bf16.msra.mxu0 %v778
  %1014 = vmatprep.subr.bf16.mxu0 0
  %1015 = vmatpush1.bf16.msra.mxu0 0
  %1016 = vmatprep.subr.bf16.mxu0 0
  %1017 = vmatpush1.bf16.msra.mxu0 0
  %1018 = vmatprep.subr.bf16.mxu0 0
  %1019 = vmatpush1.bf16.msra.mxu0 0
  %1020 = vmatprep.subr.bf16.mxu0 0
  %1021 = vmatpush1.bf16.msra.mxu0 0
  %1022 = vmatprep.subr.bf16.mxu0 0
  %1023 = vmatpush1.bf16.msra.mxu0 0
  %1024 = vmatprep.subr.bf16.mxu0 0
  %1025 = vmatpush1.bf16.msra.mxu0 0
  %1026 = vmatprep.subr.bf16.mxu0 0
  %1027 = vmatpush1.bf16.msra.mxu0 0
  %1028 = vmatprep.subr.bf16.mxu0 0
  %1029 = vmatpush1.bf16.msra.mxu0 0
  %1030 = vmatprep.subr.bf16.mxu0 0
  %1031 = vmatpush1.bf16.msra.mxu0 0
  %1032 = vmatprep.subr.bf16.mxu0 0
  %1033 = vmatpush1.bf16.msra.mxu0 0
  %1034 = vmatprep.subr.bf16.mxu0 0
  %1035 = vmatpush1.bf16.msra.mxu0 0
  %1036 = vmatprep.subr.bf16.mxu0 0
  %1037 = vmatpush1.bf16.msra.mxu0 0
  %1038 = vmatprep.subr.bf16.mxu0 0
  %1039 = vmatpush1.bf16.msra.mxu0 0
  %1040 = vmatprep.subr.bf16.mxu0 0
  %1041 = vmatpush1.bf16.msra.mxu0 0
  %1042 = vmatprep.mubr.bf16.mxu0 0
  %1043 = vmatmul.mubr.bf16.gmra.mrb[0].mxu0 %v803
  %v1044 = vpop.f32.mrb[0].mxu0
  %v1045 = vadd.f32 0.0, %v1044
  %v1046 = vpop.f32.mrb[0].mxu0
  %v1047 = vadd.f32 0.0, %v1046
  %v1048 = vpop.f32.mrb[0].mxu0
  %v1049 = vpop.f32.mrb[0].mxu0
  %1050 = vdwg.mxu0
  %1051 = vmatprep.subr.bf16.mxu0 %v726
  %1052 = vmatpush1.bf16.msra.mxu0 %v722
  %1053 = vmatprep.subr.bf16.mxu0 %v790
  %1054 = vmatpush1.bf16.msra.mxu0 %v786
  %1055 = vmatprep.subr.bf16.mxu0 0
  %1056 = vmatpush1.bf16.msra.mxu0 0
  %1057 = vmatprep.subr.bf16.mxu0 0
  %1058 = vmatpush1.bf16.msra.mxu0 0
  %1059 = vmatprep.subr.bf16.mxu0 0
  %1060 = vmatpush1.bf16.msra.mxu0 0
  %1061 = vmatprep.subr.bf16.mxu0 0
  %1062 = vmatpush1.bf16.msra.mxu0 0
  %1063 = vmatprep.subr.bf16.mxu0 0
  %1064 = vmatpush1.bf16.msra.mxu0 0
  %1065 = vmatprep.subr.bf16.mxu0 0
  %1066 = vmatpush1.bf16.msra.mxu0 0
  %1067 = vmatprep.subr.bf16.mxu0 0
  %1068 = vmatpush1.bf16.msra.mxu0 0
  %1069 = vmatprep.subr.bf16.mxu0 0
  %1070 = vmatpush1.bf16.msra.mxu0 0
  %1071 = vmatprep.subr.bf16.mxu0 0
  %1072 = vmatpush1.bf16.msra.mxu0 0
  %1073 = vmatprep.subr.bf16.mxu0 0
  %1074 = vmatpush1.bf16.msra.mxu0 0
  %1075 = vmatprep.subr.bf16.mxu0 0
  %1076 = vmatpush1.bf16.msra.mxu0 0
  %1077 = vmatprep.subr.bf16.mxu0 0
  %1078 = vmatpush1.bf16.msra.mxu0 0
  %1079 = vmatprep.subr.bf16.mxu0 0
  %1080 = vmatpush1.bf16.msra.mxu0 0
  %1081 = vmatprep.subr.bf16.mxu0 0
  %1082 = vmatpush1.bf16.msra.mxu0 0
  %1083 = vmatprep.mubr.bf16.mxu0 0
  %1084 = vmatmul.mubr.bf16.gmra.mrb[0].mxu0 %v803
  %v1085 = vpop.f32.mrb[0].mxu0
  %v1086 = vadd.f32 0.0, %v1085
  %v1087 = vpop.f32.mrb[0].mxu0
  %v1088 = vadd.f32 0.0, %v1087
  %v1089 = vpop.f32.mrb[0].mxu0
  %v1090 = vpop.f32.mrb[0].mxu0
  %1091 = vdwg.mxu0
  %1092 = vmatprep.subr.bf16.mxu0 %v734
  %1093 = vmatpush1.bf16.msra.mxu0 %v730
  %1094 = vmatprep.subr.bf16.mxu0 %v798
  %1095 = vmatpush1.bf16.msra.mxu0 %v794
  %1096 = vmatprep.subr.bf16.mxu0 0
  %1097 = vmatpush1.bf16.msra.mxu0 0
  %1098 = vmatprep.subr.bf16.mxu0 0
  %1099 = vmatpush1.bf16.msra.mxu0 0
  %1100 = vmatprep.subr.bf16.mxu0 0
  %1101 = vmatpush1.bf16.msra.mxu0 0
  %1102 = vmatprep.subr.bf16.mxu0 0
  %1103 = vmatpush1.bf16.msra.mxu0 0
  %1104 = vmatprep.subr.bf16.mxu0 0
  %1105 = vmatpush1.bf16.msra.mxu0 0
  %1106 = vmatprep.subr.bf16.mxu0 0
  %1107 = vmatpush1.bf16.msra.mxu0 0
  %1108 = vmatprep.subr.bf16.mxu0 0
  %1109 = vmatpush1.bf16.msra.mxu0 0
  %1110 = vmatprep.subr.bf16.mxu0 0
  %1111 = vmatpush1.bf16.msra.mxu0 0
  %1112 = vmatprep.subr.bf16.mxu0 0
  %1113 = vmatpush1.bf16.msra.mxu0 0
  %1114 = vmatprep.subr.bf16.mxu0 0
  %1115 = vmatpush1.bf16.msra.mxu0 0
  %1116 = vmatprep.subr.bf16.mxu0 0
  %1117 = vmatpush1.bf16.msra.mxu0 0
  %1118 = vmatprep.subr.bf16.mxu0 0
  %1119 = vmatpush1.bf16.msra.mxu0 0
  %1120 = vmatprep.subr.bf16.mxu0 0
  %1121 = vmatpush1.bf16.msra.mxu0 0
  %1122 = vmatprep.subr.bf16.mxu0 0
  %1123 = vmatpush1.bf16.msra.mxu0 0
  %1124 = vmatprep.mubr.bf16.mxu0 0
  %1125 = vmatmul.mubr.bf16.gmra.mrb[0].mxu0 %v803
  %v1126 = vpop.f32.mrb[0].mxu0
  %v1127 = vadd.f32 0.0, %v1126
  %v1128 = vpop.f32.mrb[0].mxu0
  %v1129 = vadd.f32 0.0, %v1128
  %v1130 = vpop.f32.mrb[0].mxu0
  %v1131 = vpop.f32.mrb[0].mxu0
  %1132 = vdwg.mxu0
  %1133 = vrot.lane.b32.xlu0 %v216, 2
  %v1134 = vpop.permute.xlu0 %1133
  %1135 = vrot.lane.b32.xlu0 %v217, 2
  %v1136 = vpop.permute.xlu0 %1135
  %1137 = vrot.lane.b32.xlu0 %v218, 2
  %v1138 = vpop.permute.xlu0 %1137
  %1139 = vrot.lane.b32.xlu0 %v219, 2
  %v1140 = vpop.permute.xlu0 %1139
  %1141 = vrot.lane.b32.xlu0 %v220, 2
  %v1142 = vpop.permute.xlu0 %1141
  %1143 = vrot.lane.b32.xlu0 %v221, 2
  %v1144 = vpop.permute.xlu0 %1143
  %1145 = vrot.lane.b32.xlu0 %v222, 2
  %v1146 = vpop.permute.xlu0 %1145
  %1147 = vrot.lane.b32.xlu0 %v223, 2
  %v1148 = vpop.permute.xlu0 %1147
  %v1149 = vrot.slane %v1134, 4
  %v1150 = vrot.slane %v1136, 4
  %v1151 = vrot.slane %v1138, 4
  %v1152 = vrot.slane %v1140, 4
  %v1153 = vrot.slane %v1142, 4
  %v1154 = vrot.slane %v1144, 4
  %v1155 = vrot.slane %v1146, 4
  %v1156 = vrot.slane %v1148, 4
  %vm1157 = vcmask 15360
  %v1158 = vsel %vm1157, %v1149, %v1134
  %v1159 = vsel %vm250, %v1149, %v1150
  %v1160 = vsel %vm1157, %v1159, %v1136
  %v1161 = vsel %vm250, %v1150, %v1151
  %v1162 = vsel %vm1157, %v1161, %v1138
  %v1163 = vsel %vm250, %v1151, %v1152
  %v1164 = vsel %vm1157, %v1163, %v1140
  %v1165 = vsel %vm250, %v1152, %v1153
  %v1166 = vsel %vm1157, %v1165, %v1142
  %v1167 = vsel %vm250, %v1153, %v1154
  %v1168 = vsel %vm1157, %v1167, %v1144
  %v1169 = vsel %vm250, %v1154, %v1155
  %v1170 = vsel %vm1157, %v1169, %v1146
  %v1171 = vsel %vm250, %v1155, %v1156
  %v1172 = vsel %vm1157, %v1171, %v1148
  %vm1173 = vcmp.ne.s16.totalorder %v1158, 0
  %vm1174 = vcmp.ne.s16.totalorder %v1160, 0
  %vm1175 = vcmp.ne.s16.totalorder %v1162, 0
  %vm1176 = vcmp.ne.s16.totalorder %v1164, 0
  %vm1177 = vcmp.ne.s16.totalorder %v1166, 0
  %vm1178 = vcmp.ne.s16.totalorder %v1168, 0
  %vm1179 = vcmp.ne.s16.totalorder %v1170, 0
  %vm1180 = vcmp.ne.s16.totalorder %v1172, 0
  %vm1181 = vcmp.ne.s16.totalorder %v1156, 0
  %v1182 = vsel %vm1173, %v79, 0
  %v1183 = vsel %vm1174, %v80, 0
  %v1184 = vsel %vm1175, %v81, 0
  %v1185 = vsel %vm1176, %v82, 0
  %v1186 = vsel %vm1177, %v83, 0
  %v1187 = vsel %vm1178, %v84, 0
  %v1188 = vsel %vm1179, %v85, 0
  %v1189 = vsel %vm1180, %v86, 0
  %v1190 = vsel %vm1181, %v215, 0
  %vm1191 = vcmp.ne.s32.totalorder %v31, 31
  %vm1192 = vcmp.ne.s32.totalorder %v32, 31
  %vm1193 = vcmp.ne.s32.totalorder %v33, 31
  %vm1194 = vcmp.ne.s32.totalorder %v34, 31
  %vm1195 = vcmp.ne.s32.totalorder %v35, 31
  %vm1196 = vcmp.ne.s32.totalorder %v36, 31
  %vm1197 = vcmp.ne.s32.totalorder %v37, 31
  %vm1198 = vcmp.ne.s32.totalorder %v38, 31
  %vm1199 = vcmp.ne.s32.totalorder %v39, 31
  %vm1200 = vcmp.ne.s32.totalorder %v40, 31
  %vm1201 = vcmp.ne.s32.totalorder %v41, 31
  %vm1202 = vcmp.ne.s32.totalorder %v42, 31
  %vm1203 = vcmp.ne.s32.totalorder %v43, 31
  %vm1204 = vcmp.ne.s32.totalorder %v44, 31
  %vm1205 = vcmp.ne.s32.totalorder %v45, 31
  %vm1206 = vcmp.ne.s32.totalorder %v46, 31
  %v1207 = vsel %vm1191, 1, 0
  %v1208 = vsel %vm1192, 1, 0
  %v1209 = vsel %vm1193, 1, 0
  %v1210 = vsel %vm1194, 1, 0
  %v1211 = vsel %vm1195, 1, 0
  %v1212 = vsel %vm1196, 1, 0
  %v1213 = vsel %vm1197, 1, 0
  %v1214 = vsel %vm1198, 1, 0
  %v1215 = vsel %vm1199, 1, 0
  %v1216 = vsel %vm1200, 1, 0
  %v1217 = vsel %vm1201, 1, 0
  %v1218 = vsel %vm1202, 1, 0
  %v1219 = vsel %vm1203, 1, 0
  %v1220 = vsel %vm1204, 1, 0
  %v1221 = vsel %vm1205, 1, 0
  %v1222 = vsel %vm1206, 1, 0
  %vm1223 = vcmp.eq.s32.totalorder %v1207, 1
  %vm1224 = vcmp.eq.s32.totalorder %v1208, 1
  %vm1225 = vcmp.eq.s32.totalorder %v1209, 1
  %vm1226 = vcmp.eq.s32.totalorder %v1210, 1
  %vm1227 = vcmp.eq.s32.totalorder %v1211, 1
  %vm1228 = vcmp.eq.s32.totalorder %v1212, 1
  %vm1229 = vcmp.eq.s32.totalorder %v1213, 1
  %vm1230 = vcmp.eq.s32.totalorder %v1214, 1
  %vm1231 = vcmp.eq.s32.totalorder %v1215, 1
  %vm1232 = vcmp.eq.s32.totalorder %v1216, 1
  %vm1233 = vcmp.eq.s32.totalorder %v1217, 1
  %vm1234 = vcmp.eq.s32.totalorder %v1218, 1
  %vm1235 = vcmp.eq.s32.totalorder %v1219, 1
  %vm1236 = vcmp.eq.s32.totalorder %v1220, 1
  %vm1237 = vcmp.eq.s32.totalorder %v1221, 1
  %vm1238 = vcmp.eq.s32.totalorder %v1222, 1
  %vm1239 = vmpackc.low %vm1224, %vm1223
  %vm1240 = vmpackc.low %vm1226, %vm1225
  %vm1241 = vmpackc.low %vm1228, %vm1227
  %vm1242 = vmpackc.low %vm1230, %vm1229
  %vm1243 = vmpackc.low %vm1232, %vm1231
  %vm1244 = vmpackc.low %vm1234, %vm1233
  %vm1245 = vmpackc.low %vm1236, %vm1235
  %vm1246 = vmpackc.low %vm1238, %vm1237
  %v1247 = vsel %vm1239, 65537, 0
  %v1248 = vsel %vm1240, 65537, 0
  %v1249 = vsel %vm1241, 65537, 0
  %v1250 = vsel %vm1242, 65537, 0
  %v1251 = vsel %vm1243, 65537, 0
  %v1252 = vsel %vm1244, 65537, 0
  %v1253 = vsel %vm1245, 65537, 0
  %v1254 = vsel %vm1246, 65537, 0
  %1255 = vrot.lane.b32.xlu0 %v1247, 2
  %v1256 = vpop.permute.xlu0 %1255
  %1257 = vrot.lane.b32.xlu0 %v1248, 2
  %v1258 = vpop.permute.xlu0 %1257
  %1259 = vrot.lane.b32.xlu0 %v1249, 2
  %v1260 = vpop.permute.xlu0 %1259
  %1261 = vrot.lane.b32.xlu0 %v1250, 2
  %v1262 = vpop.permute.xlu0 %1261
  %1263 = vrot.lane.b32.xlu0 %v1251, 2
  %v1264 = vpop.permute.xlu0 %1263
  %1265 = vrot.lane.b32.xlu0 %v1252, 2
  %v1266 = vpop.permute.xlu0 %1265
  %1267 = vrot.lane.b32.xlu0 %v1253, 2
  %v1268 = vpop.permute.xlu0 %1267
  %1269 = vrot.lane.b32.xlu0 %v1254, 2
  %v1270 = vpop.permute.xlu0 %1269
  %v1271 = vrot.slane %v1256, 4
  %v1272 = vrot.slane %v1258, 4
  %v1273 = vrot.slane %v1260, 4
  %v1274 = vrot.slane %v1262, 4
  %v1275 = vrot.slane %v1264, 4
  %v1276 = vrot.slane %v1266, 4
  %v1277 = vrot.slane %v1268, 4
  %v1278 = vrot.slane %v1270, 4
  %v1279 = vsel %vm1157, %v1271, %v1256
  %v1280 = vsel %vm250, %v1271, %v1272
  %v1281 = vsel %vm1157, %v1280, %v1258
  %v1282 = vsel %vm250, %v1272, %v1273
  %v1283 = vsel %vm1157, %v1282, %v1260
  %v1284 = vsel %vm250, %v1273, %v1274
  %v1285 = vsel %vm1157, %v1284, %v1262
  %v1286 = vsel %vm250, %v1274, %v1275
  %v1287 = vsel %vm1157, %v1286, %v1264
  %v1288 = vsel %vm250, %v1275, %v1276
  %v1289 = vsel %vm1157, %v1288, %v1266
  %v1290 = vsel %vm250, %v1276, %v1277
  %v1291 = vsel %vm1157, %v1290, %v1268
  %v1292 = vsel %vm250, %v1277, %v1278
  %v1293 = vsel %vm1157, %v1292, %v1270
  %vm1294 = vcmp.ne.s16.totalorder %v1279, 0
  %vm1295 = vcmp.ne.s16.totalorder %v1281, 0
  %vm1296 = vcmp.ne.s16.totalorder %v1283, 0
  %vm1297 = vcmp.ne.s16.totalorder %v1285, 0
  %vm1298 = vcmp.ne.s16.totalorder %v1287, 0
  %vm1299 = vcmp.ne.s16.totalorder %v1289, 0
  %vm1300 = vcmp.ne.s16.totalorder %v1291, 0
  %vm1301 = vcmp.ne.s16.totalorder %v1293, 0
  %vm1302 = vcmp.ne.s16.totalorder %v1278, 0
  %v1303 = vsel %vm1294, %v1182, 0
  %v1304 = vsel %vm1295, %v1183, 0
  %v1305 = vsel %vm1296, %v1184, 0
  %v1306 = vsel %vm1297, %v1185, 0
  %v1307 = vsel %vm1298, %v1186, 0
  %v1308 = vsel %vm1299, %v1187, 0
  %v1309 = vsel %vm1300, %v1188, 0
  %v1310 = vsel %vm1301, %v1189, 0
  %v1311 = vsel %vm1302, %v1190, 0
  %1312 = vrot.lane.b32.xlu0 %v1247, 34
  %v1313 = vpop.permute.xlu0 %1312
  %1314 = vrot.lane.b32.xlu0 %v1248, 34
  %v1315 = vpop.permute.xlu0 %1314
  %1316 = vrot.lane.b32.xlu0 %v1249, 34
  %v1317 = vpop.permute.xlu0 %1316
  %1318 = vrot.lane.b32.xlu0 %v1250, 34
  %v1319 = vpop.permute.xlu0 %1318
  %1320 = vrot.lane.b32.xlu0 %v1251, 34
  %v1321 = vpop.permute.xlu0 %1320
  %1322 = vrot.lane.b32.xlu0 %v1252, 34
  %v1323 = vpop.permute.xlu0 %1322
  %1324 = vrot.lane.b32.xlu0 %v1253, 34
  %v1325 = vpop.permute.xlu0 %1324
  %1326 = vrot.lane.b32.xlu0 %v1254, 34
  %v1327 = vpop.permute.xlu0 %1326
  %v1328 = vrot.slane %v1313, 4
  %v1329 = vrot.slane %v1315, 4
  %v1330 = vrot.slane %v1317, 4
  %v1331 = vrot.slane %v1319, 4
  %v1332 = vrot.slane %v1321, 4
  %v1333 = vrot.slane %v1323, 4
  %v1334 = vrot.slane %v1325, 4
  %v1335 = vrot.slane %v1327, 4
  %vm1336 = vcmask 277504
  %v1337 = vsel %vm1336, %v1328, %v1313
  %v1338 = vsel %vm250, %v1328, %v1329
  %v1339 = vsel %vm1336, %v1338, %v1315
  %v1340 = vsel %vm250, %v1329, %v1330
  %v1341 = vsel %vm1336, %v1340, %v1317
  %v1342 = vsel %vm250, %v1330, %v1331
  %v1343 = vsel %vm1336, %v1342, %v1319
  %v1344 = vsel %vm250, %v1331, %v1332
  %v1345 = vsel %vm1336, %v1344, %v1321
  %v1346 = vsel %vm250, %v1332, %v1333
  %v1347 = vsel %vm1336, %v1346, %v1323
  %v1348 = vsel %vm250, %v1333, %v1334
  %v1349 = vsel %vm1336, %v1348, %v1325
  %v1350 = vsel %vm250, %v1334, %v1335
  %v1351 = vsel %vm1336, %v1350, %v1327
  %vm1352 = vcmp.ne.s16.totalorder %v1337, 0
  %vm1353 = vcmp.ne.s16.totalorder %v1339, 0
  %vm1354 = vcmp.ne.s16.totalorder %v1341, 0
  %vm1355 = vcmp.ne.s16.totalorder %v1343, 0
  %vm1356 = vcmp.ne.s16.totalorder %v1345, 0
  %vm1357 = vcmp.ne.s16.totalorder %v1347, 0
  %vm1358 = vcmp.ne.s16.totalorder %v1349, 0
  %vm1359 = vcmp.ne.s16.totalorder %v1351, 0
  %vm1360 = vcmp.ne.s16.totalorder %v1335, 0
  %v1361 = vsel %vm1352, %v79, 0
  %v1362 = vsel %vm1353, %v80, 0
  %v1363 = vsel %vm1354, %v81, 0
  %v1364 = vsel %vm1355, %v82, 0
  %v1365 = vsel %vm1356, %v83, 0
  %v1366 = vsel %vm1357, %v84, 0
  %v1367 = vsel %vm1358, %v85, 0
  %v1368 = vsel %vm1359, %v86, 0
  %v1369 = vsel %vm1360, %v215, 0
  %v1379 = vunpack.c.l.b16 %v1303
  %v1380 = vunpack.c.h.b16 %v1303
  %v1381 = vunpack.c.l.b16 %v1304
  %v1382 = vunpack.c.h.b16 %v1304
  %v1383 = vunpack.c.l.b16 %v1305
  %v1384 = vunpack.c.h.b16 %v1305
  %v1385 = vunpack.c.l.b16 %v1306
  %v1386 = vunpack.c.h.b16 %v1306
  %v1387 = vunpack.c.l.b16 %v1307
  %v1388 = vunpack.c.h.b16 %v1307
  %v1389 = vunpack.c.l.b16 %v1308
  %v1390 = vunpack.c.h.b16 %v1308
  %v1391 = vunpack.c.l.b16 %v1309
  %v1392 = vunpack.c.h.b16 %v1309
  %v1393 = vunpack.c.l.b16 %v1310
  %v1394 = vunpack.c.h.b16 %v1310
  %v1395 = vunpack.c.l.b16 %v1311
  %v1396 = vpack.c.b16 %v1379, %v1379
  %v1397 = vpack.c.b16 %v1380, %v1380
  %v1398 = vpack.c.b16 %v1381, %v1381
  %v1399 = vpack.c.b16 %v1382, %v1382
  %v1400 = vpack.c.b16 %v1383, %v1383
  %v1401 = vpack.c.b16 %v1384, %v1384
  %v1402 = vpack.c.b16 %v1385, %v1385
  %v1403 = vpack.c.b16 %v1386, %v1386
  %v1404 = vpack.c.b16 %v1387, %v1387
  %v1405 = vpack.c.b16 %v1388, %v1388
  %v1406 = vpack.c.b16 %v1389, %v1389
  %v1407 = vpack.c.b16 %v1390, %v1390
  %v1408 = vpack.c.b16 %v1391, %v1391
  %v1409 = vpack.c.b16 %v1392, %v1392
  %v1410 = vpack.c.b16 %v1393, %v1393
  %v1411 = vpack.c.b16 %v1394, %v1394
  %v1412 = vpack.c.b16 %v1395, %v1395
  %1413 = vrot.lane.b32.xlu0 %v1396, 127
  %v1414 = vpop.permute.xlu0 %1413
  %1415 = vrot.lane.b32.xlu0 %v1397, 127
  %v1416 = vpop.permute.xlu0 %1415
  %1417 = vrot.lane.b32.xlu0 %v1398, 127
  %v1418 = vpop.permute.xlu0 %1417
  %1419 = vrot.lane.b32.xlu0 %v1399, 127
  %v1420 = vpop.permute.xlu0 %1419
  %1421 = vrot.lane.b32.xlu0 %v1400, 127
  %v1422 = vpop.permute.xlu0 %1421
  %1423 = vrot.lane.b32.xlu0 %v1401, 127
  %v1424 = vpop.permute.xlu0 %1423
  %1425 = vrot.lane.b32.xlu0 %v1402, 127
  %v1426 = vpop.permute.xlu0 %1425
  %1427 = vrot.lane.b32.xlu0 %v1403, 127
  %v1428 = vpop.permute.xlu0 %1427
  %1429 = vrot.lane.b32.xlu0 %v1404, 127
  %v1430 = vpop.permute.xlu0 %1429
  %1431 = vrot.lane.b32.xlu0 %v1405, 127
  %v1432 = vpop.permute.xlu0 %1431
  %1433 = vrot.lane.b32.xlu0 %v1406, 127
  %v1434 = vpop.permute.xlu0 %1433
  %1435 = vrot.lane.b32.xlu0 %v1407, 127
  %v1436 = vpop.permute.xlu0 %1435
  %1437 = vrot.lane.b32.xlu0 %v1408, 127
  %v1438 = vpop.permute.xlu0 %1437
  %1439 = vrot.lane.b32.xlu0 %v1409, 127
  %v1440 = vpop.permute.xlu0 %1439
  %1441 = vrot.lane.b32.xlu0 %v1410, 127
  %v1442 = vpop.permute.xlu0 %1441
  %1443 = vrot.lane.b32.xlu0 %v1411, 127
  %v1444 = vpop.permute.xlu0 %1443
  %1445 = vrot.lane.b32.xlu0 %v1412, 127
  %v1446 = vpop.permute.xlu0 %1445
  %v1447 = vsel %vm466, %v1414, %v1416
  %v1448 = vsel %vm466, %v1416, %v1418
  %v1449 = vsel %vm466, %v1418, %v1420
  %v1450 = vsel %vm466, %v1420, %v1422
  %v1451 = vsel %vm466, %v1422, %v1424
  %v1452 = vsel %vm466, %v1424, %v1426
  %v1453 = vsel %vm466, %v1426, %v1428
  %v1454 = vsel %vm466, %v1428, %v1430
  %v1455 = vsel %vm466, %v1430, %v1432
  %v1456 = vsel %vm466, %v1432, %v1434
  %v1457 = vsel %vm466, %v1434, %v1436
  %v1458 = vsel %vm466, %v1436, %v1438
  %v1459 = vsel %vm466, %v1438, %v1440
  %v1460 = vsel %vm466, %v1440, %v1442
  %v1461 = vsel %vm466, %v1442, %v1444
  %v1462 = vsel %vm466, %v1444, %v1446
  %1463 = vrot.lane.b32.xlu0 %v603, 96
  %v1464 = vpop.permute.xlu0 %1463
  %1465 = vrot.lane.b32.xlu0 %v604, 96
  %v1466 = vpop.permute.xlu0 %1465
  %1467 = vrot.lane.b32.xlu0 %v605, 96
  %v1468 = vpop.permute.xlu0 %1467
  %1469 = vrot.lane.b32.xlu0 %v606, 96
  %v1470 = vpop.permute.xlu0 %1469
  %1471 = vrot.lane.b32.xlu0 %v607, 96
  %v1472 = vpop.permute.xlu0 %1471
  %1473 = vrot.lane.b32.xlu0 %v608, 96
  %v1474 = vpop.permute.xlu0 %1473
  %1475 = vrot.lane.b32.xlu0 %v609, 96
  %v1476 = vpop.permute.xlu0 %1475
  %1477 = vrot.lane.b32.xlu0 %v610, 96
  %v1478 = vpop.permute.xlu0 %1477
  %1479 = vrot.lane.b32.xlu0 %v611, 96
  %v1480 = vpop.permute.xlu0 %1479
  %1481 = vrot.lane.b32.xlu0 %v612, 96
  %v1482 = vpop.permute.xlu0 %1481
  %1483 = vrot.lane.b32.xlu0 %v613, 96
  %v1484 = vpop.permute.xlu0 %1483
  %1485 = vrot.lane.b32.xlu0 %v614, 96
  %v1486 = vpop.permute.xlu0 %1485
  %1487 = vrot.lane.b32.xlu0 %v615, 96
  %v1488 = vpop.permute.xlu0 %1487
  %1489 = vrot.lane.b32.xlu0 %v616, 96
  %v1490 = vpop.permute.xlu0 %1489
  %1491 = vrot.lane.b32.xlu0 %v617, 96
  %v1492 = vpop.permute.xlu0 %1491
  %1493 = vrot.lane.b32.xlu0 %v618, 96
  %v1494 = vpop.permute.xlu0 %1493
  %1495 = vrot.lane.b32.xlu0 %v619, 96
  %v1496 = vpop.permute.xlu0 %1495
  %v1497 = vsel %vm560, %v1464, %v1466
  %v1498 = vsel %vm560, %v1466, %v1468
  %v1499 = vsel %vm560, %v1468, %v1470
  %v1500 = vsel %vm560, %v1470, %v1472
  %v1501 = vsel %vm560, %v1472, %v1474
  %v1502 = vsel %vm560, %v1474, %v1476
  %v1503 = vsel %vm560, %v1476, %v1478
  %v1504 = vsel %vm560, %v1478, %v1480
  %v1505 = vsel %vm560, %v1480, %v1482
  %v1506 = vsel %vm560, %v1482, %v1484
  %v1507 = vsel %vm560, %v1484, %v1486
  %v1508 = vsel %vm560, %v1486, %v1488
  %v1509 = vsel %vm560, %v1488, %v1490
  %v1510 = vsel %vm560, %v1490, %v1492
  %v1511 = vsel %vm560, %v1492, %v1494
  %v1512 = vsel %vm560, %v1494, %v1496
  %v1522 = vunpack.c.l.b16 %v1361
  %v1523 = vunpack.c.h.b16 %v1361
  %v1524 = vunpack.c.l.b16 %v1362
  %v1525 = vunpack.c.h.b16 %v1362
  %v1526 = vunpack.c.l.b16 %v1363
  %v1527 = vunpack.c.h.b16 %v1363
  %v1528 = vunpack.c.l.b16 %v1364
  %v1529 = vunpack.c.h.b16 %v1364
  %v1530 = vunpack.c.l.b16 %v1365
  %v1531 = vunpack.c.h.b16 %v1365
  %v1532 = vunpack.c.l.b16 %v1366
  %v1533 = vunpack.c.h.b16 %v1366
  %v1534 = vunpack.c.l.b16 %v1367
  %v1535 = vunpack.c.h.b16 %v1367
  %v1536 = vunpack.c.l.b16 %v1368
  %v1537 = vunpack.c.h.b16 %v1368
  %v1538 = vunpack.c.l.b16 %v1369
  %v1539 = vpack.c.b16 %v1522, %v1522
  %v1540 = vpack.c.b16 %v1523, %v1523
  %v1541 = vpack.c.b16 %v1524, %v1524
  %v1542 = vpack.c.b16 %v1525, %v1525
  %v1543 = vpack.c.b16 %v1526, %v1526
  %v1544 = vpack.c.b16 %v1527, %v1527
  %v1545 = vpack.c.b16 %v1528, %v1528
  %v1546 = vpack.c.b16 %v1529, %v1529
  %v1547 = vpack.c.b16 %v1530, %v1530
  %v1548 = vpack.c.b16 %v1531, %v1531
  %v1549 = vpack.c.b16 %v1532, %v1532
  %v1550 = vpack.c.b16 %v1533, %v1533
  %v1551 = vpack.c.b16 %v1534, %v1534
  %v1552 = vpack.c.b16 %v1535, %v1535
  %v1553 = vpack.c.b16 %v1536, %v1536
  %v1554 = vpack.c.b16 %v1537, %v1537
  %v1555 = vpack.c.b16 %v1538, %v1538
  %1556 = vrot.lane.b32.xlu0 %v1539, 95
  %v1557 = vpop.permute.xlu0 %1556
  %1558 = vrot.lane.b32.xlu0 %v1540, 95
  %v1559 = vpop.permute.xlu0 %1558
  %1560 = vrot.lane.b32.xlu0 %v1541, 95
  %v1561 = vpop.permute.xlu0 %1560
  %1562 = vrot.lane.b32.xlu0 %v1542, 95
  %v1563 = vpop.permute.xlu0 %1562
  %1564 = vrot.lane.b32.xlu0 %v1543, 95
  %v1565 = vpop.permute.xlu0 %1564
  %1566 = vrot.lane.b32.xlu0 %v1544, 95
  %v1567 = vpop.permute.xlu0 %1566
  %1568 = vrot.lane.b32.xlu0 %v1545, 95
  %v1569 = vpop.permute.xlu0 %1568
  %1570 = vrot.lane.b32.xlu0 %v1546, 95
  %v1571 = vpop.permute.xlu0 %1570
  %1572 = vrot.lane.b32.xlu0 %v1547, 95
  %v1573 = vpop.permute.xlu0 %1572
  %1574 = vrot.lane.b32.xlu0 %v1548, 95
  %v1575 = vpop.permute.xlu0 %1574
  %1576 = vrot.lane.b32.xlu0 %v1549, 95
  %v1577 = vpop.permute.xlu0 %1576
  %1578 = vrot.lane.b32.xlu0 %v1550, 95
  %v1579 = vpop.permute.xlu0 %1578
  %1580 = vrot.lane.b32.xlu0 %v1551, 95
  %v1581 = vpop.permute.xlu0 %1580
  %1582 = vrot.lane.b32.xlu0 %v1552, 95
  %v1583 = vpop.permute.xlu0 %1582
  %1584 = vrot.lane.b32.xlu0 %v1553, 95
  %v1585 = vpop.permute.xlu0 %1584
  %1586 = vrot.lane.b32.xlu0 %v1554, 95
  %v1587 = vpop.permute.xlu0 %1586
  %1588 = vrot.lane.b32.xlu0 %v1555, 95
  %v1589 = vpop.permute.xlu0 %1588
  %v1590 = vsel %vm654, %v1557, %v1559
  %v1591 = vsel %vm654, %v1559, %v1561
  %v1592 = vsel %vm654, %v1561, %v1563
  %v1593 = vsel %vm654, %v1563, %v1565
  %v1594 = vsel %vm654, %v1565, %v1567
  %v1595 = vsel %vm654, %v1567, %v1569
  %v1596 = vsel %vm654, %v1569, %v1571
  %v1597 = vsel %vm654, %v1571, %v1573
  %v1598 = vsel %vm654, %v1573, %v1575
  %v1599 = vsel %vm654, %v1575, %v1577
  %v1600 = vsel %vm654, %v1577, %v1579
  %v1601 = vsel %vm654, %v1579, %v1581
  %v1602 = vsel %vm654, %v1581, %v1583
  %v1603 = vsel %vm654, %v1583, %v1585
  %v1604 = vsel %vm654, %v1585, %v1587
  %v1605 = vsel %vm654, %v1587, %v1589
  %v1608 = vsel %vm671, %v415, %v1447
  %v1611 = vsel %vm671, %v416, %v1448
  %v1614 = vsel %vm671, %v417, %v1449
  %v1617 = vsel %vm671, %v418, %v1450
  %v1620 = vsel %vm671, %v419, %v1451
  %v1623 = vsel %vm671, %v420, %v1452
  %v1626 = vsel %vm671, %v421, %v1453
  %v1629 = vsel %vm671, %v422, %v1454
  %v1632 = vsel %vm671, %v423, %v1455
  %v1635 = vsel %vm671, %v424, %v1456
  %v1638 = vsel %vm671, %v425, %v1457
  %v1641 = vsel %vm671, %v426, %v1458
  %v1644 = vsel %vm671, %v427, %v1459
  %v1647 = vsel %vm671, %v428, %v1460
  %v1650 = vsel %vm671, %v429, %v1461
  %v1653 = vsel %vm671, %v430, %v1462
  %v1656 = vsel %vm671, %v431, %v1446
  %v1659 = vsel %vm671, %v1497, %v1590
  %v1662 = vsel %vm671, %v1498, %v1591
  %v1665 = vsel %vm671, %v1499, %v1592
  %v1668 = vsel %vm671, %v1500, %v1593
  %v1671 = vsel %vm671, %v1501, %v1594
  %v1674 = vsel %vm671, %v1502, %v1595
  %v1677 = vsel %vm671, %v1503, %v1596
  %v1680 = vsel %vm671, %v1504, %v1597
  %v1683 = vsel %vm671, %v1505, %v1598
  %v1686 = vsel %vm671, %v1506, %v1599
  %v1689 = vsel %vm671, %v1507, %v1600
  %v1692 = vsel %vm671, %v1508, %v1601
  %v1695 = vsel %vm671, %v1509, %v1602
  %v1698 = vsel %vm671, %v1510, %v1603
  %v1701 = vsel %vm671, %v1511, %v1604
  %v1704 = vsel %vm671, %v1512, %v1605
  %v1707 = vsel %vm671, %v1496, %v1589
  %s1708 = scalar_lea.vmem %s1, 2
  %v1709 = vld [vmem:[%s1708] sm:$0x3]
  %1744 = vrot.lane.b32.xlu0 %v1608, 127
  %v1745 = vpop.permute.xlu0 %1744
  %1746 = vrot.lane.b32.xlu0 %v1611, 127
  %v1747 = vpop.permute.xlu0 %1746
  %1748 = vrot.lane.b32.xlu0 %v1614, 127
  %v1749 = vpop.permute.xlu0 %1748
  %1750 = vrot.lane.b32.xlu0 %v1617, 127
  %v1751 = vpop.permute.xlu0 %1750
  %1752 = vrot.lane.b32.xlu0 %v1620, 127
  %v1753 = vpop.permute.xlu0 %1752
  %1754 = vrot.lane.b32.xlu0 %v1623, 127
  %v1755 = vpop.permute.xlu0 %1754
  %1756 = vrot.lane.b32.xlu0 %v1626, 127
  %v1757 = vpop.permute.xlu0 %1756
  %1758 = vrot.lane.b32.xlu0 %v1629, 127
  %v1759 = vpop.permute.xlu0 %1758
  %1760 = vrot.lane.b32.xlu0 %v1632, 127
  %v1761 = vpop.permute.xlu0 %1760
  %1762 = vrot.lane.b32.xlu0 %v1635, 127
  %v1763 = vpop.permute.xlu0 %1762
  %1764 = vrot.lane.b32.xlu0 %v1638, 127
  %v1765 = vpop.permute.xlu0 %1764
  %1766 = vrot.lane.b32.xlu0 %v1641, 127
  %v1767 = vpop.permute.xlu0 %1766
  %1768 = vrot.lane.b32.xlu0 %v1644, 127
  %v1769 = vpop.permute.xlu0 %1768
  %1770 = vrot.lane.b32.xlu0 %v1647, 127
  %v1771 = vpop.permute.xlu0 %1770
  %1772 = vrot.lane.b32.xlu0 %v1650, 127
  %v1773 = vpop.permute.xlu0 %1772
  %1774 = vrot.lane.b32.xlu0 %v1653, 127
  %v1775 = vpop.permute.xlu0 %1774
  %1776 = vrot.lane.b32.xlu0 %v1656, 127
  %v1777 = vpop.permute.xlu0 %1776
  %1778 = vrot.lane.b32.xlu0 %v1659, 127
  %v1779 = vpop.permute.xlu0 %1778
  %1780 = vrot.lane.b32.xlu0 %v1662, 127
  %v1781 = vpop.permute.xlu0 %1780
  %1782 = vrot.lane.b32.xlu0 %v1665, 127
  %v1783 = vpop.permute.xlu0 %1782
  %1784 = vrot.lane.b32.xlu0 %v1668, 127
  %v1785 = vpop.permute.xlu0 %1784
  %1786 = vrot.lane.b32.xlu0 %v1671, 127
  %v1787 = vpop.permute.xlu0 %1786
  %1788 = vrot.lane.b32.xlu0 %v1674, 127
  %v1789 = vpop.permute.xlu0 %1788
  %1790 = vrot.lane.b32.xlu0 %v1677, 127
  %v1791 = vpop.permute.xlu0 %1790
  %1792 = vrot.lane.b32.xlu0 %v1680, 127
  %v1793 = vpop.permute.xlu0 %1792
  %1794 = vrot.lane.b32.xlu0 %v1683, 127
  %v1795 = vpop.permute.xlu0 %1794
  %1796 = vrot.lane.b32.xlu0 %v1686, 127
  %v1797 = vpop.permute.xlu0 %1796
  %1798 = vrot.lane.b32.xlu0 %v1689, 127
  %v1799 = vpop.permute.xlu0 %1798
  %1800 = vrot.lane.b32.xlu0 %v1692, 127
  %v1801 = vpop.permute.xlu0 %1800
  %1802 = vrot.lane.b32.xlu0 %v1695, 127
  %v1803 = vpop.permute.xlu0 %1802
  %1804 = vrot.lane.b32.xlu0 %v1698, 127
  %v1805 = vpop.permute.xlu0 %1804
  %1806 = vrot.lane.b32.xlu0 %v1701, 127
  %v1807 = vpop.permute.xlu0 %1806
  %1808 = vrot.lane.b32.xlu0 %v1704, 127
  %v1809 = vpop.permute.xlu0 %1808
  %1810 = vrot.lane.b32.xlu0 %v1707, 127
  %v1811 = vpop.permute.xlu0 %1810
  %v1812 = vsel %vm466, %v1745, %v1747
  %v1813 = vsel %vm466, %v1747, %v1749
  %v1814 = vsel %vm466, %v1749, %v1751
  %v1815 = vsel %vm466, %v1751, %v1753
  %v1816 = vsel %vm466, %v1753, %v1755
  %v1817 = vsel %vm466, %v1755, %v1757
  %v1818 = vsel %vm466, %v1757, %v1759
  %v1819 = vsel %vm466, %v1759, %v1761
  %v1820 = vsel %vm466, %v1761, %v1763
  %v1821 = vsel %vm466, %v1763, %v1765
  %v1822 = vsel %vm466, %v1765, %v1767
  %v1823 = vsel %vm466, %v1767, %v1769
  %v1824 = vsel %vm466, %v1769, %v1771
  %v1825 = vsel %vm466, %v1771, %v1773
  %v1826 = vsel %vm466, %v1773, %v1775
  %v1827 = vsel %vm466, %v1775, %v1777
  %v1828 = vsel %vm466, %v1779, %v1781
  %v1829 = vsel %vm466, %v1781, %v1783
  %v1830 = vsel %vm466, %v1783, %v1785
  %v1831 = vsel %vm466, %v1785, %v1787
  %v1832 = vsel %vm466, %v1787, %v1789
  %v1833 = vsel %vm466, %v1789, %v1791
  %v1834 = vsel %vm466, %v1791, %v1793
  %v1835 = vsel %vm466, %v1793, %v1795
  %v1836 = vsel %vm466, %v1795, %v1797
  %v1837 = vsel %vm466, %v1797, %v1799
  %v1838 = vsel %vm466, %v1799, %v1801
  %v1839 = vsel %vm466, %v1801, %v1803
  %v1840 = vsel %vm466, %v1803, %v1805
  %v1841 = vsel %vm466, %v1805, %v1807
  %v1842 = vsel %vm466, %v1807, %v1809
  %v1843 = vsel %vm466, %v1809, %v1811
  %v1877 = vsel %vm801, %v1709, 0
  %1879 = vmatprep.subr.bf16.mxu0 %v1813
  %1880 = vmatpush1.bf16.msra.mxu0 %v1812
  %1881 = vmatprep.subr.bf16.mxu0 %v1829
  %1882 = vmatpush1.bf16.msra.mxu0 %v1828
  %1883 = vmatprep.subr.bf16.mxu0 0
  %1884 = vmatpush1.bf16.msra.mxu0 0
  %1885 = vmatprep.subr.bf16.mxu0 0
  %1886 = vmatpush1.bf16.msra.mxu0 0
  %1887 = vmatprep.subr.bf16.mxu0 0
  %1888 = vmatpush1.bf16.msra.mxu0 0
  %1889 = vmatprep.subr.bf16.mxu0 0
  %1890 = vmatpush1.bf16.msra.mxu0 0
  %1891 = vmatprep.subr.bf16.mxu0 0
  %1892 = vmatpush1.bf16.msra.mxu0 0
  %1893 = vmatprep.subr.bf16.mxu0 0
  %1894 = vmatpush1.bf16.msra.mxu0 0
  %1895 = vmatprep.subr.bf16.mxu0 0
  %1896 = vmatpush1.bf16.msra.mxu0 0
  %1897 = vmatprep.subr.bf16.mxu0 0
  %1898 = vmatpush1.bf16.msra.mxu0 0
  %1899 = vmatprep.subr.bf16.mxu0 0
  %1900 = vmatpush1.bf16.msra.mxu0 0
  %1901 = vmatprep.subr.bf16.mxu0 0
  %1902 = vmatpush1.bf16.msra.mxu0 0
  %1903 = vmatprep.subr.bf16.mxu0 0
  %1904 = vmatpush1.bf16.msra.mxu0 0
  %1905 = vmatprep.subr.bf16.mxu0 0
  %1906 = vmatpush1.bf16.msra.mxu0 0
  %1907 = vmatprep.subr.bf16.mxu0 0
  %1908 = vmatpush1.bf16.msra.mxu0 0
  %1909 = vmatprep.subr.bf16.mxu0 0
  %1910 = vmatpush1.bf16.msra.mxu0 0
  %1911 = vmatprep.mubr.bf16.mxu0 0
  %1912 = vmatmul.mubr.bf16.gmra.mrb[0].mxu0 %v1877
  %v1913 = vpop.f32.mrb[0].mxu0
  %v1914 = vadd.f32 0.0, %v1913
  %v1915 = vpop.f32.mrb[0].mxu0
  %v1916 = vadd.f32 0.0, %v1915
  %v1917 = vpop.f32.mrb[0].mxu0
  %v1918 = vpop.f32.mrb[0].mxu0
  %1919 = vdwg.mxu0
  %1920 = vmatprep.subr.bf16.mxu0 %v1815
  %1921 = vmatpush1.bf16.msra.mxu0 %v1814
  %1922 = vmatprep.subr.bf16.mxu0 %v1831
  %1923 = vmatpush1.bf16.msra.mxu0 %v1830
  %1924 = vmatprep.subr.bf16.mxu0 0
  %1925 = vmatpush1.bf16.msra.mxu0 0
  %1926 = vmatprep.subr.bf16.mxu0 0
  %1927 = vmatpush1.bf16.msra.mxu0 0
  %1928 = vmatprep.subr.bf16.mxu0 0
  %1929 = vmatpush1.bf16.msra.mxu0 0
  %1930 = vmatprep.subr.bf16.mxu0 0
  %1931 = vmatpush1.bf16.msra.mxu0 0
  %1932 = vmatprep.subr.bf16.mxu0 0
  %1933 = vmatpush1.bf16.msra.mxu0 0
  %1934 = vmatprep.subr.bf16.mxu0 0
  %1935 = vmatpush1.bf16.msra.mxu0 0
  %1936 = vmatprep.subr.bf16.mxu0 0
  %1937 = vmatpush1.bf16.msra.mxu0 0
  %1938 = vmatprep.subr.bf16.mxu0 0
  %1939 = vmatpush1.bf16.msra.mxu0 0
  %1940 = vmatprep.subr.bf16.mxu0 0
  %1941 = vmatpush1.bf16.msra.mxu0 0
  %1942 = vmatprep.subr.bf16.mxu0 0
  %1943 = vmatpush1.bf16.msra.mxu0 0
  %1944 = vmatprep.subr.bf16.mxu0 0
  %1945 = vmatpush1.bf16.msra.mxu0 0
  %1946 = vmatprep.subr.bf16.mxu0 0
  %1947 = vmatpush1.bf16.msra.mxu0 0
  %1948 = vmatprep.subr.bf16.mxu0 0
  %1949 = vmatpush1.bf16.msra.mxu0 0
  %1950 = vmatprep.subr.bf16.mxu0 0
  %1951 = vmatpush1.bf16.msra.mxu0 0
  %1952 = vmatprep.mubr.bf16.mxu0 0
  %1953 = vmatmul.mubr.bf16.gmra.mrb[0].mxu0 %v1877
  %v1954 = vpop.f32.mrb[0].mxu0
  %v1955 = vadd.f32 0.0, %v1954
  %v1956 = vpop.f32.mrb[0].mxu0
  %v1957 = vadd.f32 0.0, %v1956
  %v1958 = vpop.f32.mrb[0].mxu0
  %v1959 = vpop.f32.mrb[0].mxu0
  %1960 = vdwg.mxu0
  %1961 = vmatprep.subr.bf16.mxu0 %v1817
  %1962 = vmatpush1.bf16.msra.mxu0 %v1816
  %1963 = vmatprep.subr.bf16.mxu0 %v1833
  %1964 = vmatpush1.bf16.msra.mxu0 %v1832
  %1965 = vmatprep.subr.bf16.mxu0 0
  %1966 = vmatpush1.bf16.msra.mxu0 0
  %1967 = vmatprep.subr.bf16.mxu0 0
  %1968 = vmatpush1.bf16.msra.mxu0 0
  %1969 = vmatprep.subr.bf16.mxu0 0
  %1970 = vmatpush1.bf16.msra.mxu0 0
  %1971 = vmatprep.subr.bf16.mxu0 0
  %1972 = vmatpush1.bf16.msra.mxu0 0
  %1973 = vmatprep.subr.bf16.mxu0 0
  %1974 = vmatpush1.bf16.msra.mxu0 0
  %1975 = vmatprep.subr.bf16.mxu0 0
  %1976 = vmatpush1.bf16.msra.mxu0 0
  %1977 = vmatprep.subr.bf16.mxu0 0
  %1978 = vmatpush1.bf16.msra.mxu0 0
  %1979 = vmatprep.subr.bf16.mxu0 0
  %1980 = vmatpush1.bf16.msra.mxu0 0
  %1981 = vmatprep.subr.bf16.mxu0 0
  %1982 = vmatpush1.bf16.msra.mxu0 0
  %1983 = vmatprep.subr.bf16.mxu0 0
  %1984 = vmatpush1.bf16.msra.mxu0 0
  %1985 = vmatprep.subr.bf16.mxu0 0
  %1986 = vmatpush1.bf16.msra.mxu0 0
  %1987 = vmatprep.subr.bf16.mxu0 0
  %1988 = vmatpush1.bf16.msra.mxu0 0
  %1989 = vmatprep.subr.bf16.mxu0 0
  %1990 = vmatpush1.bf16.msra.mxu0 0
  %1991 = vmatprep.subr.bf16.mxu0 0
  %1992 = vmatpush1.bf16.msra.mxu0 0
  %1993 = vmatprep.mubr.bf16.mxu0 0
  %1994 = vmatmul.mubr.bf16.gmra.mrb[0].mxu0 %v1877
  %v1995 = vpop.f32.mrb[0].mxu0
  %v1996 = vadd.f32 0.0, %v1995
  %v1997 = vpop.f32.mrb[0].mxu0
  %v1998 = vadd.f32 0.0, %v1997
  %v1999 = vpop.f32.mrb[0].mxu0
  %v2000 = vpop.f32.mrb[0].mxu0
  %2001 = vdwg.mxu0
  %2002 = vmatprep.subr.bf16.mxu0 %v1819
  %2003 = vmatpush1.bf16.msra.mxu0 %v1818
  %2004 = vmatprep.subr.bf16.mxu0 %v1835
  %2005 = vmatpush1.bf16.msra.mxu0 %v1834
  %2006 = vmatprep.subr.bf16.mxu0 0
  %2007 = vmatpush1.bf16.msra.mxu0 0
  %2008 = vmatprep.subr.bf16.mxu0 0
  %2009 = vmatpush1.bf16.msra.mxu0 0
  %2010 = vmatprep.subr.bf16.mxu0 0
  %2011 = vmatpush1.bf16.msra.mxu0 0
  %2012 = vmatprep.subr.bf16.mxu0 0
  %2013 = vmatpush1.bf16.msra.mxu0 0
  %2014 = vmatprep.subr.bf16.mxu0 0
  %2015 = vmatpush1.bf16.msra.mxu0 0
  %2016 = vmatprep.subr.bf16.mxu0 0
  %2017 = vmatpush1.bf16.msra.mxu0 0
  %2018 = vmatprep.subr.bf16.mxu0 0
  %2019 = vmatpush1.bf16.msra.mxu0 0
  %2020 = vmatprep.subr.bf16.mxu0 0
  %2021 = vmatpush1.bf16.msra.mxu0 0
  %2022 = vmatprep.subr.bf16.mxu0 0
  %2023 = vmatpush1.bf16.msra.mxu0 0
  %2024 = vmatprep.subr.bf16.mxu0 0
  %2025 = vmatpush1.bf16.msra.mxu0 0
  %2026 = vmatprep.subr.bf16.mxu0 0
  %2027 = vmatpush1.bf16.msra.mxu0 0
  %2028 = vmatprep.subr.bf16.mxu0 0
  %2029 = vmatpush1.bf16.msra.mxu0 0
  %2030 = vmatprep.subr.bf16.mxu0 0
  %2031 = vmatpush1.bf16.msra.mxu0 0
  %2032 = vmatprep.subr.bf16.mxu0 0
  %2033 = vmatpush1.bf16.msra.mxu0 0
  %2034 = vmatprep.mubr.bf16.mxu0 0
  %2035 = vmatmul.mubr.bf16.gmra.mrb[0].mxu0 %v1877
  %v2036 = vpop.f32.mrb[0].mxu0
  %v2037 = vadd.f32 0.0, %v2036
  %v2038 = vpop.f32.mrb[0].mxu0
  %v2039 = vadd.f32 0.0, %v2038
  %v2040 = vpop.f32.mrb[0].mxu0
  %v2041 = vpop.f32.mrb[0].mxu0
  %2042 = vdwg.mxu0
  %2043 = vmatprep.subr.bf16.mxu0 %v1821
  %2044 = vmatpush1.bf16.msra.mxu0 %v1820
  %2045 = vmatprep.subr.bf16.mxu0 %v1837
  %2046 = vmatpush1.bf16.msra.mxu0 %v1836
  %2047 = vmatprep.subr.bf16.mxu0 0
  %2048 = vmatpush1.bf16.msra.mxu0 0
  %2049 = vmatprep.subr.bf16.mxu0 0
  %2050 = vmatpush1.bf16.msra.mxu0 0
  %2051 = vmatprep.subr.bf16.mxu0 0
  %2052 = vmatpush1.bf16.msra.mxu0 0
  %2053 = vmatprep.subr.bf16.mxu0 0
  %2054 = vmatpush1.bf16.msra.mxu0 0
  %2055 = vmatprep.subr.bf16.mxu0 0
  %2056 = vmatpush1.bf16.msra.mxu0 0
  %2057 = vmatprep.subr.bf16.mxu0 0
  %2058 = vmatpush1.bf16.msra.mxu0 0
  %2059 = vmatprep.subr.bf16.mxu0 0
  %2060 = vmatpush1.bf16.msra.mxu0 0
  %2061 = vmatprep.subr.bf16.mxu0 0
  %2062 = vmatpush1.bf16.msra.mxu0 0
  %2063 = vmatprep.subr.bf16.mxu0 0
  %2064 = vmatpush1.bf16.msra.mxu0 0
  %2065 = vmatprep.subr.bf16.mxu0 0
  %2066 = vmatpush1.bf16.msra.mxu0 0
  %2067 = vmatprep.subr.bf16.mxu0 0
  %2068 = vmatpush1.bf16.msra.mxu0 0
  %2069 = vmatprep.subr.bf16.mxu0 0
  %2070 = vmatpush1.bf16.msra.mxu0 0
  %2071 = vmatprep.subr.bf16.mxu0 0
  %2072 = vmatpush1.bf16.msra.mxu0 0
  %2073 = vmatprep.subr.bf16.mxu0 0
  %2074 = vmatpush1.bf16.msra.mxu0 0
  %2075 = vmatprep.mubr.bf16.mxu0 0
  %2076 = vmatmul.mubr.bf16.gmra.mrb[0].mxu0 %v1877
  %v2077 = vpop.f32.mrb[0].mxu0
  %v2078 = vadd.f32 0.0, %v2077
  %v2079 = vpop.f32.mrb[0].mxu0
  %v2080 = vadd.f32 0.0, %v2079
  %v2081 = vpop.f32.mrb[0].mxu0
  %v2082 = vpop.f32.mrb[0].mxu0
  %2083 = vdwg.mxu0
  %2084 = vmatprep.subr.bf16.mxu0 %v1823
  %2085 = vmatpush1.bf16.msra.mxu0 %v1822
  %2086 = vmatprep.subr.bf16.mxu0 %v1839
  %2087 = vmatpush1.bf16.msra.mxu0 %v1838
  %2088 = vmatprep.subr.bf16.mxu0 0
  %2089 = vmatpush1.bf16.msra.mxu0 0
  %2090 = vmatprep.subr.bf16.mxu0 0
  %2091 = vmatpush1.bf16.msra.mxu0 0
  %2092 = vmatprep.subr.bf16.mxu0 0
  %2093 = vmatpush1.bf16.msra.mxu0 0
  %2094 = vmatprep.subr.bf16.mxu0 0
  %2095 = vmatpush1.bf16.msra.mxu0 0
  %2096 = vmatprep.subr.bf16.mxu0 0
  %2097 = vmatpush1.bf16.msra.mxu0 0
  %2098 = vmatprep.subr.bf16.mxu0 0
  %2099 = vmatpush1.bf16.msra.mxu0 0
  %2100 = vmatprep.subr.bf16.mxu0 0
  %2101 = vmatpush1.bf16.msra.mxu0 0
  %2102 = vmatprep.subr.bf16.mxu0 0
  %2103 = vmatpush1.bf16.msra.mxu0 0
  %2104 = vmatprep.subr.bf16.mxu0 0
  %2105 = vmatpush1.bf16.msra.mxu0 0
  %2106 = vmatprep.subr.bf16.mxu0 0
  %2107 = vmatpush1.bf16.msra.mxu0 0
  %2108 = vmatprep.subr.bf16.mxu0 0
  %2109 = vmatpush1.bf16.msra.mxu0 0
  %2110 = vmatprep.subr.bf16.mxu0 0
  %2111 = vmatpush1.bf16.msra.mxu0 0
  %2112 = vmatprep.subr.bf16.mxu0 0
  %2113 = vmatpush1.bf16.msra.mxu0 0
  %2114 = vmatprep.subr.bf16.mxu0 0
  %2115 = vmatpush1.bf16.msra.mxu0 0
  %2116 = vmatprep.mubr.bf16.mxu0 0
  %2117 = vmatmul.mubr.bf16.gmra.mrb[0].mxu0 %v1877
  %v2118 = vpop.f32.mrb[0].mxu0
  %v2119 = vadd.f32 0.0, %v2118
  %v2120 = vpop.f32.mrb[0].mxu0
  %v2121 = vadd.f32 0.0, %v2120
  %v2122 = vpop.f32.mrb[0].mxu0
  %v2123 = vpop.f32.mrb[0].mxu0
  %2124 = vdwg.mxu0
  %2125 = vmatprep.subr.bf16.mxu0 %v1825
  %2126 = vmatpush1.bf16.msra.mxu0 %v1824
  %2127 = vmatprep.subr.bf16.mxu0 %v1841
  %2128 = vmatpush1.bf16.msra.mxu0 %v1840
  %2129 = vmatprep.subr.bf16.mxu0 0
  %2130 = vmatpush1.bf16.msra.mxu0 0
  %2131 = vmatprep.subr.bf16.mxu0 0
  %2132 = vmatpush1.bf16.msra.mxu0 0
  %2133 = vmatprep.subr.bf16.mxu0 0
  %2134 = vmatpush1.bf16.msra.mxu0 0
  %2135 = vmatprep.subr.bf16.mxu0 0
  %2136 = vmatpush1.bf16.msra.mxu0 0
  %2137 = vmatprep.subr.bf16.mxu0 0
  %2138 = vmatpush1.bf16.msra.mxu0 0
  %2139 = vmatprep.subr.bf16.mxu0 0
  %2140 = vmatpush1.bf16.msra.mxu0 0
  %2141 = vmatprep.subr.bf16.mxu0 0
  %2142 = vmatpush1.bf16.msra.mxu0 0
  %2143 = vmatprep.subr.bf16.mxu0 0
  %2144 = vmatpush1.bf16.msra.mxu0 0
  %2145 = vmatprep.subr.bf16.mxu0 0
  %2146 = vmatpush1.bf16.msra.mxu0 0
  %2147 = vmatprep.subr.bf16.mxu0 0
  %2148 = vmatpush1.bf16.msra.mxu0 0
  %2149 = vmatprep.subr.bf16.mxu0 0
  %2150 = vmatpush1.bf16.msra.mxu0 0
  %2151 = vmatprep.subr.bf16.mxu0 0
  %2152 = vmatpush1.bf16.msra.mxu0 0
  %2153 = vmatprep.subr.bf16.mxu0 0
  %2154 = vmatpush1.bf16.msra.mxu0 0
  %2155 = vmatprep.subr.bf16.mxu0 0
  %2156 = vmatpush1.bf16.msra.mxu0 0
  %2157 = vmatprep.mubr.bf16.mxu0 0
  %2158 = vmatmul.mubr.bf16.gmra.mrb[0].mxu0 %v1877
  %v2159 = vpop.f32.mrb[0].mxu0
  %v2160 = vadd.f32 0.0, %v2159
  %v2161 = vpop.f32.mrb[0].mxu0
  %v2162 = vadd.f32 0.0, %v2161
  %v2163 = vpop.f32.mrb[0].mxu0
  %v2164 = vpop.f32.mrb[0].mxu0
  %2165 = vdwg.mxu0
  %2166 = vmatprep.subr.bf16.mxu0 %v1827
  %2167 = vmatpush1.bf16.msra.mxu0 %v1826
  %2168 = vmatprep.subr.bf16.mxu0 %v1843
  %2169 = vmatpush1.bf16.msra.mxu0 %v1842
  %2170 = vmatprep.subr.bf16.mxu0 0
  %2171 = vmatpush1.bf16.msra.mxu0 0
  %2172 = vmatprep.subr.bf16.mxu0 0
  %2173 = vmatpush1.bf16.msra.mxu0 0
  %2174 = vmatprep.subr.bf16.mxu0 0
  %2175 = vmatpush1.bf16.msra.mxu0 0
  %2176 = vmatprep.subr.bf16.mxu0 0
  %2177 = vmatpush1.bf16.msra.mxu0 0
  %2178 = vmatprep.subr.bf16.mxu0 0
  %2179 = vmatpush1.bf16.msra.mxu0 0
  %2180 = vmatprep.subr.bf16.mxu0 0
  %2181 = vmatpush1.bf16.msra.mxu0 0
  %2182 = vmatprep.subr.bf16.mxu0 0
  %2183 = vmatpush1.bf16.msra.mxu0 0
  %2184 = vmatprep.subr.bf16.mxu0 0
  %2185 = vmatpush1.bf16.msra.mxu0 0
  %2186 = vmatprep.subr.bf16.mxu0 0
  %2187 = vmatpush1.bf16.msra.mxu0 0
  %2188 = vmatprep.subr.bf16.mxu0 0
  %2189 = vmatpush1.bf16.msra.mxu0 0
  %2190 = vmatprep.subr.bf16.mxu0 0
  %2191 = vmatpush1.bf16.msra.mxu0 0
  %2192 = vmatprep.subr.bf16.mxu0 0
  %2193 = vmatpush1.bf16.msra.mxu0 0
  %2194 = vmatprep.subr.bf16.mxu0 0
  %2195 = vmatpush1.bf16.msra.mxu0 0
  %2196 = vmatprep.subr.bf16.mxu0 0
  %2197 = vmatpush1.bf16.msra.mxu0 0
  %2198 = vmatprep.mubr.bf16.mxu0 0
  %2199 = vmatmul.mubr.bf16.gmra.mrb[0].mxu0 %v1877
  %v2200 = vpop.f32.mrb[0].mxu0
  %v2201 = vadd.f32 0.0, %v2200
  %v2202 = vpop.f32.mrb[0].mxu0
  %v2203 = vadd.f32 0.0, %v2202
  %v2204 = vpop.f32.mrb[0].mxu0
  %v2205 = vpop.f32.mrb[0].mxu0
  %2206 = vdwg.mxu0
  %vm2207 = vcmp.ne.s32.totalorder %v63, 31
  %vm2208 = vcmp.ne.s32.totalorder %v64, 31
  %vm2209 = vcmp.ne.s32.totalorder %v65, 31
  %vm2210 = vcmp.ne.s32.totalorder %v66, 31
  %vm2211 = vcmp.ne.s32.totalorder %v67, 31
  %vm2212 = vcmp.ne.s32.totalorder %v68, 31
  %vm2213 = vcmp.ne.s32.totalorder %v69, 31
  %vm2214 = vcmp.ne.s32.totalorder %v70, 31
  %vm2215 = vcmp.ne.s32.totalorder %v71, 31
  %vm2216 = vcmp.ne.s32.totalorder %v72, 31
  %vm2217 = vcmp.ne.s32.totalorder %v73, 31
  %vm2218 = vcmp.ne.s32.totalorder %v74, 31
  %vm2219 = vcmp.ne.s32.totalorder %v75, 31
  %vm2220 = vcmp.ne.s32.totalorder %v76, 31
  %vm2221 = vcmp.ne.s32.totalorder %v77, 31
  %vm2222 = vcmp.ne.s32.totalorder %v78, 31
  %v2223 = vsel %vm2207, 1, 0
  %v2224 = vsel %vm2208, 1, 0
  %v2225 = vsel %vm2209, 1, 0
  %v2226 = vsel %vm2210, 1, 0
  %v2227 = vsel %vm2211, 1, 0
  %v2228 = vsel %vm2212, 1, 0
  %v2229 = vsel %vm2213, 1, 0
  %v2230 = vsel %vm2214, 1, 0
  %v2231 = vsel %vm2215, 1, 0
  %v2232 = vsel %vm2216, 1, 0
  %v2233 = vsel %vm2217, 1, 0
  %v2234 = vsel %vm2218, 1, 0
  %v2235 = vsel %vm2219, 1, 0
  %v2236 = vsel %vm2220, 1, 0
  %v2237 = vsel %vm2221, 1, 0
  %v2238 = vsel %vm2222, 1, 0
  %vm2239 = vcmp.eq.s32.totalorder %v2223, 1
  %vm2240 = vcmp.eq.s32.totalorder %v2224, 1
  %vm2241 = vcmp.eq.s32.totalorder %v2225, 1
  %vm2242 = vcmp.eq.s32.totalorder %v2226, 1
  %vm2243 = vcmp.eq.s32.totalorder %v2227, 1
  %vm2244 = vcmp.eq.s32.totalorder %v2228, 1
  %vm2245 = vcmp.eq.s32.totalorder %v2229, 1
  %vm2246 = vcmp.eq.s32.totalorder %v2230, 1
  %vm2247 = vcmp.eq.s32.totalorder %v2231, 1
  %vm2248 = vcmp.eq.s32.totalorder %v2232, 1
  %vm2249 = vcmp.eq.s32.totalorder %v2233, 1
  %vm2250 = vcmp.eq.s32.totalorder %v2234, 1
  %vm2251 = vcmp.eq.s32.totalorder %v2235, 1
  %vm2252 = vcmp.eq.s32.totalorder %v2236, 1
  %vm2253 = vcmp.eq.s32.totalorder %v2237, 1
  %vm2254 = vcmp.eq.s32.totalorder %v2238, 1
  %vm2255 = vmpackc.low %vm2240, %vm2239
  %vm2256 = vmpackc.low %vm2242, %vm2241
  %vm2257 = vmpackc.low %vm2244, %vm2243
  %vm2258 = vmpackc.low %vm2246, %vm2245
  %vm2259 = vmpackc.low %vm2248, %vm2247
  %vm2260 = vmpackc.low %vm2250, %vm2249
  %vm2261 = vmpackc.low %vm2252, %vm2251
  %vm2262 = vmpackc.low %vm2254, %vm2253
  %v2263 = vsel %vm2255, 65537, 0
  %v2264 = vsel %vm2256, 65537, 0
  %v2265 = vsel %vm2257, 65537, 0
  %v2266 = vsel %vm2258, 65537, 0
  %v2267 = vsel %vm2259, 65537, 0
  %v2268 = vsel %vm2260, 65537, 0
  %v2269 = vsel %vm2261, 65537, 0
  %v2270 = vsel %vm2262, 65537, 0
  %2271 = vrot.lane.b32.xlu0 %v2263, 64
  %v2272 = vpop.permute.xlu0 %2271
  %2273 = vrot.lane.b32.xlu0 %v2264, 64
  %v2274 = vpop.permute.xlu0 %2273
  %2275 = vrot.lane.b32.xlu0 %v2265, 64
  %v2276 = vpop.permute.xlu0 %2275
  %2277 = vrot.lane.b32.xlu0 %v2266, 64
  %v2278 = vpop.permute.xlu0 %2277
  %2279 = vrot.lane.b32.xlu0 %v2267, 64
  %v2280 = vpop.permute.xlu0 %2279
  %2281 = vrot.lane.b32.xlu0 %v2268, 64
  %v2282 = vpop.permute.xlu0 %2281
  %2283 = vrot.lane.b32.xlu0 %v2269, 64
  %v2284 = vpop.permute.xlu0 %2283
  %2285 = vrot.lane.b32.xlu0 %v2270, 64
  %v2286 = vpop.permute.xlu0 %2285
  %v2287 = vrot.slane %v2272, 4
  %v2288 = vrot.slane %v2274, 4
  %v2289 = vrot.slane %v2276, 4
  %v2290 = vrot.slane %v2278, 4
  %v2291 = vrot.slane %v2280, 4
  %v2292 = vrot.slane %v2282, 4
  %v2293 = vrot.slane %v2284, 4
  %v2294 = vrot.slane %v2286, 4
  %vm2295 = vcmask 523264
  %v2296 = vsel %vm2295, %v2287, %v2272
  %v2297 = vsel %vm250, %v2287, %v2288
  %v2298 = vsel %vm2295, %v2297, %v2274
  %v2299 = vsel %vm250, %v2288, %v2289
  %v2300 = vsel %vm2295, %v2299, %v2276
  %v2301 = vsel %vm250, %v2289, %v2290
  %v2302 = vsel %vm2295, %v2301, %v2278
  %v2303 = vsel %vm250, %v2290, %v2291
  %v2304 = vsel %vm2295, %v2303, %v2280
  %v2305 = vsel %vm250, %v2291, %v2292
  %v2306 = vsel %vm2295, %v2305, %v2282
  %v2307 = vsel %vm250, %v2292, %v2293
  %v2308 = vsel %vm2295, %v2307, %v2284
  %v2309 = vsel %vm250, %v2293, %v2294
  %v2310 = vsel %vm2295, %v2309, %v2286
  %vm2311 = vcmp.ne.s16.totalorder %v2296, 0
  %vm2312 = vcmp.ne.s16.totalorder %v2298, 0
  %vm2313 = vcmp.ne.s16.totalorder %v2300, 0
  %vm2314 = vcmp.ne.s16.totalorder %v2302, 0
  %vm2315 = vcmp.ne.s16.totalorder %v2304, 0
  %vm2316 = vcmp.ne.s16.totalorder %v2306, 0
  %vm2317 = vcmp.ne.s16.totalorder %v2308, 0
  %vm2318 = vcmp.ne.s16.totalorder %v2310, 0
  %vm2319 = vcmp.ne.s16.totalorder %v2294, 0
  %v2320 = vsel %vm2311, %v79, 0
  %v2321 = vsel %vm2312, %v80, 0
  %v2322 = vsel %vm2313, %v81, 0
  %v2323 = vsel %vm2314, %v82, 0
  %v2324 = vsel %vm2315, %v83, 0
  %v2325 = vsel %vm2316, %v84, 0
  %v2326 = vsel %vm2317, %v85, 0
  %v2327 = vsel %vm2318, %v86, 0
  %v2328 = vsel %vm2319, %v215, 0
  %2329 = vrot.lane.b32.xlu0 %v283, 64
  %v2330 = vpop.permute.xlu0 %2329
  %2331 = vrot.lane.b32.xlu0 %v284, 64
  %v2332 = vpop.permute.xlu0 %2331
  %2333 = vrot.lane.b32.xlu0 %v285, 64
  %v2334 = vpop.permute.xlu0 %2333
  %2335 = vrot.lane.b32.xlu0 %v286, 64
  %v2336 = vpop.permute.xlu0 %2335
  %2337 = vrot.lane.b32.xlu0 %v287, 64
  %v2338 = vpop.permute.xlu0 %2337
  %2339 = vrot.lane.b32.xlu0 %v288, 64
  %v2340 = vpop.permute.xlu0 %2339
  %2341 = vrot.lane.b32.xlu0 %v289, 64
  %v2342 = vpop.permute.xlu0 %2341
  %2343 = vrot.lane.b32.xlu0 %v290, 64
  %v2344 = vpop.permute.xlu0 %2343
  %v2345 = vrot.slane %v2330, 4
  %v2346 = vrot.slane %v2332, 4
  %v2347 = vrot.slane %v2334, 4
  %v2348 = vrot.slane %v2336, 4
  %v2349 = vrot.slane %v2338, 4
  %v2350 = vrot.slane %v2340, 4
  %v2351 = vrot.slane %v2342, 4
  %v2352 = vrot.slane %v2344, 4
  %v2353 = vsel %vm2295, %v2345, %v2330
  %v2354 = vsel %vm250, %v2345, %v2346
  %v2355 = vsel %vm2295, %v2354, %v2332
  %v2356 = vsel %vm250, %v2346, %v2347
  %v2357 = vsel %vm2295, %v2356, %v2334
  %v2358 = vsel %vm250, %v2347, %v2348
  %v2359 = vsel %vm2295, %v2358, %v2336
  %v2360 = vsel %vm250, %v2348, %v2349
  %v2361 = vsel %vm2295, %v2360, %v2338
  %v2362 = vsel %vm250, %v2349, %v2350
  %v2363 = vsel %vm2295, %v2362, %v2340
  %v2364 = vsel %vm250, %v2350, %v2351
  %v2365 = vsel %vm2295, %v2364, %v2342
  %v2366 = vsel %vm250, %v2351, %v2352
  %v2367 = vsel %vm2295, %v2366, %v2344
  %vm2368 = vcmp.ne.s16.totalorder %v2353, 0
  %vm2369 = vcmp.ne.s16.totalorder %v2355, 0
  %vm2370 = vcmp.ne.s16.totalorder %v2357, 0
  %vm2371 = vcmp.ne.s16.totalorder %v2359, 0
  %vm2372 = vcmp.ne.s16.totalorder %v2361, 0
  %vm2373 = vcmp.ne.s16.totalorder %v2363, 0
  %vm2374 = vcmp.ne.s16.totalorder %v2365, 0
  %vm2375 = vcmp.ne.s16.totalorder %v2367, 0
  %vm2376 = vcmp.ne.s16.totalorder %v2352, 0
  %v2377 = vsel %vm2368, %v2320, 0
  %v2378 = vsel %vm2369, %v2321, 0
  %v2379 = vsel %vm2370, %v2322, 0
  %v2380 = vsel %vm2371, %v2323, 0
  %v2381 = vsel %vm2372, %v2324, 0
  %v2382 = vsel %vm2373, %v2325, 0
  %v2383 = vsel %vm2374, %v2326, 0
  %v2384 = vsel %vm2375, %v2327, 0
  %v2385 = vsel %vm2376, %v2328, 0
  %2386 = vrot.lane.b32.xlu0 %v2263, 65
  %v2387 = vpop.permute.xlu0 %2386
  %2388 = vrot.lane.b32.xlu0 %v2264, 65
  %v2389 = vpop.permute.xlu0 %2388
  %2390 = vrot.lane.b32.xlu0 %v2265, 65
  %v2391 = vpop.permute.xlu0 %2390
  %2392 = vrot.lane.b32.xlu0 %v2266, 65
  %v2393 = vpop.permute.xlu0 %2392
  %2394 = vrot.lane.b32.xlu0 %v2267, 65
  %v2395 = vpop.permute.xlu0 %2394
  %2396 = vrot.lane.b32.xlu0 %v2268, 65
  %v2397 = vpop.permute.xlu0 %2396
  %2398 = vrot.lane.b32.xlu0 %v2269, 65
  %v2399 = vpop.permute.xlu0 %2398
  %2400 = vrot.lane.b32.xlu0 %v2270, 65
  %v2401 = vpop.permute.xlu0 %2400
  %v2402 = vrot.slane %v2387, 4
  %v2403 = vrot.slane %v2389, 4
  %v2404 = vrot.slane %v2391, 4
  %v2405 = vrot.slane %v2393, 4
  %v2406 = vrot.slane %v2395, 4
  %v2407 = vrot.slane %v2397, 4
  %v2408 = vrot.slane %v2399, 4
  %v2409 = vrot.slane %v2401, 4
  %vm2410 = vcmask 531456
  %v2411 = vsel %vm2410, %v2402, %v2387
  %v2412 = vsel %vm250, %v2402, %v2403
  %v2413 = vsel %vm2410, %v2412, %v2389
  %v2414 = vsel %vm250, %v2403, %v2404
  %v2415 = vsel %vm2410, %v2414, %v2391
  %v2416 = vsel %vm250, %v2404, %v2405
  %v2417 = vsel %vm2410, %v2416, %v2393
  %v2418 = vsel %vm250, %v2405, %v2406
  %v2419 = vsel %vm2410, %v2418, %v2395
  %v2420 = vsel %vm250, %v2406, %v2407
  %v2421 = vsel %vm2410, %v2420, %v2397
  %v2422 = vsel %vm250, %v2407, %v2408
  %v2423 = vsel %vm2410, %v2422, %v2399
  %v2424 = vsel %vm250, %v2408, %v2409
  %v2425 = vsel %vm2410, %v2424, %v2401
  %vm2426 = vcmp.ne.s16.totalorder %v2411, 0
  %vm2427 = vcmp.ne.s16.totalorder %v2413, 0
  %vm2428 = vcmp.ne.s16.totalorder %v2415, 0
  %vm2429 = vcmp.ne.s16.totalorder %v2417, 0
  %vm2430 = vcmp.ne.s16.totalorder %v2419, 0
  %vm2431 = vcmp.ne.s16.totalorder %v2421, 0
  %vm2432 = vcmp.ne.s16.totalorder %v2423, 0
  %vm2433 = vcmp.ne.s16.totalorder %v2425, 0
  %vm2434 = vcmp.ne.s16.totalorder %v2409, 0
  %v2435 = vsel %vm2426, %v79, 0
  %v2436 = vsel %vm2427, %v80, 0
  %v2437 = vsel %vm2428, %v81, 0
  %v2438 = vsel %vm2429, %v82, 0
  %v2439 = vsel %vm2430, %v83, 0
  %v2440 = vsel %vm2431, %v84, 0
  %v2441 = vsel %vm2432, %v85, 0
  %v2442 = vsel %vm2433, %v86, 0
  %v2443 = vsel %vm2434, %v215, 0
  %2444 = vrot.lane.b32.xlu0 %v603, 127
  %v2445 = vpop.permute.xlu0 %2444
  %2446 = vrot.lane.b32.xlu0 %v604, 127
  %v2447 = vpop.permute.xlu0 %2446
  %2448 = vrot.lane.b32.xlu0 %v605, 127
  %v2449 = vpop.permute.xlu0 %2448
  %2450 = vrot.lane.b32.xlu0 %v606, 127
  %v2451 = vpop.permute.xlu0 %2450
  %2452 = vrot.lane.b32.xlu0 %v607, 127
  %v2453 = vpop.permute.xlu0 %2452
  %2454 = vrot.lane.b32.xlu0 %v608, 127
  %v2455 = vpop.permute.xlu0 %2454
  %2456 = vrot.lane.b32.xlu0 %v609, 127
  %v2457 = vpop.permute.xlu0 %2456
  %2458 = vrot.lane.b32.xlu0 %v610, 127
  %v2459 = vpop.permute.xlu0 %2458
  %2460 = vrot.lane.b32.xlu0 %v611, 127
  %v2461 = vpop.permute.xlu0 %2460
  %2462 = vrot.lane.b32.xlu0 %v612, 127
  %v2463 = vpop.permute.xlu0 %2462
  %2464 = vrot.lane.b32.xlu0 %v613, 127
  %v2465 = vpop.permute.xlu0 %2464
  %2466 = vrot.lane.b32.xlu0 %v614, 127
  %v2467 = vpop.permute.xlu0 %2466
  %2468 = vrot.lane.b32.xlu0 %v615, 127
  %v2469 = vpop.permute.xlu0 %2468
  %2470 = vrot.lane.b32.xlu0 %v616, 127
  %v2471 = vpop.permute.xlu0 %2470
  %2472 = vrot.lane.b32.xlu0 %v617, 127
  %v2473 = vpop.permute.xlu0 %2472
  %2474 = vrot.lane.b32.xlu0 %v618, 127
  %v2475 = vpop.permute.xlu0 %2474
  %2476 = vrot.lane.b32.xlu0 %v619, 127
  %v2477 = vpop.permute.xlu0 %2476
  %v2478 = vsel %vm466, %v2445, %v2447
  %v2479 = vsel %vm466, %v2447, %v2449
  %v2480 = vsel %vm466, %v2449, %v2451
  %v2481 = vsel %vm466, %v2451, %v2453
  %v2482 = vsel %vm466, %v2453, %v2455
  %v2483 = vsel %vm466, %v2455, %v2457
  %v2484 = vsel %vm466, %v2457, %v2459
  %v2485 = vsel %vm466, %v2459, %v2461
  %v2486 = vsel %vm466, %v2461, %v2463
  %v2487 = vsel %vm466, %v2463, %v2465
  %v2488 = vsel %vm466, %v2465, %v2467
  %v2489 = vsel %vm466, %v2467, %v2469
  %v2490 = vsel %vm466, %v2469, %v2471
  %v2491 = vsel %vm466, %v2471, %v2473
  %v2492 = vsel %vm466, %v2473, %v2475
  %v2493 = vsel %vm466, %v2475, %v2477
  %v2503 = vunpack.c.l.b16 %v2377
  %v2504 = vunpack.c.h.b16 %v2377
  %v2505 = vunpack.c.l.b16 %v2378
  %v2506 = vunpack.c.h.b16 %v2378
  %v2507 = vunpack.c.l.b16 %v2379
  %v2508 = vunpack.c.h.b16 %v2379
  %v2509 = vunpack.c.l.b16 %v2380
  %v2510 = vunpack.c.h.b16 %v2380
  %v2511 = vunpack.c.l.b16 %v2381
  %v2512 = vunpack.c.h.b16 %v2381
  %v2513 = vunpack.c.l.b16 %v2382
  %v2514 = vunpack.c.h.b16 %v2382
  %v2515 = vunpack.c.l.b16 %v2383
  %v2516 = vunpack.c.h.b16 %v2383
  %v2517 = vunpack.c.l.b16 %v2384
  %v2518 = vunpack.c.h.b16 %v2384
  %v2519 = vunpack.c.l.b16 %v2385
  %v2520 = vpack.c.b16 %v2503, %v2503
  %v2521 = vpack.c.b16 %v2504, %v2504
  %v2522 = vpack.c.b16 %v2505, %v2505
  %v2523 = vpack.c.b16 %v2506, %v2506
  %v2524 = vpack.c.b16 %v2507, %v2507
  %v2525 = vpack.c.b16 %v2508, %v2508
  %v2526 = vpack.c.b16 %v2509, %v2509
  %v2527 = vpack.c.b16 %v2510, %v2510
  %v2528 = vpack.c.b16 %v2511, %v2511
  %v2529 = vpack.c.b16 %v2512, %v2512
  %v2530 = vpack.c.b16 %v2513, %v2513
  %v2531 = vpack.c.b16 %v2514, %v2514
  %v2532 = vpack.c.b16 %v2515, %v2515
  %v2533 = vpack.c.b16 %v2516, %v2516
  %v2534 = vpack.c.b16 %v2517, %v2517
  %v2535 = vpack.c.b16 %v2518, %v2518
  %v2536 = vpack.c.b16 %v2519, %v2519
  %2537 = vrot.lane.b32.xlu0 %v2520, 96
  %v2538 = vpop.permute.xlu0 %2537
  %2539 = vrot.lane.b32.xlu0 %v2521, 96
  %v2540 = vpop.permute.xlu0 %2539
  %2541 = vrot.lane.b32.xlu0 %v2522, 96
  %v2542 = vpop.permute.xlu0 %2541
  %2543 = vrot.lane.b32.xlu0 %v2523, 96
  %v2544 = vpop.permute.xlu0 %2543
  %2545 = vrot.lane.b32.xlu0 %v2524, 96
  %v2546 = vpop.permute.xlu0 %2545
  %2547 = vrot.lane.b32.xlu0 %v2525, 96
  %v2548 = vpop.permute.xlu0 %2547
  %2549 = vrot.lane.b32.xlu0 %v2526, 96
  %v2550 = vpop.permute.xlu0 %2549
  %2551 = vrot.lane.b32.xlu0 %v2527, 96
  %v2552 = vpop.permute.xlu0 %2551
  %2553 = vrot.lane.b32.xlu0 %v2528, 96
  %v2554 = vpop.permute.xlu0 %2553
  %2555 = vrot.lane.b32.xlu0 %v2529, 96
  %v2556 = vpop.permute.xlu0 %2555
  %2557 = vrot.lane.b32.xlu0 %v2530, 96
  %v2558 = vpop.permute.xlu0 %2557
  %2559 = vrot.lane.b32.xlu0 %v2531, 96
  %v2560 = vpop.permute.xlu0 %2559
  %2561 = vrot.lane.b32.xlu0 %v2532, 96
  %v2562 = vpop.permute.xlu0 %2561
  %2563 = vrot.lane.b32.xlu0 %v2533, 96
  %v2564 = vpop.permute.xlu0 %2563
  %2565 = vrot.lane.b32.xlu0 %v2534, 96
  %v2566 = vpop.permute.xlu0 %2565
  %2567 = vrot.lane.b32.xlu0 %v2535, 96
  %v2568 = vpop.permute.xlu0 %2567
  %2569 = vrot.lane.b32.xlu0 %v2536, 96
  %v2570 = vpop.permute.xlu0 %2569
  %v2571 = vsel %vm560, %v2538, %v2540
  %v2572 = vsel %vm560, %v2540, %v2542
  %v2573 = vsel %vm560, %v2542, %v2544
  %v2574 = vsel %vm560, %v2544, %v2546
  %v2575 = vsel %vm560, %v2546, %v2548
  %v2576 = vsel %vm560, %v2548, %v2550
  %v2577 = vsel %vm560, %v2550, %v2552
  %v2578 = vsel %vm560, %v2552, %v2554
  %v2579 = vsel %vm560, %v2554, %v2556
  %v2580 = vsel %vm560, %v2556, %v2558
  %v2581 = vsel %vm560, %v2558, %v2560
  %v2582 = vsel %vm560, %v2560, %v2562
  %v2583 = vsel %vm560, %v2562, %v2564
  %v2584 = vsel %vm560, %v2564, %v2566
  %v2585 = vsel %vm560, %v2566, %v2568
  %v2586 = vsel %vm560, %v2568, %v2570
  %v2596 = vunpack.c.l.b16 %v2435
  %v2597 = vunpack.c.h.b16 %v2435
  %v2598 = vunpack.c.l.b16 %v2436
  %v2599 = vunpack.c.h.b16 %v2436
  %v2600 = vunpack.c.l.b16 %v2437
  %v2601 = vunpack.c.h.b16 %v2437
  %v2602 = vunpack.c.l.b16 %v2438
  %v2603 = vunpack.c.h.b16 %v2438
  %v2604 = vunpack.c.l.b16 %v2439
  %v2605 = vunpack.c.h.b16 %v2439
  %v2606 = vunpack.c.l.b16 %v2440
  %v2607 = vunpack.c.h.b16 %v2440
  %v2608 = vunpack.c.l.b16 %v2441
  %v2609 = vunpack.c.h.b16 %v2441
  %v2610 = vunpack.c.l.b16 %v2442
  %v2611 = vunpack.c.h.b16 %v2442
  %v2612 = vunpack.c.l.b16 %v2443
  %v2613 = vpack.c.b16 %v2596, %v2596
  %v2614 = vpack.c.b16 %v2597, %v2597
  %v2615 = vpack.c.b16 %v2598, %v2598
  %v2616 = vpack.c.b16 %v2599, %v2599
  %v2617 = vpack.c.b16 %v2600, %v2600
  %v2618 = vpack.c.b16 %v2601, %v2601
  %v2619 = vpack.c.b16 %v2602, %v2602
  %v2620 = vpack.c.b16 %v2603, %v2603
  %v2621 = vpack.c.b16 %v2604, %v2604
  %v2622 = vpack.c.b16 %v2605, %v2605
  %v2623 = vpack.c.b16 %v2606, %v2606
  %v2624 = vpack.c.b16 %v2607, %v2607
  %v2625 = vpack.c.b16 %v2608, %v2608
  %v2626 = vpack.c.b16 %v2609, %v2609
  %v2627 = vpack.c.b16 %v2610, %v2610
  %v2628 = vpack.c.b16 %v2611, %v2611
  %v2629 = vpack.c.b16 %v2612, %v2612
  %2630 = vrot.lane.b32.xlu0 %v2613, 95
  %v2631 = vpop.permute.xlu0 %2630
  %2632 = vrot.lane.b32.xlu0 %v2614, 95
  %v2633 = vpop.permute.xlu0 %2632
  %2634 = vrot.lane.b32.xlu0 %v2615, 95
  %v2635 = vpop.permute.xlu0 %2634
  %2636 = vrot.lane.b32.xlu0 %v2616, 95
  %v2637 = vpop.permute.xlu0 %2636
  %2638 = vrot.lane.b32.xlu0 %v2617, 95
  %v2639 = vpop.permute.xlu0 %2638
  %2640 = vrot.lane.b32.xlu0 %v2618, 95
  %v2641 = vpop.permute.xlu0 %2640
  %2642 = vrot.lane.b32.xlu0 %v2619, 95
  %v2643 = vpop.permute.xlu0 %2642
  %2644 = vrot.lane.b32.xlu0 %v2620, 95
  %v2645 = vpop.permute.xlu0 %2644
  %2646 = vrot.lane.b32.xlu0 %v2621, 95
  %v2647 = vpop.permute.xlu0 %2646
  %2648 = vrot.lane.b32.xlu0 %v2622, 95
  %v2649 = vpop.permute.xlu0 %2648
  %2650 = vrot.lane.b32.xlu0 %v2623, 95
  %v2651 = vpop.permute.xlu0 %2650
  %2652 = vrot.lane.b32.xlu0 %v2624, 95
  %v2653 = vpop.permute.xlu0 %2652
  %2654 = vrot.lane.b32.xlu0 %v2625, 95
  %v2655 = vpop.permute.xlu0 %2654
  %2656 = vrot.lane.b32.xlu0 %v2626, 95
  %v2657 = vpop.permute.xlu0 %2656
  %2658 = vrot.lane.b32.xlu0 %v2627, 95
  %v2659 = vpop.permute.xlu0 %2658
  %2660 = vrot.lane.b32.xlu0 %v2628, 95
  %v2661 = vpop.permute.xlu0 %2660
  %2662 = vrot.lane.b32.xlu0 %v2629, 95
  %v2663 = vpop.permute.xlu0 %2662
  %v2664 = vsel %vm654, %v2631, %v2633
  %v2665 = vsel %vm654, %v2633, %v2635
  %v2666 = vsel %vm654, %v2635, %v2637
  %v2667 = vsel %vm654, %v2637, %v2639
  %v2668 = vsel %vm654, %v2639, %v2641
  %v2669 = vsel %vm654, %v2641, %v2643
  %v2670 = vsel %vm654, %v2643, %v2645
  %v2671 = vsel %vm654, %v2645, %v2647
  %v2672 = vsel %vm654, %v2647, %v2649
  %v2673 = vsel %vm654, %v2649, %v2651
  %v2674 = vsel %vm654, %v2651, %v2653
  %v2675 = vsel %vm654, %v2653, %v2655
  %v2676 = vsel %vm654, %v2655, %v2657
  %v2677 = vsel %vm654, %v2657, %v2659
  %v2678 = vsel %vm654, %v2659, %v2661
  %v2679 = vsel %vm654, %v2661, %v2663
  %v2682 = vsel %vm671, %v509, %v2478
  %v2685 = vsel %vm671, %v510, %v2479
  %v2688 = vsel %vm671, %v511, %v2480
  %v2691 = vsel %vm671, %v512, %v2481
  %v2694 = vsel %vm671, %v513, %v2482
  %v2697 = vsel %vm671, %v514, %v2483
  %v2700 = vsel %vm671, %v515, %v2484
  %v2703 = vsel %vm671, %v516, %v2485
  %v2706 = vsel %vm671, %v517, %v2486
  %v2709 = vsel %vm671, %v518, %v2487
  %v2712 = vsel %vm671, %v519, %v2488
  %v2715 = vsel %vm671, %v520, %v2489
  %v2718 = vsel %vm671, %v521, %v2490
  %v2721 = vsel %vm671, %v522, %v2491
  %v2724 = vsel %vm671, %v523, %v2492
  %v2727 = vsel %vm671, %v524, %v2493
  %v2730 = vsel %vm671, %v525, %v2477
  %v2733 = vsel %vm671, %v2571, %v2664
  %v2736 = vsel %vm671, %v2572, %v2665
  %v2739 = vsel %vm671, %v2573, %v2666
  %v2742 = vsel %vm671, %v2574, %v2667
  %v2745 = vsel %vm671, %v2575, %v2668
  %v2748 = vsel %vm671, %v2576, %v2669
  %v2751 = vsel %vm671, %v2577, %v2670
  %v2754 = vsel %vm671, %v2578, %v2671
  %v2757 = vsel %vm671, %v2579, %v2672
  %v2760 = vsel %vm671, %v2580, %v2673
  %v2763 = vsel %vm671, %v2581, %v2674
  %v2766 = vsel %vm671, %v2582, %v2675
  %v2769 = vsel %vm671, %v2583, %v2676
  %v2772 = vsel %vm671, %v2584, %v2677
  %v2775 = vsel %vm671, %v2585, %v2678
  %v2778 = vsel %vm671, %v2586, %v2679
  %v2781 = vsel %vm671, %v2570, %v2663
  %s2782 = scalar_lea.vmem %s1, 4
  %v2783 = vld [vmem:[%s2782] sm:$0x3]
  %2818 = vrot.lane.b32.xlu0 %v2682, 96
  %v2819 = vpop.permute.xlu0 %2818
  %2820 = vrot.lane.b32.xlu0 %v2685, 96
  %v2821 = vpop.permute.xlu0 %2820
  %2822 = vrot.lane.b32.xlu0 %v2688, 96
  %v2823 = vpop.permute.xlu0 %2822
  %2824 = vrot.lane.b32.xlu0 %v2691, 96
  %v2825 = vpop.permute.xlu0 %2824
  %2826 = vrot.lane.b32.xlu0 %v2694, 96
  %v2827 = vpop.permute.xlu0 %2826
  %2828 = vrot.lane.b32.xlu0 %v2697, 96
  %v2829 = vpop.permute.xlu0 %2828
  %2830 = vrot.lane.b32.xlu0 %v2700, 96
  %v2831 = vpop.permute.xlu0 %2830
  %2832 = vrot.lane.b32.xlu0 %v2703, 96
  %v2833 = vpop.permute.xlu0 %2832
  %2834 = vrot.lane.b32.xlu0 %v2706, 96
  %v2835 = vpop.permute.xlu0 %2834
  %2836 = vrot.lane.b32.xlu0 %v2709, 96
  %v2837 = vpop.permute.xlu0 %2836
  %2838 = vrot.lane.b32.xlu0 %v2712, 96
  %v2839 = vpop.permute.xlu0 %2838
  %2840 = vrot.lane.b32.xlu0 %v2715, 96
  %v2841 = vpop.permute.xlu0 %2840
  %2842 = vrot.lane.b32.xlu0 %v2718, 96
  %v2843 = vpop.permute.xlu0 %2842
  %2844 = vrot.lane.b32.xlu0 %v2721, 96
  %v2845 = vpop.permute.xlu0 %2844
  %2846 = vrot.lane.b32.xlu0 %v2724, 96
  %v2847 = vpop.permute.xlu0 %2846
  %2848 = vrot.lane.b32.xlu0 %v2727, 96
  %v2849 = vpop.permute.xlu0 %2848
  %2850 = vrot.lane.b32.xlu0 %v2730, 96
  %v2851 = vpop.permute.xlu0 %2850
  %2852 = vrot.lane.b32.xlu0 %v2733, 96
  %v2853 = vpop.permute.xlu0 %2852
  %2854 = vrot.lane.b32.xlu0 %v2736, 96
  %v2855 = vpop.permute.xlu0 %2854
  %2856 = vrot.lane.b32.xlu0 %v2739, 96
  %v2857 = vpop.permute.xlu0 %2856
  %2858 = vrot.lane.b32.xlu0 %v2742, 96
  %v2859 = vpop.permute.xlu0 %2858
  %2860 = vrot.lane.b32.xlu0 %v2745, 96
  %v2861 = vpop.permute.xlu0 %2860
  %2862 = vrot.lane.b32.xlu0 %v2748, 96
  %v2863 = vpop.permute.xlu0 %2862
  %2864 = vrot.lane.b32.xlu0 %v2751, 96
  %v2865 = vpop.permute.xlu0 %2864
  %2866 = vrot.lane.b32.xlu0 %v2754, 96
  %v2867 = vpop.permute.xlu0 %2866
  %2868 = vrot.lane.b32.xlu0 %v2757, 96
  %v2869 = vpop.permute.xlu0 %2868
  %2870 = vrot.lane.b32.xlu0 %v2760, 96
  %v2871 = vpop.permute.xlu0 %2870
  %2872 = vrot.lane.b32.xlu0 %v2763, 96
  %v2873 = vpop.permute.xlu0 %2872
  %2874 = vrot.lane.b32.xlu0 %v2766, 96
  %v2875 = vpop.permute.xlu0 %2874
  %2876 = vrot.lane.b32.xlu0 %v2769, 96
  %v2877 = vpop.permute.xlu0 %2876
  %2878 = vrot.lane.b32.xlu0 %v2772, 96
  %v2879 = vpop.permute.xlu0 %2878
  %2880 = vrot.lane.b32.xlu0 %v2775, 96
  %v2881 = vpop.permute.xlu0 %2880
  %2882 = vrot.lane.b32.xlu0 %v2778, 96
  %v2883 = vpop.permute.xlu0 %2882
  %2884 = vrot.lane.b32.xlu0 %v2781, 96
  %v2885 = vpop.permute.xlu0 %2884
  %v2886 = vsel %vm560, %v2819, %v2821
  %v2887 = vsel %vm560, %v2821, %v2823
  %v2888 = vsel %vm560, %v2823, %v2825
  %v2889 = vsel %vm560, %v2825, %v2827
  %v2890 = vsel %vm560, %v2827, %v2829
  %v2891 = vsel %vm560, %v2829, %v2831
  %v2892 = vsel %vm560, %v2831, %v2833
  %v2893 = vsel %vm560, %v2833, %v2835
  %v2894 = vsel %vm560, %v2835, %v2837
  %v2895 = vsel %vm560, %v2837, %v2839
  %v2896 = vsel %vm560, %v2839, %v2841
  %v2897 = vsel %vm560, %v2841, %v2843
  %v2898 = vsel %vm560, %v2843, %v2845
  %v2899 = vsel %vm560, %v2845, %v2847
  %v2900 = vsel %vm560, %v2847, %v2849
  %v2901 = vsel %vm560, %v2849, %v2851
  %v2902 = vsel %vm560, %v2853, %v2855
  %v2903 = vsel %vm560, %v2855, %v2857
  %v2904 = vsel %vm560, %v2857, %v2859
  %v2905 = vsel %vm560, %v2859, %v2861
  %v2906 = vsel %vm560, %v2861, %v2863
  %v2907 = vsel %vm560, %v2863, %v2865
  %v2908 = vsel %vm560, %v2865, %v2867
  %v2909 = vsel %vm560, %v2867, %v2869
  %v2910 = vsel %vm560, %v2869, %v2871
  %v2911 = vsel %vm560, %v2871, %v2873
  %v2912 = vsel %vm560, %v2873, %v2875
  %v2913 = vsel %vm560, %v2875, %v2877
  %v2914 = vsel %vm560, %v2877, %v2879
  %v2915 = vsel %vm560, %v2879, %v2881
  %v2916 = vsel %vm560, %v2881, %v2883
  %v2917 = vsel %vm560, %v2883, %v2885
  %v2951 = vsel %vm801, %v2783, 0
  %2953 = vmatprep.subr.bf16.mxu0 %v2887
  %2954 = vmatpush1.bf16.msra.mxu0 %v2886
  %2955 = vmatprep.subr.bf16.mxu0 %v2903
  %2956 = vmatpush1.bf16.msra.mxu0 %v2902
  %2957 = vmatprep.subr.bf16.mxu0 0
  %2958 = vmatpush1.bf16.msra.mxu0 0
  %2959 = vmatprep.subr.bf16.mxu0 0
  %2960 = vmatpush1.bf16.msra.mxu0 0
  %2961 = vmatprep.subr.bf16.mxu0 0
  %2962 = vmatpush1.bf16.msra.mxu0 0
  %2963 = vmatprep.subr.bf16.mxu0 0
  %2964 = vmatpush1.bf16.msra.mxu0 0
  %2965 = vmatprep.subr.bf16.mxu0 0
  %2966 = vmatpush1.bf16.msra.mxu0 0
  %2967 = vmatprep.subr.bf16.mxu0 0
  %2968 = vmatpush1.bf16.msra.mxu0 0
  %2969 = vmatprep.subr.bf16.mxu0 0
  %2970 = vmatpush1.bf16.msra.mxu0 0
  %2971 = vmatprep.subr.bf16.mxu0 0
  %2972 = vmatpush1.bf16.msra.mxu0 0
  %2973 = vmatprep.subr.bf16.mxu0 0
  %2974 = vmatpush1.bf16.msra.mxu0 0
  %2975 = vmatprep.subr.bf16.mxu0 0
  %2976 = vmatpush1.bf16.msra.mxu0 0
  %2977 = vmatprep.subr.bf16.mxu0 0
  %2978 = vmatpush1.bf16.msra.mxu0 0
  %2979 = vmatprep.subr.bf16.mxu0 0
  %2980 = vmatpush1.bf16.msra.mxu0 0
  %2981 = vmatprep.subr.bf16.mxu0 0
  %2982 = vmatpush1.bf16.msra.mxu0 0
  %2983 = vmatprep.subr.bf16.mxu0 0
  %2984 = vmatpush1.bf16.msra.mxu0 0
  %2985 = vmatprep.mubr.bf16.mxu0 0
  %2986 = vmatmul.mubr.bf16.gmra.mrb[0].mxu0 %v2951
  %v2987 = vpop.f32.mrb[0].mxu0
  %v2988 = vadd.f32 0.0, %v2987
  %v2989 = vpop.f32.mrb[0].mxu0
  %v2990 = vadd.f32 0.0, %v2989
  %v2991 = vpop.f32.mrb[0].mxu0
  %v2992 = vpop.f32.mrb[0].mxu0
  %2993 = vdwg.mxu0
  %2994 = vmatprep.subr.bf16.mxu0 %v2889
  %2995 = vmatpush1.bf16.msra.mxu0 %v2888
  %2996 = vmatprep.subr.bf16.mxu0 %v2905
  %2997 = vmatpush1.bf16.msra.mxu0 %v2904
  %2998 = vmatprep.subr.bf16.mxu0 0
  %2999 = vmatpush1.bf16.msra.mxu0 0
  %3000 = vmatprep.subr.bf16.mxu0 0
  %3001 = vmatpush1.bf16.msra.mxu0 0
  %3002 = vmatprep.subr.bf16.mxu0 0
  %3003 = vmatpush1.bf16.msra.mxu0 0
  %3004 = vmatprep.subr.bf16.mxu0 0
  %3005 = vmatpush1.bf16.msra.mxu0 0
  %3006 = vmatprep.subr.bf16.mxu0 0
  %3007 = vmatpush1.bf16.msra.mxu0 0
  %3008 = vmatprep.subr.bf16.mxu0 0
  %3009 = vmatpush1.bf16.msra.mxu0 0
  %3010 = vmatprep.subr.bf16.mxu0 0
  %3011 = vmatpush1.bf16.msra.mxu0 0
  %3012 = vmatprep.subr.bf16.mxu0 0
  %3013 = vmatpush1.bf16.msra.mxu0 0
  %3014 = vmatprep.subr.bf16.mxu0 0
  %3015 = vmatpush1.bf16.msra.mxu0 0
  %3016 = vmatprep.subr.bf16.mxu0 0
  %3017 = vmatpush1.bf16.msra.mxu0 0
  %3018 = vmatprep.subr.bf16.mxu0 0
  %3019 = vmatpush1.bf16.msra.mxu0 0
  %3020 = vmatprep.subr.bf16.mxu0 0
  %3021 = vmatpush1.bf16.msra.mxu0 0
  %3022 = vmatprep.subr.bf16.mxu0 0
  %3023 = vmatpush1.bf16.msra.mxu0 0
  %3024 = vmatprep.subr.bf16.mxu0 0
  %3025 = vmatpush1.bf16.msra.mxu0 0
  %3026 = vmatprep.mubr.bf16.mxu0 0
  %3027 = vmatmul.mubr.bf16.gmra.mrb[0].mxu0 %v2951
  %v3028 = vpop.f32.mrb[0].mxu0
  %v3029 = vadd.f32 0.0, %v3028
  %v3030 = vpop.f32.mrb[0].mxu0
  %v3031 = vadd.f32 0.0, %v3030
  %v3032 = vpop.f32.mrb[0].mxu0
  %v3033 = vpop.f32.mrb[0].mxu0
  %3034 = vdwg.mxu0
  %3035 = vmatprep.subr.bf16.mxu0 %v2891
  %3036 = vmatpush1.bf16.msra.mxu0 %v2890
  %3037 = vmatprep.subr.bf16.mxu0 %v2907
  %3038 = vmatpush1.bf16.msra.mxu0 %v2906
  %3039 = vmatprep.subr.bf16.mxu0 0
  %3040 = vmatpush1.bf16.msra.mxu0 0
  %3041 = vmatprep.subr.bf16.mxu0 0
  %3042 = vmatpush1.bf16.msra.mxu0 0
  %3043 = vmatprep.subr.bf16.mxu0 0
  %3044 = vmatpush1.bf16.msra.mxu0 0
  %3045 = vmatprep.subr.bf16.mxu0 0
  %3046 = vmatpush1.bf16.msra.mxu0 0
  %3047 = vmatprep.subr.bf16.mxu0 0
  %3048 = vmatpush1.bf16.msra.mxu0 0
  %3049 = vmatprep.subr.bf16.mxu0 0
  %3050 = vmatpush1.bf16.msra.mxu0 0
  %3051 = vmatprep.subr.bf16.mxu0 0
  %3052 = vmatpush1.bf16.msra.mxu0 0
  %3053 = vmatprep.subr.bf16.mxu0 0
  %3054 = vmatpush1.bf16.msra.mxu0 0
  %3055 = vmatprep.subr.bf16.mxu0 0
  %3056 = vmatpush1.bf16.msra.mxu0 0
  %3057 = vmatprep.subr.bf16.mxu0 0
  %3058 = vmatpush1.bf16.msra.mxu0 0
  %3059 = vmatprep.subr.bf16.mxu0 0
  %3060 = vmatpush1.bf16.msra.mxu0 0
  %3061 = vmatprep.subr.bf16.mxu0 0
  %3062 = vmatpush1.bf16.msra.mxu0 0
  %3063 = vmatprep.subr.bf16.mxu0 0
  %3064 = vmatpush1.bf16.msra.mxu0 0
  %3065 = vmatprep.subr.bf16.mxu0 0
  %3066 = vmatpush1.bf16.msra.mxu0 0
  %3067 = vmatprep.mubr.bf16.mxu0 0
  %3068 = vmatmul.mubr.bf16.gmra.mrb[0].mxu0 %v2951
  %v3069 = vpop.f32.mrb[0].mxu0
  %v3070 = vadd.f32 0.0, %v3069
  %v3071 = vpop.f32.mrb[0].mxu0
  %v3072 = vadd.f32 0.0, %v3071
  %v3073 = vpop.f32.mrb[0].mxu0
  %v3074 = vpop.f32.mrb[0].mxu0
  %3075 = vdwg.mxu0
  %3076 = vmatprep.subr.bf16.mxu0 %v2893
  %3077 = vmatpush1.bf16.msra.mxu0 %v2892
  %3078 = vmatprep.subr.bf16.mxu0 %v2909
  %3079 = vmatpush1.bf16.msra.mxu0 %v2908
  %3080 = vmatprep.subr.bf16.mxu0 0
  %3081 = vmatpush1.bf16.msra.mxu0 0
  %3082 = vmatprep.subr.bf16.mxu0 0
  %3083 = vmatpush1.bf16.msra.mxu0 0
  %3084 = vmatprep.subr.bf16.mxu0 0
  %3085 = vmatpush1.bf16.msra.mxu0 0
  %3086 = vmatprep.subr.bf16.mxu0 0
  %3087 = vmatpush1.bf16.msra.mxu0 0
  %3088 = vmatprep.subr.bf16.mxu0 0
  %3089 = vmatpush1.bf16.msra.mxu0 0
  %3090 = vmatprep.subr.bf16.mxu0 0
  %3091 = vmatpush1.bf16.msra.mxu0 0
  %3092 = vmatprep.subr.bf16.mxu0 0
  %3093 = vmatpush1.bf16.msra.mxu0 0
  %3094 = vmatprep.subr.bf16.mxu0 0
  %3095 = vmatpush1.bf16.msra.mxu0 0
  %3096 = vmatprep.subr.bf16.mxu0 0
  %3097 = vmatpush1.bf16.msra.mxu0 0
  %3098 = vmatprep.subr.bf16.mxu0 0
  %3099 = vmatpush1.bf16.msra.mxu0 0
  %3100 = vmatprep.subr.bf16.mxu0 0
  %3101 = vmatpush1.bf16.msra.mxu0 0
  %3102 = vmatprep.subr.bf16.mxu0 0
  %3103 = vmatpush1.bf16.msra.mxu0 0
  %3104 = vmatprep.subr.bf16.mxu0 0
  %3105 = vmatpush1.bf16.msra.mxu0 0
  %3106 = vmatprep.subr.bf16.mxu0 0
  %3107 = vmatpush1.bf16.msra.mxu0 0
  %3108 = vmatprep.mubr.bf16.mxu0 0
  %3109 = vmatmul.mubr.bf16.gmra.mrb[0].mxu0 %v2951
  %v3110 = vpop.f32.mrb[0].mxu0
  %v3111 = vadd.f32 0.0, %v3110
  %v3112 = vpop.f32.mrb[0].mxu0
  %v3113 = vadd.f32 0.0, %v3112
  %v3114 = vpop.f32.mrb[0].mxu0
  %v3115 = vpop.f32.mrb[0].mxu0
  %3116 = vdwg.mxu0
  %3117 = vmatprep.subr.bf16.mxu0 %v2895
  %3118 = vmatpush1.bf16.msra.mxu0 %v2894
  %3119 = vmatprep.subr.bf16.mxu0 %v2911
  %3120 = vmatpush1.bf16.msra.mxu0 %v2910
  %3121 = vmatprep.subr.bf16.mxu0 0
  %3122 = vmatpush1.bf16.msra.mxu0 0
  %3123 = vmatprep.subr.bf16.mxu0 0
  %3124 = vmatpush1.bf16.msra.mxu0 0
  %3125 = vmatprep.subr.bf16.mxu0 0
  %3126 = vmatpush1.bf16.msra.mxu0 0
  %3127 = vmatprep.subr.bf16.mxu0 0
  %3128 = vmatpush1.bf16.msra.mxu0 0
  %3129 = vmatprep.subr.bf16.mxu0 0
  %3130 = vmatpush1.bf16.msra.mxu0 0
  %3131 = vmatprep.subr.bf16.mxu0 0
  %3132 = vmatpush1.bf16.msra.mxu0 0
  %3133 = vmatprep.subr.bf16.mxu0 0
  %3134 = vmatpush1.bf16.msra.mxu0 0
  %3135 = vmatprep.subr.bf16.mxu0 0
  %3136 = vmatpush1.bf16.msra.mxu0 0
  %3137 = vmatprep.subr.bf16.mxu0 0
  %3138 = vmatpush1.bf16.msra.mxu0 0
  %3139 = vmatprep.subr.bf16.mxu0 0
  %3140 = vmatpush1.bf16.msra.mxu0 0
  %3141 = vmatprep.subr.bf16.mxu0 0
  %3142 = vmatpush1.bf16.msra.mxu0 0
  %3143 = vmatprep.subr.bf16.mxu0 0
  %3144 = vmatpush1.bf16.msra.mxu0 0
  %3145 = vmatprep.subr.bf16.mxu0 0
  %3146 = vmatpush1.bf16.msra.mxu0 0
  %3147 = vmatprep.subr.bf16.mxu0 0
  %3148 = vmatpush1.bf16.msra.mxu0 0
  %3149 = vmatprep.mubr.bf16.mxu0 0
  %3150 = vmatmul.mubr.bf16.gmra.mrb[0].mxu0 %v2951
  %v3151 = vpop.f32.mrb[0].mxu0
  %v3152 = vadd.f32 0.0, %v3151
  %v3153 = vpop.f32.mrb[0].mxu0
  %v3154 = vadd.f32 0.0, %v3153
  %v3155 = vpop.f32.mrb[0].mxu0
  %v3156 = vpop.f32.mrb[0].mxu0
  %3157 = vdwg.mxu0
  %3158 = vmatprep.subr.bf16.mxu0 %v2897
  %3159 = vmatpush1.bf16.msra.mxu0 %v2896
  %3160 = vmatprep.subr.bf16.mxu0 %v2913
  %3161 = vmatpush1.bf16.msra.mxu0 %v2912
  %3162 = vmatprep.subr.bf16.mxu0 0
  %3163 = vmatpush1.bf16.msra.mxu0 0
  %3164 = vmatprep.subr.bf16.mxu0 0
  %3165 = vmatpush1.bf16.msra.mxu0 0
  %3166 = vmatprep.subr.bf16.mxu0 0
  %3167 = vmatpush1.bf16.msra.mxu0 0
  %3168 = vmatprep.subr.bf16.mxu0 0
  %3169 = vmatpush1.bf16.msra.mxu0 0
  %3170 = vmatprep.subr.bf16.mxu0 0
  %3171 = vmatpush1.bf16.msra.mxu0 0
  %3172 = vmatprep.subr.bf16.mxu0 0
  %3173 = vmatpush1.bf16.msra.mxu0 0
  %3174 = vmatprep.subr.bf16.mxu0 0
  %3175 = vmatpush1.bf16.msra.mxu0 0
  %3176 = vmatprep.subr.bf16.mxu0 0
  %3177 = vmatpush1.bf16.msra.mxu0 0
  %3178 = vmatprep.subr.bf16.mxu0 0
  %3179 = vmatpush1.bf16.msra.mxu0 0
  %3180 = vmatprep.subr.bf16.mxu0 0
  %3181 = vmatpush1.bf16.msra.mxu0 0
  %3182 = vmatprep.subr.bf16.mxu0 0
  %3183 = vmatpush1.bf16.msra.mxu0 0
  %3184 = vmatprep.subr.bf16.mxu0 0
  %3185 = vmatpush1.bf16.msra.mxu0 0
  %3186 = vmatprep.subr.bf16.mxu0 0
  %3187 = vmatpush1.bf16.msra.mxu0 0
  %3188 = vmatprep.subr.bf16.mxu0 0
  %3189 = vmatpush1.bf16.msra.mxu0 0
  %3190 = vmatprep.mubr.bf16.mxu0 0
  %3191 = vmatmul.mubr.bf16.gmra.mrb[0].mxu0 %v2951
  %v3192 = vpop.f32.mrb[0].mxu0
  %v3193 = vadd.f32 0.0, %v3192
  %v3194 = vpop.f32.mrb[0].mxu0
  %v3195 = vadd.f32 0.0, %v3194
  %v3196 = vpop.f32.mrb[0].mxu0
  %v3197 = vpop.f32.mrb[0].mxu0
  %3198 = vdwg.mxu0
  %3199 = vmatprep.subr.bf16.mxu0 %v2899
  %3200 = vmatpush1.bf16.msra.mxu0 %v2898
  %3201 = vmatprep.subr.bf16.mxu0 %v2915
  %3202 = vmatpush1.bf16.msra.mxu0 %v2914
  %3203 = vmatprep.subr.bf16.mxu0 0
  %3204 = vmatpush1.bf16.msra.mxu0 0
  %3205 = vmatprep.subr.bf16.mxu0 0
  %3206 = vmatpush1.bf16.msra.mxu0 0
  %3207 = vmatprep.subr.bf16.mxu0 0
  %3208 = vmatpush1.bf16.msra.mxu0 0
  %3209 = vmatprep.subr.bf16.mxu0 0
  %3210 = vmatpush1.bf16.msra.mxu0 0
  %3211 = vmatprep.subr.bf16.mxu0 0
  %3212 = vmatpush1.bf16.msra.mxu0 0
  %3213 = vmatprep.subr.bf16.mxu0 0
  %3214 = vmatpush1.bf16.msra.mxu0 0
  %3215 = vmatprep.subr.bf16.mxu0 0
  %3216 = vmatpush1.bf16.msra.mxu0 0
  %3217 = vmatprep.subr.bf16.mxu0 0
  %3218 = vmatpush1.bf16.msra.mxu0 0
  %3219 = vmatprep.subr.bf16.mxu0 0
  %3220 = vmatpush1.bf16.msra.mxu0 0
  %3221 = vmatprep.subr.bf16.mxu0 0
  %3222 = vmatpush1.bf16.msra.mxu0 0
  %3223 = vmatprep.subr.bf16.mxu0 0
  %3224 = vmatpush1.bf16.msra.mxu0 0
  %3225 = vmatprep.subr.bf16.mxu0 0
  %3226 = vmatpush1.bf16.msra.mxu0 0
  %3227 = vmatprep.subr.bf16.mxu0 0
  %3228 = vmatpush1.bf16.msra.mxu0 0
  %3229 = vmatprep.subr.bf16.mxu0 0
  %3230 = vmatpush1.bf16.msra.mxu0 0
  %3231 = vmatprep.mubr.bf16.mxu0 0
  %3232 = vmatmul.mubr.bf16.gmra.mrb[0].mxu0 %v2951
  %v3233 = vpop.f32.mrb[0].mxu0
  %v3234 = vadd.f32 0.0, %v3233
  %v3235 = vpop.f32.mrb[0].mxu0
  %v3236 = vadd.f32 0.0, %v3235
  %v3237 = vpop.f32.mrb[0].mxu0
  %v3238 = vpop.f32.mrb[0].mxu0
  %3239 = vdwg.mxu0
  %3240 = vmatprep.subr.bf16.mxu0 %v2901
  %3241 = vmatpush1.bf16.msra.mxu0 %v2900
  %3242 = vmatprep.subr.bf16.mxu0 %v2917
  %3243 = vmatpush1.bf16.msra.mxu0 %v2916
  %3244 = vmatprep.subr.bf16.mxu0 0
  %3245 = vmatpush1.bf16.msra.mxu0 0
  %3246 = vmatprep.subr.bf16.mxu0 0
  %3247 = vmatpush1.bf16.msra.mxu0 0
  %3248 = vmatprep.subr.bf16.mxu0 0
  %3249 = vmatpush1.bf16.msra.mxu0 0
  %3250 = vmatprep.subr.bf16.mxu0 0
  %3251 = vmatpush1.bf16.msra.mxu0 0
  %3252 = vmatprep.subr.bf16.mxu0 0
  %3253 = vmatpush1.bf16.msra.mxu0 0
  %3254 = vmatprep.subr.bf16.mxu0 0
  %3255 = vmatpush1.bf16.msra.mxu0 0
  %3256 = vmatprep.subr.bf16.mxu0 0
  %3257 = vmatpush1.bf16.msra.mxu0 0
  %3258 = vmatprep.subr.bf16.mxu0 0
  %3259 = vmatpush1.bf16.msra.mxu0 0
  %3260 = vmatprep.subr.bf16.mxu0 0
  %3261 = vmatpush1.bf16.msra.mxu0 0
  %3262 = vmatprep.subr.bf16.mxu0 0
  %3263 = vmatpush1.bf16.msra.mxu0 0
  %3264 = vmatprep.subr.bf16.mxu0 0
  %3265 = vmatpush1.bf16.msra.mxu0 0
  %3266 = vmatprep.subr.bf16.mxu0 0
  %3267 = vmatpush1.bf16.msra.mxu0 0
  %3268 = vmatprep.subr.bf16.mxu0 0
  %3269 = vmatpush1.bf16.msra.mxu0 0
  %3270 = vmatprep.subr.bf16.mxu0 0
  %3271 = vmatpush1.bf16.msra.mxu0 0
  %3272 = vmatprep.mubr.bf16.mxu0 0
  %3273 = vmatmul.mubr.bf16.gmra.mrb[0].mxu0 %v2951
  %v3274 = vpop.f32.mrb[0].mxu0
  %v3275 = vadd.f32 0.0, %v3274
  %v3276 = vpop.f32.mrb[0].mxu0
  %v3277 = vadd.f32 0.0, %v3276
  %v3278 = vpop.f32.mrb[0].mxu0
  %v3279 = vpop.f32.mrb[0].mxu0
  %3280 = vdwg.mxu0
  %3281 = vrot.lane.b32.xlu0 %v2263, 66
  %v3282 = vpop.permute.xlu0 %3281
  %3283 = vrot.lane.b32.xlu0 %v2264, 66
  %v3284 = vpop.permute.xlu0 %3283
  %3285 = vrot.lane.b32.xlu0 %v2265, 66
  %v3286 = vpop.permute.xlu0 %3285
  %3287 = vrot.lane.b32.xlu0 %v2266, 66
  %v3288 = vpop.permute.xlu0 %3287
  %3289 = vrot.lane.b32.xlu0 %v2267, 66
  %v3290 = vpop.permute.xlu0 %3289
  %3291 = vrot.lane.b32.xlu0 %v2268, 66
  %v3292 = vpop.permute.xlu0 %3291
  %3293 = vrot.lane.b32.xlu0 %v2269, 66
  %v3294 = vpop.permute.xlu0 %3293
  %3295 = vrot.lane.b32.xlu0 %v2270, 66
  %v3296 = vpop.permute.xlu0 %3295
  %v3297 = vrot.slane %v3282, 4
  %v3298 = vrot.slane %v3284, 4
  %v3299 = vrot.slane %v3286, 4
  %v3300 = vrot.slane %v3288, 4
  %v3301 = vrot.slane %v3290, 4
  %v3302 = vrot.slane %v3292, 4
  %v3303 = vrot.slane %v3294, 4
  %v3304 = vrot.slane %v3296, 4
  %vm3305 = vcmask 539648
  %v3306 = vsel %vm3305, %v3297, %v3282
  %v3307 = vsel %vm250, %v3297, %v3298
  %v3308 = vsel %vm3305, %v3307, %v3284
  %v3309 = vsel %vm250, %v3298, %v3299
  %v3310 = vsel %vm3305, %v3309, %v3286
  %v3311 = vsel %vm250, %v3299, %v3300
  %v3312 = vsel %vm3305, %v3311, %v3288
  %v3313 = vsel %vm250, %v3300, %v3301
  %v3314 = vsel %vm3305, %v3313, %v3290
  %v3315 = vsel %vm250, %v3301, %v3302
  %v3316 = vsel %vm3305, %v3315, %v3292
  %v3317 = vsel %vm250, %v3302, %v3303
  %v3318 = vsel %vm3305, %v3317, %v3294
  %v3319 = vsel %vm250, %v3303, %v3304
  %v3320 = vsel %vm3305, %v3319, %v3296
  %vm3321 = vcmp.ne.s16.totalorder %v3306, 0
  %vm3322 = vcmp.ne.s16.totalorder %v3308, 0
  %vm3323 = vcmp.ne.s16.totalorder %v3310, 0
  %vm3324 = vcmp.ne.s16.totalorder %v3312, 0
  %vm3325 = vcmp.ne.s16.totalorder %v3314, 0
  %vm3326 = vcmp.ne.s16.totalorder %v3316, 0
  %vm3327 = vcmp.ne.s16.totalorder %v3318, 0
  %vm3328 = vcmp.ne.s16.totalorder %v3320, 0
  %vm3329 = vcmp.ne.s16.totalorder %v3304, 0
  %v3330 = vsel %vm3321, %v79, 0
  %v3331 = vsel %vm3322, %v80, 0
  %v3332 = vsel %vm3323, %v81, 0
  %v3333 = vsel %vm3324, %v82, 0
  %v3334 = vsel %vm3325, %v83, 0
  %v3335 = vsel %vm3326, %v84, 0
  %v3336 = vsel %vm3327, %v85, 0
  %v3337 = vsel %vm3328, %v86, 0
  %v3338 = vsel %vm3329, %v215, 0
  %3339 = vrot.lane.b32.xlu0 %v1247, 66
  %v3340 = vpop.permute.xlu0 %3339
  %3341 = vrot.lane.b32.xlu0 %v1248, 66
  %v3342 = vpop.permute.xlu0 %3341
  %3343 = vrot.lane.b32.xlu0 %v1249, 66
  %v3344 = vpop.permute.xlu0 %3343
  %3345 = vrot.lane.b32.xlu0 %v1250, 66
  %v3346 = vpop.permute.xlu0 %3345
  %3347 = vrot.lane.b32.xlu0 %v1251, 66
  %v3348 = vpop.permute.xlu0 %3347
  %3349 = vrot.lane.b32.xlu0 %v1252, 66
  %v3350 = vpop.permute.xlu0 %3349
  %3351 = vrot.lane.b32.xlu0 %v1253, 66
  %v3352 = vpop.permute.xlu0 %3351
  %3353 = vrot.lane.b32.xlu0 %v1254, 66
  %v3354 = vpop.permute.xlu0 %3353
  %v3355 = vrot.slane %v3340, 4
  %v3356 = vrot.slane %v3342, 4
  %v3357 = vrot.slane %v3344, 4
  %v3358 = vrot.slane %v3346, 4
  %v3359 = vrot.slane %v3348, 4
  %v3360 = vrot.slane %v3350, 4
  %v3361 = vrot.slane %v3352, 4
  %v3362 = vrot.slane %v3354, 4
  %v3363 = vsel %vm3305, %v3355, %v3340
  %v3364 = vsel %vm250, %v3355, %v3356
  %v3365 = vsel %vm3305, %v3364, %v3342
  %v3366 = vsel %vm250, %v3356, %v3357
  %v3367 = vsel %vm3305, %v3366, %v3344
  %v3368 = vsel %vm250, %v3357, %v3358
  %v3369 = vsel %vm3305, %v3368, %v3346
  %v3370 = vsel %vm250, %v3358, %v3359
  %v3371 = vsel %vm3305, %v3370, %v3348
  %v3372 = vsel %vm250, %v3359, %v3360
  %v3373 = vsel %vm3305, %v3372, %v3350
  %v3374 = vsel %vm250, %v3360, %v3361
  %v3375 = vsel %vm3305, %v3374, %v3352
  %v3376 = vsel %vm250, %v3361, %v3362
  %v3377 = vsel %vm3305, %v3376, %v3354
  %vm3378 = vcmp.ne.s16.totalorder %v3363, 0
  %vm3379 = vcmp.ne.s16.totalorder %v3365, 0
  %vm3380 = vcmp.ne.s16.totalorder %v3367, 0
  %vm3381 = vcmp.ne.s16.totalorder %v3369, 0
  %vm3382 = vcmp.ne.s16.totalorder %v3371, 0
  %vm3383 = vcmp.ne.s16.totalorder %v3373, 0
  %vm3384 = vcmp.ne.s16.totalorder %v3375, 0
  %vm3385 = vcmp.ne.s16.totalorder %v3377, 0
  %vm3386 = vcmp.ne.s16.totalorder %v3362, 0
  %v3387 = vsel %vm3378, %v3330, 0
  %v3388 = vsel %vm3379, %v3331, 0
  %v3389 = vsel %vm3380, %v3332, 0
  %v3390 = vsel %vm3381, %v3333, 0
  %v3391 = vsel %vm3382, %v3334, 0
  %v3392 = vsel %vm3383, %v3335, 0
  %v3393 = vsel %vm3384, %v3336, 0
  %v3394 = vsel %vm3385, %v3337, 0
  %v3395 = vsel %vm3386, %v3338, 0
  %3396 = vrot.lane.b32.xlu0 %v1539, 127
  %v3397 = vpop.permute.xlu0 %3396
  %3398 = vrot.lane.b32.xlu0 %v1540, 127
  %v3399 = vpop.permute.xlu0 %3398
  %3400 = vrot.lane.b32.xlu0 %v1541, 127
  %v3401 = vpop.permute.xlu0 %3400
  %3402 = vrot.lane.b32.xlu0 %v1542, 127
  %v3403 = vpop.permute.xlu0 %3402
  %3404 = vrot.lane.b32.xlu0 %v1543, 127
  %v3405 = vpop.permute.xlu0 %3404
  %3406 = vrot.lane.b32.xlu0 %v1544, 127
  %v3407 = vpop.permute.xlu0 %3406
  %3408 = vrot.lane.b32.xlu0 %v1545, 127
  %v3409 = vpop.permute.xlu0 %3408
  %3410 = vrot.lane.b32.xlu0 %v1546, 127
  %v3411 = vpop.permute.xlu0 %3410
  %3412 = vrot.lane.b32.xlu0 %v1547, 127
  %v3413 = vpop.permute.xlu0 %3412
  %3414 = vrot.lane.b32.xlu0 %v1548, 127
  %v3415 = vpop.permute.xlu0 %3414
  %3416 = vrot.lane.b32.xlu0 %v1549, 127
  %v3417 = vpop.permute.xlu0 %3416
  %3418 = vrot.lane.b32.xlu0 %v1550, 127
  %v3419 = vpop.permute.xlu0 %3418
  %3420 = vrot.lane.b32.xlu0 %v1551, 127
  %v3421 = vpop.permute.xlu0 %3420
  %3422 = vrot.lane.b32.xlu0 %v1552, 127
  %v3423 = vpop.permute.xlu0 %3422
  %3424 = vrot.lane.b32.xlu0 %v1553, 127
  %v3425 = vpop.permute.xlu0 %3424
  %3426 = vrot.lane.b32.xlu0 %v1554, 127
  %v3427 = vpop.permute.xlu0 %3426
  %3428 = vrot.lane.b32.xlu0 %v1555, 127
  %v3429 = vpop.permute.xlu0 %3428
  %v3430 = vsel %vm466, %v3397, %v3399
  %v3431 = vsel %vm466, %v3399, %v3401
  %v3432 = vsel %vm466, %v3401, %v3403
  %v3433 = vsel %vm466, %v3403, %v3405
  %v3434 = vsel %vm466, %v3405, %v3407
  %v3435 = vsel %vm466, %v3407, %v3409
  %v3436 = vsel %vm466, %v3409, %v3411
  %v3437 = vsel %vm466, %v3411, %v3413
  %v3438 = vsel %vm466, %v3413, %v3415
  %v3439 = vsel %vm466, %v3415, %v3417
  %v3440 = vsel %vm466, %v3417, %v3419
  %v3441 = vsel %vm466, %v3419, %v3421
  %v3442 = vsel %vm466, %v3421, %v3423
  %v3443 = vsel %vm466, %v3423, %v3425
  %v3444 = vsel %vm466, %v3425, %v3427
  %v3445 = vsel %vm466, %v3427, %v3429
  %3446 = vrot.lane.b32.xlu0 %v2613, 96
  %v3447 = vpop.permute.xlu0 %3446
  %3448 = vrot.lane.b32.xlu0 %v2614, 96
  %v3449 = vpop.permute.xlu0 %3448
  %3450 = vrot.lane.b32.xlu0 %v2615, 96
  %v3451 = vpop.permute.xlu0 %3450
  %3452 = vrot.lane.b32.xlu0 %v2616, 96
  %v3453 = vpop.permute.xlu0 %3452
  %3454 = vrot.lane.b32.xlu0 %v2617, 96
  %v3455 = vpop.permute.xlu0 %3454
  %3456 = vrot.lane.b32.xlu0 %v2618, 96
  %v3457 = vpop.permute.xlu0 %3456
  %3458 = vrot.lane.b32.xlu0 %v2619, 96
  %v3459 = vpop.permute.xlu0 %3458
  %3460 = vrot.lane.b32.xlu0 %v2620, 96
  %v3461 = vpop.permute.xlu0 %3460
  %3462 = vrot.lane.b32.xlu0 %v2621, 96
  %v3463 = vpop.permute.xlu0 %3462
  %3464 = vrot.lane.b32.xlu0 %v2622, 96
  %v3465 = vpop.permute.xlu0 %3464
  %3466 = vrot.lane.b32.xlu0 %v2623, 96
  %v3467 = vpop.permute.xlu0 %3466
  %3468 = vrot.lane.b32.xlu0 %v2624, 96
  %v3469 = vpop.permute.xlu0 %3468
  %3470 = vrot.lane.b32.xlu0 %v2625, 96
  %v3471 = vpop.permute.xlu0 %3470
  %3472 = vrot.lane.b32.xlu0 %v2626, 96
  %v3473 = vpop.permute.xlu0 %3472
  %3474 = vrot.lane.b32.xlu0 %v2627, 96
  %v3475 = vpop.permute.xlu0 %3474
  %3476 = vrot.lane.b32.xlu0 %v2628, 96
  %v3477 = vpop.permute.xlu0 %3476
  %3478 = vrot.lane.b32.xlu0 %v2629, 96
  %v3479 = vpop.permute.xlu0 %3478
  %v3480 = vsel %vm560, %v3447, %v3449
  %v3481 = vsel %vm560, %v3449, %v3451
  %v3482 = vsel %vm560, %v3451, %v3453
  %v3483 = vsel %vm560, %v3453, %v3455
  %v3484 = vsel %vm560, %v3455, %v3457
  %v3485 = vsel %vm560, %v3457, %v3459
  %v3486 = vsel %vm560, %v3459, %v3461
  %v3487 = vsel %vm560, %v3461, %v3463
  %v3488 = vsel %vm560, %v3463, %v3465
  %v3489 = vsel %vm560, %v3465, %v3467
  %v3490 = vsel %vm560, %v3467, %v3469
  %v3491 = vsel %vm560, %v3469, %v3471
  %v3492 = vsel %vm560, %v3471, %v3473
  %v3493 = vsel %vm560, %v3473, %v3475
  %v3494 = vsel %vm560, %v3475, %v3477
  %v3495 = vsel %vm560, %v3477, %v3479
  %v3505 = vunpack.c.l.b16 %v3387
  %v3506 = vunpack.c.h.b16 %v3387
  %v3507 = vunpack.c.l.b16 %v3388
  %v3508 = vunpack.c.h.b16 %v3388
  %v3509 = vunpack.c.l.b16 %v3389
  %v3510 = vunpack.c.h.b16 %v3389
  %v3511 = vunpack.c.l.b16 %v3390
  %v3512 = vunpack.c.h.b16 %v3390
  %v3513 = vunpack.c.l.b16 %v3391
  %v3514 = vunpack.c.h.b16 %v3391
  %v3515 = vunpack.c.l.b16 %v3392
  %v3516 = vunpack.c.h.b16 %v3392
  %v3517 = vunpack.c.l.b16 %v3393
  %v3518 = vunpack.c.h.b16 %v3393
  %v3519 = vunpack.c.l.b16 %v3394
  %v3520 = vunpack.c.h.b16 %v3394
  %v3521 = vunpack.c.l.b16 %v3395
  %v3522 = vpack.c.b16 %v3505, %v3505
  %v3523 = vpack.c.b16 %v3506, %v3506
  %v3524 = vpack.c.b16 %v3507, %v3507
  %v3525 = vpack.c.b16 %v3508, %v3508
  %v3526 = vpack.c.b16 %v3509, %v3509
  %v3527 = vpack.c.b16 %v3510, %v3510
  %v3528 = vpack.c.b16 %v3511, %v3511
  %v3529 = vpack.c.b16 %v3512, %v3512
  %v3530 = vpack.c.b16 %v3513, %v3513
  %v3531 = vpack.c.b16 %v3514, %v3514
  %v3532 = vpack.c.b16 %v3515, %v3515
  %v3533 = vpack.c.b16 %v3516, %v3516
  %v3534 = vpack.c.b16 %v3517, %v3517
  %v3535 = vpack.c.b16 %v3518, %v3518
  %v3536 = vpack.c.b16 %v3519, %v3519
  %v3537 = vpack.c.b16 %v3520, %v3520
  %v3538 = vpack.c.b16 %v3521, %v3521
  %3539 = vrot.lane.b32.xlu0 %v3522, 95
  %v3540 = vpop.permute.xlu0 %3539
  %3541 = vrot.lane.b32.xlu0 %v3523, 95
  %v3542 = vpop.permute.xlu0 %3541
  %3543 = vrot.lane.b32.xlu0 %v3524, 95
  %v3544 = vpop.permute.xlu0 %3543
  %3545 = vrot.lane.b32.xlu0 %v3525, 95
  %v3546 = vpop.permute.xlu0 %3545
  %3547 = vrot.lane.b32.xlu0 %v3526, 95
  %v3548 = vpop.permute.xlu0 %3547
  %3549 = vrot.lane.b32.xlu0 %v3527, 95
  %v3550 = vpop.permute.xlu0 %3549
  %3551 = vrot.lane.b32.xlu0 %v3528, 95
  %v3552 = vpop.permute.xlu0 %3551
  %3553 = vrot.lane.b32.xlu0 %v3529, 95
  %v3554 = vpop.permute.xlu0 %3553
  %3555 = vrot.lane.b32.xlu0 %v3530, 95
  %v3556 = vpop.permute.xlu0 %3555
  %3557 = vrot.lane.b32.xlu0 %v3531, 95
  %v3558 = vpop.permute.xlu0 %3557
  %3559 = vrot.lane.b32.xlu0 %v3532, 95
  %v3560 = vpop.permute.xlu0 %3559
  %3561 = vrot.lane.b32.xlu0 %v3533, 95
  %v3562 = vpop.permute.xlu0 %3561
  %3563 = vrot.lane.b32.xlu0 %v3534, 95
  %v3564 = vpop.permute.xlu0 %3563
  %3565 = vrot.lane.b32.xlu0 %v3535, 95
  %v3566 = vpop.permute.xlu0 %3565
  %3567 = vrot.lane.b32.xlu0 %v3536, 95
  %v3568 = vpop.permute.xlu0 %3567
  %3569 = vrot.lane.b32.xlu0 %v3537, 95
  %v3570 = vpop.permute.xlu0 %3569
  %3571 = vrot.lane.b32.xlu0 %v3538, 95
  %v3572 = vpop.permute.xlu0 %3571
  %v3573 = vsel %vm654, %v3540, %v3542
  %v3574 = vsel %vm654, %v3542, %v3544
  %v3575 = vsel %vm654, %v3544, %v3546
  %v3576 = vsel %vm654, %v3546, %v3548
  %v3577 = vsel %vm654, %v3548, %v3550
  %v3578 = vsel %vm654, %v3550, %v3552
  %v3579 = vsel %vm654, %v3552, %v3554
  %v3580 = vsel %vm654, %v3554, %v3556
  %v3581 = vsel %vm654, %v3556, %v3558
  %v3582 = vsel %vm654, %v3558, %v3560
  %v3583 = vsel %vm654, %v3560, %v3562
  %v3584 = vsel %vm654, %v3562, %v3564
  %v3585 = vsel %vm654, %v3564, %v3566
  %v3586 = vsel %vm654, %v3566, %v3568
  %v3587 = vsel %vm654, %v3568, %v3570
  %v3588 = vsel %vm654, %v3570, %v3572
  %v3591 = vsel %vm671, %v603, %v3430
  %v3594 = vsel %vm671, %v604, %v3431
  %v3597 = vsel %vm671, %v605, %v3432
  %v3600 = vsel %vm671, %v606, %v3433
  %v3603 = vsel %vm671, %v607, %v3434
  %v3606 = vsel %vm671, %v608, %v3435
  %v3609 = vsel %vm671, %v609, %v3436
  %v3612 = vsel %vm671, %v610, %v3437
  %v3615 = vsel %vm671, %v611, %v3438
  %v3618 = vsel %vm671, %v612, %v3439
  %v3621 = vsel %vm671, %v613, %v3440
  %v3624 = vsel %vm671, %v614, %v3441
  %v3627 = vsel %vm671, %v615, %v3442
  %v3630 = vsel %vm671, %v616, %v3443
  %v3633 = vsel %vm671, %v617, %v3444
  %v3636 = vsel %vm671, %v618, %v3445
  %v3639 = vsel %vm671, %v619, %v3429
  %v3642 = vsel %vm671, %v3480, %v3573
  %v3645 = vsel %vm671, %v3481, %v3574
  %v3648 = vsel %vm671, %v3482, %v3575
  %v3651 = vsel %vm671, %v3483, %v3576
  %v3654 = vsel %vm671, %v3484, %v3577
  %v3657 = vsel %vm671, %v3485, %v3578
  %v3660 = vsel %vm671, %v3486, %v3579
  %v3663 = vsel %vm671, %v3487, %v3580
  %v3666 = vsel %vm671, %v3488, %v3581
  %v3669 = vsel %vm671, %v3489, %v3582
  %v3672 = vsel %vm671, %v3490, %v3583
  %v3675 = vsel %vm671, %v3491, %v3584
  %v3678 = vsel %vm671, %v3492, %v3585
  %v3681 = vsel %vm671, %v3493, %v3586
  %v3684 = vsel %vm671, %v3494, %v3587
  %v3687 = vsel %vm671, %v3495, %v3588
  %v3690 = vsel %vm671, %v3479, %v3572
  %s3691 = scalar_lea.vmem %s1, 6
  %v3692 = vld [vmem:[%s3691] sm:$0x3]
  %3727 = vrot.lane.b32.xlu0 %v3591, 95
  %v3728 = vpop.permute.xlu0 %3727
  %3729 = vrot.lane.b32.xlu0 %v3594, 95
  %v3730 = vpop.permute.xlu0 %3729
  %3731 = vrot.lane.b32.xlu0 %v3597, 95
  %v3732 = vpop.permute.xlu0 %3731
  %3733 = vrot.lane.b32.xlu0 %v3600, 95
  %v3734 = vpop.permute.xlu0 %3733
  %3735 = vrot.lane.b32.xlu0 %v3603, 95
  %v3736 = vpop.permute.xlu0 %3735
  %3737 = vrot.lane.b32.xlu0 %v3606, 95
  %v3738 = vpop.permute.xlu0 %3737
  %3739 = vrot.lane.b32.xlu0 %v3609, 95
  %v3740 = vpop.permute.xlu0 %3739
  %3741 = vrot.lane.b32.xlu0 %v3612, 95
  %v3742 = vpop.permute.xlu0 %3741
  %3743 = vrot.lane.b32.xlu0 %v3615, 95
  %v3744 = vpop.permute.xlu0 %3743
  %3745 = vrot.lane.b32.xlu0 %v3618, 95
  %v3746 = vpop.permute.xlu0 %3745
  %3747 = vrot.lane.b32.xlu0 %v3621, 95
  %v3748 = vpop.permute.xlu0 %3747
  %3749 = vrot.lane.b32.xlu0 %v3624, 95
  %v3750 = vpop.permute.xlu0 %3749
  %3751 = vrot.lane.b32.xlu0 %v3627, 95
  %v3752 = vpop.permute.xlu0 %3751
  %3753 = vrot.lane.b32.xlu0 %v3630, 95
  %v3754 = vpop.permute.xlu0 %3753
  %3755 = vrot.lane.b32.xlu0 %v3633, 95
  %v3756 = vpop.permute.xlu0 %3755
  %3757 = vrot.lane.b32.xlu0 %v3636, 95
  %v3758 = vpop.permute.xlu0 %3757
  %3759 = vrot.lane.b32.xlu0 %v3639, 95
  %v3760 = vpop.permute.xlu0 %3759
  %3761 = vrot.lane.b32.xlu0 %v3642, 95
  %v3762 = vpop.permute.xlu0 %3761
  %3763 = vrot.lane.b32.xlu0 %v3645, 95
  %v3764 = vpop.permute.xlu0 %3763
  %3765 = vrot.lane.b32.xlu0 %v3648, 95
  %v3766 = vpop.permute.xlu0 %3765
  %3767 = vrot.lane.b32.xlu0 %v3651, 95
  %v3768 = vpop.permute.xlu0 %3767
  %3769 = vrot.lane.b32.xlu0 %v3654, 95
  %v3770 = vpop.permute.xlu0 %3769
  %3771 = vrot.lane.b32.xlu0 %v3657, 95
  %v3772 = vpop.permute.xlu0 %3771
  %3773 = vrot.lane.b32.xlu0 %v3660, 95
  %v3774 = vpop.permute.xlu0 %3773
  %3775 = vrot.lane.b32.xlu0 %v3663, 95
  %v3776 = vpop.permute.xlu0 %3775
  %3777 = vrot.lane.b32.xlu0 %v3666, 95
  %v3778 = vpop.permute.xlu0 %3777
  %3779 = vrot.lane.b32.xlu0 %v3669, 95
  %v3780 = vpop.permute.xlu0 %3779
  %3781 = vrot.lane.b32.xlu0 %v3672, 95
  %v3782 = vpop.permute.xlu0 %3781
  %3783 = vrot.lane.b32.xlu0 %v3675, 95
  %v3784 = vpop.permute.xlu0 %3783
  %3785 = vrot.lane.b32.xlu0 %v3678, 95
  %v3786 = vpop.permute.xlu0 %3785
  %3787 = vrot.lane.b32.xlu0 %v3681, 95
  %v3788 = vpop.permute.xlu0 %3787
  %3789 = vrot.lane.b32.xlu0 %v3684, 95
  %v3790 = vpop.permute.xlu0 %3789
  %3791 = vrot.lane.b32.xlu0 %v3687, 95
  %v3792 = vpop.permute.xlu0 %3791
  %3793 = vrot.lane.b32.xlu0 %v3690, 95
  %v3794 = vpop.permute.xlu0 %3793
  %v3795 = vsel %vm654, %v3728, %v3730
  %v3796 = vsel %vm654, %v3730, %v3732
  %v3797 = vsel %vm654, %v3732, %v3734
  %v3798 = vsel %vm654, %v3734, %v3736
  %v3799 = vsel %vm654, %v3736, %v3738
  %v3800 = vsel %vm654, %v3738, %v3740
  %v3801 = vsel %vm654, %v3740, %v3742
  %v3802 = vsel %vm654, %v3742, %v3744
  %v3803 = vsel %vm654, %v3744, %v3746
  %v3804 = vsel %vm654, %v3746, %v3748
  %v3805 = vsel %vm654, %v3748, %v3750
  %v3806 = vsel %vm654, %v3750, %v3752
  %v3807 = vsel %vm654, %v3752, %v3754
  %v3808 = vsel %vm654, %v3754, %v3756
  %v3809 = vsel %vm654, %v3756, %v3758
  %v3810 = vsel %vm654, %v3758, %v3760
  %v3811 = vsel %vm654, %v3762, %v3764
  %v3812 = vsel %vm654, %v3764, %v3766
  %v3813 = vsel %vm654, %v3766, %v3768
  %v3814 = vsel %vm654, %v3768, %v3770
  %v3815 = vsel %vm654, %v3770, %v3772
  %v3816 = vsel %vm654, %v3772, %v3774
  %v3817 = vsel %vm654, %v3774, %v3776
  %v3818 = vsel %vm654, %v3776, %v3778
  %v3819 = vsel %vm654, %v3778, %v3780
  %v3820 = vsel %vm654, %v3780, %v3782
  %v3821 = vsel %vm654, %v3782, %v3784
  %v3822 = vsel %vm654, %v3784, %v3786
  %v3823 = vsel %vm654, %v3786, %v3788
  %v3824 = vsel %vm654, %v3788, %v3790
  %v3825 = vsel %vm654, %v3790, %v3792
  %v3826 = vsel %vm654, %v3792, %v3794
  %v3860 = vsel %vm801, %v3692, 0
  %3862 = vmatprep.subr.bf16.mxu0 %v3796
  %3863 = vmatpush1.bf16.msra.mxu0 %v3795
  %3864 = vmatprep.subr.bf16.mxu0 %v3812
  %3865 = vmatpush1.bf16.msra.mxu0 %v3811
  %3866 = vmatprep.subr.bf16.mxu0 0
  %3867 = vmatpush1.bf16.msra.mxu0 0
  %3868 = vmatprep.subr.bf16.mxu0 0
  %3869 = vmatpush1.bf16.msra.mxu0 0
  %3870 = vmatprep.subr.bf16.mxu0 0
  %3871 = vmatpush1.bf16.msra.mxu0 0
  %3872 = vmatprep.subr.bf16.mxu0 0
  %3873 = vmatpush1.bf16.msra.mxu0 0
  %3874 = vmatprep.subr.bf16.mxu0 0
  %3875 = vmatpush1.bf16.msra.mxu0 0
  %3876 = vmatprep.subr.bf16.mxu0 0
  %3877 = vmatpush1.bf16.msra.mxu0 0
  %3878 = vmatprep.subr.bf16.mxu0 0
  %3879 = vmatpush1.bf16.msra.mxu0 0
  %3880 = vmatprep.subr.bf16.mxu0 0
  %3881 = vmatpush1.bf16.msra.mxu0 0
  %3882 = vmatprep.subr.bf16.mxu0 0
  %3883 = vmatpush1.bf16.msra.mxu0 0
  %3884 = vmatprep.subr.bf16.mxu0 0
  %3885 = vmatpush1.bf16.msra.mxu0 0
  %3886 = vmatprep.subr.bf16.mxu0 0
  %3887 = vmatpush1.bf16.msra.mxu0 0
  %3888 = vmatprep.subr.bf16.mxu0 0
  %3889 = vmatpush1.bf16.msra.mxu0 0
  %3890 = vmatprep.subr.bf16.mxu0 0
  %3891 = vmatpush1.bf16.msra.mxu0 0
  %3892 = vmatprep.subr.bf16.mxu0 0
  %3893 = vmatpush1.bf16.msra.mxu0 0
  %3894 = vmatprep.mubr.bf16.mxu0 0
  %3895 = vmatmul.mubr.bf16.gmra.mrb[0].mxu0 %v3860
  %v3896 = vpop.f32.mrb[0].mxu0
  %v3897 = vadd.f32 0.0, %v3896
  %v3898 = vpop.f32.mrb[0].mxu0
  %v3899 = vadd.f32 0.0, %v3898
  %v3900 = vpop.f32.mrb[0].mxu0
  %v3901 = vpop.f32.mrb[0].mxu0
  %3902 = vdwg.mxu0
  %3903 = vmatprep.subr.bf16.mxu0 %v3798
  %3904 = vmatpush1.bf16.msra.mxu0 %v3797
  %3905 = vmatprep.subr.bf16.mxu0 %v3814
  %3906 = vmatpush1.bf16.msra.mxu0 %v3813
  %3907 = vmatprep.subr.bf16.mxu0 0
  %3908 = vmatpush1.bf16.msra.mxu0 0
  %3909 = vmatprep.subr.bf16.mxu0 0
  %3910 = vmatpush1.bf16.msra.mxu0 0
  %3911 = vmatprep.subr.bf16.mxu0 0
  %3912 = vmatpush1.bf16.msra.mxu0 0
  %3913 = vmatprep.subr.bf16.mxu0 0
  %3914 = vmatpush1.bf16.msra.mxu0 0
  %3915 = vmatprep.subr.bf16.mxu0 0
  %3916 = vmatpush1.bf16.msra.mxu0 0
  %3917 = vmatprep.subr.bf16.mxu0 0
  %3918 = vmatpush1.bf16.msra.mxu0 0
  %3919 = vmatprep.subr.bf16.mxu0 0
  %3920 = vmatpush1.bf16.msra.mxu0 0
  %3921 = vmatprep.subr.bf16.mxu0 0
  %3922 = vmatpush1.bf16.msra.mxu0 0
  %3923 = vmatprep.subr.bf16.mxu0 0
  %3924 = vmatpush1.bf16.msra.mxu0 0
  %3925 = vmatprep.subr.bf16.mxu0 0
  %3926 = vmatpush1.bf16.msra.mxu0 0
  %3927 = vmatprep.subr.bf16.mxu0 0
  %3928 = vmatpush1.bf16.msra.mxu0 0
  %3929 = vmatprep.subr.bf16.mxu0 0
  %3930 = vmatpush1.bf16.msra.mxu0 0
  %3931 = vmatprep.subr.bf16.mxu0 0
  %3932 = vmatpush1.bf16.msra.mxu0 0
  %3933 = vmatprep.subr.bf16.mxu0 0
  %3934 = vmatpush1.bf16.msra.mxu0 0
  %3935 = vmatprep.mubr.bf16.mxu0 0
  %3936 = vmatmul.mubr.bf16.gmra.mrb[0].mxu0 %v3860
  %v3937 = vpop.f32.mrb[0].mxu0
  %v3938 = vadd.f32 0.0, %v3937
  %v3939 = vpop.f32.mrb[0].mxu0
  %v3940 = vadd.f32 0.0, %v3939
  %v3941 = vpop.f32.mrb[0].mxu0
  %v3942 = vpop.f32.mrb[0].mxu0
  %3943 = vdwg.mxu0
  %3944 = vmatprep.subr.bf16.mxu0 %v3800
  %3945 = vmatpush1.bf16.msra.mxu0 %v3799
  %3946 = vmatprep.subr.bf16.mxu0 %v3816
  %3947 = vmatpush1.bf16.msra.mxu0 %v3815
  %3948 = vmatprep.subr.bf16.mxu0 0
  %3949 = vmatpush1.bf16.msra.mxu0 0
  %3950 = vmatprep.subr.bf16.mxu0 0
  %3951 = vmatpush1.bf16.msra.mxu0 0
  %3952 = vmatprep.subr.bf16.mxu0 0
  %3953 = vmatpush1.bf16.msra.mxu0 0
  %3954 = vmatprep.subr.bf16.mxu0 0
  %3955 = vmatpush1.bf16.msra.mxu0 0
  %3956 = vmatprep.subr.bf16.mxu0 0
  %3957 = vmatpush1.bf16.msra.mxu0 0
  %3958 = vmatprep.subr.bf16.mxu0 0
  %3959 = vmatpush1.bf16.msra.mxu0 0
  %3960 = vmatprep.subr.bf16.mxu0 0
  %3961 = vmatpush1.bf16.msra.mxu0 0
  %3962 = vmatprep.subr.bf16.mxu0 0
  %3963 = vmatpush1.bf16.msra.mxu0 0
  %3964 = vmatprep.subr.bf16.mxu0 0
  %3965 = vmatpush1.bf16.msra.mxu0 0
  %3966 = vmatprep.subr.bf16.mxu0 0
  %3967 = vmatpush1.bf16.msra.mxu0 0
  %3968 = vmatprep.subr.bf16.mxu0 0
  %3969 = vmatpush1.bf16.msra.mxu0 0
  %3970 = vmatprep.subr.bf16.mxu0 0
  %3971 = vmatpush1.bf16.msra.mxu0 0
  %3972 = vmatprep.subr.bf16.mxu0 0
  %3973 = vmatpush1.bf16.msra.mxu0 0
  %3974 = vmatprep.subr.bf16.mxu0 0
  %3975 = vmatpush1.bf16.msra.mxu0 0
  %3976 = vmatprep.mubr.bf16.mxu0 0
  %3977 = vmatmul.mubr.bf16.gmra.mrb[0].mxu0 %v3860
  %v3978 = vpop.f32.mrb[0].mxu0
  %v3979 = vadd.f32 0.0, %v3978
  %v3980 = vpop.f32.mrb[0].mxu0
  %v3981 = vadd.f32 0.0, %v3980
  %v3982 = vpop.f32.mrb[0].mxu0
  %v3983 = vpop.f32.mrb[0].mxu0
  %3984 = vdwg.mxu0
  %3985 = vmatprep.subr.bf16.mxu0 %v3802
  %3986 = vmatpush1.bf16.msra.mxu0 %v3801
  %3987 = vmatprep.subr.bf16.mxu0 %v3818
  %3988 = vmatpush1.bf16.msra.mxu0 %v3817
  %3989 = vmatprep.subr.bf16.mxu0 0
  %3990 = vmatpush1.bf16.msra.mxu0 0
  %3991 = vmatprep.subr.bf16.mxu0 0
  %3992 = vmatpush1.bf16.msra.mxu0 0
  %3993 = vmatprep.subr.bf16.mxu0 0
  %3994 = vmatpush1.bf16.msra.mxu0 0
  %3995 = vmatprep.subr.bf16.mxu0 0
  %3996 = vmatpush1.bf16.msra.mxu0 0
  %3997 = vmatprep.subr.bf16.mxu0 0
  %3998 = vmatpush1.bf16.msra.mxu0 0
  %3999 = vmatprep.subr.bf16.mxu0 0
  %4000 = vmatpush1.bf16.msra.mxu0 0
  %4001 = vmatprep.subr.bf16.mxu0 0
  %4002 = vmatpush1.bf16.msra.mxu0 0
  %4003 = vmatprep.subr.bf16.mxu0 0
  %4004 = vmatpush1.bf16.msra.mxu0 0
  %4005 = vmatprep.subr.bf16.mxu0 0
  %4006 = vmatpush1.bf16.msra.mxu0 0
  %4007 = vmatprep.subr.bf16.mxu0 0
  %4008 = vmatpush1.bf16.msra.mxu0 0
  %4009 = vmatprep.subr.bf16.mxu0 0
  %4010 = vmatpush1.bf16.msra.mxu0 0
  %4011 = vmatprep.subr.bf16.mxu0 0
  %4012 = vmatpush1.bf16.msra.mxu0 0
  %4013 = vmatprep.subr.bf16.mxu0 0
  %4014 = vmatpush1.bf16.msra.mxu0 0
  %4015 = vmatprep.subr.bf16.mxu0 0
  %4016 = vmatpush1.bf16.msra.mxu0 0
  %4017 = vmatprep.mubr.bf16.mxu0 0
  %4018 = vmatmul.mubr.bf16.gmra.mrb[0].mxu0 %v3860
  %v4019 = vpop.f32.mrb[0].mxu0
  %v4020 = vadd.f32 0.0, %v4019
  %v4021 = vpop.f32.mrb[0].mxu0
  %v4022 = vadd.f32 0.0, %v4021
  %v4023 = vpop.f32.mrb[0].mxu0
  %v4024 = vpop.f32.mrb[0].mxu0
  %4025 = vdwg.mxu0
  %4026 = vmatprep.subr.bf16.mxu0 %v3804
  %4027 = vmatpush1.bf16.msra.mxu0 %v3803
  %4028 = vmatprep.subr.bf16.mxu0 %v3820
  %4029 = vmatpush1.bf16.msra.mxu0 %v3819
  %4030 = vmatprep.subr.bf16.mxu0 0
  %4031 = vmatpush1.bf16.msra.mxu0 0
  %4032 = vmatprep.subr.bf16.mxu0 0
  %4033 = vmatpush1.bf16.msra.mxu0 0
  %4034 = vmatprep.subr.bf16.mxu0 0
  %4035 = vmatpush1.bf16.msra.mxu0 0
  %4036 = vmatprep.subr.bf16.mxu0 0
  %4037 = vmatpush1.bf16.msra.mxu0 0
  %4038 = vmatprep.subr.bf16.mxu0 0
  %4039 = vmatpush1.bf16.msra.mxu0 0
  %4040 = vmatprep.subr.bf16.mxu0 0
  %4041 = vmatpush1.bf16.msra.mxu0 0
  %4042 = vmatprep.subr.bf16.mxu0 0
  %4043 = vmatpush1.bf16.msra.mxu0 0
  %4044 = vmatprep.subr.bf16.mxu0 0
  %4045 = vmatpush1.bf16.msra.mxu0 0
  %4046 = vmatprep.subr.bf16.mxu0 0
  %4047 = vmatpush1.bf16.msra.mxu0 0
  %4048 = vmatprep.subr.bf16.mxu0 0
  %4049 = vmatpush1.bf16.msra.mxu0 0
  %4050 = vmatprep.subr.bf16.mxu0 0
  %4051 = vmatpush1.bf16.msra.mxu0 0
  %4052 = vmatprep.subr.bf16.mxu0 0
  %4053 = vmatpush1.bf16.msra.mxu0 0
  %4054 = vmatprep.subr.bf16.mxu0 0
  %4055 = vmatpush1.bf16.msra.mxu0 0
  %4056 = vmatprep.subr.bf16.mxu0 0
  %4057 = vmatpush1.bf16.msra.mxu0 0
  %4058 = vmatprep.mubr.bf16.mxu0 0
  %4059 = vmatmul.mubr.bf16.gmra.mrb[0].mxu0 %v3860
  %v4060 = vpop.f32.mrb[0].mxu0
  %v4061 = vadd.f32 0.0, %v4060
  %v4062 = vpop.f32.mrb[0].mxu0
  %v4063 = vadd.f32 0.0, %v4062
  %v4064 = vpop.f32.mrb[0].mxu0
  %v4065 = vpop.f32.mrb[0].mxu0
  %4066 = vdwg.mxu0
  %4067 = vmatprep.subr.bf16.mxu0 %v3806
  %4068 = vmatpush1.bf16.msra.mxu0 %v3805
  %4069 = vmatprep.subr.bf16.mxu0 %v3822
  %4070 = vmatpush1.bf16.msra.mxu0 %v3821
  %4071 = vmatprep.subr.bf16.mxu0 0
  %4072 = vmatpush1.bf16.msra.mxu0 0
  %4073 = vmatprep.subr.bf16.mxu0 0
  %4074 = vmatpush1.bf16.msra.mxu0 0
  %4075 = vmatprep.subr.bf16.mxu0 0
  %4076 = vmatpush1.bf16.msra.mxu0 0
  %4077 = vmatprep.subr.bf16.mxu0 0
  %4078 = vmatpush1.bf16.msra.mxu0 0
  %4079 = vmatprep.subr.bf16.mxu0 0
  %4080 = vmatpush1.bf16.msra.mxu0 0
  %4081 = vmatprep.subr.bf16.mxu0 0
  %4082 = vmatpush1.bf16.msra.mxu0 0
  %4083 = vmatprep.subr.bf16.mxu0 0
  %4084 = vmatpush1.bf16.msra.mxu0 0
  %4085 = vmatprep.subr.bf16.mxu0 0
  %4086 = vmatpush1.bf16.msra.mxu0 0
  %4087 = vmatprep.subr.bf16.mxu0 0
  %4088 = vmatpush1.bf16.msra.mxu0 0
  %4089 = vmatprep.subr.bf16.mxu0 0
  %4090 = vmatpush1.bf16.msra.mxu0 0
  %4091 = vmatprep.subr.bf16.mxu0 0
  %4092 = vmatpush1.bf16.msra.mxu0 0
  %4093 = vmatprep.subr.bf16.mxu0 0
  %4094 = vmatpush1.bf16.msra.mxu0 0
  %4095 = vmatprep.subr.bf16.mxu0 0
  %4096 = vmatpush1.bf16.msra.mxu0 0
  %4097 = vmatprep.subr.bf16.mxu0 0
  %4098 = vmatpush1.bf16.msra.mxu0 0
  %4099 = vmatprep.mubr.bf16.mxu0 0
  %4100 = vmatmul.mubr.bf16.gmra.mrb[0].mxu0 %v3860
  %v4101 = vpop.f32.mrb[0].mxu0
  %v4102 = vadd.f32 0.0, %v4101
  %v4103 = vpop.f32.mrb[0].mxu0
  %v4104 = vadd.f32 0.0, %v4103
  %v4105 = vpop.f32.mrb[0].mxu0
  %v4106 = vpop.f32.mrb[0].mxu0
  %4107 = vdwg.mxu0
  %4108 = vmatprep.subr.bf16.mxu0 %v3808
  %4109 = vmatpush1.bf16.msra.mxu0 %v3807
  %4110 = vmatprep.subr.bf16.mxu0 %v3824
  %4111 = vmatpush1.bf16.msra.mxu0 %v3823
  %4112 = vmatprep.subr.bf16.mxu0 0
  %4113 = vmatpush1.bf16.msra.mxu0 0
  %4114 = vmatprep.subr.bf16.mxu0 0
  %4115 = vmatpush1.bf16.msra.mxu0 0
  %4116 = vmatprep.subr.bf16.mxu0 0
  %4117 = vmatpush1.bf16.msra.mxu0 0
  %4118 = vmatprep.subr.bf16.mxu0 0
  %4119 = vmatpush1.bf16.msra.mxu0 0
  %4120 = vmatprep.subr.bf16.mxu0 0
  %4121 = vmatpush1.bf16.msra.mxu0 0
  %4122 = vmatprep.subr.bf16.mxu0 0
  %4123 = vmatpush1.bf16.msra.mxu0 0
  %4124 = vmatprep.subr.bf16.mxu0 0
  %4125 = vmatpush1.bf16.msra.mxu0 0
  %4126 = vmatprep.subr.bf16.mxu0 0
  %4127 = vmatpush1.bf16.msra.mxu0 0
  %4128 = vmatprep.subr.bf16.mxu0 0
  %4129 = vmatpush1.bf16.msra.mxu0 0
  %4130 = vmatprep.subr.bf16.mxu0 0
  %4131 = vmatpush1.bf16.msra.mxu0 0
  %4132 = vmatprep.subr.bf16.mxu0 0
  %4133 = vmatpush1.bf16.msra.mxu0 0
  %4134 = vmatprep.subr.bf16.mxu0 0
  %4135 = vmatpush1.bf16.msra.mxu0 0
  %4136 = vmatprep.subr.bf16.mxu0 0
  %4137 = vmatpush1.bf16.msra.mxu0 0
  %4138 = vmatprep.subr.bf16.mxu0 0
  %4139 = vmatpush1.bf16.msra.mxu0 0
  %4140 = vmatprep.mubr.bf16.mxu0 0
  %4141 = vmatmul.mubr.bf16.gmra.mrb[0].mxu0 %v3860
  %v4142 = vpop.f32.mrb[0].mxu0
  %v4143 = vadd.f32 0.0, %v4142
  %v4144 = vpop.f32.mrb[0].mxu0
  %v4145 = vadd.f32 0.0, %v4144
  %v4146 = vpop.f32.mrb[0].mxu0
  %v4147 = vpop.f32.mrb[0].mxu0
  %4148 = vdwg.mxu0
  %4149 = vmatprep.subr.bf16.mxu0 %v3810
  %4150 = vmatpush1.bf16.msra.mxu0 %v3809
  %4151 = vmatprep.subr.bf16.mxu0 %v3826
  %4152 = vmatpush1.bf16.msra.mxu0 %v3825
  %4153 = vmatprep.subr.bf16.mxu0 0
  %4154 = vmatpush1.bf16.msra.mxu0 0
  %4155 = vmatprep.subr.bf16.mxu0 0
  %4156 = vmatpush1.bf16.msra.mxu0 0
  %4157 = vmatprep.subr.bf16.mxu0 0
  %4158 = vmatpush1.bf16.msra.mxu0 0
  %4159 = vmatprep.subr.bf16.mxu0 0
  %4160 = vmatpush1.bf16.msra.mxu0 0
  %4161 = vmatprep.subr.bf16.mxu0 0
  %4162 = vmatpush1.bf16.msra.mxu0 0
  %4163 = vmatprep.subr.bf16.mxu0 0
  %4164 = vmatpush1.bf16.msra.mxu0 0
  %4165 = vmatprep.subr.bf16.mxu0 0
  %4166 = vmatpush1.bf16.msra.mxu0 0
  %4167 = vmatprep.subr.bf16.mxu0 0
  %4168 = vmatpush1.bf16.msra.mxu0 0
  %4169 = vmatprep.subr.bf16.mxu0 0
  %4170 = vmatpush1.bf16.msra.mxu0 0
  %4171 = vmatprep.subr.bf16.mxu0 0
  %4172 = vmatpush1.bf16.msra.mxu0 0
  %4173 = vmatprep.subr.bf16.mxu0 0
  %4174 = vmatpush1.bf16.msra.mxu0 0
  %4175 = vmatprep.subr.bf16.mxu0 0
  %4176 = vmatpush1.bf16.msra.mxu0 0
  %4177 = vmatprep.subr.bf16.mxu0 0
  %4178 = vmatpush1.bf16.msra.mxu0 0
  %4179 = vmatprep.subr.bf16.mxu0 0
  %4180 = vmatpush1.bf16.msra.mxu0 0
  %4181 = vmatprep.mubr.bf16.mxu0 0
  %4182 = vmatmul.mubr.bf16.gmra.mrb[0].mxu0 %v3860
  %v4183 = vpop.f32.mrb[0].mxu0
  %v4184 = vadd.f32 0.0, %v4183
  %v4185 = vpop.f32.mrb[0].mxu0
  %v4186 = vadd.f32 0.0, %v4185
  %v4187 = vpop.f32.mrb[0].mxu0
  %v4188 = vpop.f32.mrb[0].mxu0
  %4189 = vdwg.mxu0
  %v4190 = vtanh.pop %v840
  %v4191 = vtanh.pop %v842
  %v4192 = vtanh.pop %v881
  %v4193 = vtanh.pop %v883
  %v4194 = vtanh.pop %v922
  %v4195 = vtanh.pop %v924
  %v4196 = vtanh.pop %v963
  %v4197 = vtanh.pop %v965
  %v4198 = vtanh.pop %v1004
  %v4199 = vtanh.pop %v1006
  %v4200 = vtanh.pop %v1045
  %v4201 = vtanh.pop %v1047
  %v4202 = vtanh.pop %v1086
  %v4203 = vtanh.pop %v1088
  %v4204 = vtanh.pop %v1127
  %v4205 = vtanh.pop %v1129
  %v4222 = vcombine.low %v4190, %v4191
  %v4223 = vcombine.low %v4192, %v4193
  %v4224 = vcombine.low %v4194, %v4195
  %v4225 = vcombine.low %v4196, %v4197
  %v4226 = vcombine.low %v4198, %v4199
  %v4227 = vcombine.low %v4200, %v4201
  %v4228 = vcombine.low %v4202, %v4203
  %v4229 = vcombine.low %v4204, %v4205
  %4238 = vst [vmem:[%s2] sm:$0x77] %v4222
  %4239 = vst [vmem:[%s2 + $0x8] sm:$0x77] %v4223
  %4240 = vst [vmem:[%s2 + $0x10] sm:$0x77] %v4224
  %4241 = vst [vmem:[%s2 + $0x18] sm:$0x77] %v4225
  %4242 = vst [vmem:[%s2 + $0x20] sm:$0x77] %v4226
  %4243 = vst [vmem:[%s2 + $0x28] sm:$0x77] %v4227
  %4244 = vst [vmem:[%s2 + $0x30] sm:$0x77] %v4228
  %4245 = vst [vmem:[%s2 + $0x38] sm:$0x77] %v4229
  %v4246 = vtanh.pop %v1914
  %v4247 = vtanh.pop %v1916
  %v4248 = vtanh.pop %v1955
  %v4249 = vtanh.pop %v1957
  %v4250 = vtanh.pop %v1996
  %v4251 = vtanh.pop %v1998
  %v4252 = vtanh.pop %v2037
  %v4253 = vtanh.pop %v2039
  %v4254 = vtanh.pop %v2078
  %v4255 = vtanh.pop %v2080
  %v4256 = vtanh.pop %v2119
  %v4257 = vtanh.pop %v2121
  %v4258 = vtanh.pop %v2160
  %v4259 = vtanh.pop %v2162
  %v4260 = vtanh.pop %v2201
  %v4261 = vtanh.pop %v2203
  %v4278 = vcombine.low %v4246, %v4247
  %v4279 = vcombine.low %v4248, %v4249
  %v4280 = vcombine.low %v4250, %v4251
  %v4281 = vcombine.low %v4252, %v4253
  %v4282 = vcombine.low %v4254, %v4255
  %v4283 = vcombine.low %v4256, %v4257
  %v4284 = vcombine.low %v4258, %v4259
  %v4285 = vcombine.low %v4260, %v4261
  %s4294 = scalar_lea.vmem %s2, 64
  %4295 = vst [vmem:[%s4294] sm:$0x77] %v4278
  %4296 = vst [vmem:[%s4294 + $0x8] sm:$0x77] %v4279
  %4297 = vst [vmem:[%s4294 + $0x10] sm:$0x77] %v4280
  %4298 = vst [vmem:[%s4294 + $0x18] sm:$0x77] %v4281
  %4299 = vst [vmem:[%s4294 + $0x20] sm:$0x77] %v4282
  %4300 = vst [vmem:[%s4294 + $0x28] sm:$0x77] %v4283
  %4301 = vst [vmem:[%s4294 + $0x30] sm:$0x77] %v4284
  %4302 = vst [vmem:[%s4294 + $0x38] sm:$0x77] %v4285
  %v4303 = vtanh.pop %v2988
  %v4304 = vtanh.pop %v2990
  %v4305 = vtanh.pop %v3029
  %v4306 = vtanh.pop %v3031
  %v4307 = vtanh.pop %v3070
  %v4308 = vtanh.pop %v3072
  %v4309 = vtanh.pop %v3111
  %v4310 = vtanh.pop %v3113
  %v4311 = vtanh.pop %v3152
  %v4312 = vtanh.pop %v3154
  %v4313 = vtanh.pop %v3193
  %v4314 = vtanh.pop %v3195
  %v4315 = vtanh.pop %v3234
  %v4316 = vtanh.pop %v3236
  %v4317 = vtanh.pop %v3275
  %v4318 = vtanh.pop %v3277
  %v4335 = vcombine.low %v4303, %v4304
  %v4336 = vcombine.low %v4305, %v4306
  %v4337 = vcombine.low %v4307, %v4308
  %v4338 = vcombine.low %v4309, %v4310
  %v4339 = vcombine.low %v4311, %v4312
  %v4340 = vcombine.low %v4313, %v4314
  %v4341 = vcombine.low %v4315, %v4316
  %v4342 = vcombine.low %v4317, %v4318
  %s4351 = scalar_lea.vmem %s2, 128
  %4352 = vst [vmem:[%s4351] sm:$0x77] %v4335
  %4353 = vst [vmem:[%s4351 + $0x8] sm:$0x77] %v4336
  %4354 = vst [vmem:[%s4351 + $0x10] sm:$0x77] %v4337
  %4355 = vst [vmem:[%s4351 + $0x18] sm:$0x77] %v4338
  %4356 = vst [vmem:[%s4351 + $0x20] sm:$0x77] %v4339
  %4357 = vst [vmem:[%s4351 + $0x28] sm:$0x77] %v4340
  %4358 = vst [vmem:[%s4351 + $0x30] sm:$0x77] %v4341
  %4359 = vst [vmem:[%s4351 + $0x38] sm:$0x77] %v4342
  %v4360 = vtanh.pop %v3897
  %v4361 = vtanh.pop %v3899
  %v4362 = vtanh.pop %v3938
  %v4363 = vtanh.pop %v3940
  %v4364 = vtanh.pop %v3979
  %v4365 = vtanh.pop %v3981
  %v4366 = vtanh.pop %v4020
  %v4367 = vtanh.pop %v4022
  %v4368 = vtanh.pop %v4061
  %v4369 = vtanh.pop %v4063
  %v4370 = vtanh.pop %v4102
  %v4371 = vtanh.pop %v4104
  %v4372 = vtanh.pop %v4143
  %v4373 = vtanh.pop %v4145
  %v4374 = vtanh.pop %v4184
  %v4375 = vtanh.pop %v4186
  %v4392 = vcombine.low %v4360, %v4361
  %v4393 = vcombine.low %v4362, %v4363
  %v4394 = vcombine.low %v4364, %v4365
  %v4395 = vcombine.low %v4366, %v4367
  %v4396 = vcombine.low %v4368, %v4369
  %v4397 = vcombine.low %v4370, %v4371
  %v4398 = vcombine.low %v4372, %v4373
  %v4399 = vcombine.low %v4374, %v4375
  %s4408 = scalar_lea.vmem %s2, 192
  %4409 = vst [vmem:[%s4408] sm:$0x77] %v4392
  %4410 = vst [vmem:[%s4408 + $0x8] sm:$0x77] %v4393
  %4411 = vst [vmem:[%s4408 + $0x10] sm:$0x77] %v4394
  %4412 = vst [vmem:[%s4408 + $0x18] sm:$0x77] %v4395
  %4413 = vst [vmem:[%s4408 + $0x20] sm:$0x77] %v4396
  %4414 = vst [vmem:[%s4408 + $0x28] sm:$0x77] %v4397
  %4415 = vst [vmem:[%s4408 + $0x30] sm:$0x77] %v4398
  %4416 = vst [vmem:[%s4408 + $0x38] sm:$0x77] %v4399
  // Predicated region
  $region10: #{generator_forward.7} parent=0 // pred_check
    _
  $region11: #{generator_forward.7} parent=0 // pred_check_branch
    %4418 = sbr.rel (0) target = $region13
  $region12: #{generator_forward.7} parent=0 // pred_region
    _
  $region13: #{generator_forward.7} parent=0 // pred_fallthru
    _
  // Predicated region
  $region14: #{generator_forward.7} parent=0 // pred_check
    _
  $region15: #{generator_forward.7} parent=0 // pred_check_branch
    %4420 = sbr.rel (0) target = $region17
  $region16: #{generator_forward.7} parent=0 // pred_region
    _
  $region17: #{generator_forward.7} parent=0 // pred_fallthru
    _

</llo_original>
